<compile_context>
chip_gen: v6e
topology: v6e:2x2x1
jax: 0.10.0
libtpu: 0.0.40
codegen_flags: <defaults>
</compile_context>

<pallas_src>
import functools

import jax
import jax.numpy as jnp
from jax.experimental import pallas as pl
from jax.experimental.pallas import tpu as pltpu


# ----------------------------------------------------------------------------
# Fused Pallas kernel:
#   nearest upsample (x`scale`) -> pad1 -> conv3x3+bias+LeakyReLU
#                               -> pad1 -> conv3x3+bias+LeakyReLU
# ----------------------------------------------------------------------------
def _fused_upconv_kernel(x_ref, w1_ref, b1_ref, w2_ref, b2_ref, o_ref,
                         up_ref, y1_ref, *, H, W, Cin, Cout, scale, slope):
    # x_ref : (1, H//scale, W//scale, Cin)  bf16 input tile (pre-upsample)
    # w1_ref: (9*Cin, Cout)   bf16 im2col weights, row index = (dy*3+dx)*Cin + ci
    # b1_ref: (1, Cout)       f32
    # w2_ref: (9*Cout, Cout)  bf16
    # b2_ref: (1, Cout)       f32
    # o_ref : (1, H, W, Cout) output tile (f32)
    # up_ref: (H+2, W+2, Cin)  VMEM scratch: upsampled input + 1px zero border
    # y1_ref: (H+2, W+2, Cout) VMEM scratch: conv1 activation + 1px zero border

    # Zero the scratches (borders provide the conv padding); interiors are
    # rewritten below.  Cheap VMEM stores; done every step so the kernel is
    # correct regardless of how grid iterations are sharded across cores.
    up_ref[...] = jnp.zeros_like(up_ref)
    y1_ref[...] = jnp.zeros_like(y1_ref)

    # --- nearest-neighbour upsample (integer scale) into the padded scratch ---
    x = x_ref[0].astype(jnp.float32)                       # (hi, wi, Cin)
    if scale > 1:
        hi, wi = H // scale, W // scale
        # out[r, c] = in[r // scale, c // scale]  (PyTorch 'nearest')
        x = jnp.broadcast_to(x[:, None, :, :], (hi, scale, wi, Cin))
        x = x.reshape(H, wi, Cin)
        x = jnp.broadcast_to(x[:, :, None, :], (H, wi, scale, Cin))
        x = x.reshape(H, W, Cin)
    up_ref[1:H + 1, 1:W + 1, :] = x.astype(up_ref.dtype)

    # --- 3x3 conv as a single im2col matmul + bias + LeakyReLU (f32 accum) ---
    def conv3x3_lrelu(src_ref, w_flat, bias, cin):
        taps = [src_ref[dy:dy + H, dx:dx + W, :].reshape(H * W, cin)
                for dy in range(3) for dx in range(3)]
        patches = jnp.concatenate(taps, axis=-1)           # (H*W, 9*cin) bf16
        y = jnp.dot(patches, w_flat, preferred_element_type=jnp.float32)
        y = y + bias                                       # (H*W, Cout) f32
        return jnp.where(y > 0, y, slope * y)              # LeakyReLU(slope)

    y1 = conv3x3_lrelu(up_ref, w1_ref[...], b1_ref[0, :], Cin)
    y1_ref[1:H + 1, 1:W + 1, :] = y1.reshape(H, W, Cout).astype(y1_ref.dtype)

    y2 = conv3x3_lrelu(y1_ref, w2_ref[...], b2_ref[0, :], Cout)
    o_ref[0] = y2.reshape(H, W, Cout).astype(o_ref.dtype)


# ----------------------------------------------------------------------------
# Wrapper: PyTorch-style NCHW in / NCHW out
# ----------------------------------------------------------------------------
def _round_up(x, m):
    return ((x + m - 1) // m) * m


def conv_module_g_forward(x_nchw, params, out_size, first=False,
                          compute_dtype=jnp.bfloat16, lane=128):
    w1, b1, w2, b2 = params["w1"], params["b1"], params["w2"], params["b2"]
    Cin, Cout = w1.shape[2], w1.shape[3]

    x = jnp.transpose(x_nchw, (0, 2, 3, 1))                # -> NHWC
    N, H_in, W_in, _ = x.shape

    if first:
        scale, H, W = 1, H_in, W_in
    else:
        H = W = out_size
        if H_in == W_in and out_size % H_in == 0:
            scale = out_size // H_in                       # fused in-kernel path
        else:
            # General nearest ratio: gather in the wrapper (rare path); the two
            # convs are still fused.  floor(i*H_in/out) == PyTorch mode='nearest'.
            hi = (jnp.arange(out_size) * H_in) // out_size
            wi = (jnp.arange(out_size) * W_in) // out_size
            x = x[:, hi][:, :, wi]
            scale = 1

    # Pad channels up to the 128-lane width (no-op for real GAN widths) and cast
    # activations/weights to bf16; biases stay f32 (added after f32 accumulation).
    Cinp, Coutp = _round_up(Cin, lane), _round_up(Cout, lane)
    xk = jnp.pad(x, ((0, 0), (0, 0), (0, 0), (0, Cinp - Cin))).astype(compute_dtype)
    w1p = jnp.pad(w1, ((0, 0), (0, 0), (0, Cinp - Cin), (0, Coutp - Cout)))
    w2p = jnp.pad(w2, ((0, 0), (0, 0), (0, Coutp - Cout), (0, Coutp - Cout)))
    w1k = w1p.reshape(9 * Cinp, Coutp).astype(compute_dtype)
    w2k = w2p.reshape(9 * Coutp, Coutp).astype(compute_dtype)
    b1k = jnp.pad(b1, (0, Coutp - Cout)).reshape(1, Coutp).astype(jnp.float32)
    b2k = jnp.pad(b2, (0, Coutp - Cout)).reshape(1, Coutp).astype(jnp.float32)

    Hi, Wi = xk.shape[1], xk.shape[2]
    kern = functools.partial(_fused_upconv_kernel, H=H, W=W, Cin=Cinp,
                             Cout=Coutp, scale=scale, slope=0.2)

    out = pl.pallas_call(
        kern,
        out_shape=jax.ShapeDtypeStruct((N, H, W, Coutp), x_nchw.dtype),
        grid=(N,),
        in_specs=[
            pl.BlockSpec((1, Hi, Wi, Cinp), lambda n: (n, 0, 0, 0)),
            pl.BlockSpec((9 * Cinp, Coutp), lambda n: (0, 0)),
            pl.BlockSpec((1, Coutp), lambda n: (0, 0)),
            pl.BlockSpec((9 * Coutp, Coutp), lambda n: (0, 0)),
            pl.BlockSpec((1, Coutp), lambda n: (0, 0)),
        ],
        out_specs=pl.BlockSpec((1, H, W, Coutp), lambda n: (n, 0, 0, 0)),
        scratch_shapes=[
            pltpu.VMEM((H + 2, W + 2, Cinp), compute_dtype),   # upsampled+pad
            pltpu.VMEM((H + 2, W + 2, Coutp), compute_dtype),  # conv1 act + pad
        ],
        compiler_params=pltpu.CompilerParams(
            dimension_semantics=("parallel",),
            vmem_limit_bytes=48 * 1024 * 1024,
        ),
    )(xk, w1k, b1k, w2k, b2k)

    out = out[..., :Cout]                                  # drop channel padding
    return jnp.transpose(out, (0, 3, 1, 2))                # -> NCHW


# ----------------------------------------------------------------------------
# Params + pure-XLA reference (for a loose numerical sanity check)
# ----------------------------------------------------------------------------
def init_conv_module_g_params(key, inch, outch):
    k1, k2, k3, k4 = jax.random.split(key, 4)
    w1 = jax.random.normal(k1, (3, 3, inch, outch), jnp.float32) * (
        1.0 / jnp.sqrt(9.0 * inch))
    b1 = jax.random.normal(k2, (outch,), jnp.float32) * 0.01
    w2 = jax.random.normal(k3, (3, 3, outch, outch), jnp.float32) * (
        1.0 / jnp.sqrt(9.0 * outch))
    b2 = jax.random.normal(k4, (outch,), jnp.float32) * 0.01
    return {"w1": w1, "b1": b1, "w2": w2, "b2": b2}


def _reference_forward(x_nchw, params, out_size, first=False):
    x = jnp.transpose(x_nchw, (0, 2, 3, 1)).astype(jnp.float32)
    if not first:
        _, H, W, _ = x.shape
        hi = (jnp.arange(out_size) * H) // out_size
        wi = (jnp.arange(out_size) * W) // out_size
        x = x[:, hi][:, :, wi]

    def conv(x, w, b):
        y = jax.lax.conv_general_dilated(
            x, w, window_strides=(1, 1), padding="SAME",
            dimension_numbers=("NHWC", "HWIO", "NHWC"))
        y = y + b
        return jnp.where(y > 0, y, 0.2 * y)

    x = conv(x, params["w1"], params["b1"])
    x = conv(x, params["w2"], params["b2"])
    return jnp.transpose(x, (0, 3, 1, 2))


if __name__ == "__main__":
    # small shapes: batch=2, inch=4, outch=8, input spatial 8x8, out_size=16
    N, INCH, OUTCH = 2, 4, 8
    IN_SIZE, OUT_SIZE = 8, 16

    key = jax.random.PRNGKey(0)
    kx, kp = jax.random.split(key)
    x = jax.random.normal(kx, (N, INCH, IN_SIZE, IN_SIZE), jnp.float32)
    params = init_conv_module_g_params(kp, INCH, OUTCH)

    y = conv_module_g_forward(x, params, OUT_SIZE, first=False)
    y = jax.block_until_ready(y)
    assert y.shape == (N, OUTCH, OUT_SIZE, OUT_SIZE), y.shape

    # Loose sanity check vs. an XLA reference (kernel uses bf16 matmul inputs
    # with f32 accumulation, so allow bf16-level error).
    y_ref = jax.block_until_ready(_reference_forward(x, params, OUT_SIZE, first=False))
    max_err = float(jnp.max(jnp.abs(y - y_ref)))
    assert max_err < 0.25, f"max abs error vs reference: {max_err}"

    print("KERNEL_OK")
</pallas_src>

<mosaic_0001>
module attributes {stable_mosaic.version = 11 : i64} {
  func.func @_fused_upconv_kernel(%arg0: i32, %arg1: memref<1x8x8x128xbf16, #tpu.memory_space<vmem>>, %arg2: memref<1152x128xbf16, #tpu.memory_space<vmem>>, %arg3: memref<1x128xf32, #tpu.memory_space<vmem>>, %arg4: memref<1152x128xbf16, #tpu.memory_space<vmem>>, %arg5: memref<1x128xf32, #tpu.memory_space<vmem>>, %arg6: memref<1x16x16x128xf32, #tpu.memory_space<vmem>>, %arg7: memref<18x18x128xbf16, #tpu.memory_space<vmem>>, %arg8: memref<18x18x128xbf16, #tpu.memory_space<vmem>>) attributes {dimension_semantics = [#tpu.dimension_semantics<parallel>], iteration_bounds = array<i64: 2>, scalar_prefetch = 0 : i64, scratch_operands = 2 : i64, tpu.core_type = #tpu.core_type<tc>, window_params = [{transform_indices = @transform_0, window_bounds = array<i64: 1, 8, 8, 128>}, {pipeline_mode = #tpu.pipeline_mode<synchronous>, transform_indices = @transform_1, window_bounds = array<i64: 1152, 128>}, {pipeline_mode = #tpu.pipeline_mode<synchronous>, transform_indices = @transform_2, window_bounds = array<i64: 1, 128>}, {pipeline_mode = #tpu.pipeline_mode<synchronous>, transform_indices = @transform_3, window_bounds = array<i64: 1152, 128>}, {pipeline_mode = #tpu.pipeline_mode<synchronous>, transform_indices = @transform_4, window_bounds = array<i64: 1, 128>}, {transform_indices = @transform_5, window_bounds = array<i64: 1, 16, 16, 128>}]} {
    %cst = arith.constant 0.000000e+00 : bf16
    %0 = vector.broadcast %cst : bf16 to vector<18x18x128xbf16>
    %c0 = arith.constant 0 : index
    %c0_0 = arith.constant 0 : index
    %c0_1 = arith.constant 0 : index
    %1 = vector.load %arg7[%c0, %c0_0, %c0_1] : memref<18x18x128xbf16, #tpu.memory_space<vmem>>, vector<18x18x128xbf16>
    tpu.vector_store %arg7[%c0, %c0_0, %c0_1], %0 {strides = array<i32>} : memref<18x18x128xbf16, #tpu.memory_space<vmem>>, vector<18x18x128xbf16>,
    %cst_2 = arith.constant 0.000000e+00 : bf16
    %2 = vector.broadcast %cst_2 : bf16 to vector<18x18x128xbf16>
    %c0_3 = arith.constant 0 : index
    %c0_4 = arith.constant 0 : index
    %c0_5 = arith.constant 0 : index
    %3 = vector.load %arg8[%c0_3, %c0_4, %c0_5] : memref<18x18x128xbf16, #tpu.memory_space<vmem>>, vector<18x18x128xbf16>
    tpu.vector_store %arg8[%c0_3, %c0_4, %c0_5], %2 {strides = array<i32>} : memref<18x18x128xbf16, #tpu.memory_space<vmem>>, vector<18x18x128xbf16>,
    %c0_6 = arith.constant 0 : index
    %c0_7 = arith.constant 0 : index
    %c0_8 = arith.constant 0 : index
    %c0_9 = arith.constant 0 : index
    %4 = vector.load %arg1[%c0_6, %c0_7, %c0_8, %c0_9] : memref<1x8x8x128xbf16, #tpu.memory_space<vmem>>, vector<1x8x8x128xbf16>
    %5 = vector.shape_cast %4 : vector<1x8x8x128xbf16> to vector<8x8x128xbf16>
    %6 = arith.extf %5 : vector<8x8x128xbf16> to vector<8x8x128xf32>
    %7 = vector.shape_cast %6 : vector<8x8x128xf32> to vector<8x1x8x128xf32>
    %8 = vector.shape_cast %7 : vector<8x1x8x128xf32> to vector<8x1x8x128xf32>
    %9 = vector.broadcast %8 : vector<8x1x8x128xf32> to vector<8x2x8x128xf32>
    %10 = vector.shape_cast %9 : vector<8x2x8x128xf32> to vector<16x8x128xf32>
    %11 = vector.shape_cast %10 : vector<16x8x128xf32> to vector<16x8x1x128xf32>
    %12 = vector.shape_cast %11 : vector<16x8x1x128xf32> to vector<16x8x1x128xf32>
    %13 = vector.broadcast %12 : vector<16x8x1x128xf32> to vector<16x8x2x128xf32>
    %14 = vector.shape_cast %13 : vector<16x8x2x128xf32> to vector<16x16x128xf32>
    %15 = arith.truncf %14 : vector<16x16x128xf32> to vector<16x16x128xbf16>
    %c1 = arith.constant 1 : index
    %c1_10 = arith.constant 1 : index
    %c0_11 = arith.constant 0 : index
    %16 = vector.load %arg7[%c1, %c1_10, %c0_11] : memref<18x18x128xbf16, #tpu.memory_space<vmem>>, vector<16x16x128xbf16>
    tpu.vector_store %arg7[%c1, %c1_10, %c0_11], %15 {strides = array<i32>} : memref<18x18x128xbf16, #tpu.memory_space<vmem>>, vector<16x16x128xbf16>,
    %c0_12 = arith.constant 0 : index
    %c0_13 = arith.constant 0 : index
    %17 = vector.load %arg2[%c0_12, %c0_13] : memref<1152x128xbf16, #tpu.memory_space<vmem>>, vector<1152x128xbf16>
    %c0_14 = arith.constant 0 : index
    %c0_15 = arith.constant 0 : index
    %18 = vector.load %arg3[%c0_14, %c0_15] : memref<1x128xf32, #tpu.memory_space<vmem>>, vector<1x128xf32>
    %19 = vector.shape_cast %18 : vector<1x128xf32> to vector<128xf32>
    %c0_16 = arith.constant 0 : index
    %c0_17 = arith.constant 0 : index
    %c0_18 = arith.constant 0 : index
    %20 = vector.load %arg7[%c0_16, %c0_17, %c0_18] : memref<18x18x128xbf16, #tpu.memory_space<vmem>>, vector<16x16x128xbf16>
    %21 = vector.shape_cast %20 : vector<16x16x128xbf16> to vector<256x128xbf16>
    %c0_19 = arith.constant 0 : index
    %c1_20 = arith.constant 1 : index
    %c0_21 = arith.constant 0 : index
    %22 = vector.load %arg7[%c0_19, %c1_20, %c0_21] : memref<18x18x128xbf16, #tpu.memory_space<vmem>>, vector<16x16x128xbf16>
    %23 = vector.shape_cast %22 : vector<16x16x128xbf16> to vector<256x128xbf16>
    %c0_22 = arith.constant 0 : index
    %c2 = arith.constant 2 : index
    %c0_23 = arith.constant 0 : index
    %24 = vector.load %arg7[%c0_22, %c2, %c0_23] : memref<18x18x128xbf16, #tpu.memory_space<vmem>>, vector<16x16x128xbf16>
    %25 = vector.shape_cast %24 : vector<16x16x128xbf16> to vector<256x128xbf16>
    %c1_24 = arith.constant 1 : index
    %c0_25 = arith.constant 0 : index
    %c0_26 = arith.constant 0 : index
    %26 = vector.load %arg7[%c1_24, %c0_25, %c0_26] : memref<18x18x128xbf16, #tpu.memory_space<vmem>>, vector<16x16x128xbf16>
    %27 = vector.shape_cast %26 : vector<16x16x128xbf16> to vector<256x128xbf16>
    %c1_27 = arith.constant 1 : index
    %c1_28 = arith.constant 1 : index
    %c0_29 = arith.constant 0 : index
    %28 = vector.load %arg7[%c1_27, %c1_28, %c0_29] : memref<18x18x128xbf16, #tpu.memory_space<vmem>>, vector<16x16x128xbf16>
    %29 = vector.shape_cast %28 : vector<16x16x128xbf16> to vector<256x128xbf16>
    %c1_30 = arith.constant 1 : index
    %c2_31 = arith.constant 2 : index
    %c0_32 = arith.constant 0 : index
    %30 = vector.load %arg7[%c1_30, %c2_31, %c0_32] : memref<18x18x128xbf16, #tpu.memory_space<vmem>>, vector<16x16x128xbf16>
    %31 = vector.shape_cast %30 : vector<16x16x128xbf16> to vector<256x128xbf16>
    %c2_33 = arith.constant 2 : index
    %c0_34 = arith.constant 0 : index
    %c0_35 = arith.constant 0 : index
    %32 = vector.load %arg7[%c2_33, %c0_34, %c0_35] : memref<18x18x128xbf16, #tpu.memory_space<vmem>>, vector<16x16x128xbf16>
    %33 = vector.shape_cast %32 : vector<16x16x128xbf16> to vector<256x128xbf16>
    %c2_36 = arith.constant 2 : index
    %c1_37 = arith.constant 1 : index
    %c0_38 = arith.constant 0 : index
    %34 = vector.load %arg7[%c2_36, %c1_37, %c0_38] : memref<18x18x128xbf16, #tpu.memory_space<vmem>>, vector<16x16x128xbf16>
    %35 = vector.shape_cast %34 : vector<16x16x128xbf16> to vector<256x128xbf16>
    %c2_39 = arith.constant 2 : index
    %c2_40 = arith.constant 2 : index
    %c0_41 = arith.constant 0 : index
    %36 = vector.load %arg7[%c2_39, %c2_40, %c0_41] : memref<18x18x128xbf16, #tpu.memory_space<vmem>>, vector<16x16x128xbf16>
    %37 = vector.shape_cast %36 : vector<16x16x128xbf16> to vector<256x128xbf16>
    %38 = tpu.concatenate %21, %23, %25, %27, %29, %31, %33, %35, %37 in 1 : vector<256x128xbf16>, vector<256x128xbf16>, vector<256x128xbf16>, vector<256x128xbf16>, vector<256x128xbf16>, vector<256x128xbf16>, vector<256x128xbf16>, vector<256x128xbf16>, vector<256x128xbf16> -> vector<256x1152xbf16>
    %cst_42 = arith.constant dense<0.000000e+00> : vector<256x128xf32>
    %39 = tpu.matmul %38, %17, %cst_42 {dimension_numbers = #tpu.dot_dimension_numbers<[1], [0], [0], [1], [0, 0, 1, 1], [], []>} : vector<256x1152xbf16>, vector<1152x128xbf16>, vector<256x128xf32> -> vector<256x128xf32>
    %40 = vector.shape_cast %19 : vector<128xf32> to vector<1x128xf32>
    %41 = vector.broadcast %40 : vector<1x128xf32> to vector<256x128xf32>
    %42 = arith.addf %39, %41 : vector<256x128xf32>
    %cst_43 = arith.constant 0.000000e+00 : f32
    %43 = vector.broadcast %cst_43 : f32 to vector<256x128xf32>
    %44 = arith.cmpf ogt, %42, %43 : vector<256x128xf32>
    %cst_44 = arith.constant 2.000000e-01 : f32
    %45 = vector.broadcast %cst_44 : f32 to vector<256x128xf32>
    %46 = arith.mulf %45, %42 : vector<256x128xf32>
    %47 = arith.select %44, %42, %46 : vector<256x128xi1>, vector<256x128xf32>
    %48 = vector.shape_cast %47 : vector<256x128xf32> to vector<16x16x128xf32>
    %49 = arith.truncf %48 : vector<16x16x128xf32> to vector<16x16x128xbf16>
    %c1_45 = arith.constant 1 : index
    %c1_46 = arith.constant 1 : index
    %c0_47 = arith.constant 0 : index
    %50 = vector.load %arg8[%c1_45, %c1_46, %c0_47] : memref<18x18x128xbf16, #tpu.memory_space<vmem>>, vector<16x16x128xbf16>
    tpu.vector_store %arg8[%c1_45, %c1_46, %c0_47], %49 {strides = array<i32>} : memref<18x18x128xbf16, #tpu.memory_space<vmem>>, vector<16x16x128xbf16>,
    %c0_48 = arith.constant 0 : index
    %c0_49 = arith.constant 0 : index
    %51 = vector.load %arg4[%c0_48, %c0_49] : memref<1152x128xbf16, #tpu.memory_space<vmem>>, vector<1152x128xbf16>
    %c0_50 = arith.constant 0 : index
    %c0_51 = arith.constant 0 : index
    %52 = vector.load %arg5[%c0_50, %c0_51] : memref<1x128xf32, #tpu.memory_space<vmem>>, vector<1x128xf32>
    %53 = vector.shape_cast %52 : vector<1x128xf32> to vector<128xf32>
    %c0_52 = arith.constant 0 : index
    %c0_53 = arith.constant 0 : index
    %c0_54 = arith.constant 0 : index
    %54 = vector.load %arg8[%c0_52, %c0_53, %c0_54] : memref<18x18x128xbf16, #tpu.memory_space<vmem>>, vector<16x16x128xbf16>
    %55 = vector.shape_cast %54 : vector<16x16x128xbf16> to vector<256x128xbf16>
    %c0_55 = arith.constant 0 : index
    %c1_56 = arith.constant 1 : index
    %c0_57 = arith.constant 0 : index
    %56 = vector.load %arg8[%c0_55, %c1_56, %c0_57] : memref<18x18x128xbf16, #tpu.memory_space<vmem>>, vector<16x16x128xbf16>
    %57 = vector.shape_cast %56 : vector<16x16x128xbf16> to vector<256x128xbf16>
    %c0_58 = arith.constant 0 : index
    %c2_59 = arith.constant 2 : index
    %c0_60 = arith.constant 0 : index
    %58 = vector.load %arg8[%c0_58, %c2_59, %c0_60] : memref<18x18x128xbf16, #tpu.memory_space<vmem>>, vector<16x16x128xbf16>
    %59 = vector.shape_cast %58 : vector<16x16x128xbf16> to vector<256x128xbf16>
    %c1_61 = arith.constant 1 : index
    %c0_62 = arith.constant 0 : index
    %c0_63 = arith.constant 0 : index
    %60 = vector.load %arg8[%c1_61, %c0_62, %c0_63] : memref<18x18x128xbf16, #tpu.memory_space<vmem>>, vector<16x16x128xbf16>
    %61 = vector.shape_cast %60 : vector<16x16x128xbf16> to vector<256x128xbf16>
    %c1_64 = arith.constant 1 : index
    %c1_65 = arith.constant 1 : index
    %c0_66 = arith.constant 0 : index
    %62 = vector.load %arg8[%c1_64, %c1_65, %c0_66] : memref<18x18x128xbf16, #tpu.memory_space<vmem>>, vector<16x16x128xbf16>
    %63 = vector.shape_cast %62 : vector<16x16x128xbf16> to vector<256x128xbf16>
    %c1_67 = arith.constant 1 : index
    %c2_68 = arith.constant 2 : index
    %c0_69 = arith.constant 0 : index
    %64 = vector.load %arg8[%c1_67, %c2_68, %c0_69] : memref<18x18x128xbf16, #tpu.memory_space<vmem>>, vector<16x16x128xbf16>
    %65 = vector.shape_cast %64 : vector<16x16x128xbf16> to vector<256x128xbf16>
    %c2_70 = arith.constant 2 : index
    %c0_71 = arith.constant 0 : index
    %c0_72 = arith.constant 0 : index
    %66 = vector.load %arg8[%c2_70, %c0_71, %c0_72] : memref<18x18x128xbf16, #tpu.memory_space<vmem>>, vector<16x16x128xbf16>
    %67 = vector.shape_cast %66 : vector<16x16x128xbf16> to vector<256x128xbf16>
    %c2_73 = arith.constant 2 : index
    %c1_74 = arith.constant 1 : index
    %c0_75 = arith.constant 0 : index
    %68 = vector.load %arg8[%c2_73, %c1_74, %c0_75] : memref<18x18x128xbf16, #tpu.memory_space<vmem>>, vector<16x16x128xbf16>
    %69 = vector.shape_cast %68 : vector<16x16x128xbf16> to vector<256x128xbf16>
    %c2_76 = arith.constant 2 : index
    %c2_77 = arith.constant 2 : index
    %c0_78 = arith.constant 0 : index
    %70 = vector.load %arg8[%c2_76, %c2_77, %c0_78] : memref<18x18x128xbf16, #tpu.memory_space<vmem>>, vector<16x16x128xbf16>
    %71 = vector.shape_cast %70 : vector<16x16x128xbf16> to vector<256x128xbf16>
    %72 = tpu.concatenate %55, %57, %59, %61, %63, %65, %67, %69, %71 in 1 : vector<256x128xbf16>, vector<256x128xbf16>, vector<256x128xbf16>, vector<256x128xbf16>, vector<256x128xbf16>, vector<256x128xbf16>, vector<256x128xbf16>, vector<256x128xbf16>, vector<256x128xbf16> -> vector<256x1152xbf16>
    %cst_79 = arith.constant dense<0.000000e+00> : vector<256x128xf32>
    %73 = tpu.matmul %72, %51, %cst_79 {dimension_numbers = #tpu.dot_dimension_numbers<[1], [0], [0], [1], [0, 0, 1, 1], [], []>} : vector<256x1152xbf16>, vector<1152x128xbf16>, vector<256x128xf32> -> vector<256x128xf32>
    %74 = vector.shape_cast %53 : vector<128xf32> to vector<1x128xf32>
    %75 = vector.broadcast %74 : vector<1x128xf32> to vector<256x128xf32>
    %76 = arith.addf %73, %75 : vector<256x128xf32>
    %cst_80 = arith.constant 0.000000e+00 : f32
    %77 = vector.broadcast %cst_80 : f32 to vector<256x128xf32>
    %78 = arith.cmpf ogt, %76, %77 : vector<256x128xf32>
    %cst_81 = arith.constant 2.000000e-01 : f32
    %79 = vector.broadcast %cst_81 : f32 to vector<256x128xf32>
    %80 = arith.mulf %79, %76 : vector<256x128xf32>
    %81 = arith.select %78, %76, %80 : vector<256x128xi1>, vector<256x128xf32>
    %82 = vector.shape_cast %81 : vector<256x128xf32> to vector<16x16x128xf32>
    %c0_82 = arith.constant 0 : index
    %c0_83 = arith.constant 0 : index
    %c0_84 = arith.constant 0 : index
    %c0_85 = arith.constant 0 : index
    %83 = vector.load %arg6[%c0_82, %c0_83, %c0_84, %c0_85] : memref<1x16x16x128xf32, #tpu.memory_space<vmem>>, vector<1x16x16x128xf32>
    %84 = vector.shape_cast %83 : vector<1x16x16x128xf32> to vector<16x16x128xf32>
    %85 = vector.shape_cast %82 : vector<16x16x128xf32> to vector<1x16x16x128xf32>
    tpu.vector_store %arg6[%c0_82, %c0_83, %c0_84, %c0_85], %85 {strides = array<i32>} : memref<1x16x16x128xf32, #tpu.memory_space<vmem>>, vector<1x16x16x128xf32>,
    return
  }
  func.func @transform_0(%arg0: i32) -> (i32, i32, i32, i32) {
    %c0_i32 = arith.constant 0 : i32
    %c0_i32_0 = arith.constant 0 : i32
    %c0_i32_1 = arith.constant 0 : i32
    %c0_i32_2 = arith.constant 0 : i32
    return %arg0, %c0_i32, %c0_i32_0, %c0_i32_1 : i32, i32, i32, i32
  }
  func.func @transform_1(%arg0: i32) -> (i32, i32) {
    %c0_i32 = arith.constant 0 : i32
    %c0_i32_0 = arith.constant 0 : i32
    %c0_i32_1 = arith.constant 0 : i32
    return %c0_i32, %c0_i32_0 : i32, i32
  }
  func.func @transform_2(%arg0: i32) -> (i32, i32) {
    %c0_i32 = arith.constant 0 : i32
    %c0_i32_0 = arith.constant 0 : i32
    %c0_i32_1 = arith.constant 0 : i32
    return %c0_i32, %c0_i32_0 : i32, i32
  }
  func.func @transform_3(%arg0: i32) -> (i32, i32) {
    %c0_i32 = arith.constant 0 : i32
    %c0_i32_0 = arith.constant 0 : i32
    %c0_i32_1 = arith.constant 0 : i32
    return %c0_i32, %c0_i32_0 : i32, i32
  }
  func.func @transform_4(%arg0: i32) -> (i32, i32) {
    %c0_i32 = arith.constant 0 : i32
    %c0_i32_0 = arith.constant 0 : i32
    %c0_i32_1 = arith.constant 0 : i32
    return %c0_i32, %c0_i32_0 : i32, i32
  }
  func.func @transform_5(%arg0: i32) -> (i32, i32, i32, i32) {
    %c0_i32 = arith.constant 0 : i32
    %c0_i32_0 = arith.constant 0 : i32
    %c0_i32_1 = arith.constant 0 : i32
    %c0_i32_2 = arith.constant 0 : i32
    return %arg0, %c0_i32, %c0_i32_0, %c0_i32_1 : i32, i32, i32, i32
  }
}

</mosaic_0001>

<llo_original>
// kernel: tpu_custom_call.1
$region0: #{tpu_custom_call.1}
  #allocation0 [shape = 'u32[]', space=smem, size = 0x4, offset = 0x4, fixed_abs, tag = 'smem constant byte address 0x4 - core index']
  #allocation1 [shape = 'u32[144,128]{1,0:T(1,128)}', space=vmem, size = 0x12000, scoped, tag = 'internal scratch']
  #allocation2 [shape = 'bf16[18,18,128]{2,1,0:T(8,128)(2,1)}', space=vmem, size = 0x1b000, scoped, tag = 'scratch operand']
  #allocation3 [shape = 'bf16[18,18,128]{2,1,0:T(8,128)(2,1)}', space=vmem, size = 0x1b000, scoped, tag = 'scratch operand']
  %s0 = inlined_call_operand.hbm [shape: bf16[2,8,8,128], index: 0, kind: input, shape index: {}]
  %s1 = inlined_call_operand.hbm [shape: bf16[1152,128], index: 1, kind: input, shape index: {}]
  %s2 = inlined_call_operand.vmem [shape: f32[1,128], index: 2, kind: input, shape index: {}]
  %s3 = inlined_call_operand.hbm [shape: bf16[1152,128], index: 3, kind: input, shape index: {}]
  %s4 = inlined_call_operand.vmem [shape: f32[1,128], index: 4, kind: input, shape index: {}]
  %s5 = inlined_call_operand.hbm [shape: f32[2,16,16,128], index: 5, kind: output, shape index: {}]
  %s6 = sld [smem:[#allocation0]]
  $region65: #{tpu_custom_call.1} parent=0
    _
  %s8 = ssub.s32 1, %s6
  %s9 = scalar_select 0, %s8, %s6
  $region1: #{tpu_custom_call.1} parent=0
    #allocation4 [shape = 'u8[32768]{0}', space=vmem, size = 0x8000, scoped, tag = 'input window, operand 0']
    #allocation5 [shape = 's32[2]{0}', space=sflag, size = 0x8, scoped, tag = 'scoped memory for tpu_custom_call.1']
    #allocation6 [shape = 's32[2]{0}', space=sflag, size = 0x8, scoped, tag = 'scoped memory for tpu_custom_call.1']
    #allocation7 [shape = 'u8[294912]{0}', space=vmem, size = 0x48000, scoped, tag = 'input window, operand 1, single buffered']
    #allocation8 [shape = 's32[1]{0}', space=sflag, size = 0x4, scoped, tag = 'scoped memory for tpu_custom_call.1']
    #allocation9 [shape = 'u8[294912]{0}', space=vmem, size = 0x48000, scoped, tag = 'input window, operand 3, single buffered']
    #allocation10 [shape = 'u8[262144]{0}', space=vmem, size = 0x40000, scoped, tag = 'output window, operand 0']
    %10 = vsyncpa [#allocation5], 0
    %s11 = scalar_lea.sflag [#allocation5], 1
    %12 = vsyncpa %s11, 0
    %13 = vsyncpa [#allocation8], 0
    %14 = vsyncpa [#allocation6], 0
    %s15 = scalar_lea.sflag [#allocation6], 1
    %16 = vsyncpa %s15, 0
    loop: start=0, step=1, limit=4
    $region2: #{tpu_custom_call.1} parent=1 // loop_pre_header
      _
    $region3: #{tpu_custom_call.1} parent=1 // loop_header
      %s18 = sphi 0, %s22
      %p19 = scmp.ge.s32.totalorder %s18, 4
      %s28 = sphi 0, %s30
      %s31 = sphi 0, %s28
      %s32 = sphi 0, %s31
      %s48 = sphi 0, %s32
      %s52 = sphi 0, %s52
      %s54 = sphi 0, %s52
      %s55 = sphi 0, %s54
      %s69 = sphi 0, %s55
      %s73 = sphi 0, %s73
      %s75 = sphi 0, %s73
      %s76 = sphi 0, %s75
      %s90 = sphi 0, %s76
      %s94 = sphi 0, %s94
      %s96 = sphi 0, %s94
      %s97 = sphi 0, %s96
      %s111 = sphi 0, %s97
      %s115 = sphi 0, %s115
      %s117 = sphi 0, %s115
      %s118 = sphi 0, %s117
      %s132 = sphi 0, %s118
      %s138 = sphi 0, %s140
      %s141 = sphi 0, %s138
      %s142 = sphi 0, %s141
      %s158 = sphi 0, %s142
    $region4: #{tpu_custom_call.1} parent=1 // loop_header_branch
      %21 = sbr.rel (%p19) target = $region8
    $region5: #{tpu_custom_call.1} parent=1 // loop_body
      %s23 = ssub.s32 %s18, 1
      %s24 = ssub.s32 %s18, 2
      %s25 = sadd.s32 %s18, 1
      %s26 = ssub.s32 %s18, %s25
      %p27 = scmp.eq.s32.totalorder %s26, 0
      %s29 = sadd.s32 %s28, 1
      %s30 = scalar_select %p27, %s28, %s29
      %p33 = pneg %p27
      %p34 = scmp.eq.s32.totalorder %s18, 1
      %p35 = por %p33, %p34
      %p36 = scmp.ne.s32.totalorder %s28, %s31
      %p37 = scmp.eq.s32.totalorder %s18, 0
      %p38 = por %p36, %p37
      %p39 = scmp.ne.s32.totalorder %s28, %s31
      %p40 = scmp.eq.s32.totalorder %s23, 1
      %p41 = por %p39, %p40
      %p42 = scmp.ne.s32.totalorder %s31, %s32
      %p43 = scmp.eq.s32.totalorder %s23, 0
      %p44 = por %p42, %p43
      %p45 = scmp.ne.s32.totalorder %s31, %s32
      %p46 = scmp.eq.s32.totalorder %s24, 1
      %p47 = por %p45, %p46
      %p49 = scmp.ne.s32.totalorder %s32, %s48
      %p50 = scmp.eq.s32.totalorder %s24, 0
      %p51 = por %p49, %p50
      %s53 = sadd.s32 %s52, 1
      %p56 = scmp.eq.s32.totalorder %s18, 1
      %p57 = scmp.ne.s32.totalorder %s52, %s54
      %p58 = scmp.eq.s32.totalorder %s18, 0
      %p59 = por %p57, %p58
      %p60 = scmp.ne.s32.totalorder %s52, %s54
      %p61 = scmp.eq.s32.totalorder %s23, 1
      %p62 = por %p60, %p61
      %p63 = scmp.ne.s32.totalorder %s54, %s55
      %p64 = scmp.eq.s32.totalorder %s23, 0
      %p65 = por %p63, %p64
      %p66 = scmp.ne.s32.totalorder %s54, %s55
      %p67 = scmp.eq.s32.totalorder %s24, 1
      %p68 = por %p66, %p67
      %p70 = scmp.ne.s32.totalorder %s55, %s69
      %p71 = scmp.eq.s32.totalorder %s24, 0
      %p72 = por %p70, %p71
      %s74 = sadd.s32 %s73, 1
      %p77 = scmp.eq.s32.totalorder %s18, 1
      %p78 = scmp.ne.s32.totalorder %s73, %s75
      %p79 = scmp.eq.s32.totalorder %s18, 0
      %p80 = por %p78, %p79
      %p81 = scmp.ne.s32.totalorder %s73, %s75
      %p82 = scmp.eq.s32.totalorder %s23, 1
      %p83 = por %p81, %p82
      %p84 = scmp.ne.s32.totalorder %s75, %s76
      %p85 = scmp.eq.s32.totalorder %s23, 0
      %p86 = por %p84, %p85
      %p87 = scmp.ne.s32.totalorder %s75, %s76
      %p88 = scmp.eq.s32.totalorder %s24, 1
      %p89 = por %p87, %p88
      %p91 = scmp.ne.s32.totalorder %s76, %s90
      %p92 = scmp.eq.s32.totalorder %s24, 0
      %p93 = por %p91, %p92
      %s95 = sadd.s32 %s94, 1
      %p98 = scmp.eq.s32.totalorder %s18, 1
      %p99 = scmp.ne.s32.totalorder %s94, %s96
      %p100 = scmp.eq.s32.totalorder %s18, 0
      %p101 = por %p99, %p100
      %p102 = scmp.ne.s32.totalorder %s94, %s96
      %p103 = scmp.eq.s32.totalorder %s23, 1
      %p104 = por %p102, %p103
      %p105 = scmp.ne.s32.totalorder %s96, %s97
      %p106 = scmp.eq.s32.totalorder %s23, 0
      %p107 = por %p105, %p106
      %p108 = scmp.ne.s32.totalorder %s96, %s97
      %p109 = scmp.eq.s32.totalorder %s24, 1
      %p110 = por %p108, %p109
      %p112 = scmp.ne.s32.totalorder %s97, %s111
      %p113 = scmp.eq.s32.totalorder %s24, 0
      %p114 = por %p112, %p113
      %s116 = sadd.s32 %s115, 1
      %p119 = scmp.eq.s32.totalorder %s18, 1
      %p120 = scmp.ne.s32.totalorder %s115, %s117
      %p121 = scmp.eq.s32.totalorder %s18, 0
      %p122 = por %p120, %p121
      %p123 = scmp.ne.s32.totalorder %s115, %s117
      %p124 = scmp.eq.s32.totalorder %s23, 1
      %p125 = por %p123, %p124
      %p126 = scmp.ne.s32.totalorder %s117, %s118
      %p127 = scmp.eq.s32.totalorder %s23, 0
      %p128 = por %p126, %p127
      %p129 = scmp.ne.s32.totalorder %s117, %s118
      %p130 = scmp.eq.s32.totalorder %s24, 1
      %p131 = por %p129, %p130
      %p133 = scmp.ne.s32.totalorder %s118, %s132
      %p134 = scmp.eq.s32.totalorder %s24, 0
      %p135 = por %p133, %p134
      %s136 = ssub.s32 %s18, %s25
      %p137 = scmp.eq.s32.totalorder %s136, 0
      %s139 = sadd.s32 %s138, 1
      %s140 = scalar_select %p137, %s138, %s139
      %p143 = pneg %p137
      %p144 = scmp.eq.s32.totalorder %s18, 1
      %p145 = por %p143, %p144
      %p146 = scmp.ne.s32.totalorder %s138, %s141
      %p147 = scmp.eq.s32.totalorder %s18, 0
      %p148 = por %p146, %p147
      %p149 = scmp.ne.s32.totalorder %s138, %s141
      %p150 = scmp.eq.s32.totalorder %s23, 1
      %p151 = por %p149, %p150
      %p152 = scmp.ne.s32.totalorder %s141, %s142
      %p153 = scmp.eq.s32.totalorder %s23, 0
      %p154 = por %p152, %p153
      %p155 = scmp.ne.s32.totalorder %s141, %s142
      %p156 = scmp.eq.s32.totalorder %s24, 1
      %p157 = por %p155, %p156
      %p159 = scmp.ne.s32.totalorder %s142, %s158
      %p160 = scmp.eq.s32.totalorder %s24, 0
      %p161 = por %p159, %p160
      %p162 = scmp.le.s32.totalorder 1, %s18
      %p163 = scmp.lt.s32.totalorder %s18, 3
      %p164 = pnand %p162, %p163
      %p165 = pneg %p164
      // Predicated region
      $region9: #{tpu_custom_call.1} parent=5 // pred_check
        _
      $region10: #{tpu_custom_call.1} parent=5 // pred_check_branch
        %167 = sbr.rel (%p164) target = $region12
      $region11: #{tpu_custom_call.1} parent=5 // pred_region
        %s168 = ssub.s32 %s18, 1
        // Predicated region
        $region13: #{tpu_custom_call.1} parent=11 // pred_check
          %p169 = pneg %p65
        $region14: #{tpu_custom_call.1} parent=11 // pred_check_branch
          %171 = sbr.rel (%p169) target = $region16
        $region15: #{tpu_custom_call.1} parent=11 // pred_region
          %s173 = ssub.s32 9216, 9216
          %174 = vsyncadd [#allocation8], %s173
          %s175 = sshll.u32 [#allocation7], 4
          %s176 = int_to_ptr.vmem [resolvable:$true] %s175
          %181 = dma.hbm_to_vmem [thread:$0]  %s1, 9216, %s176, [#allocation8], 64, 64, 4
        $region16: #{tpu_custom_call.1} parent=11 // pred_fallthru
          _
        // Predicated region
        $region17: #{tpu_custom_call.1} parent=11 // pred_check
          %p182 = pneg %p86
        $region18: #{tpu_custom_call.1} parent=11 // pred_check_branch
          %184 = sbr.rel (%p182) target = $region20
        $region19: #{tpu_custom_call.1} parent=11 // pred_region
          _
        $region20: #{tpu_custom_call.1} parent=11 // pred_fallthru
          _
        // Predicated region
        $region21: #{tpu_custom_call.1} parent=11 // pred_check
          %p185 = pneg %p107
        $region22: #{tpu_custom_call.1} parent=11 // pred_check_branch
          %187 = sbr.rel (%p185) target = $region24
        $region23: #{tpu_custom_call.1} parent=11 // pred_region
          %s189 = ssub.s32 9216, 9216
          %190 = vsyncadd [#allocation8], %s189
          %s191 = sshll.u32 [#allocation9], 4
          %s192 = int_to_ptr.vmem [resolvable:$true] %s191
          %197 = dma.hbm_to_vmem [thread:$0]  %s3, 9216, %s192, [#allocation8], 64, 64, 4
        $region24: #{tpu_custom_call.1} parent=11 // pred_fallthru
          _
        // Predicated region
        $region25: #{tpu_custom_call.1} parent=11 // pred_check
          %p198 = pneg %p128
        $region26: #{tpu_custom_call.1} parent=11 // pred_check_branch
          %200 = sbr.rel (%p198) target = $region28
        $region27: #{tpu_custom_call.1} parent=11 // pred_region
          _
        $region28: #{tpu_custom_call.1} parent=11 // pred_fallthru
          _
      $region12: #{tpu_custom_call.1} parent=5 // pred_fallthru
        _
      %p201 = scmp.lt.s32.totalorder %s18, 2
      // Predicated region
      $region29: #{tpu_custom_call.1} parent=5 // pred_check
        %p202 = pneg %p201
      $region30: #{tpu_custom_call.1} parent=5 // pred_check_branch
        %204 = sbr.rel (%p202) target = $region32
      $region31: #{tpu_custom_call.1} parent=5 // pred_region
        // Predicated region
        $region33: #{tpu_custom_call.1} parent=31 // pred_check
          %p205 = pneg %p38
        $region34: #{tpu_custom_call.1} parent=31 // pred_check_branch
          %207 = sbr.rel (%p205) target = $region36
        $region35: #{tpu_custom_call.1} parent=31 // pred_region
          %s208 = sand.u32 %s28, 1
          %s209 = scalar_lea.sflag [#allocation5], %s208
          %s210 = sand.u32 %s28, 1
          %s211 = smul.addr %s210, 32
          %s212 = scalar_lea.vmem [#allocation4], %s211
          %s214 = ssub.s32 512, 512
          %215 = vsyncadd %s209, %s214
          %s216 = smul.addr %s18, 8
          %s217 = smul.addr %s216, 64
          %s218 = scalar_lea.hbm %s0, %s217
          %s219 = sshll.u32 %s212, 4
          %s220 = int_to_ptr.vmem [resolvable:$true] %s219
          %225 = dma.hbm_to_vmem [thread:$0]  %s218, 512, %s220, %s209, 64, 64, 4
        $region36: #{tpu_custom_call.1} parent=31 // pred_fallthru
          _
      $region32: #{tpu_custom_call.1} parent=5 // pred_fallthru
        _
      %p226 = scmp.le.s32.totalorder 1, %s18
      %p227 = scmp.lt.s32.totalorder %s18, 3
      %p228 = pnand %p226, %p227
      %p229 = pneg %p228
      // Predicated region
      $region37: #{tpu_custom_call.1} parent=5 // pred_check
        _
      $region38: #{tpu_custom_call.1} parent=5 // pred_check_branch
        %231 = sbr.rel (%p228) target = $region40
      $region39: #{tpu_custom_call.1} parent=5 // pred_region
        %s232 = ssub.s32 %s18, 1
        %s233 = sand.u32 %s31, 1
        %s234 = scalar_lea.sflag [#allocation5], %s233
        %s235 = sand.u32 %s31, 1
        %s236 = smul.addr %s235, 32
        %s237 = scalar_lea.vmem [#allocation4], %s236
        // Predicated region
        $region41: #{tpu_custom_call.1} parent=39 // pred_check
          %p238 = pneg %p44
        $region42: #{tpu_custom_call.1} parent=39 // pred_check_branch
          %240 = sbr.rel (%p238) target = $region44
        $region43: #{tpu_custom_call.1} parent=39 // pred_region
          %241 = dma.done %s234, 512
        $region44: #{tpu_custom_call.1} parent=39 // pred_fallthru
          _
        // Predicated region
        $region45: #{tpu_custom_call.1} parent=39 // pred_check
          %p242 = pneg %p65
        $region46: #{tpu_custom_call.1} parent=39 // pred_check_branch
          %244 = sbr.rel (%p242) target = $region48
        $region47: #{tpu_custom_call.1} parent=39 // pred_region
          %245 = dma.done [#allocation8], 9216
        $region48: #{tpu_custom_call.1} parent=39 // pred_fallthru
          _
        // Predicated region
        $region49: #{tpu_custom_call.1} parent=39 // pred_check
          %p246 = pneg %p107
        $region50: #{tpu_custom_call.1} parent=39 // pred_check_branch
          %248 = sbr.rel (%p246) target = $region52
        $region51: #{tpu_custom_call.1} parent=39 // pred_region
          %249 = dma.done [#allocation8], 9216
        $region52: #{tpu_custom_call.1} parent=39 // pred_fallthru
          _
        %s250 = sand.u32 %s31, 1
        %s251 = scalar_lea.sflag [#allocation5], %s250
        %s252 = sand.u32 %s31, 1
        %s253 = smul.addr %s252, 32
        %s254 = scalar_lea.vmem [#allocation4], %s253
        %p255 = pneg %p44
        %p256 = pneg %p41
        %p257 = pneg %p65
        %p258 = pneg %p62
        %p259 = pneg %p86
        %p260 = pneg %p83
        %p261 = pneg %p107
        %p262 = pneg %p104
        %p263 = pneg %p128
        %p264 = pneg %p125
        %p265 = pneg %p154
        %p266 = pneg %p151
        %s267 = sand.u32 %s141, 1
        %s268 = scalar_lea.sflag [#allocation6], %s267
        %s269 = sand.u32 %s141, 1
        %s270 = smul.addr %s269, 256
        %s271 = scalar_lea.vmem [#allocation10], %s270
        %273 = vst [vmem:[#allocation2] sm:$0xf] 0
        %274 = vst [vmem:[#allocation2 + $0x4] sm:$0xf] 0
        %275 = vst [vmem:[#allocation2 + $0x8] sm:$0x1] 0
        %276 = vst [vmem:[#allocation2 + $0xc] sm:$0xf] 0
        %277 = vst [vmem:[#allocation2 + $0x10] sm:$0xf] 0
        %278 = vst [vmem:[#allocation2 + $0x14] sm:$0x1] 0
        %279 = vst [vmem:[#allocation2 + $0x18] sm:$0xf] 0
        %280 = vst [vmem:[#allocation2 + $0x1c] sm:$0xf] 0
        %281 = vst [vmem:[#allocation2 + $0x20] sm:$0x1] 0
        %282 = vst [vmem:[#allocation2 + $0x24] sm:$0xf] 0
        %283 = vst [vmem:[#allocation2 + $0x28] sm:$0xf] 0
        %284 = vst [vmem:[#allocation2 + $0x2c] sm:$0x1] 0
        %285 = vst [vmem:[#allocation2 + $0x30] sm:$0xf] 0
        %286 = vst [vmem:[#allocation2 + $0x34] sm:$0xf] 0
        %287 = vst [vmem:[#allocation2 + $0x38] sm:$0x1] 0
        %288 = vst [vmem:[#allocation2 + $0x3c] sm:$0xf] 0
        %289 = vst [vmem:[#allocation2 + $0x40] sm:$0xf] 0
        %290 = vst [vmem:[#allocation2 + $0x44] sm:$0x1] 0
        %291 = vst [vmem:[#allocation2 + $0x48] sm:$0xf] 0
        %292 = vst [vmem:[#allocation2 + $0x4c] sm:$0xf] 0
        %293 = vst [vmem:[#allocation2 + $0x50] sm:$0x1] 0
        %294 = vst [vmem:[#allocation2 + $0x54] sm:$0xf] 0
        %295 = vst [vmem:[#allocation2 + $0x58] sm:$0xf] 0
        %296 = vst [vmem:[#allocation2 + $0x5c] sm:$0x1] 0
        %297 = vst [vmem:[#allocation2 + $0x60] sm:$0xf] 0
        %298 = vst [vmem:[#allocation2 + $0x64] sm:$0xf] 0
        %299 = vst [vmem:[#allocation2 + $0x68] sm:$0x1] 0
        %300 = vst [vmem:[#allocation2 + $0x6c] sm:$0xf] 0
        %301 = vst [vmem:[#allocation2 + $0x70] sm:$0xf] 0
        %302 = vst [vmem:[#allocation2 + $0x74] sm:$0x1] 0
        %303 = vst [vmem:[#allocation2 + $0x78] sm:$0xf] 0
        %304 = vst [vmem:[#allocation2 + $0x7c] sm:$0xf] 0
        %305 = vst [vmem:[#allocation2 + $0x80] sm:$0x1] 0
        %306 = vst [vmem:[#allocation2 + $0x84] sm:$0xf] 0
        %307 = vst [vmem:[#allocation2 + $0x88] sm:$0xf] 0
        %308 = vst [vmem:[#allocation2 + $0x8c] sm:$0x1] 0
        %309 = vst [vmem:[#allocation2 + $0x90] sm:$0xf] 0
        %310 = vst [vmem:[#allocation2 + $0x94] sm:$0xf] 0
        %311 = vst [vmem:[#allocation2 + $0x98] sm:$0x1] 0
        %312 = vst [vmem:[#allocation2 + $0x9c] sm:$0xf] 0
        %313 = vst [vmem:[#allocation2 + $0xa0] sm:$0xf] 0
        %314 = vst [vmem:[#allocation2 + $0xa4] sm:$0x1] 0
        %315 = vst [vmem:[#allocation2 + $0xa8] sm:$0xf] 0
        %316 = vst [vmem:[#allocation2 + $0xac] sm:$0xf] 0
        %317 = vst [vmem:[#allocation2 + $0xb0] sm:$0x1] 0
        %318 = vst [vmem:[#allocation2 + $0xb4] sm:$0xf] 0
        %319 = vst [vmem:[#allocation2 + $0xb8] sm:$0xf] 0
        %320 = vst [vmem:[#allocation2 + $0xbc] sm:$0x1] 0
        %321 = vst [vmem:[#allocation2 + $0xc0] sm:$0xf] 0
        %322 = vst [vmem:[#allocation2 + $0xc4] sm:$0xf] 0
        %323 = vst [vmem:[#allocation2 + $0xc8] sm:$0x1] 0
        %324 = vst [vmem:[#allocation2 + $0xcc] sm:$0xf] 0
        %325 = vst [vmem:[#allocation2 + $0xd0] sm:$0xf] 0
        %326 = vst [vmem:[#allocation2 + $0xd4] sm:$0x1] 0
        %327 = vst [vmem:[#allocation3] sm:$0xf] 0
        %328 = vst [vmem:[#allocation3 + $0x4] sm:$0xf] 0
        %329 = vst [vmem:[#allocation3 + $0x8] sm:$0x1] 0
        %330 = vst [vmem:[#allocation3 + $0xc] sm:$0xf] 0
        %331 = vst [vmem:[#allocation3 + $0x10] sm:$0xf] 0
        %332 = vst [vmem:[#allocation3 + $0x14] sm:$0x1] 0
        %333 = vst [vmem:[#allocation3 + $0x18] sm:$0xf] 0
        %334 = vst [vmem:[#allocation3 + $0x1c] sm:$0xf] 0
        %335 = vst [vmem:[#allocation3 + $0x20] sm:$0x1] 0
        %336 = vst [vmem:[#allocation3 + $0x24] sm:$0xf] 0
        %337 = vst [vmem:[#allocation3 + $0x28] sm:$0xf] 0
        %338 = vst [vmem:[#allocation3 + $0x2c] sm:$0x1] 0
        %339 = vst [vmem:[#allocation3 + $0x30] sm:$0xf] 0
        %340 = vst [vmem:[#allocation3 + $0x34] sm:$0xf] 0
        %341 = vst [vmem:[#allocation3 + $0x38] sm:$0x1] 0
        %342 = vst [vmem:[#allocation3 + $0x3c] sm:$0xf] 0
        %343 = vst [vmem:[#allocation3 + $0x40] sm:$0xf] 0
        %344 = vst [vmem:[#allocation3 + $0x44] sm:$0x1] 0
        %345 = vst [vmem:[#allocation3 + $0x48] sm:$0xf] 0
        %346 = vst [vmem:[#allocation3 + $0x4c] sm:$0xf] 0
        %347 = vst [vmem:[#allocation3 + $0x50] sm:$0x1] 0
        %348 = vst [vmem:[#allocation3 + $0x54] sm:$0xf] 0
        %349 = vst [vmem:[#allocation3 + $0x58] sm:$0xf] 0
        %350 = vst [vmem:[#allocation3 + $0x5c] sm:$0x1] 0
        %351 = vst [vmem:[#allocation3 + $0x60] sm:$0xf] 0
        %352 = vst [vmem:[#allocation3 + $0x64] sm:$0xf] 0
        %353 = vst [vmem:[#allocation3 + $0x68] sm:$0x1] 0
        %354 = vst [vmem:[#allocation3 + $0x6c] sm:$0xf] 0
        %355 = vst [vmem:[#allocation3 + $0x70] sm:$0xf] 0
        %356 = vst [vmem:[#allocation3 + $0x74] sm:$0x1] 0
        %357 = vst [vmem:[#allocation3 + $0x78] sm:$0xf] 0
        %358 = vst [vmem:[#allocation3 + $0x7c] sm:$0xf] 0
        %359 = vst [vmem:[#allocation3 + $0x80] sm:$0x1] 0
        %360 = vst [vmem:[#allocation3 + $0x84] sm:$0xf] 0
        %361 = vst [vmem:[#allocation3 + $0x88] sm:$0xf] 0
        %362 = vst [vmem:[#allocation3 + $0x8c] sm:$0x1] 0
        %363 = vst [vmem:[#allocation3 + $0x90] sm:$0xf] 0
        %364 = vst [vmem:[#allocation3 + $0x94] sm:$0xf] 0
        %365 = vst [vmem:[#allocation3 + $0x98] sm:$0x1] 0
        %366 = vst [vmem:[#allocation3 + $0x9c] sm:$0xf] 0
        %367 = vst [vmem:[#allocation3 + $0xa0] sm:$0xf] 0
        %368 = vst [vmem:[#allocation3 + $0xa4] sm:$0x1] 0
        %369 = vst [vmem:[#allocation3 + $0xa8] sm:$0xf] 0
        %370 = vst [vmem:[#allocation3 + $0xac] sm:$0xf] 0
        %371 = vst [vmem:[#allocation3 + $0xb0] sm:$0x1] 0
        %372 = vst [vmem:[#allocation3 + $0xb4] sm:$0xf] 0
        %373 = vst [vmem:[#allocation3 + $0xb8] sm:$0xf] 0
        %374 = vst [vmem:[#allocation3 + $0xbc] sm:$0x1] 0
        %375 = vst [vmem:[#allocation3 + $0xc0] sm:$0xf] 0
        %376 = vst [vmem:[#allocation3 + $0xc4] sm:$0xf] 0
        %377 = vst [vmem:[#allocation3 + $0xc8] sm:$0x1] 0
        %378 = vst [vmem:[#allocation3 + $0xcc] sm:$0xf] 0
        %379 = vst [vmem:[#allocation3 + $0xd0] sm:$0xf] 0
        %380 = vst [vmem:[#allocation3 + $0xd4] sm:$0x1] 0
        %v381 = vld [vmem:[%s237] sm:$0xf]
        %v382 = vld [vmem:[%s237 + $0x4] sm:$0xf]
        %v383 = vld [vmem:[%s237 + $0x8] sm:$0xf]
        %v384 = vld [vmem:[%s237 + $0xc] sm:$0xf]
        %v385 = vld [vmem:[%s237 + $0x10] sm:$0xf]
        %v386 = vld [vmem:[%s237 + $0x14] sm:$0xf]
        %v387 = vld [vmem:[%s237 + $0x18] sm:$0xf]
        %v388 = vld [vmem:[%s237 + $0x1c] sm:$0xf]
        %v389 = vunpack.c.l.bf16 %v381
        %v390 = vunpack.c.l.bf16 %v382
        %v391 = vunpack.c.l.bf16 %v383
        %v392 = vunpack.c.l.bf16 %v384
        %v393 = vunpack.c.l.bf16 %v385
        %v394 = vunpack.c.l.bf16 %v386
        %v395 = vunpack.c.l.bf16 %v387
        %v396 = vunpack.c.l.bf16 %v388
        %v405 = vcombine.high %v389, %v389
        %v407 = vunpack.c.l.s4 1966171168
        %v408 = vunpack.c.0.s8 %v407
        %v409 = vlaneseq
        %v410 = vshrl.u32 %v409, 7
        %v411 = vsub.s32 %v408, %v410
        %v412 = vrot.slane %v389, %v411
        %v414 = vunpack.c.l.s4 1966171168
        %v415 = vunpack.c.0.s8 %v414
        %v416 = vlaneseq
        %v417 = vshrl.u32 %v416, 7
        %v418 = vsub.s32 %v415, %v417
        %v419 = vrot.slane %v405, %v418
        %v420 = vcombine.high %v412, %v412
        %v421 = vcombine.high %v419, %v419
        %v423 = vunpack.c.l.s4 1966171168
        %v424 = vunpack.c.0.s8 %v423
        %v425 = vlaneseq
        %v426 = vshrl.u32 %v425, 7
        %v427 = vsub.s32 %v424, %v426
        %v428 = vrot.slane %v412, %v427
        %v430 = vunpack.c.l.s4 1966171168
        %v431 = vunpack.c.0.s8 %v430
        %v432 = vlaneseq
        %v433 = vshrl.u32 %v432, 7
        %v434 = vsub.s32 %v431, %v433
        %v435 = vrot.slane %v419, %v434
        %v437 = vunpack.c.l.s4 1966171168
        %v438 = vunpack.c.0.s8 %v437
        %v439 = vlaneseq
        %v440 = vshrl.u32 %v439, 7
        %v441 = vsub.s32 %v438, %v440
        %v442 = vrot.slane %v420, %v441
        %v444 = vunpack.c.l.s4 1966171168
        %v445 = vunpack.c.0.s8 %v444
        %v446 = vlaneseq
        %v447 = vshrl.u32 %v446, 7
        %v448 = vsub.s32 %v445, %v447
        %v449 = vrot.slane %v421, %v448
        %v450 = vcombine.high %v428, %v428
        %v451 = vcombine.high %v435, %v435
        %v452 = vcombine.high %v442, %v442
        %v453 = vcombine.high %v449, %v449
        %v454 = vcombine.high %v390, %v390
        %v456 = vunpack.c.l.s4 1966171168
        %v457 = vunpack.c.0.s8 %v456
        %v458 = vlaneseq
        %v459 = vshrl.u32 %v458, 7
        %v460 = vsub.s32 %v457, %v459
        %v461 = vrot.slane %v390, %v460
        %v463 = vunpack.c.l.s4 1966171168
        %v464 = vunpack.c.0.s8 %v463
        %v465 = vlaneseq
        %v466 = vshrl.u32 %v465, 7
        %v467 = vsub.s32 %v464, %v466
        %v468 = vrot.slane %v454, %v467
        %v469 = vcombine.high %v461, %v461
        %v470 = vcombine.high %v468, %v468
        %v472 = vunpack.c.l.s4 1966171168
        %v473 = vunpack.c.0.s8 %v472
        %v474 = vlaneseq
        %v475 = vshrl.u32 %v474, 7
        %v476 = vsub.s32 %v473, %v475
        %v477 = vrot.slane %v461, %v476
        %v479 = vunpack.c.l.s4 1966171168
        %v480 = vunpack.c.0.s8 %v479
        %v481 = vlaneseq
        %v482 = vshrl.u32 %v481, 7
        %v483 = vsub.s32 %v480, %v482
        %v484 = vrot.slane %v468, %v483
        %v486 = vunpack.c.l.s4 1966171168
        %v487 = vunpack.c.0.s8 %v486
        %v488 = vlaneseq
        %v489 = vshrl.u32 %v488, 7
        %v490 = vsub.s32 %v487, %v489
        %v491 = vrot.slane %v469, %v490
        %v493 = vunpack.c.l.s4 1966171168
        %v494 = vunpack.c.0.s8 %v493
        %v495 = vlaneseq
        %v496 = vshrl.u32 %v495, 7
        %v497 = vsub.s32 %v494, %v496
        %v498 = vrot.slane %v470, %v497
        %v499 = vcombine.high %v477, %v477
        %v500 = vcombine.high %v484, %v484
        %v501 = vcombine.high %v491, %v491
        %v502 = vcombine.high %v498, %v498
        %v503 = vcombine.high %v391, %v391
        %v505 = vunpack.c.l.s4 1966171168
        %v506 = vunpack.c.0.s8 %v505
        %v507 = vlaneseq
        %v508 = vshrl.u32 %v507, 7
        %v509 = vsub.s32 %v506, %v508
        %v510 = vrot.slane %v391, %v509
        %v512 = vunpack.c.l.s4 1966171168
        %v513 = vunpack.c.0.s8 %v512
        %v514 = vlaneseq
        %v515 = vshrl.u32 %v514, 7
        %v516 = vsub.s32 %v513, %v515
        %v517 = vrot.slane %v503, %v516
        %v518 = vcombine.high %v510, %v510
        %v519 = vcombine.high %v517, %v517
        %v521 = vunpack.c.l.s4 1966171168
        %v522 = vunpack.c.0.s8 %v521
        %v523 = vlaneseq
        %v524 = vshrl.u32 %v523, 7
        %v525 = vsub.s32 %v522, %v524
        %v526 = vrot.slane %v510, %v525
        %v528 = vunpack.c.l.s4 1966171168
        %v529 = vunpack.c.0.s8 %v528
        %v530 = vlaneseq
        %v531 = vshrl.u32 %v530, 7
        %v532 = vsub.s32 %v529, %v531
        %v533 = vrot.slane %v517, %v532
        %v535 = vunpack.c.l.s4 1966171168
        %v536 = vunpack.c.0.s8 %v535
        %v537 = vlaneseq
        %v538 = vshrl.u32 %v537, 7
        %v539 = vsub.s32 %v536, %v538
        %v540 = vrot.slane %v518, %v539
        %v542 = vunpack.c.l.s4 1966171168
        %v543 = vunpack.c.0.s8 %v542
        %v544 = vlaneseq
        %v545 = vshrl.u32 %v544, 7
        %v546 = vsub.s32 %v543, %v545
        %v547 = vrot.slane %v519, %v546
        %v548 = vcombine.high %v526, %v526
        %v549 = vcombine.high %v533, %v533
        %v550 = vcombine.high %v540, %v540
        %v551 = vcombine.high %v547, %v547
        %v552 = vcombine.high %v392, %v392
        %v554 = vunpack.c.l.s4 1966171168
        %v555 = vunpack.c.0.s8 %v554
        %v556 = vlaneseq
        %v557 = vshrl.u32 %v556, 7
        %v558 = vsub.s32 %v555, %v557
        %v559 = vrot.slane %v392, %v558
        %v561 = vunpack.c.l.s4 1966171168
        %v562 = vunpack.c.0.s8 %v561
        %v563 = vlaneseq
        %v564 = vshrl.u32 %v563, 7
        %v565 = vsub.s32 %v562, %v564
        %v566 = vrot.slane %v552, %v565
        %v567 = vcombine.high %v559, %v559
        %v568 = vcombine.high %v566, %v566
        %v570 = vunpack.c.l.s4 1966171168
        %v571 = vunpack.c.0.s8 %v570
        %v572 = vlaneseq
        %v573 = vshrl.u32 %v572, 7
        %v574 = vsub.s32 %v571, %v573
        %v575 = vrot.slane %v559, %v574
        %v577 = vunpack.c.l.s4 1966171168
        %v578 = vunpack.c.0.s8 %v577
        %v579 = vlaneseq
        %v580 = vshrl.u32 %v579, 7
        %v581 = vsub.s32 %v578, %v580
        %v582 = vrot.slane %v566, %v581
        %v584 = vunpack.c.l.s4 1966171168
        %v585 = vunpack.c.0.s8 %v584
        %v586 = vlaneseq
        %v587 = vshrl.u32 %v586, 7
        %v588 = vsub.s32 %v585, %v587
        %v589 = vrot.slane %v567, %v588
        %v591 = vunpack.c.l.s4 1966171168
        %v592 = vunpack.c.0.s8 %v591
        %v593 = vlaneseq
        %v594 = vshrl.u32 %v593, 7
        %v595 = vsub.s32 %v592, %v594
        %v596 = vrot.slane %v568, %v595
        %v597 = vcombine.high %v575, %v575
        %v598 = vcombine.high %v582, %v582
        %v599 = vcombine.high %v589, %v589
        %v600 = vcombine.high %v596, %v596
        %v601 = vcombine.high %v393, %v393
        %v603 = vunpack.c.l.s4 1966171168
        %v604 = vunpack.c.0.s8 %v603
        %v605 = vlaneseq
        %v606 = vshrl.u32 %v605, 7
        %v607 = vsub.s32 %v604, %v606
        %v608 = vrot.slane %v393, %v607
        %v610 = vunpack.c.l.s4 1966171168
        %v611 = vunpack.c.0.s8 %v610
        %v612 = vlaneseq
        %v613 = vshrl.u32 %v612, 7
        %v614 = vsub.s32 %v611, %v613
        %v615 = vrot.slane %v601, %v614
        %v616 = vcombine.high %v608, %v608
        %v617 = vcombine.high %v615, %v615
        %v619 = vunpack.c.l.s4 1966171168
        %v620 = vunpack.c.0.s8 %v619
        %v621 = vlaneseq
        %v622 = vshrl.u32 %v621, 7
        %v623 = vsub.s32 %v620, %v622
        %v624 = vrot.slane %v608, %v623
        %v626 = vunpack.c.l.s4 1966171168
        %v627 = vunpack.c.0.s8 %v626
        %v628 = vlaneseq
        %v629 = vshrl.u32 %v628, 7
        %v630 = vsub.s32 %v627, %v629
        %v631 = vrot.slane %v615, %v630
        %v633 = vunpack.c.l.s4 1966171168
        %v634 = vunpack.c.0.s8 %v633
        %v635 = vlaneseq
        %v636 = vshrl.u32 %v635, 7
        %v637 = vsub.s32 %v634, %v636
        %v638 = vrot.slane %v616, %v637
        %v640 = vunpack.c.l.s4 1966171168
        %v641 = vunpack.c.0.s8 %v640
        %v642 = vlaneseq
        %v643 = vshrl.u32 %v642, 7
        %v644 = vsub.s32 %v641, %v643
        %v645 = vrot.slane %v617, %v644
        %v646 = vcombine.high %v624, %v624
        %v647 = vcombine.high %v631, %v631
        %v648 = vcombine.high %v638, %v638
        %v649 = vcombine.high %v645, %v645
        %v650 = vcombine.high %v394, %v394
        %v652 = vunpack.c.l.s4 1966171168
        %v653 = vunpack.c.0.s8 %v652
        %v654 = vlaneseq
        %v655 = vshrl.u32 %v654, 7
        %v656 = vsub.s32 %v653, %v655
        %v657 = vrot.slane %v394, %v656
        %v659 = vunpack.c.l.s4 1966171168
        %v660 = vunpack.c.0.s8 %v659
        %v661 = vlaneseq
        %v662 = vshrl.u32 %v661, 7
        %v663 = vsub.s32 %v660, %v662
        %v664 = vrot.slane %v650, %v663
        %v665 = vcombine.high %v657, %v657
        %v666 = vcombine.high %v664, %v664
        %v668 = vunpack.c.l.s4 1966171168
        %v669 = vunpack.c.0.s8 %v668
        %v670 = vlaneseq
        %v671 = vshrl.u32 %v670, 7
        %v672 = vsub.s32 %v669, %v671
        %v673 = vrot.slane %v657, %v672
        %v675 = vunpack.c.l.s4 1966171168
        %v676 = vunpack.c.0.s8 %v675
        %v677 = vlaneseq
        %v678 = vshrl.u32 %v677, 7
        %v679 = vsub.s32 %v676, %v678
        %v680 = vrot.slane %v664, %v679
        %v682 = vunpack.c.l.s4 1966171168
        %v683 = vunpack.c.0.s8 %v682
        %v684 = vlaneseq
        %v685 = vshrl.u32 %v684, 7
        %v686 = vsub.s32 %v683, %v685
        %v687 = vrot.slane %v665, %v686
        %v689 = vunpack.c.l.s4 1966171168
        %v690 = vunpack.c.0.s8 %v689
        %v691 = vlaneseq
        %v692 = vshrl.u32 %v691, 7
        %v693 = vsub.s32 %v690, %v692
        %v694 = vrot.slane %v666, %v693
        %v695 = vcombine.high %v673, %v673
        %v696 = vcombine.high %v680, %v680
        %v697 = vcombine.high %v687, %v687
        %v698 = vcombine.high %v694, %v694
        %v699 = vcombine.high %v395, %v395
        %v701 = vunpack.c.l.s4 1966171168
        %v702 = vunpack.c.0.s8 %v701
        %v703 = vlaneseq
        %v704 = vshrl.u32 %v703, 7
        %v705 = vsub.s32 %v702, %v704
        %v706 = vrot.slane %v395, %v705
        %v708 = vunpack.c.l.s4 1966171168
        %v709 = vunpack.c.0.s8 %v708
        %v710 = vlaneseq
        %v711 = vshrl.u32 %v710, 7
        %v712 = vsub.s32 %v709, %v711
        %v713 = vrot.slane %v699, %v712
        %v714 = vcombine.high %v706, %v706
        %v715 = vcombine.high %v713, %v713
        %v717 = vunpack.c.l.s4 1966171168
        %v718 = vunpack.c.0.s8 %v717
        %v719 = vlaneseq
        %v720 = vshrl.u32 %v719, 7
        %v721 = vsub.s32 %v718, %v720
        %v722 = vrot.slane %v706, %v721
        %v724 = vunpack.c.l.s4 1966171168
        %v725 = vunpack.c.0.s8 %v724
        %v726 = vlaneseq
        %v727 = vshrl.u32 %v726, 7
        %v728 = vsub.s32 %v725, %v727
        %v729 = vrot.slane %v713, %v728
        %v731 = vunpack.c.l.s4 1966171168
        %v732 = vunpack.c.0.s8 %v731
        %v733 = vlaneseq
        %v734 = vshrl.u32 %v733, 7
        %v735 = vsub.s32 %v732, %v734
        %v736 = vrot.slane %v714, %v735
        %v738 = vunpack.c.l.s4 1966171168
        %v739 = vunpack.c.0.s8 %v738
        %v740 = vlaneseq
        %v741 = vshrl.u32 %v740, 7
        %v742 = vsub.s32 %v739, %v741
        %v743 = vrot.slane %v715, %v742
        %v744 = vcombine.high %v722, %v722
        %v745 = vcombine.high %v729, %v729
        %v746 = vcombine.high %v736, %v736
        %v747 = vcombine.high %v743, %v743
        %v748 = vcombine.high %v396, %v396
        %v750 = vunpack.c.l.s4 1966171168
        %v751 = vunpack.c.0.s8 %v750
        %v752 = vlaneseq
        %v753 = vshrl.u32 %v752, 7
        %v754 = vsub.s32 %v751, %v753
        %v755 = vrot.slane %v396, %v754
        %v757 = vunpack.c.l.s4 1966171168
        %v758 = vunpack.c.0.s8 %v757
        %v759 = vlaneseq
        %v760 = vshrl.u32 %v759, 7
        %v761 = vsub.s32 %v758, %v760
        %v762 = vrot.slane %v748, %v761
        %v763 = vcombine.high %v755, %v755
        %v764 = vcombine.high %v762, %v762
        %v766 = vunpack.c.l.s4 1966171168
        %v767 = vunpack.c.0.s8 %v766
        %v768 = vlaneseq
        %v769 = vshrl.u32 %v768, 7
        %v770 = vsub.s32 %v767, %v769
        %v771 = vrot.slane %v755, %v770
        %v773 = vunpack.c.l.s4 1966171168
        %v774 = vunpack.c.0.s8 %v773
        %v775 = vlaneseq
        %v776 = vshrl.u32 %v775, 7
        %v777 = vsub.s32 %v774, %v776
        %v778 = vrot.slane %v762, %v777
        %v780 = vunpack.c.l.s4 1966171168
        %v781 = vunpack.c.0.s8 %v780
        %v782 = vlaneseq
        %v783 = vshrl.u32 %v782, 7
        %v784 = vsub.s32 %v781, %v783
        %v785 = vrot.slane %v763, %v784
        %v787 = vunpack.c.l.s4 1966171168
        %v788 = vunpack.c.0.s8 %v787
        %v789 = vlaneseq
        %v790 = vshrl.u32 %v789, 7
        %v791 = vsub.s32 %v788, %v790
        %v792 = vrot.slane %v764, %v791
        %v793 = vcombine.high %v771, %v771
        %v794 = vcombine.high %v778, %v778
        %v795 = vcombine.high %v785, %v785
        %v796 = vcombine.high %v792, %v792
        %v797 = vlaneseq
        %v798 = vshrl.u32 %v797, 7
        %v799 = vsub.s32 0, %v798
        %v800 = vrot.slane %v428, %v799
        %v801 = vlaneseq
        %v802 = vshrl.u32 %v801, 7
        %v803 = vsub.s32 0, %v802
        %v804 = vrot.slane %v442, %v803
        %v805 = vlaneseq
        %v806 = vshrl.u32 %v805, 7
        %v807 = vsub.s32 0, %v806
        %v808 = vrot.slane %v450, %v807
        %v809 = vlaneseq
        %v810 = vshrl.u32 %v809, 7
        %v811 = vsub.s32 0, %v810
        %v812 = vrot.slane %v452, %v811
        %v813 = vlaneseq
        %v814 = vshrl.u32 %v813, 7
        %v815 = vsub.s32 0, %v814
        %v816 = vrot.slane %v435, %v815
        %v817 = vlaneseq
        %v818 = vshrl.u32 %v817, 7
        %v819 = vsub.s32 0, %v818
        %v820 = vrot.slane %v449, %v819
        %v821 = vlaneseq
        %v822 = vshrl.u32 %v821, 7
        %v823 = vsub.s32 0, %v822
        %v824 = vrot.slane %v451, %v823
        %v825 = vlaneseq
        %v826 = vshrl.u32 %v825, 7
        %v827 = vsub.s32 0, %v826
        %v828 = vrot.slane %v453, %v827
        %v829 = vlaneseq
        %v830 = vshrl.u32 %v829, 7
        %v831 = vsub.s32 0, %v830
        %v832 = vrot.slane %v477, %v831
        %v833 = vlaneseq
        %v834 = vshrl.u32 %v833, 7
        %v835 = vsub.s32 0, %v834
        %v836 = vrot.slane %v491, %v835
        %v837 = vlaneseq
        %v838 = vshrl.u32 %v837, 7
        %v839 = vsub.s32 0, %v838
        %v840 = vrot.slane %v499, %v839
        %v841 = vlaneseq
        %v842 = vshrl.u32 %v841, 7
        %v843 = vsub.s32 0, %v842
        %v844 = vrot.slane %v501, %v843
        %v845 = vlaneseq
        %v846 = vshrl.u32 %v845, 7
        %v847 = vsub.s32 0, %v846
        %v848 = vrot.slane %v484, %v847
        %v849 = vlaneseq
        %v850 = vshrl.u32 %v849, 7
        %v851 = vsub.s32 0, %v850
        %v852 = vrot.slane %v498, %v851
        %v853 = vlaneseq
        %v854 = vshrl.u32 %v853, 7
        %v855 = vsub.s32 0, %v854
        %v856 = vrot.slane %v500, %v855
        %v857 = vlaneseq
        %v858 = vshrl.u32 %v857, 7
        %v859 = vsub.s32 0, %v858
        %v860 = vrot.slane %v502, %v859
        %v861 = vlaneseq
        %v862 = vshrl.u32 %v861, 7
        %v863 = vsub.s32 0, %v862
        %v864 = vrot.slane %v526, %v863
        %v865 = vlaneseq
        %v866 = vshrl.u32 %v865, 7
        %v867 = vsub.s32 0, %v866
        %v868 = vrot.slane %v540, %v867
        %v869 = vlaneseq
        %v870 = vshrl.u32 %v869, 7
        %v871 = vsub.s32 0, %v870
        %v872 = vrot.slane %v548, %v871
        %v873 = vlaneseq
        %v874 = vshrl.u32 %v873, 7
        %v875 = vsub.s32 0, %v874
        %v876 = vrot.slane %v550, %v875
        %v877 = vlaneseq
        %v878 = vshrl.u32 %v877, 7
        %v879 = vsub.s32 0, %v878
        %v880 = vrot.slane %v533, %v879
        %v881 = vlaneseq
        %v882 = vshrl.u32 %v881, 7
        %v883 = vsub.s32 0, %v882
        %v884 = vrot.slane %v547, %v883
        %v885 = vlaneseq
        %v886 = vshrl.u32 %v885, 7
        %v887 = vsub.s32 0, %v886
        %v888 = vrot.slane %v549, %v887
        %v889 = vlaneseq
        %v890 = vshrl.u32 %v889, 7
        %v891 = vsub.s32 0, %v890
        %v892 = vrot.slane %v551, %v891
        %v893 = vlaneseq
        %v894 = vshrl.u32 %v893, 7
        %v895 = vsub.s32 0, %v894
        %v896 = vrot.slane %v575, %v895
        %v897 = vlaneseq
        %v898 = vshrl.u32 %v897, 7
        %v899 = vsub.s32 0, %v898
        %v900 = vrot.slane %v589, %v899
        %v901 = vlaneseq
        %v902 = vshrl.u32 %v901, 7
        %v903 = vsub.s32 0, %v902
        %v904 = vrot.slane %v597, %v903
        %v905 = vlaneseq
        %v906 = vshrl.u32 %v905, 7
        %v907 = vsub.s32 0, %v906
        %v908 = vrot.slane %v599, %v907
        %v909 = vlaneseq
        %v910 = vshrl.u32 %v909, 7
        %v911 = vsub.s32 0, %v910
        %v912 = vrot.slane %v582, %v911
        %v913 = vlaneseq
        %v914 = vshrl.u32 %v913, 7
        %v915 = vsub.s32 0, %v914
        %v916 = vrot.slane %v596, %v915
        %v917 = vlaneseq
        %v918 = vshrl.u32 %v917, 7
        %v919 = vsub.s32 0, %v918
        %v920 = vrot.slane %v598, %v919
        %v921 = vlaneseq
        %v922 = vshrl.u32 %v921, 7
        %v923 = vsub.s32 0, %v922
        %v924 = vrot.slane %v600, %v923
        %v925 = vlaneseq
        %v926 = vshrl.u32 %v925, 7
        %v927 = vsub.s32 0, %v926
        %v928 = vrot.slane %v624, %v927
        %v929 = vlaneseq
        %v930 = vshrl.u32 %v929, 7
        %v931 = vsub.s32 0, %v930
        %v932 = vrot.slane %v638, %v931
        %v933 = vlaneseq
        %v934 = vshrl.u32 %v933, 7
        %v935 = vsub.s32 0, %v934
        %v936 = vrot.slane %v646, %v935
        %v937 = vlaneseq
        %v938 = vshrl.u32 %v937, 7
        %v939 = vsub.s32 0, %v938
        %v940 = vrot.slane %v648, %v939
        %v941 = vlaneseq
        %v942 = vshrl.u32 %v941, 7
        %v943 = vsub.s32 0, %v942
        %v944 = vrot.slane %v631, %v943
        %v945 = vlaneseq
        %v946 = vshrl.u32 %v945, 7
        %v947 = vsub.s32 0, %v946
        %v948 = vrot.slane %v645, %v947
        %v949 = vlaneseq
        %v950 = vshrl.u32 %v949, 7
        %v951 = vsub.s32 0, %v950
        %v952 = vrot.slane %v647, %v951
        %v953 = vlaneseq
        %v954 = vshrl.u32 %v953, 7
        %v955 = vsub.s32 0, %v954
        %v956 = vrot.slane %v649, %v955
        %v957 = vlaneseq
        %v958 = vshrl.u32 %v957, 7
        %v959 = vsub.s32 0, %v958
        %v960 = vrot.slane %v673, %v959
        %v961 = vlaneseq
        %v962 = vshrl.u32 %v961, 7
        %v963 = vsub.s32 0, %v962
        %v964 = vrot.slane %v687, %v963
        %v965 = vlaneseq
        %v966 = vshrl.u32 %v965, 7
        %v967 = vsub.s32 0, %v966
        %v968 = vrot.slane %v695, %v967
        %v969 = vlaneseq
        %v970 = vshrl.u32 %v969, 7
        %v971 = vsub.s32 0, %v970
        %v972 = vrot.slane %v697, %v971
        %v973 = vlaneseq
        %v974 = vshrl.u32 %v973, 7
        %v975 = vsub.s32 0, %v974
        %v976 = vrot.slane %v680, %v975
        %v977 = vlaneseq
        %v978 = vshrl.u32 %v977, 7
        %v979 = vsub.s32 0, %v978
        %v980 = vrot.slane %v694, %v979
        %v981 = vlaneseq
        %v982 = vshrl.u32 %v981, 7
        %v983 = vsub.s32 0, %v982
        %v984 = vrot.slane %v696, %v983
        %v985 = vlaneseq
        %v986 = vshrl.u32 %v985, 7
        %v987 = vsub.s32 0, %v986
        %v988 = vrot.slane %v698, %v987
        %v989 = vlaneseq
        %v990 = vshrl.u32 %v989, 7
        %v991 = vsub.s32 0, %v990
        %v992 = vrot.slane %v722, %v991
        %v993 = vlaneseq
        %v994 = vshrl.u32 %v993, 7
        %v995 = vsub.s32 0, %v994
        %v996 = vrot.slane %v736, %v995
        %v997 = vlaneseq
        %v998 = vshrl.u32 %v997, 7
        %v999 = vsub.s32 0, %v998
        %v1000 = vrot.slane %v744, %v999
        %v1001 = vlaneseq
        %v1002 = vshrl.u32 %v1001, 7
        %v1003 = vsub.s32 0, %v1002
        %v1004 = vrot.slane %v746, %v1003
        %v1005 = vlaneseq
        %v1006 = vshrl.u32 %v1005, 7
        %v1007 = vsub.s32 0, %v1006
        %v1008 = vrot.slane %v729, %v1007
        %v1009 = vlaneseq
        %v1010 = vshrl.u32 %v1009, 7
        %v1011 = vsub.s32 0, %v1010
        %v1012 = vrot.slane %v743, %v1011
        %v1013 = vlaneseq
        %v1014 = vshrl.u32 %v1013, 7
        %v1015 = vsub.s32 0, %v1014
        %v1016 = vrot.slane %v745, %v1015
        %v1017 = vlaneseq
        %v1018 = vshrl.u32 %v1017, 7
        %v1019 = vsub.s32 0, %v1018
        %v1020 = vrot.slane %v747, %v1019
        %v1021 = vlaneseq
        %v1022 = vshrl.u32 %v1021, 7
        %v1023 = vsub.s32 0, %v1022
        %v1024 = vrot.slane %v771, %v1023
        %v1025 = vlaneseq
        %v1026 = vshrl.u32 %v1025, 7
        %v1027 = vsub.s32 0, %v1026
        %v1028 = vrot.slane %v785, %v1027
        %v1029 = vlaneseq
        %v1030 = vshrl.u32 %v1029, 7
        %v1031 = vsub.s32 0, %v1030
        %v1032 = vrot.slane %v793, %v1031
        %v1033 = vlaneseq
        %v1034 = vshrl.u32 %v1033, 7
        %v1035 = vsub.s32 0, %v1034
        %v1036 = vrot.slane %v795, %v1035
        %v1037 = vlaneseq
        %v1038 = vshrl.u32 %v1037, 7
        %v1039 = vsub.s32 0, %v1038
        %v1040 = vrot.slane %v778, %v1039
        %v1041 = vlaneseq
        %v1042 = vshrl.u32 %v1041, 7
        %v1043 = vsub.s32 0, %v1042
        %v1044 = vrot.slane %v792, %v1043
        %v1045 = vlaneseq
        %v1046 = vshrl.u32 %v1045, 7
        %v1047 = vsub.s32 0, %v1046
        %v1048 = vrot.slane %v794, %v1047
        %v1049 = vlaneseq
        %v1050 = vshrl.u32 %v1049, 7
        %v1051 = vsub.s32 0, %v1050
        %v1052 = vrot.slane %v796, %v1051
        %v1053 = vcombine.low %v800, %v804
        %v1054 = vcombine.low %v808, %v812
        %v1056 = vunpack.c.l.s4 1983009808
        %v1057 = vunpack.c.0.s8 %v1056
        %v1058 = vlaneseq
        %v1059 = vshrl.u32 %v1058, 7
        %v1060 = vsub.s32 %v1057, %v1059
        %v1061 = vrot.slane %v1053, %v1060
        %v1063 = vunpack.c.l.s4 1983009808
        %v1064 = vunpack.c.0.s8 %v1063
        %v1065 = vlaneseq
        %v1066 = vshrl.u32 %v1065, 7
        %v1067 = vsub.s32 %v1064, %v1066
        %v1068 = vrot.slane %v1054, %v1067
        %v1069 = vcombine.low %v1061, %v1068
        %v1070 = vcombine.low %v816, %v820
        %v1071 = vcombine.low %v824, %v828
        %v1073 = vunpack.c.l.s4 1983009808
        %v1074 = vunpack.c.0.s8 %v1073
        %v1075 = vlaneseq
        %v1076 = vshrl.u32 %v1075, 7
        %v1077 = vsub.s32 %v1074, %v1076
        %v1078 = vrot.slane %v1070, %v1077
        %v1080 = vunpack.c.l.s4 1983009808
        %v1081 = vunpack.c.0.s8 %v1080
        %v1082 = vlaneseq
        %v1083 = vshrl.u32 %v1082, 7
        %v1084 = vsub.s32 %v1081, %v1083
        %v1085 = vrot.slane %v1071, %v1084
        %v1086 = vcombine.low %v1078, %v1085
        %v1087 = vcombine.low %v832, %v836
        %v1088 = vcombine.low %v840, %v844
        %v1090 = vunpack.c.l.s4 1983009808
        %v1091 = vunpack.c.0.s8 %v1090
        %v1092 = vlaneseq
        %v1093 = vshrl.u32 %v1092, 7
        %v1094 = vsub.s32 %v1091, %v1093
        %v1095 = vrot.slane %v1087, %v1094
        %v1097 = vunpack.c.l.s4 1983009808
        %v1098 = vunpack.c.0.s8 %v1097
        %v1099 = vlaneseq
        %v1100 = vshrl.u32 %v1099, 7
        %v1101 = vsub.s32 %v1098, %v1100
        %v1102 = vrot.slane %v1088, %v1101
        %v1103 = vcombine.low %v1095, %v1102
        %v1104 = vcombine.low %v848, %v852
        %v1105 = vcombine.low %v856, %v860
        %v1107 = vunpack.c.l.s4 1983009808
        %v1108 = vunpack.c.0.s8 %v1107
        %v1109 = vlaneseq
        %v1110 = vshrl.u32 %v1109, 7
        %v1111 = vsub.s32 %v1108, %v1110
        %v1112 = vrot.slane %v1104, %v1111
        %v1114 = vunpack.c.l.s4 1983009808
        %v1115 = vunpack.c.0.s8 %v1114
        %v1116 = vlaneseq
        %v1117 = vshrl.u32 %v1116, 7
        %v1118 = vsub.s32 %v1115, %v1117
        %v1119 = vrot.slane %v1105, %v1118
        %v1120 = vcombine.low %v1112, %v1119
        %v1121 = vcombine.low %v864, %v868
        %v1122 = vcombine.low %v872, %v876
        %v1124 = vunpack.c.l.s4 1983009808
        %v1125 = vunpack.c.0.s8 %v1124
        %v1126 = vlaneseq
        %v1127 = vshrl.u32 %v1126, 7
        %v1128 = vsub.s32 %v1125, %v1127
        %v1129 = vrot.slane %v1121, %v1128
        %v1131 = vunpack.c.l.s4 1983009808
        %v1132 = vunpack.c.0.s8 %v1131
        %v1133 = vlaneseq
        %v1134 = vshrl.u32 %v1133, 7
        %v1135 = vsub.s32 %v1132, %v1134
        %v1136 = vrot.slane %v1122, %v1135
        %v1137 = vcombine.low %v1129, %v1136
        %v1138 = vcombine.low %v880, %v884
        %v1139 = vcombine.low %v888, %v892
        %v1141 = vunpack.c.l.s4 1983009808
        %v1142 = vunpack.c.0.s8 %v1141
        %v1143 = vlaneseq
        %v1144 = vshrl.u32 %v1143, 7
        %v1145 = vsub.s32 %v1142, %v1144
        %v1146 = vrot.slane %v1138, %v1145
        %v1148 = vunpack.c.l.s4 1983009808
        %v1149 = vunpack.c.0.s8 %v1148
        %v1150 = vlaneseq
        %v1151 = vshrl.u32 %v1150, 7
        %v1152 = vsub.s32 %v1149, %v1151
        %v1153 = vrot.slane %v1139, %v1152
        %v1154 = vcombine.low %v1146, %v1153
        %v1155 = vcombine.low %v896, %v900
        %v1156 = vcombine.low %v904, %v908
        %v1158 = vunpack.c.l.s4 1983009808
        %v1159 = vunpack.c.0.s8 %v1158
        %v1160 = vlaneseq
        %v1161 = vshrl.u32 %v1160, 7
        %v1162 = vsub.s32 %v1159, %v1161
        %v1163 = vrot.slane %v1155, %v1162
        %v1165 = vunpack.c.l.s4 1983009808
        %v1166 = vunpack.c.0.s8 %v1165
        %v1167 = vlaneseq
        %v1168 = vshrl.u32 %v1167, 7
        %v1169 = vsub.s32 %v1166, %v1168
        %v1170 = vrot.slane %v1156, %v1169
        %v1171 = vcombine.low %v1163, %v1170
        %v1172 = vcombine.low %v912, %v916
        %v1173 = vcombine.low %v920, %v924
        %v1175 = vunpack.c.l.s4 1983009808
        %v1176 = vunpack.c.0.s8 %v1175
        %v1177 = vlaneseq
        %v1178 = vshrl.u32 %v1177, 7
        %v1179 = vsub.s32 %v1176, %v1178
        %v1180 = vrot.slane %v1172, %v1179
        %v1182 = vunpack.c.l.s4 1983009808
        %v1183 = vunpack.c.0.s8 %v1182
        %v1184 = vlaneseq
        %v1185 = vshrl.u32 %v1184, 7
        %v1186 = vsub.s32 %v1183, %v1185
        %v1187 = vrot.slane %v1173, %v1186
        %v1188 = vcombine.low %v1180, %v1187
        %v1189 = vcombine.low %v928, %v932
        %v1190 = vcombine.low %v936, %v940
        %v1192 = vunpack.c.l.s4 1983009808
        %v1193 = vunpack.c.0.s8 %v1192
        %v1194 = vlaneseq
        %v1195 = vshrl.u32 %v1194, 7
        %v1196 = vsub.s32 %v1193, %v1195
        %v1197 = vrot.slane %v1189, %v1196
        %v1199 = vunpack.c.l.s4 1983009808
        %v1200 = vunpack.c.0.s8 %v1199
        %v1201 = vlaneseq
        %v1202 = vshrl.u32 %v1201, 7
        %v1203 = vsub.s32 %v1200, %v1202
        %v1204 = vrot.slane %v1190, %v1203
        %v1205 = vcombine.low %v1197, %v1204
        %v1206 = vcombine.low %v944, %v948
        %v1207 = vcombine.low %v952, %v956
        %v1209 = vunpack.c.l.s4 1983009808
        %v1210 = vunpack.c.0.s8 %v1209
        %v1211 = vlaneseq
        %v1212 = vshrl.u32 %v1211, 7
        %v1213 = vsub.s32 %v1210, %v1212
        %v1214 = vrot.slane %v1206, %v1213
        %v1216 = vunpack.c.l.s4 1983009808
        %v1217 = vunpack.c.0.s8 %v1216
        %v1218 = vlaneseq
        %v1219 = vshrl.u32 %v1218, 7
        %v1220 = vsub.s32 %v1217, %v1219
        %v1221 = vrot.slane %v1207, %v1220
        %v1222 = vcombine.low %v1214, %v1221
        %v1223 = vcombine.low %v960, %v964
        %v1224 = vcombine.low %v968, %v972
        %v1226 = vunpack.c.l.s4 1983009808
        %v1227 = vunpack.c.0.s8 %v1226
        %v1228 = vlaneseq
        %v1229 = vshrl.u32 %v1228, 7
        %v1230 = vsub.s32 %v1227, %v1229
        %v1231 = vrot.slane %v1223, %v1230
        %v1233 = vunpack.c.l.s4 1983009808
        %v1234 = vunpack.c.0.s8 %v1233
        %v1235 = vlaneseq
        %v1236 = vshrl.u32 %v1235, 7
        %v1237 = vsub.s32 %v1234, %v1236
        %v1238 = vrot.slane %v1224, %v1237
        %v1239 = vcombine.low %v1231, %v1238
        %v1240 = vcombine.low %v976, %v980
        %v1241 = vcombine.low %v984, %v988
        %v1243 = vunpack.c.l.s4 1983009808
        %v1244 = vunpack.c.0.s8 %v1243
        %v1245 = vlaneseq
        %v1246 = vshrl.u32 %v1245, 7
        %v1247 = vsub.s32 %v1244, %v1246
        %v1248 = vrot.slane %v1240, %v1247
        %v1250 = vunpack.c.l.s4 1983009808
        %v1251 = vunpack.c.0.s8 %v1250
        %v1252 = vlaneseq
        %v1253 = vshrl.u32 %v1252, 7
        %v1254 = vsub.s32 %v1251, %v1253
        %v1255 = vrot.slane %v1241, %v1254
        %v1256 = vcombine.low %v1248, %v1255
        %v1257 = vcombine.low %v992, %v996
        %v1258 = vcombine.low %v1000, %v1004
        %v1260 = vunpack.c.l.s4 1983009808
        %v1261 = vunpack.c.0.s8 %v1260
        %v1262 = vlaneseq
        %v1263 = vshrl.u32 %v1262, 7
        %v1264 = vsub.s32 %v1261, %v1263
        %v1265 = vrot.slane %v1257, %v1264
        %v1267 = vunpack.c.l.s4 1983009808
        %v1268 = vunpack.c.0.s8 %v1267
        %v1269 = vlaneseq
        %v1270 = vshrl.u32 %v1269, 7
        %v1271 = vsub.s32 %v1268, %v1270
        %v1272 = vrot.slane %v1258, %v1271
        %v1273 = vcombine.low %v1265, %v1272
        %v1274 = vcombine.low %v1008, %v1012
        %v1275 = vcombine.low %v1016, %v1020
        %v1277 = vunpack.c.l.s4 1983009808
        %v1278 = vunpack.c.0.s8 %v1277
        %v1279 = vlaneseq
        %v1280 = vshrl.u32 %v1279, 7
        %v1281 = vsub.s32 %v1278, %v1280
        %v1282 = vrot.slane %v1274, %v1281
        %v1284 = vunpack.c.l.s4 1983009808
        %v1285 = vunpack.c.0.s8 %v1284
        %v1286 = vlaneseq
        %v1287 = vshrl.u32 %v1286, 7
        %v1288 = vsub.s32 %v1285, %v1287
        %v1289 = vrot.slane %v1275, %v1288
        %v1290 = vcombine.low %v1282, %v1289
        %v1291 = vcombine.low %v1024, %v1028
        %v1292 = vcombine.low %v1032, %v1036
        %v1294 = vunpack.c.l.s4 1983009808
        %v1295 = vunpack.c.0.s8 %v1294
        %v1296 = vlaneseq
        %v1297 = vshrl.u32 %v1296, 7
        %v1298 = vsub.s32 %v1295, %v1297
        %v1299 = vrot.slane %v1291, %v1298
        %v1301 = vunpack.c.l.s4 1983009808
        %v1302 = vunpack.c.0.s8 %v1301
        %v1303 = vlaneseq
        %v1304 = vshrl.u32 %v1303, 7
        %v1305 = vsub.s32 %v1302, %v1304
        %v1306 = vrot.slane %v1292, %v1305
        %v1307 = vcombine.low %v1299, %v1306
        %v1308 = vcombine.low %v1040, %v1044
        %v1309 = vcombine.low %v1048, %v1052
        %v1311 = vunpack.c.l.s4 1983009808
        %v1312 = vunpack.c.0.s8 %v1311
        %v1313 = vlaneseq
        %v1314 = vshrl.u32 %v1313, 7
        %v1315 = vsub.s32 %v1312, %v1314
        %v1316 = vrot.slane %v1308, %v1315
        %v1318 = vunpack.c.l.s4 1983009808
        %v1319 = vunpack.c.0.s8 %v1318
        %v1320 = vlaneseq
        %v1321 = vshrl.u32 %v1320, 7
        %v1322 = vsub.s32 %v1319, %v1321
        %v1323 = vrot.slane %v1309, %v1322
        %v1324 = vcombine.low %v1316, %v1323
        %v1341 = vpack.c.bf16 %v1086, %v1069
        %v1342 = vpack.c.bf16 %v1120, %v1103
        %v1343 = vpack.c.bf16 %v1154, %v1137
        %v1344 = vpack.c.bf16 %v1188, %v1171
        %v1345 = vpack.c.bf16 %v1222, %v1205
        %v1346 = vpack.c.bf16 %v1256, %v1239
        %v1347 = vpack.c.bf16 %v1290, %v1273
        %v1348 = vpack.c.bf16 %v1324, %v1307
        %v1357 = vunpack.c.l.b16 %v1341
        %v1358 = vunpack.c.h.b16 %v1341
        %v1359 = vunpack.c.l.b16 %v1342
        %v1360 = vunpack.c.h.b16 %v1342
        %v1361 = vunpack.c.l.b16 %v1343
        %v1362 = vunpack.c.h.b16 %v1343
        %v1363 = vunpack.c.l.b16 %v1344
        %v1364 = vunpack.c.h.b16 %v1344
        %v1365 = vunpack.c.l.b16 %v1345
        %v1366 = vunpack.c.h.b16 %v1345
        %v1367 = vunpack.c.l.b16 %v1346
        %v1368 = vunpack.c.h.b16 %v1346
        %v1369 = vunpack.c.l.b16 %v1347
        %v1370 = vunpack.c.h.b16 %v1347
        %v1371 = vunpack.c.l.b16 %v1348
        %v1372 = vunpack.c.h.b16 %v1348
        %v1373 = vpack.c.b16 %v1357, %v1357
        %v1374 = vpack.c.b16 %v1358, %v1358
        %v1375 = vpack.c.b16 %v1359, %v1359
        %v1376 = vpack.c.b16 %v1360, %v1360
        %v1377 = vpack.c.b16 %v1361, %v1361
        %v1378 = vpack.c.b16 %v1362, %v1362
        %v1379 = vpack.c.b16 %v1363, %v1363
        %v1380 = vpack.c.b16 %v1364, %v1364
        %v1381 = vpack.c.b16 %v1365, %v1365
        %v1382 = vpack.c.b16 %v1366, %v1366
        %v1383 = vpack.c.b16 %v1367, %v1367
        %v1384 = vpack.c.b16 %v1368, %v1368
        %v1385 = vpack.c.b16 %v1369, %v1369
        %v1386 = vpack.c.b16 %v1370, %v1370
        %v1387 = vpack.c.b16 %v1371, %v1371
        %v1388 = vpack.c.b16 %v1372, %v1372
        %vm1389 = vsmask.f32 256
        %vm1390 = vsmask.f32 4368
        %vm1391 = vmor %vm1389, %vm1390
        %v1393 = vshrl.u32 %v1373, 16
        %v1395 = vrot.slane %v1393, 7
        %v1396 = vshll.u32 %v1373, 16
        %v1398 = vor.u32 %v1395, %v1396
        %v1399 = vrot.slane %v1395, 4
        %v1401 = vshrl.u32 %v1374, 16
        %v1403 = vrot.slane %v1401, 7
        %v1404 = vshll.u32 %v1374, 16
        %v1406 = vor.u32 %v1403, %v1404
        %v1407 = vsel %vm1391, %v1399, %v1406
        %v1408 = vrot.slane %v1403, 4
        %v1410 = vshrl.u32 %v1375, 16
        %v1412 = vrot.slane %v1410, 7
        %v1413 = vshll.u32 %v1375, 16
        %v1415 = vor.u32 %v1412, %v1413
        %v1416 = vrot.slane %v1412, 4
        %v1418 = vshrl.u32 %v1376, 16
        %v1420 = vrot.slane %v1418, 7
        %v1421 = vshll.u32 %v1376, 16
        %v1423 = vor.u32 %v1420, %v1421
        %v1424 = vsel %vm1391, %v1416, %v1423
        %v1425 = vrot.slane %v1420, 4
        %v1427 = vshrl.u32 %v1377, 16
        %v1429 = vrot.slane %v1427, 7
        %v1430 = vshll.u32 %v1377, 16
        %v1432 = vor.u32 %v1429, %v1430
        %v1433 = vrot.slane %v1429, 4
        %v1435 = vshrl.u32 %v1378, 16
        %v1437 = vrot.slane %v1435, 7
        %v1438 = vshll.u32 %v1378, 16
        %v1440 = vor.u32 %v1437, %v1438
        %v1441 = vsel %vm1391, %v1433, %v1440
        %v1442 = vrot.slane %v1437, 4
        %v1444 = vshrl.u32 %v1379, 16
        %v1446 = vrot.slane %v1444, 7
        %v1447 = vshll.u32 %v1379, 16
        %v1449 = vor.u32 %v1446, %v1447
        %v1450 = vrot.slane %v1446, 4
        %v1452 = vshrl.u32 %v1380, 16
        %v1454 = vrot.slane %v1452, 7
        %v1455 = vshll.u32 %v1380, 16
        %v1457 = vor.u32 %v1454, %v1455
        %v1458 = vsel %vm1391, %v1450, %v1457
        %v1459 = vrot.slane %v1454, 4
        %v1461 = vshrl.u32 %v1381, 16
        %v1463 = vrot.slane %v1461, 7
        %v1464 = vshll.u32 %v1381, 16
        %v1466 = vor.u32 %v1463, %v1464
        %v1467 = vrot.slane %v1463, 4
        %v1469 = vshrl.u32 %v1382, 16
        %v1471 = vrot.slane %v1469, 7
        %v1472 = vshll.u32 %v1382, 16
        %v1474 = vor.u32 %v1471, %v1472
        %v1475 = vsel %vm1391, %v1467, %v1474
        %v1476 = vrot.slane %v1471, 4
        %v1478 = vshrl.u32 %v1383, 16
        %v1480 = vrot.slane %v1478, 7
        %v1481 = vshll.u32 %v1383, 16
        %v1483 = vor.u32 %v1480, %v1481
        %v1484 = vrot.slane %v1480, 4
        %v1486 = vshrl.u32 %v1384, 16
        %v1488 = vrot.slane %v1486, 7
        %v1489 = vshll.u32 %v1384, 16
        %v1491 = vor.u32 %v1488, %v1489
        %v1492 = vsel %vm1391, %v1484, %v1491
        %v1493 = vrot.slane %v1488, 4
        %v1495 = vshrl.u32 %v1385, 16
        %v1497 = vrot.slane %v1495, 7
        %v1498 = vshll.u32 %v1385, 16
        %v1500 = vor.u32 %v1497, %v1498
        %v1501 = vrot.slane %v1497, 4
        %v1503 = vshrl.u32 %v1386, 16
        %v1505 = vrot.slane %v1503, 7
        %v1506 = vshll.u32 %v1386, 16
        %v1508 = vor.u32 %v1505, %v1506
        %v1509 = vsel %vm1391, %v1501, %v1508
        %v1510 = vrot.slane %v1505, 4
        %v1512 = vshrl.u32 %v1387, 16
        %v1514 = vrot.slane %v1512, 7
        %v1515 = vshll.u32 %v1387, 16
        %v1517 = vor.u32 %v1514, %v1515
        %v1518 = vrot.slane %v1514, 4
        %v1520 = vshrl.u32 %v1388, 16
        %v1522 = vrot.slane %v1520, 7
        %v1523 = vshll.u32 %v1388, 16
        %v1525 = vor.u32 %v1522, %v1523
        %v1526 = vsel %vm1391, %v1518, %v1525
        %v1527 = vrot.slane %v1522, 4
        %s1552 = scalar_lea.vmem [#allocation2], 12
        %vm1553 = vcmask 1043456
        %vm1554 = vsmask.f32 7938
        %vm1555 = vmand %vm1553, %vm1554
        %v1556 = vld [vmem:[%s1552] sm:$0xf]
        %v1557 = vsel %vm1555, %v1398, %v1556
        %1558 = vst [vmem:[%s1552] sm:$0xf] %v1557
        %1559 = vst [vmem:[%s1552 + $0x4] sm:$0xf] %v1407
        %vm1560 = vcmask 1040384
        %vm1561 = vmand %vm1560, %vm1389
        %v1562 = vld [vmem:[%s1552 + $0x8] sm:$0x1]
        %v1563 = vsel %vm1561, %v1408, %v1562
        %1564 = vst [vmem:[%s1552 + $0x8] sm:$0x1] %v1563
        %v1565 = vld [vmem:[%s1552 + $0xc] sm:$0xf]
        %v1566 = vsel %vm1555, %v1398, %v1565
        %1567 = vst [vmem:[%s1552 + $0xc] sm:$0xf] %v1566
        %1568 = vst [vmem:[%s1552 + $0x10] sm:$0xf] %v1407
        %v1569 = vld [vmem:[%s1552 + $0x14] sm:$0x1]
        %v1570 = vsel %vm1561, %v1408, %v1569
        %1571 = vst [vmem:[%s1552 + $0x14] sm:$0x1] %v1570
        %v1572 = vld [vmem:[%s1552 + $0x18] sm:$0xf]
        %v1573 = vsel %vm1555, %v1415, %v1572
        %1574 = vst [vmem:[%s1552 + $0x18] sm:$0xf] %v1573
        %1575 = vst [vmem:[%s1552 + $0x1c] sm:$0xf] %v1424
        %v1576 = vld [vmem:[%s1552 + $0x20] sm:$0x1]
        %v1577 = vsel %vm1561, %v1425, %v1576
        %1578 = vst [vmem:[%s1552 + $0x20] sm:$0x1] %v1577
        %v1579 = vld [vmem:[%s1552 + $0x24] sm:$0xf]
        %v1580 = vsel %vm1555, %v1415, %v1579
        %1581 = vst [vmem:[%s1552 + $0x24] sm:$0xf] %v1580
        %1582 = vst [vmem:[%s1552 + $0x28] sm:$0xf] %v1424
        %v1583 = vld [vmem:[%s1552 + $0x2c] sm:$0x1]
        %v1584 = vsel %vm1561, %v1425, %v1583
        %1585 = vst [vmem:[%s1552 + $0x2c] sm:$0x1] %v1584
        %v1586 = vld [vmem:[%s1552 + $0x30] sm:$0xf]
        %v1587 = vsel %vm1555, %v1432, %v1586
        %1588 = vst [vmem:[%s1552 + $0x30] sm:$0xf] %v1587
        %1589 = vst [vmem:[%s1552 + $0x34] sm:$0xf] %v1441
        %v1590 = vld [vmem:[%s1552 + $0x38] sm:$0x1]
        %v1591 = vsel %vm1561, %v1442, %v1590
        %1592 = vst [vmem:[%s1552 + $0x38] sm:$0x1] %v1591
        %v1593 = vld [vmem:[%s1552 + $0x3c] sm:$0xf]
        %v1594 = vsel %vm1555, %v1432, %v1593
        %1595 = vst [vmem:[%s1552 + $0x3c] sm:$0xf] %v1594
        %1596 = vst [vmem:[%s1552 + $0x40] sm:$0xf] %v1441
        %v1597 = vld [vmem:[%s1552 + $0x44] sm:$0x1]
        %v1598 = vsel %vm1561, %v1442, %v1597
        %1599 = vst [vmem:[%s1552 + $0x44] sm:$0x1] %v1598
        %v1600 = vld [vmem:[%s1552 + $0x48] sm:$0xf]
        %v1601 = vsel %vm1555, %v1449, %v1600
        %1602 = vst [vmem:[%s1552 + $0x48] sm:$0xf] %v1601
        %1603 = vst [vmem:[%s1552 + $0x4c] sm:$0xf] %v1458
        %v1604 = vld [vmem:[%s1552 + $0x50] sm:$0x1]
        %v1605 = vsel %vm1561, %v1459, %v1604
        %1606 = vst [vmem:[%s1552 + $0x50] sm:$0x1] %v1605
        %v1607 = vld [vmem:[%s1552 + $0x54] sm:$0xf]
        %v1608 = vsel %vm1555, %v1449, %v1607
        %1609 = vst [vmem:[%s1552 + $0x54] sm:$0xf] %v1608
        %1610 = vst [vmem:[%s1552 + $0x58] sm:$0xf] %v1458
        %v1611 = vld [vmem:[%s1552 + $0x5c] sm:$0x1]
        %v1612 = vsel %vm1561, %v1459, %v1611
        %1613 = vst [vmem:[%s1552 + $0x5c] sm:$0x1] %v1612
        %v1614 = vld [vmem:[%s1552 + $0x60] sm:$0xf]
        %v1615 = vsel %vm1555, %v1466, %v1614
        %1616 = vst [vmem:[%s1552 + $0x60] sm:$0xf] %v1615
        %1617 = vst [vmem:[%s1552 + $0x64] sm:$0xf] %v1475
        %v1618 = vld [vmem:[%s1552 + $0x68] sm:$0x1]
        %v1619 = vsel %vm1561, %v1476, %v1618
        %1620 = vst [vmem:[%s1552 + $0x68] sm:$0x1] %v1619
        %v1621 = vld [vmem:[%s1552 + $0x6c] sm:$0xf]
        %v1622 = vsel %vm1555, %v1466, %v1621
        %1623 = vst [vmem:[%s1552 + $0x6c] sm:$0xf] %v1622
        %1624 = vst [vmem:[%s1552 + $0x70] sm:$0xf] %v1475
        %v1625 = vld [vmem:[%s1552 + $0x74] sm:$0x1]
        %v1626 = vsel %vm1561, %v1476, %v1625
        %1627 = vst [vmem:[%s1552 + $0x74] sm:$0x1] %v1626
        %v1628 = vld [vmem:[%s1552 + $0x78] sm:$0xf]
        %v1629 = vsel %vm1555, %v1483, %v1628
        %1630 = vst [vmem:[%s1552 + $0x78] sm:$0xf] %v1629
        %1631 = vst [vmem:[%s1552 + $0x7c] sm:$0xf] %v1492
        %v1632 = vld [vmem:[%s1552 + $0x80] sm:$0x1]
        %v1633 = vsel %vm1561, %v1493, %v1632
        %1634 = vst [vmem:[%s1552 + $0x80] sm:$0x1] %v1633
        %v1635 = vld [vmem:[%s1552 + $0x84] sm:$0xf]
        %v1636 = vsel %vm1555, %v1483, %v1635
        %1637 = vst [vmem:[%s1552 + $0x84] sm:$0xf] %v1636
        %1638 = vst [vmem:[%s1552 + $0x88] sm:$0xf] %v1492
        %v1639 = vld [vmem:[%s1552 + $0x8c] sm:$0x1]
        %v1640 = vsel %vm1561, %v1493, %v1639
        %1641 = vst [vmem:[%s1552 + $0x8c] sm:$0x1] %v1640
        %v1642 = vld [vmem:[%s1552 + $0x90] sm:$0xf]
        %v1643 = vsel %vm1555, %v1500, %v1642
        %1644 = vst [vmem:[%s1552 + $0x90] sm:$0xf] %v1643
        %1645 = vst [vmem:[%s1552 + $0x94] sm:$0xf] %v1509
        %v1646 = vld [vmem:[%s1552 + $0x98] sm:$0x1]
        %v1647 = vsel %vm1561, %v1510, %v1646
        %1648 = vst [vmem:[%s1552 + $0x98] sm:$0x1] %v1647
        %v1649 = vld [vmem:[%s1552 + $0x9c] sm:$0xf]
        %v1650 = vsel %vm1555, %v1500, %v1649
        %1651 = vst [vmem:[%s1552 + $0x9c] sm:$0xf] %v1650
        %1652 = vst [vmem:[%s1552 + $0xa0] sm:$0xf] %v1509
        %v1653 = vld [vmem:[%s1552 + $0xa4] sm:$0x1]
        %v1654 = vsel %vm1561, %v1510, %v1653
        %1655 = vst [vmem:[%s1552 + $0xa4] sm:$0x1] %v1654
        %v1656 = vld [vmem:[%s1552 + $0xa8] sm:$0xf]
        %v1657 = vsel %vm1555, %v1517, %v1656
        %1658 = vst [vmem:[%s1552 + $0xa8] sm:$0xf] %v1657
        %1659 = vst [vmem:[%s1552 + $0xac] sm:$0xf] %v1526
        %v1660 = vld [vmem:[%s1552 + $0xb0] sm:$0x1]
        %v1661 = vsel %vm1561, %v1527, %v1660
        %1662 = vst [vmem:[%s1552 + $0xb0] sm:$0x1] %v1661
        %v1663 = vld [vmem:[%s1552 + $0xb4] sm:$0xf]
        %v1664 = vsel %vm1555, %v1517, %v1663
        %1665 = vst [vmem:[%s1552 + $0xb4] sm:$0xf] %v1664
        %1666 = vst [vmem:[%s1552 + $0xb8] sm:$0xf] %v1526
        %v1667 = vld [vmem:[%s1552 + $0xbc] sm:$0x1]
        %v1668 = vsel %vm1561, %v1527, %v1667
        %1669 = vst [vmem:[%s1552 + $0xbc] sm:$0x1] %v1668
        %v1670 = vld [vmem:[#allocation7] sm:$0xf]
        %v1671 = vld [vmem:[#allocation7 + $0x4] sm:$0xf]
        %v1672 = vld [vmem:[#allocation7 + $0x8] sm:$0xf]
        %v1673 = vld [vmem:[#allocation7 + $0xc] sm:$0xf]
        %v1674 = vld [vmem:[#allocation7 + $0x10] sm:$0xf]
        %v1675 = vld [vmem:[#allocation7 + $0x14] sm:$0xf]
        %v1676 = vld [vmem:[#allocation7 + $0x18] sm:$0xf]
        %v1677 = vld [vmem:[#allocation7 + $0x1c] sm:$0xf]
        %v1678 = vld [vmem:[#allocation7 + $0x20] sm:$0xf]
        %v1679 = vld [vmem:[#allocation7 + $0x24] sm:$0xf]
        %v1680 = vld [vmem:[#allocation7 + $0x28] sm:$0xf]
        %v1681 = vld [vmem:[#allocation7 + $0x2c] sm:$0xf]
        %v1682 = vld [vmem:[#allocation7 + $0x30] sm:$0xf]
        %v1683 = vld [vmem:[#allocation7 + $0x34] sm:$0xf]
        %v1684 = vld [vmem:[#allocation7 + $0x38] sm:$0xf]
        %v1685 = vld [vmem:[#allocation7 + $0x3c] sm:$0xf]
        %v1686 = vld [vmem:[#allocation7 + $0x40] sm:$0xf]
        %v1687 = vld [vmem:[#allocation7 + $0x44] sm:$0xf]
        %v1688 = vld [vmem:[#allocation7 + $0x48] sm:$0xf]
        %v1689 = vld [vmem:[#allocation7 + $0x4c] sm:$0xf]
        %v1690 = vld [vmem:[#allocation7 + $0x50] sm:$0xf]
        %v1691 = vld [vmem:[#allocation7 + $0x54] sm:$0xf]
        %v1692 = vld [vmem:[#allocation7 + $0x58] sm:$0xf]
        %v1693 = vld [vmem:[#allocation7 + $0x5c] sm:$0xf]
        %v1694 = vld [vmem:[#allocation7 + $0x60] sm:$0xf]
        %v1695 = vld [vmem:[#allocation7 + $0x64] sm:$0xf]
        %v1696 = vld [vmem:[#allocation7 + $0x68] sm:$0xf]
        %v1697 = vld [vmem:[#allocation7 + $0x6c] sm:$0xf]
        %v1698 = vld [vmem:[#allocation7 + $0x70] sm:$0xf]
        %v1699 = vld [vmem:[#allocation7 + $0x74] sm:$0xf]
        %v1700 = vld [vmem:[#allocation7 + $0x78] sm:$0xf]
        %v1701 = vld [vmem:[#allocation7 + $0x7c] sm:$0xf]
        %v1702 = vld [vmem:[#allocation7 + $0x80] sm:$0xf]
        %v1703 = vld [vmem:[#allocation7 + $0x84] sm:$0xf]
        %v1704 = vld [vmem:[#allocation7 + $0x88] sm:$0xf]
        %v1705 = vld [vmem:[#allocation7 + $0x8c] sm:$0xf]
        %v1706 = vld [vmem:[#allocation7 + $0x90] sm:$0xf]
        %v1707 = vld [vmem:[#allocation7 + $0x94] sm:$0xf]
        %v1708 = vld [vmem:[#allocation7 + $0x98] sm:$0xf]
        %v1709 = vld [vmem:[#allocation7 + $0x9c] sm:$0xf]
        %v1710 = vld [vmem:[#allocation7 + $0xa0] sm:$0xf]
        %v1711 = vld [vmem:[#allocation7 + $0xa4] sm:$0xf]
        %v1712 = vld [vmem:[#allocation7 + $0xa8] sm:$0xf]
        %v1713 = vld [vmem:[#allocation7 + $0xac] sm:$0xf]
        %v1714 = vld [vmem:[#allocation7 + $0xb0] sm:$0xf]
        %v1715 = vld [vmem:[#allocation7 + $0xb4] sm:$0xf]
        %v1716 = vld [vmem:[#allocation7 + $0xb8] sm:$0xf]
        %v1717 = vld [vmem:[#allocation7 + $0xbc] sm:$0xf]
        %v1718 = vld [vmem:[#allocation7 + $0xc0] sm:$0xf]
        %v1719 = vld [vmem:[#allocation7 + $0xc4] sm:$0xf]
        %v1720 = vld [vmem:[#allocation7 + $0xc8] sm:$0xf]
        %v1721 = vld [vmem:[#allocation7 + $0xcc] sm:$0xf]
        %v1722 = vld [vmem:[#allocation7 + $0xd0] sm:$0xf]
        %v1723 = vld [vmem:[#allocation7 + $0xd4] sm:$0xf]
        %v1724 = vld [vmem:[#allocation7 + $0xd8] sm:$0xf]
        %v1725 = vld [vmem:[#allocation7 + $0xdc] sm:$0xf]
        %v1726 = vld [vmem:[#allocation7 + $0xe0] sm:$0xf]
        %v1727 = vld [vmem:[#allocation7 + $0xe4] sm:$0xf]
        %v1728 = vld [vmem:[#allocation7 + $0xe8] sm:$0xf]
        %v1729 = vld [vmem:[#allocation7 + $0xec] sm:$0xf]
        %v1730 = vld [vmem:[#allocation7 + $0xf0] sm:$0xf]
        %v1731 = vld [vmem:[#allocation7 + $0xf4] sm:$0xf]
        %v1732 = vld [vmem:[#allocation7 + $0xf8] sm:$0xf]
        %v1733 = vld [vmem:[#allocation7 + $0xfc] sm:$0xf]
        %v1734 = vld [vmem:[#allocation7 + $0x100] sm:$0xf]
        %v1735 = vld [vmem:[#allocation7 + $0x104] sm:$0xf]
        %v1736 = vld [vmem:[#allocation7 + $0x108] sm:$0xf]
        %v1737 = vld [vmem:[#allocation7 + $0x10c] sm:$0xf]
        %v1738 = vld [vmem:[#allocation7 + $0x110] sm:$0xf]
        %v1739 = vld [vmem:[#allocation7 + $0x114] sm:$0xf]
        %v1740 = vld [vmem:[#allocation7 + $0x118] sm:$0xf]
        %v1741 = vld [vmem:[#allocation7 + $0x11c] sm:$0xf]
        %v1742 = vld [vmem:[#allocation7 + $0x120] sm:$0xf]
        %v1743 = vld [vmem:[#allocation7 + $0x124] sm:$0xf]
        %v1744 = vld [vmem:[#allocation7 + $0x128] sm:$0xf]
        %v1745 = vld [vmem:[#allocation7 + $0x12c] sm:$0xf]
        %v1746 = vld [vmem:[#allocation7 + $0x130] sm:$0xf]
        %v1747 = vld [vmem:[#allocation7 + $0x134] sm:$0xf]
        %v1748 = vld [vmem:[#allocation7 + $0x138] sm:$0xf]
        %v1749 = vld [vmem:[#allocation7 + $0x13c] sm:$0xf]
        %v1750 = vld [vmem:[#allocation7 + $0x140] sm:$0xf]
        %v1751 = vld [vmem:[#allocation7 + $0x144] sm:$0xf]
        %v1752 = vld [vmem:[#allocation7 + $0x148] sm:$0xf]
        %v1753 = vld [vmem:[#allocation7 + $0x14c] sm:$0xf]
        %v1754 = vld [vmem:[#allocation7 + $0x150] sm:$0xf]
        %v1755 = vld [vmem:[#allocation7 + $0x154] sm:$0xf]
        %v1756 = vld [vmem:[#allocation7 + $0x158] sm:$0xf]
        %v1757 = vld [vmem:[#allocation7 + $0x15c] sm:$0xf]
        %v1758 = vld [vmem:[#allocation7 + $0x160] sm:$0xf]
        %v1759 = vld [vmem:[#allocation7 + $0x164] sm:$0xf]
        %v1760 = vld [vmem:[#allocation7 + $0x168] sm:$0xf]
        %v1761 = vld [vmem:[#allocation7 + $0x16c] sm:$0xf]
        %v1762 = vld [vmem:[#allocation7 + $0x170] sm:$0xf]
        %v1763 = vld [vmem:[#allocation7 + $0x174] sm:$0xf]
        %v1764 = vld [vmem:[#allocation7 + $0x178] sm:$0xf]
        %v1765 = vld [vmem:[#allocation7 + $0x17c] sm:$0xf]
        %v1766 = vld [vmem:[#allocation7 + $0x180] sm:$0xf]
        %v1767 = vld [vmem:[#allocation7 + $0x184] sm:$0xf]
        %v1768 = vld [vmem:[#allocation7 + $0x188] sm:$0xf]
        %v1769 = vld [vmem:[#allocation7 + $0x18c] sm:$0xf]
        %v1770 = vld [vmem:[#allocation7 + $0x190] sm:$0xf]
        %v1771 = vld [vmem:[#allocation7 + $0x194] sm:$0xf]
        %v1772 = vld [vmem:[#allocation7 + $0x198] sm:$0xf]
        %v1773 = vld [vmem:[#allocation7 + $0x19c] sm:$0xf]
        %v1774 = vld [vmem:[#allocation7 + $0x1a0] sm:$0xf]
        %v1775 = vld [vmem:[#allocation7 + $0x1a4] sm:$0xf]
        %v1776 = vld [vmem:[#allocation7 + $0x1a8] sm:$0xf]
        %v1777 = vld [vmem:[#allocation7 + $0x1ac] sm:$0xf]
        %v1778 = vld [vmem:[#allocation7 + $0x1b0] sm:$0xf]
        %v1779 = vld [vmem:[#allocation7 + $0x1b4] sm:$0xf]
        %v1780 = vld [vmem:[#allocation7 + $0x1b8] sm:$0xf]
        %v1781 = vld [vmem:[#allocation7 + $0x1bc] sm:$0xf]
        %v1782 = vld [vmem:[#allocation7 + $0x1c0] sm:$0xf]
        %v1783 = vld [vmem:[#allocation7 + $0x1c4] sm:$0xf]
        %v1784 = vld [vmem:[#allocation7 + $0x1c8] sm:$0xf]
        %v1785 = vld [vmem:[#allocation7 + $0x1cc] sm:$0xf]
        %v1786 = vld [vmem:[#allocation7 + $0x1d0] sm:$0xf]
        %v1787 = vld [vmem:[#allocation7 + $0x1d4] sm:$0xf]
        %v1788 = vld [vmem:[#allocation7 + $0x1d8] sm:$0xf]
        %v1789 = vld [vmem:[#allocation7 + $0x1dc] sm:$0xf]
        %v1790 = vld [vmem:[#allocation7 + $0x1e0] sm:$0xf]
        %v1791 = vld [vmem:[#allocation7 + $0x1e4] sm:$0xf]
        %v1792 = vld [vmem:[#allocation7 + $0x1e8] sm:$0xf]
        %v1793 = vld [vmem:[#allocation7 + $0x1ec] sm:$0xf]
        %v1794 = vld [vmem:[#allocation7 + $0x1f0] sm:$0xf]
        %v1795 = vld [vmem:[#allocation7 + $0x1f4] sm:$0xf]
        %v1796 = vld [vmem:[#allocation7 + $0x1f8] sm:$0xf]
        %v1797 = vld [vmem:[#allocation7 + $0x1fc] sm:$0xf]
        %v1798 = vld [vmem:[#allocation7 + $0x200] sm:$0xf]
        %v1799 = vld [vmem:[#allocation7 + $0x204] sm:$0xf]
        %v1800 = vld [vmem:[#allocation7 + $0x208] sm:$0xf]
        %v1801 = vld [vmem:[#allocation7 + $0x20c] sm:$0xf]
        %v1802 = vld [vmem:[#allocation7 + $0x210] sm:$0xf]
        %v1803 = vld [vmem:[#allocation7 + $0x214] sm:$0xf]
        %v1804 = vld [vmem:[#allocation7 + $0x218] sm:$0xf]
        %v1805 = vld [vmem:[#allocation7 + $0x21c] sm:$0xf]
        %v1806 = vld [vmem:[#allocation7 + $0x220] sm:$0xf]
        %v1807 = vld [vmem:[#allocation7 + $0x224] sm:$0xf]
        %v1808 = vld [vmem:[#allocation7 + $0x228] sm:$0xf]
        %v1809 = vld [vmem:[#allocation7 + $0x22c] sm:$0xf]
        %v1810 = vld [vmem:[#allocation7 + $0x230] sm:$0xf]
        %v1811 = vld [vmem:[#allocation7 + $0x234] sm:$0xf]
        %v1812 = vld [vmem:[#allocation7 + $0x238] sm:$0xf]
        %v1813 = vld [vmem:[#allocation7 + $0x23c] sm:$0xf]
        %v1814 = vld [vmem:[%s2] sm:$0x1]
        %v1815 = vld [vmem:[#allocation2] sm:$0xf]
        %v1816 = vld [vmem:[#allocation2 + $0x4] sm:$0xf]
        %v1817 = vld [vmem:[#allocation2 + $0xc] sm:$0xf]
        %v1818 = vld [vmem:[#allocation2 + $0x10] sm:$0xf]
        %v1819 = vld [vmem:[#allocation2 + $0x18] sm:$0xf]
        %v1820 = vld [vmem:[#allocation2 + $0x1c] sm:$0xf]
        %v1821 = vld [vmem:[#allocation2 + $0x24] sm:$0xf]
        %v1822 = vld [vmem:[#allocation2 + $0x28] sm:$0xf]
        %v1823 = vld [vmem:[#allocation2 + $0x30] sm:$0xf]
        %v1824 = vld [vmem:[#allocation2 + $0x34] sm:$0xf]
        %v1825 = vld [vmem:[#allocation2 + $0x3c] sm:$0xf]
        %v1826 = vld [vmem:[#allocation2 + $0x40] sm:$0xf]
        %v1827 = vld [vmem:[#allocation2 + $0x48] sm:$0xf]
        %v1828 = vld [vmem:[#allocation2 + $0x4c] sm:$0xf]
        %v1829 = vld [vmem:[#allocation2 + $0x54] sm:$0xf]
        %v1830 = vld [vmem:[#allocation2 + $0x58] sm:$0xf]
        %v1831 = vld [vmem:[#allocation2 + $0x60] sm:$0xf]
        %v1832 = vld [vmem:[#allocation2 + $0x64] sm:$0xf]
        %v1833 = vld [vmem:[#allocation2 + $0x6c] sm:$0xf]
        %v1834 = vld [vmem:[#allocation2 + $0x70] sm:$0xf]
        %v1835 = vld [vmem:[#allocation2 + $0x78] sm:$0xf]
        %v1836 = vld [vmem:[#allocation2 + $0x7c] sm:$0xf]
        %v1837 = vld [vmem:[#allocation2 + $0x84] sm:$0xf]
        %v1838 = vld [vmem:[#allocation2 + $0x88] sm:$0xf]
        %v1839 = vld [vmem:[#allocation2 + $0x90] sm:$0xf]
        %v1840 = vld [vmem:[#allocation2 + $0x94] sm:$0xf]
        %v1841 = vld [vmem:[#allocation2 + $0x9c] sm:$0xf]
        %v1842 = vld [vmem:[#allocation2 + $0xa0] sm:$0xf]
        %v1843 = vld [vmem:[#allocation2 + $0xa8] sm:$0xf]
        %v1844 = vld [vmem:[#allocation2 + $0xac] sm:$0xf]
        %v1845 = vld [vmem:[#allocation2 + $0xb4] sm:$0xf]
        %v1846 = vld [vmem:[#allocation2 + $0xb8] sm:$0xf]
        %v1847 = vld [vmem:[#allocation2 + $0x8] sm:$0x1]
        %v1848 = vld [vmem:[#allocation2 + $0x14] sm:$0x1]
        %v1849 = vld [vmem:[#allocation2 + $0x20] sm:$0x1]
        %v1850 = vld [vmem:[#allocation2 + $0x2c] sm:$0x1]
        %v1851 = vld [vmem:[#allocation2 + $0x38] sm:$0x1]
        %v1852 = vld [vmem:[#allocation2 + $0x44] sm:$0x1]
        %v1853 = vld [vmem:[#allocation2 + $0x50] sm:$0x1]
        %v1854 = vld [vmem:[#allocation2 + $0x5c] sm:$0x1]
        %v1855 = vld [vmem:[#allocation2 + $0x68] sm:$0x1]
        %v1856 = vld [vmem:[#allocation2 + $0x74] sm:$0x1]
        %v1857 = vld [vmem:[#allocation2 + $0x80] sm:$0x1]
        %v1858 = vld [vmem:[#allocation2 + $0x8c] sm:$0x1]
        %v1859 = vld [vmem:[#allocation2 + $0x98] sm:$0x1]
        %v1860 = vld [vmem:[#allocation2 + $0xa4] sm:$0x1]
        %v1861 = vld [vmem:[#allocation2 + $0xb0] sm:$0x1]
        %v1862 = vld [vmem:[#allocation2 + $0xbc] sm:$0x1]
        %vm1863 = vsmask.f32 3328
        %vm1864 = vsmask.f32 7440
        %vm1865 = vmor %vm1863, %vm1864
        %v1867 = vshrl.u32 %v1815, 16
        %v1869 = vrot.slane %v1867, 4
        %v1870 = vshll.u32 %v1815, 16
        %v1872 = vrot.slane %v1870, 5
        %v1873 = vor.u32 %v1869, %v1872
        %v1874 = vrot.slane %v1873, 4
        %v1876 = vshll.u32 %v1816, 16
        %v1878 = vrot.slane %v1876, 5
        %v1879 = vsel %vm1865, %v1874, %v1878
        %v1880 = vshrl.u32 %v1816, 16
        %v1882 = vrot.slane %v1880, 4
        %v1883 = vor.u32 %v1882, %v1878
        %v1884 = vrot.slane %v1883, 4
        %v1886 = vshll.u32 %v1847, 16
        %v1888 = vrot.slane %v1886, 5
        %v1889 = vsel %vm1865, %v1884, %v1888
        %v1891 = vshrl.u32 %v1817, 16
        %v1893 = vrot.slane %v1891, 4
        %v1894 = vshll.u32 %v1817, 16
        %v1896 = vrot.slane %v1894, 5
        %v1897 = vor.u32 %v1893, %v1896
        %v1898 = vrot.slane %v1897, 4
        %v1900 = vshll.u32 %v1818, 16
        %v1902 = vrot.slane %v1900, 5
        %v1903 = vsel %vm1865, %v1898, %v1902
        %v1904 = vshrl.u32 %v1818, 16
        %v1906 = vrot.slane %v1904, 4
        %v1907 = vor.u32 %v1906, %v1902
        %v1908 = vrot.slane %v1907, 4
        %v1910 = vshll.u32 %v1848, 16
        %v1912 = vrot.slane %v1910, 5
        %v1913 = vsel %vm1865, %v1908, %v1912
        %v1915 = vshrl.u32 %v1819, 16
        %v1917 = vrot.slane %v1915, 4
        %v1918 = vshll.u32 %v1819, 16
        %v1920 = vrot.slane %v1918, 5
        %v1921 = vor.u32 %v1917, %v1920
        %v1922 = vrot.slane %v1921, 4
        %v1924 = vshll.u32 %v1820, 16
        %v1926 = vrot.slane %v1924, 5
        %v1927 = vsel %vm1865, %v1922, %v1926
        %v1928 = vshrl.u32 %v1820, 16
        %v1930 = vrot.slane %v1928, 4
        %v1931 = vor.u32 %v1930, %v1926
        %v1932 = vrot.slane %v1931, 4
        %v1934 = vshll.u32 %v1849, 16
        %v1936 = vrot.slane %v1934, 5
        %v1937 = vsel %vm1865, %v1932, %v1936
        %v1939 = vshrl.u32 %v1821, 16
        %v1941 = vrot.slane %v1939, 4
        %v1942 = vshll.u32 %v1821, 16
        %v1944 = vrot.slane %v1942, 5
        %v1945 = vor.u32 %v1941, %v1944
        %v1946 = vrot.slane %v1945, 4
        %v1948 = vshll.u32 %v1822, 16
        %v1950 = vrot.slane %v1948, 5
        %v1951 = vsel %vm1865, %v1946, %v1950
        %v1952 = vshrl.u32 %v1822, 16
        %v1954 = vrot.slane %v1952, 4
        %v1955 = vor.u32 %v1954, %v1950
        %v1956 = vrot.slane %v1955, 4
        %v1958 = vshll.u32 %v1850, 16
        %v1960 = vrot.slane %v1958, 5
        %v1961 = vsel %vm1865, %v1956, %v1960
        %v1963 = vshrl.u32 %v1823, 16
        %v1965 = vrot.slane %v1963, 4
        %v1966 = vshll.u32 %v1823, 16
        %v1968 = vrot.slane %v1966, 5
        %v1969 = vor.u32 %v1965, %v1968
        %v1970 = vrot.slane %v1969, 4
        %v1972 = vshll.u32 %v1824, 16
        %v1974 = vrot.slane %v1972, 5
        %v1975 = vsel %vm1865, %v1970, %v1974
        %v1976 = vshrl.u32 %v1824, 16
        %v1978 = vrot.slane %v1976, 4
        %v1979 = vor.u32 %v1978, %v1974
        %v1980 = vrot.slane %v1979, 4
        %v1982 = vshll.u32 %v1851, 16
        %v1984 = vrot.slane %v1982, 5
        %v1985 = vsel %vm1865, %v1980, %v1984
        %v1987 = vshrl.u32 %v1825, 16
        %v1989 = vrot.slane %v1987, 4
        %v1990 = vshll.u32 %v1825, 16
        %v1992 = vrot.slane %v1990, 5
        %v1993 = vor.u32 %v1989, %v1992
        %v1994 = vrot.slane %v1993, 4
        %v1996 = vshll.u32 %v1826, 16
        %v1998 = vrot.slane %v1996, 5
        %v1999 = vsel %vm1865, %v1994, %v1998
        %v2000 = vshrl.u32 %v1826, 16
        %v2002 = vrot.slane %v2000, 4
        %v2003 = vor.u32 %v2002, %v1998
        %v2004 = vrot.slane %v2003, 4
        %v2006 = vshll.u32 %v1852, 16
        %v2008 = vrot.slane %v2006, 5
        %v2009 = vsel %vm1865, %v2004, %v2008
        %v2011 = vshrl.u32 %v1827, 16
        %v2013 = vrot.slane %v2011, 4
        %v2014 = vshll.u32 %v1827, 16
        %v2016 = vrot.slane %v2014, 5
        %v2017 = vor.u32 %v2013, %v2016
        %v2018 = vrot.slane %v2017, 4
        %v2020 = vshll.u32 %v1828, 16
        %v2022 = vrot.slane %v2020, 5
        %v2023 = vsel %vm1865, %v2018, %v2022
        %v2024 = vshrl.u32 %v1828, 16
        %v2026 = vrot.slane %v2024, 4
        %v2027 = vor.u32 %v2026, %v2022
        %v2028 = vrot.slane %v2027, 4
        %v2030 = vshll.u32 %v1853, 16
        %v2032 = vrot.slane %v2030, 5
        %v2033 = vsel %vm1865, %v2028, %v2032
        %v2035 = vshrl.u32 %v1829, 16
        %v2037 = vrot.slane %v2035, 4
        %v2038 = vshll.u32 %v1829, 16
        %v2040 = vrot.slane %v2038, 5
        %v2041 = vor.u32 %v2037, %v2040
        %v2042 = vrot.slane %v2041, 4
        %v2044 = vshll.u32 %v1830, 16
        %v2046 = vrot.slane %v2044, 5
        %v2047 = vsel %vm1865, %v2042, %v2046
        %v2048 = vshrl.u32 %v1830, 16
        %v2050 = vrot.slane %v2048, 4
        %v2051 = vor.u32 %v2050, %v2046
        %v2052 = vrot.slane %v2051, 4
        %v2054 = vshll.u32 %v1854, 16
        %v2056 = vrot.slane %v2054, 5
        %v2057 = vsel %vm1865, %v2052, %v2056
        %v2059 = vshrl.u32 %v1831, 16
        %v2061 = vrot.slane %v2059, 4
        %v2062 = vshll.u32 %v1831, 16
        %v2064 = vrot.slane %v2062, 5
        %v2065 = vor.u32 %v2061, %v2064
        %v2066 = vrot.slane %v2065, 4
        %v2068 = vshll.u32 %v1832, 16
        %v2070 = vrot.slane %v2068, 5
        %v2071 = vsel %vm1865, %v2066, %v2070
        %v2072 = vshrl.u32 %v1832, 16
        %v2074 = vrot.slane %v2072, 4
        %v2075 = vor.u32 %v2074, %v2070
        %v2076 = vrot.slane %v2075, 4
        %v2078 = vshll.u32 %v1855, 16
        %v2080 = vrot.slane %v2078, 5
        %v2081 = vsel %vm1865, %v2076, %v2080
        %v2083 = vshrl.u32 %v1833, 16
        %v2085 = vrot.slane %v2083, 4
        %v2086 = vshll.u32 %v1833, 16
        %v2088 = vrot.slane %v2086, 5
        %v2089 = vor.u32 %v2085, %v2088
        %v2090 = vrot.slane %v2089, 4
        %v2092 = vshll.u32 %v1834, 16
        %v2094 = vrot.slane %v2092, 5
        %v2095 = vsel %vm1865, %v2090, %v2094
        %v2096 = vshrl.u32 %v1834, 16
        %v2098 = vrot.slane %v2096, 4
        %v2099 = vor.u32 %v2098, %v2094
        %v2100 = vrot.slane %v2099, 4
        %v2102 = vshll.u32 %v1856, 16
        %v2104 = vrot.slane %v2102, 5
        %v2105 = vsel %vm1865, %v2100, %v2104
        %v2107 = vshrl.u32 %v1835, 16
        %v2109 = vrot.slane %v2107, 4
        %v2110 = vshll.u32 %v1835, 16
        %v2112 = vrot.slane %v2110, 5
        %v2113 = vor.u32 %v2109, %v2112
        %v2114 = vrot.slane %v2113, 4
        %v2116 = vshll.u32 %v1836, 16
        %v2118 = vrot.slane %v2116, 5
        %v2119 = vsel %vm1865, %v2114, %v2118
        %v2120 = vshrl.u32 %v1836, 16
        %v2122 = vrot.slane %v2120, 4
        %v2123 = vor.u32 %v2122, %v2118
        %v2124 = vrot.slane %v2123, 4
        %v2126 = vshll.u32 %v1857, 16
        %v2128 = vrot.slane %v2126, 5
        %v2129 = vsel %vm1865, %v2124, %v2128
        %v2131 = vshrl.u32 %v1837, 16
        %v2133 = vrot.slane %v2131, 4
        %v2134 = vshll.u32 %v1837, 16
        %v2136 = vrot.slane %v2134, 5
        %v2137 = vor.u32 %v2133, %v2136
        %v2138 = vrot.slane %v2137, 4
        %v2140 = vshll.u32 %v1838, 16
        %v2142 = vrot.slane %v2140, 5
        %v2143 = vsel %vm1865, %v2138, %v2142
        %v2144 = vshrl.u32 %v1838, 16
        %v2146 = vrot.slane %v2144, 4
        %v2147 = vor.u32 %v2146, %v2142
        %v2148 = vrot.slane %v2147, 4
        %v2150 = vshll.u32 %v1858, 16
        %v2152 = vrot.slane %v2150, 5
        %v2153 = vsel %vm1865, %v2148, %v2152
        %v2155 = vshrl.u32 %v1839, 16
        %v2157 = vrot.slane %v2155, 4
        %v2158 = vshll.u32 %v1839, 16
        %v2160 = vrot.slane %v2158, 5
        %v2161 = vor.u32 %v2157, %v2160
        %v2162 = vrot.slane %v2161, 4
        %v2164 = vshll.u32 %v1840, 16
        %v2166 = vrot.slane %v2164, 5
        %v2167 = vsel %vm1865, %v2162, %v2166
        %v2168 = vshrl.u32 %v1840, 16
        %v2170 = vrot.slane %v2168, 4
        %v2171 = vor.u32 %v2170, %v2166
        %v2172 = vrot.slane %v2171, 4
        %v2174 = vshll.u32 %v1859, 16
        %v2176 = vrot.slane %v2174, 5
        %v2177 = vsel %vm1865, %v2172, %v2176
        %v2179 = vshrl.u32 %v1841, 16
        %v2181 = vrot.slane %v2179, 4
        %v2182 = vshll.u32 %v1841, 16
        %v2184 = vrot.slane %v2182, 5
        %v2185 = vor.u32 %v2181, %v2184
        %v2186 = vrot.slane %v2185, 4
        %v2188 = vshll.u32 %v1842, 16
        %v2190 = vrot.slane %v2188, 5
        %v2191 = vsel %vm1865, %v2186, %v2190
        %v2192 = vshrl.u32 %v1842, 16
        %v2194 = vrot.slane %v2192, 4
        %v2195 = vor.u32 %v2194, %v2190
        %v2196 = vrot.slane %v2195, 4
        %v2198 = vshll.u32 %v1860, 16
        %v2200 = vrot.slane %v2198, 5
        %v2201 = vsel %vm1865, %v2196, %v2200
        %v2203 = vshrl.u32 %v1843, 16
        %v2205 = vrot.slane %v2203, 4
        %v2206 = vshll.u32 %v1843, 16
        %v2208 = vrot.slane %v2206, 5
        %v2209 = vor.u32 %v2205, %v2208
        %v2210 = vrot.slane %v2209, 4
        %v2212 = vshll.u32 %v1844, 16
        %v2214 = vrot.slane %v2212, 5
        %v2215 = vsel %vm1865, %v2210, %v2214
        %v2216 = vshrl.u32 %v1844, 16
        %v2218 = vrot.slane %v2216, 4
        %v2219 = vor.u32 %v2218, %v2214
        %v2220 = vrot.slane %v2219, 4
        %v2222 = vshll.u32 %v1861, 16
        %v2224 = vrot.slane %v2222, 5
        %v2225 = vsel %vm1865, %v2220, %v2224
        %v2227 = vshrl.u32 %v1845, 16
        %v2229 = vrot.slane %v2227, 4
        %v2230 = vshll.u32 %v1845, 16
        %v2232 = vrot.slane %v2230, 5
        %v2233 = vor.u32 %v2229, %v2232
        %v2234 = vrot.slane %v2233, 4
        %v2236 = vshll.u32 %v1846, 16
        %v2238 = vrot.slane %v2236, 5
        %v2239 = vsel %vm1865, %v2234, %v2238
        %v2240 = vshrl.u32 %v1846, 16
        %v2242 = vrot.slane %v2240, 4
        %v2243 = vor.u32 %v2242, %v2238
        %v2244 = vrot.slane %v2243, 4
        %v2246 = vshll.u32 %v1862, 16
        %v2248 = vrot.slane %v2246, 5
        %v2249 = vsel %vm1865, %v2244, %v2248
        %v2250 = vld [vmem:[#allocation2] sm:$0xe]
        %v2251 = vld [vmem:[#allocation2 + $0xc] sm:$0xe]
        %v2252 = vld [vmem:[#allocation2 + $0x18] sm:$0xe]
        %v2253 = vld [vmem:[#allocation2 + $0x24] sm:$0xe]
        %v2254 = vld [vmem:[#allocation2 + $0x30] sm:$0xe]
        %v2255 = vld [vmem:[#allocation2 + $0x3c] sm:$0xe]
        %v2256 = vld [vmem:[#allocation2 + $0x48] sm:$0xe]
        %v2257 = vld [vmem:[#allocation2 + $0x54] sm:$0xe]
        %v2258 = vld [vmem:[#allocation2 + $0x60] sm:$0xe]
        %v2259 = vld [vmem:[#allocation2 + $0x6c] sm:$0xe]
        %v2260 = vld [vmem:[#allocation2 + $0x78] sm:$0xe]
        %v2261 = vld [vmem:[#allocation2 + $0x84] sm:$0xe]
        %v2262 = vld [vmem:[#allocation2 + $0x90] sm:$0xe]
        %v2263 = vld [vmem:[#allocation2 + $0x9c] sm:$0xe]
        %v2264 = vld [vmem:[#allocation2 + $0xa8] sm:$0xe]
        %v2265 = vld [vmem:[#allocation2 + $0xb4] sm:$0xe]
        %vm2314 = vcmask 1042432
        %vm2315 = vcmask 1046532
        %vm2316 = vmor %vm2314, %vm2315
        %v2317 = vrot.slane %v2250, 5
        %v2318 = vrot.slane %v2317, 4
        %v2319 = vrot.slane %v1816, 5
        %v2320 = vsel %vm2316, %v2318, %v2319
        %v2321 = vrot.slane %v2319, 4
        %v2322 = vrot.slane %v1847, 5
        %v2323 = vsel %vm2316, %v2321, %v2322
        %v2324 = vrot.slane %v2251, 5
        %v2325 = vrot.slane %v2324, 4
        %v2326 = vrot.slane %v1818, 5
        %v2327 = vsel %vm2316, %v2325, %v2326
        %v2328 = vrot.slane %v2326, 4
        %v2329 = vrot.slane %v1848, 5
        %v2330 = vsel %vm2316, %v2328, %v2329
        %v2331 = vrot.slane %v2252, 5
        %v2332 = vrot.slane %v2331, 4
        %v2333 = vrot.slane %v1820, 5
        %v2334 = vsel %vm2316, %v2332, %v2333
        %v2335 = vrot.slane %v2333, 4
        %v2336 = vrot.slane %v1849, 5
        %v2337 = vsel %vm2316, %v2335, %v2336
        %v2338 = vrot.slane %v2253, 5
        %v2339 = vrot.slane %v2338, 4
        %v2340 = vrot.slane %v1822, 5
        %v2341 = vsel %vm2316, %v2339, %v2340
        %v2342 = vrot.slane %v2340, 4
        %v2343 = vrot.slane %v1850, 5
        %v2344 = vsel %vm2316, %v2342, %v2343
        %v2345 = vrot.slane %v2254, 5
        %v2346 = vrot.slane %v2345, 4
        %v2347 = vrot.slane %v1824, 5
        %v2348 = vsel %vm2316, %v2346, %v2347
        %v2349 = vrot.slane %v2347, 4
        %v2350 = vrot.slane %v1851, 5
        %v2351 = vsel %vm2316, %v2349, %v2350
        %v2352 = vrot.slane %v2255, 5
        %v2353 = vrot.slane %v2352, 4
        %v2354 = vrot.slane %v1826, 5
        %v2355 = vsel %vm2316, %v2353, %v2354
        %v2356 = vrot.slane %v2354, 4
        %v2357 = vrot.slane %v1852, 5
        %v2358 = vsel %vm2316, %v2356, %v2357
        %v2359 = vrot.slane %v2256, 5
        %v2360 = vrot.slane %v2359, 4
        %v2361 = vrot.slane %v1828, 5
        %v2362 = vsel %vm2316, %v2360, %v2361
        %v2363 = vrot.slane %v2361, 4
        %v2364 = vrot.slane %v1853, 5
        %v2365 = vsel %vm2316, %v2363, %v2364
        %v2366 = vrot.slane %v2257, 5
        %v2367 = vrot.slane %v2366, 4
        %v2368 = vrot.slane %v1830, 5
        %v2369 = vsel %vm2316, %v2367, %v2368
        %v2370 = vrot.slane %v2368, 4
        %v2371 = vrot.slane %v1854, 5
        %v2372 = vsel %vm2316, %v2370, %v2371
        %v2373 = vrot.slane %v2258, 5
        %v2374 = vrot.slane %v2373, 4
        %v2375 = vrot.slane %v1832, 5
        %v2376 = vsel %vm2316, %v2374, %v2375
        %v2377 = vrot.slane %v2375, 4
        %v2378 = vrot.slane %v1855, 5
        %v2379 = vsel %vm2316, %v2377, %v2378
        %v2380 = vrot.slane %v2259, 5
        %v2381 = vrot.slane %v2380, 4
        %v2382 = vrot.slane %v1834, 5
        %v2383 = vsel %vm2316, %v2381, %v2382
        %v2384 = vrot.slane %v2382, 4
        %v2385 = vrot.slane %v1856, 5
        %v2386 = vsel %vm2316, %v2384, %v2385
        %v2387 = vrot.slane %v2260, 5
        %v2388 = vrot.slane %v2387, 4
        %v2389 = vrot.slane %v1836, 5
        %v2390 = vsel %vm2316, %v2388, %v2389
        %v2391 = vrot.slane %v2389, 4
        %v2392 = vrot.slane %v1857, 5
        %v2393 = vsel %vm2316, %v2391, %v2392
        %v2394 = vrot.slane %v2261, 5
        %v2395 = vrot.slane %v2394, 4
        %v2396 = vrot.slane %v1838, 5
        %v2397 = vsel %vm2316, %v2395, %v2396
        %v2398 = vrot.slane %v2396, 4
        %v2399 = vrot.slane %v1858, 5
        %v2400 = vsel %vm2316, %v2398, %v2399
        %v2401 = vrot.slane %v2262, 5
        %v2402 = vrot.slane %v2401, 4
        %v2403 = vrot.slane %v1840, 5
        %v2404 = vsel %vm2316, %v2402, %v2403
        %v2405 = vrot.slane %v2403, 4
        %v2406 = vrot.slane %v1859, 5
        %v2407 = vsel %vm2316, %v2405, %v2406
        %v2408 = vrot.slane %v2263, 5
        %v2409 = vrot.slane %v2408, 4
        %v2410 = vrot.slane %v1842, 5
        %v2411 = vsel %vm2316, %v2409, %v2410
        %v2412 = vrot.slane %v2410, 4
        %v2413 = vrot.slane %v1860, 5
        %v2414 = vsel %vm2316, %v2412, %v2413
        %v2415 = vrot.slane %v2264, 5
        %v2416 = vrot.slane %v2415, 4
        %v2417 = vrot.slane %v1844, 5
        %v2418 = vsel %vm2316, %v2416, %v2417
        %v2419 = vrot.slane %v2417, 4
        %v2420 = vrot.slane %v1861, 5
        %v2421 = vsel %vm2316, %v2419, %v2420
        %v2422 = vrot.slane %v2265, 5
        %v2423 = vrot.slane %v2422, 4
        %v2424 = vrot.slane %v1846, 5
        %v2425 = vsel %vm2316, %v2423, %v2424
        %v2426 = vrot.slane %v2424, 4
        %v2427 = vrot.slane %v1862, 5
        %v2428 = vsel %vm2316, %v2426, %v2427
        %v2429 = vld [vmem:[%s1552] sm:$0xf]
        %v2430 = vld [vmem:[%s1552 + $0x4] sm:$0xf]
        %v2431 = vld [vmem:[%s1552 + $0xc] sm:$0xf]
        %v2432 = vld [vmem:[%s1552 + $0x10] sm:$0xf]
        %v2433 = vld [vmem:[%s1552 + $0x18] sm:$0xf]
        %v2434 = vld [vmem:[%s1552 + $0x1c] sm:$0xf]
        %v2435 = vld [vmem:[%s1552 + $0x24] sm:$0xf]
        %v2436 = vld [vmem:[%s1552 + $0x28] sm:$0xf]
        %v2437 = vld [vmem:[%s1552 + $0x30] sm:$0xf]
        %v2438 = vld [vmem:[%s1552 + $0x34] sm:$0xf]
        %v2439 = vld [vmem:[%s1552 + $0x3c] sm:$0xf]
        %v2440 = vld [vmem:[%s1552 + $0x40] sm:$0xf]
        %v2441 = vld [vmem:[%s1552 + $0x48] sm:$0xf]
        %v2442 = vld [vmem:[%s1552 + $0x4c] sm:$0xf]
        %v2443 = vld [vmem:[%s1552 + $0x54] sm:$0xf]
        %v2444 = vld [vmem:[%s1552 + $0x58] sm:$0xf]
        %v2445 = vld [vmem:[%s1552 + $0x60] sm:$0xf]
        %v2446 = vld [vmem:[%s1552 + $0x64] sm:$0xf]
        %v2447 = vld [vmem:[%s1552 + $0x6c] sm:$0xf]
        %v2448 = vld [vmem:[%s1552 + $0x70] sm:$0xf]
        %v2449 = vld [vmem:[%s1552 + $0x78] sm:$0xf]
        %v2450 = vld [vmem:[%s1552 + $0x7c] sm:$0xf]
        %v2451 = vld [vmem:[%s1552 + $0x84] sm:$0xf]
        %v2452 = vld [vmem:[%s1552 + $0x88] sm:$0xf]
        %v2453 = vld [vmem:[%s1552 + $0x90] sm:$0xf]
        %v2454 = vld [vmem:[%s1552 + $0x94] sm:$0xf]
        %v2455 = vld [vmem:[%s1552 + $0x9c] sm:$0xf]
        %v2456 = vld [vmem:[%s1552 + $0xa0] sm:$0xf]
        %v2457 = vld [vmem:[%s1552 + $0xa8] sm:$0xf]
        %v2458 = vld [vmem:[%s1552 + $0xac] sm:$0xf]
        %v2459 = vld [vmem:[%s1552 + $0xb4] sm:$0xf]
        %v2460 = vld [vmem:[%s1552 + $0xb8] sm:$0xf]
        %v2461 = vld [vmem:[%s1552 + $0x8] sm:$0x1]
        %v2462 = vld [vmem:[%s1552 + $0x14] sm:$0x1]
        %v2463 = vld [vmem:[%s1552 + $0x20] sm:$0x1]
        %v2464 = vld [vmem:[%s1552 + $0x2c] sm:$0x1]
        %v2465 = vld [vmem:[%s1552 + $0x38] sm:$0x1]
        %v2466 = vld [vmem:[%s1552 + $0x44] sm:$0x1]
        %v2467 = vld [vmem:[%s1552 + $0x50] sm:$0x1]
        %v2468 = vld [vmem:[%s1552 + $0x5c] sm:$0x1]
        %v2469 = vld [vmem:[%s1552 + $0x68] sm:$0x1]
        %v2470 = vld [vmem:[%s1552 + $0x74] sm:$0x1]
        %v2471 = vld [vmem:[%s1552 + $0x80] sm:$0x1]
        %v2472 = vld [vmem:[%s1552 + $0x8c] sm:$0x1]
        %v2473 = vld [vmem:[%s1552 + $0x98] sm:$0x1]
        %v2474 = vld [vmem:[%s1552 + $0xa4] sm:$0x1]
        %v2475 = vld [vmem:[%s1552 + $0xb0] sm:$0x1]
        %v2476 = vld [vmem:[%s1552 + $0xbc] sm:$0x1]
        %v2478 = vshrl.u32 %v2429, 16
        %v2480 = vrot.slane %v2478, 4
        %v2481 = vshll.u32 %v2429, 16
        %v2483 = vrot.slane %v2481, 5
        %v2484 = vor.u32 %v2480, %v2483
        %v2485 = vrot.slane %v2484, 4
        %v2487 = vshll.u32 %v2430, 16
        %v2489 = vrot.slane %v2487, 5
        %v2490 = vsel %vm1865, %v2485, %v2489
        %v2491 = vshrl.u32 %v2430, 16
        %v2493 = vrot.slane %v2491, 4
        %v2494 = vor.u32 %v2493, %v2489
        %v2495 = vrot.slane %v2494, 4
        %v2497 = vshll.u32 %v2461, 16
        %v2499 = vrot.slane %v2497, 5
        %v2500 = vsel %vm1865, %v2495, %v2499
        %v2502 = vshrl.u32 %v2431, 16
        %v2504 = vrot.slane %v2502, 4
        %v2505 = vshll.u32 %v2431, 16
        %v2507 = vrot.slane %v2505, 5
        %v2508 = vor.u32 %v2504, %v2507
        %v2509 = vrot.slane %v2508, 4
        %v2511 = vshll.u32 %v2432, 16
        %v2513 = vrot.slane %v2511, 5
        %v2514 = vsel %vm1865, %v2509, %v2513
        %v2515 = vshrl.u32 %v2432, 16
        %v2517 = vrot.slane %v2515, 4
        %v2518 = vor.u32 %v2517, %v2513
        %v2519 = vrot.slane %v2518, 4
        %v2521 = vshll.u32 %v2462, 16
        %v2523 = vrot.slane %v2521, 5
        %v2524 = vsel %vm1865, %v2519, %v2523
        %v2526 = vshrl.u32 %v2433, 16
        %v2528 = vrot.slane %v2526, 4
        %v2529 = vshll.u32 %v2433, 16
        %v2531 = vrot.slane %v2529, 5
        %v2532 = vor.u32 %v2528, %v2531
        %v2533 = vrot.slane %v2532, 4
        %v2535 = vshll.u32 %v2434, 16
        %v2537 = vrot.slane %v2535, 5
        %v2538 = vsel %vm1865, %v2533, %v2537
        %v2539 = vshrl.u32 %v2434, 16
        %v2541 = vrot.slane %v2539, 4
        %v2542 = vor.u32 %v2541, %v2537
        %v2543 = vrot.slane %v2542, 4
        %v2545 = vshll.u32 %v2463, 16
        %v2547 = vrot.slane %v2545, 5
        %v2548 = vsel %vm1865, %v2543, %v2547
        %v2550 = vshrl.u32 %v2435, 16
        %v2552 = vrot.slane %v2550, 4
        %v2553 = vshll.u32 %v2435, 16
        %v2555 = vrot.slane %v2553, 5
        %v2556 = vor.u32 %v2552, %v2555
        %v2557 = vrot.slane %v2556, 4
        %v2559 = vshll.u32 %v2436, 16
        %v2561 = vrot.slane %v2559, 5
        %v2562 = vsel %vm1865, %v2557, %v2561
        %v2563 = vshrl.u32 %v2436, 16
        %v2565 = vrot.slane %v2563, 4
        %v2566 = vor.u32 %v2565, %v2561
        %v2567 = vrot.slane %v2566, 4
        %v2569 = vshll.u32 %v2464, 16
        %v2571 = vrot.slane %v2569, 5
        %v2572 = vsel %vm1865, %v2567, %v2571
        %v2574 = vshrl.u32 %v2437, 16
        %v2576 = vrot.slane %v2574, 4
        %v2577 = vshll.u32 %v2437, 16
        %v2579 = vrot.slane %v2577, 5
        %v2580 = vor.u32 %v2576, %v2579
        %v2581 = vrot.slane %v2580, 4
        %v2583 = vshll.u32 %v2438, 16
        %v2585 = vrot.slane %v2583, 5
        %v2586 = vsel %vm1865, %v2581, %v2585
        %v2587 = vshrl.u32 %v2438, 16
        %v2589 = vrot.slane %v2587, 4
        %v2590 = vor.u32 %v2589, %v2585
        %v2591 = vrot.slane %v2590, 4
        %v2593 = vshll.u32 %v2465, 16
        %v2595 = vrot.slane %v2593, 5
        %v2596 = vsel %vm1865, %v2591, %v2595
        %v2598 = vshrl.u32 %v2439, 16
        %v2600 = vrot.slane %v2598, 4
        %v2601 = vshll.u32 %v2439, 16
        %v2603 = vrot.slane %v2601, 5
        %v2604 = vor.u32 %v2600, %v2603
        %v2605 = vrot.slane %v2604, 4
        %v2607 = vshll.u32 %v2440, 16
        %v2609 = vrot.slane %v2607, 5
        %v2610 = vsel %vm1865, %v2605, %v2609
        %v2611 = vshrl.u32 %v2440, 16
        %v2613 = vrot.slane %v2611, 4
        %v2614 = vor.u32 %v2613, %v2609
        %v2615 = vrot.slane %v2614, 4
        %v2617 = vshll.u32 %v2466, 16
        %v2619 = vrot.slane %v2617, 5
        %v2620 = vsel %vm1865, %v2615, %v2619
        %v2622 = vshrl.u32 %v2441, 16
        %v2624 = vrot.slane %v2622, 4
        %v2625 = vshll.u32 %v2441, 16
        %v2627 = vrot.slane %v2625, 5
        %v2628 = vor.u32 %v2624, %v2627
        %v2629 = vrot.slane %v2628, 4
        %v2631 = vshll.u32 %v2442, 16
        %v2633 = vrot.slane %v2631, 5
        %v2634 = vsel %vm1865, %v2629, %v2633
        %v2635 = vshrl.u32 %v2442, 16
        %v2637 = vrot.slane %v2635, 4
        %v2638 = vor.u32 %v2637, %v2633
        %v2639 = vrot.slane %v2638, 4
        %v2641 = vshll.u32 %v2467, 16
        %v2643 = vrot.slane %v2641, 5
        %v2644 = vsel %vm1865, %v2639, %v2643
        %v2646 = vshrl.u32 %v2443, 16
        %v2648 = vrot.slane %v2646, 4
        %v2649 = vshll.u32 %v2443, 16
        %v2651 = vrot.slane %v2649, 5
        %v2652 = vor.u32 %v2648, %v2651
        %v2653 = vrot.slane %v2652, 4
        %v2655 = vshll.u32 %v2444, 16
        %v2657 = vrot.slane %v2655, 5
        %v2658 = vsel %vm1865, %v2653, %v2657
        %v2659 = vshrl.u32 %v2444, 16
        %v2661 = vrot.slane %v2659, 4
        %v2662 = vor.u32 %v2661, %v2657
        %v2663 = vrot.slane %v2662, 4
        %v2665 = vshll.u32 %v2468, 16
        %v2667 = vrot.slane %v2665, 5
        %v2668 = vsel %vm1865, %v2663, %v2667
        %v2670 = vshrl.u32 %v2445, 16
        %v2672 = vrot.slane %v2670, 4
        %v2673 = vshll.u32 %v2445, 16
        %v2675 = vrot.slane %v2673, 5
        %v2676 = vor.u32 %v2672, %v2675
        %v2677 = vrot.slane %v2676, 4
        %v2679 = vshll.u32 %v2446, 16
        %v2681 = vrot.slane %v2679, 5
        %v2682 = vsel %vm1865, %v2677, %v2681
        %v2683 = vshrl.u32 %v2446, 16
        %v2685 = vrot.slane %v2683, 4
        %v2686 = vor.u32 %v2685, %v2681
        %v2687 = vrot.slane %v2686, 4
        %v2689 = vshll.u32 %v2469, 16
        %v2691 = vrot.slane %v2689, 5
        %v2692 = vsel %vm1865, %v2687, %v2691
        %v2694 = vshrl.u32 %v2447, 16
        %v2696 = vrot.slane %v2694, 4
        %v2697 = vshll.u32 %v2447, 16
        %v2699 = vrot.slane %v2697, 5
        %v2700 = vor.u32 %v2696, %v2699
        %v2701 = vrot.slane %v2700, 4
        %v2703 = vshll.u32 %v2448, 16
        %v2705 = vrot.slane %v2703, 5
        %v2706 = vsel %vm1865, %v2701, %v2705
        %v2707 = vshrl.u32 %v2448, 16
        %v2709 = vrot.slane %v2707, 4
        %v2710 = vor.u32 %v2709, %v2705
        %v2711 = vrot.slane %v2710, 4
        %v2713 = vshll.u32 %v2470, 16
        %v2715 = vrot.slane %v2713, 5
        %v2716 = vsel %vm1865, %v2711, %v2715
        %v2718 = vshrl.u32 %v2449, 16
        %v2720 = vrot.slane %v2718, 4
        %v2721 = vshll.u32 %v2449, 16
        %v2723 = vrot.slane %v2721, 5
        %v2724 = vor.u32 %v2720, %v2723
        %v2725 = vrot.slane %v2724, 4
        %v2727 = vshll.u32 %v2450, 16
        %v2729 = vrot.slane %v2727, 5
        %v2730 = vsel %vm1865, %v2725, %v2729
        %v2731 = vshrl.u32 %v2450, 16
        %v2733 = vrot.slane %v2731, 4
        %v2734 = vor.u32 %v2733, %v2729
        %v2735 = vrot.slane %v2734, 4
        %v2737 = vshll.u32 %v2471, 16
        %v2739 = vrot.slane %v2737, 5
        %v2740 = vsel %vm1865, %v2735, %v2739
        %v2742 = vshrl.u32 %v2451, 16
        %v2744 = vrot.slane %v2742, 4
        %v2745 = vshll.u32 %v2451, 16
        %v2747 = vrot.slane %v2745, 5
        %v2748 = vor.u32 %v2744, %v2747
        %v2749 = vrot.slane %v2748, 4
        %v2751 = vshll.u32 %v2452, 16
        %v2753 = vrot.slane %v2751, 5
        %v2754 = vsel %vm1865, %v2749, %v2753
        %v2755 = vshrl.u32 %v2452, 16
        %v2757 = vrot.slane %v2755, 4
        %v2758 = vor.u32 %v2757, %v2753
        %v2759 = vrot.slane %v2758, 4
        %v2761 = vshll.u32 %v2472, 16
        %v2763 = vrot.slane %v2761, 5
        %v2764 = vsel %vm1865, %v2759, %v2763
        %v2766 = vshrl.u32 %v2453, 16
        %v2768 = vrot.slane %v2766, 4
        %v2769 = vshll.u32 %v2453, 16
        %v2771 = vrot.slane %v2769, 5
        %v2772 = vor.u32 %v2768, %v2771
        %v2773 = vrot.slane %v2772, 4
        %v2775 = vshll.u32 %v2454, 16
        %v2777 = vrot.slane %v2775, 5
        %v2778 = vsel %vm1865, %v2773, %v2777
        %v2779 = vshrl.u32 %v2454, 16
        %v2781 = vrot.slane %v2779, 4
        %v2782 = vor.u32 %v2781, %v2777
        %v2783 = vrot.slane %v2782, 4
        %v2785 = vshll.u32 %v2473, 16
        %v2787 = vrot.slane %v2785, 5
        %v2788 = vsel %vm1865, %v2783, %v2787
        %v2790 = vshrl.u32 %v2455, 16
        %v2792 = vrot.slane %v2790, 4
        %v2793 = vshll.u32 %v2455, 16
        %v2795 = vrot.slane %v2793, 5
        %v2796 = vor.u32 %v2792, %v2795
        %v2797 = vrot.slane %v2796, 4
        %v2799 = vshll.u32 %v2456, 16
        %v2801 = vrot.slane %v2799, 5
        %v2802 = vsel %vm1865, %v2797, %v2801
        %v2803 = vshrl.u32 %v2456, 16
        %v2805 = vrot.slane %v2803, 4
        %v2806 = vor.u32 %v2805, %v2801
        %v2807 = vrot.slane %v2806, 4
        %v2809 = vshll.u32 %v2474, 16
        %v2811 = vrot.slane %v2809, 5
        %v2812 = vsel %vm1865, %v2807, %v2811
        %v2814 = vshrl.u32 %v2457, 16
        %v2816 = vrot.slane %v2814, 4
        %v2817 = vshll.u32 %v2457, 16
        %v2819 = vrot.slane %v2817, 5
        %v2820 = vor.u32 %v2816, %v2819
        %v2821 = vrot.slane %v2820, 4
        %v2823 = vshll.u32 %v2458, 16
        %v2825 = vrot.slane %v2823, 5
        %v2826 = vsel %vm1865, %v2821, %v2825
        %v2827 = vshrl.u32 %v2458, 16
        %v2829 = vrot.slane %v2827, 4
        %v2830 = vor.u32 %v2829, %v2825
        %v2831 = vrot.slane %v2830, 4
        %v2833 = vshll.u32 %v2475, 16
        %v2835 = vrot.slane %v2833, 5
        %v2836 = vsel %vm1865, %v2831, %v2835
        %v2838 = vshrl.u32 %v2459, 16
        %v2840 = vrot.slane %v2838, 4
        %v2841 = vshll.u32 %v2459, 16
        %v2843 = vrot.slane %v2841, 5
        %v2844 = vor.u32 %v2840, %v2843
        %v2845 = vrot.slane %v2844, 4
        %v2847 = vshll.u32 %v2460, 16
        %v2849 = vrot.slane %v2847, 5
        %v2850 = vsel %vm1865, %v2845, %v2849
        %v2851 = vshrl.u32 %v2460, 16
        %v2853 = vrot.slane %v2851, 4
        %v2854 = vor.u32 %v2853, %v2849
        %v2855 = vrot.slane %v2854, 4
        %v2857 = vshll.u32 %v2476, 16
        %v2859 = vrot.slane %v2857, 5
        %v2860 = vsel %vm1865, %v2855, %v2859
        %v2861 = vld [vmem:[%s1552] sm:$0xe]
        %v2862 = vld [vmem:[%s1552 + $0xc] sm:$0xe]
        %v2863 = vld [vmem:[%s1552 + $0x18] sm:$0xe]
        %v2864 = vld [vmem:[%s1552 + $0x24] sm:$0xe]
        %v2865 = vld [vmem:[%s1552 + $0x30] sm:$0xe]
        %v2866 = vld [vmem:[%s1552 + $0x3c] sm:$0xe]
        %v2867 = vld [vmem:[%s1552 + $0x48] sm:$0xe]
        %v2868 = vld [vmem:[%s1552 + $0x54] sm:$0xe]
        %v2869 = vld [vmem:[%s1552 + $0x60] sm:$0xe]
        %v2870 = vld [vmem:[%s1552 + $0x6c] sm:$0xe]
        %v2871 = vld [vmem:[%s1552 + $0x78] sm:$0xe]
        %v2872 = vld [vmem:[%s1552 + $0x84] sm:$0xe]
        %v2873 = vld [vmem:[%s1552 + $0x90] sm:$0xe]
        %v2874 = vld [vmem:[%s1552 + $0x9c] sm:$0xe]
        %v2875 = vld [vmem:[%s1552 + $0xa8] sm:$0xe]
        %v2876 = vld [vmem:[%s1552 + $0xb4] sm:$0xe]
        %v2925 = vrot.slane %v2861, 5
        %v2926 = vrot.slane %v2925, 4
        %v2927 = vrot.slane %v2430, 5
        %v2928 = vsel %vm2316, %v2926, %v2927
        %v2929 = vrot.slane %v2927, 4
        %v2930 = vrot.slane %v2461, 5
        %v2931 = vsel %vm2316, %v2929, %v2930
        %v2932 = vrot.slane %v2862, 5
        %v2933 = vrot.slane %v2932, 4
        %v2934 = vrot.slane %v2432, 5
        %v2935 = vsel %vm2316, %v2933, %v2934
        %v2936 = vrot.slane %v2934, 4
        %v2937 = vrot.slane %v2462, 5
        %v2938 = vsel %vm2316, %v2936, %v2937
        %v2939 = vrot.slane %v2863, 5
        %v2940 = vrot.slane %v2939, 4
        %v2941 = vrot.slane %v2434, 5
        %v2942 = vsel %vm2316, %v2940, %v2941
        %v2943 = vrot.slane %v2941, 4
        %v2944 = vrot.slane %v2463, 5
        %v2945 = vsel %vm2316, %v2943, %v2944
        %v2946 = vrot.slane %v2864, 5
        %v2947 = vrot.slane %v2946, 4
        %v2948 = vrot.slane %v2436, 5
        %v2949 = vsel %vm2316, %v2947, %v2948
        %v2950 = vrot.slane %v2948, 4
        %v2951 = vrot.slane %v2464, 5
        %v2952 = vsel %vm2316, %v2950, %v2951
        %v2953 = vrot.slane %v2865, 5
        %v2954 = vrot.slane %v2953, 4
        %v2955 = vrot.slane %v2438, 5
        %v2956 = vsel %vm2316, %v2954, %v2955
        %v2957 = vrot.slane %v2955, 4
        %v2958 = vrot.slane %v2465, 5
        %v2959 = vsel %vm2316, %v2957, %v2958
        %v2960 = vrot.slane %v2866, 5
        %v2961 = vrot.slane %v2960, 4
        %v2962 = vrot.slane %v2440, 5
        %v2963 = vsel %vm2316, %v2961, %v2962
        %v2964 = vrot.slane %v2962, 4
        %v2965 = vrot.slane %v2466, 5
        %v2966 = vsel %vm2316, %v2964, %v2965
        %v2967 = vrot.slane %v2867, 5
        %v2968 = vrot.slane %v2967, 4
        %v2969 = vrot.slane %v2442, 5
        %v2970 = vsel %vm2316, %v2968, %v2969
        %v2971 = vrot.slane %v2969, 4
        %v2972 = vrot.slane %v2467, 5
        %v2973 = vsel %vm2316, %v2971, %v2972
        %v2974 = vrot.slane %v2868, 5
        %v2975 = vrot.slane %v2974, 4
        %v2976 = vrot.slane %v2444, 5
        %v2977 = vsel %vm2316, %v2975, %v2976
        %v2978 = vrot.slane %v2976, 4
        %v2979 = vrot.slane %v2468, 5
        %v2980 = vsel %vm2316, %v2978, %v2979
        %v2981 = vrot.slane %v2869, 5
        %v2982 = vrot.slane %v2981, 4
        %v2983 = vrot.slane %v2446, 5
        %v2984 = vsel %vm2316, %v2982, %v2983
        %v2985 = vrot.slane %v2983, 4
        %v2986 = vrot.slane %v2469, 5
        %v2987 = vsel %vm2316, %v2985, %v2986
        %v2988 = vrot.slane %v2870, 5
        %v2989 = vrot.slane %v2988, 4
        %v2990 = vrot.slane %v2448, 5
        %v2991 = vsel %vm2316, %v2989, %v2990
        %v2992 = vrot.slane %v2990, 4
        %v2993 = vrot.slane %v2470, 5
        %v2994 = vsel %vm2316, %v2992, %v2993
        %v2995 = vrot.slane %v2871, 5
        %v2996 = vrot.slane %v2995, 4
        %v2997 = vrot.slane %v2450, 5
        %v2998 = vsel %vm2316, %v2996, %v2997
        %v2999 = vrot.slane %v2997, 4
        %v3000 = vrot.slane %v2471, 5
        %v3001 = vsel %vm2316, %v2999, %v3000
        %v3002 = vrot.slane %v2872, 5
        %v3003 = vrot.slane %v3002, 4
        %v3004 = vrot.slane %v2452, 5
        %v3005 = vsel %vm2316, %v3003, %v3004
        %v3006 = vrot.slane %v3004, 4
        %v3007 = vrot.slane %v2472, 5
        %v3008 = vsel %vm2316, %v3006, %v3007
        %v3009 = vrot.slane %v2873, 5
        %v3010 = vrot.slane %v3009, 4
        %v3011 = vrot.slane %v2454, 5
        %v3012 = vsel %vm2316, %v3010, %v3011
        %v3013 = vrot.slane %v3011, 4
        %v3014 = vrot.slane %v2473, 5
        %v3015 = vsel %vm2316, %v3013, %v3014
        %v3016 = vrot.slane %v2874, 5
        %v3017 = vrot.slane %v3016, 4
        %v3018 = vrot.slane %v2456, 5
        %v3019 = vsel %vm2316, %v3017, %v3018
        %v3020 = vrot.slane %v3018, 4
        %v3021 = vrot.slane %v2474, 5
        %v3022 = vsel %vm2316, %v3020, %v3021
        %v3023 = vrot.slane %v2875, 5
        %v3024 = vrot.slane %v3023, 4
        %v3025 = vrot.slane %v2458, 5
        %v3026 = vsel %vm2316, %v3024, %v3025
        %v3027 = vrot.slane %v3025, 4
        %v3028 = vrot.slane %v2475, 5
        %v3029 = vsel %vm2316, %v3027, %v3028
        %v3030 = vrot.slane %v2876, 5
        %v3031 = vrot.slane %v3030, 4
        %v3032 = vrot.slane %v2460, 5
        %v3033 = vsel %vm2316, %v3031, %v3032
        %v3034 = vrot.slane %v3032, 4
        %v3035 = vrot.slane %v2476, 5
        %v3036 = vsel %vm2316, %v3034, %v3035
        %s3037 = scalar_lea.vmem [#allocation2], 24
        %v3038 = vld [vmem:[%s3037] sm:$0xf]
        %v3039 = vld [vmem:[%s3037 + $0x4] sm:$0xf]
        %v3040 = vld [vmem:[%s3037 + $0xc] sm:$0xf]
        %v3041 = vld [vmem:[%s3037 + $0x10] sm:$0xf]
        %v3042 = vld [vmem:[%s3037 + $0x18] sm:$0xf]
        %v3043 = vld [vmem:[%s3037 + $0x1c] sm:$0xf]
        %v3044 = vld [vmem:[%s3037 + $0x24] sm:$0xf]
        %v3045 = vld [vmem:[%s3037 + $0x28] sm:$0xf]
        %v3046 = vld [vmem:[%s3037 + $0x30] sm:$0xf]
        %v3047 = vld [vmem:[%s3037 + $0x34] sm:$0xf]
        %v3048 = vld [vmem:[%s3037 + $0x3c] sm:$0xf]
        %v3049 = vld [vmem:[%s3037 + $0x40] sm:$0xf]
        %v3050 = vld [vmem:[%s3037 + $0x48] sm:$0xf]
        %v3051 = vld [vmem:[%s3037 + $0x4c] sm:$0xf]
        %v3052 = vld [vmem:[%s3037 + $0x54] sm:$0xf]
        %v3053 = vld [vmem:[%s3037 + $0x58] sm:$0xf]
        %v3054 = vld [vmem:[%s3037 + $0x60] sm:$0xf]
        %v3055 = vld [vmem:[%s3037 + $0x64] sm:$0xf]
        %v3056 = vld [vmem:[%s3037 + $0x6c] sm:$0xf]
        %v3057 = vld [vmem:[%s3037 + $0x70] sm:$0xf]
        %v3058 = vld [vmem:[%s3037 + $0x78] sm:$0xf]
        %v3059 = vld [vmem:[%s3037 + $0x7c] sm:$0xf]
        %v3060 = vld [vmem:[%s3037 + $0x84] sm:$0xf]
        %v3061 = vld [vmem:[%s3037 + $0x88] sm:$0xf]
        %v3062 = vld [vmem:[%s3037 + $0x90] sm:$0xf]
        %v3063 = vld [vmem:[%s3037 + $0x94] sm:$0xf]
        %v3064 = vld [vmem:[%s3037 + $0x9c] sm:$0xf]
        %v3065 = vld [vmem:[%s3037 + $0xa0] sm:$0xf]
        %v3066 = vld [vmem:[%s3037 + $0xa8] sm:$0xf]
        %v3067 = vld [vmem:[%s3037 + $0xac] sm:$0xf]
        %v3068 = vld [vmem:[%s3037 + $0xb4] sm:$0xf]
        %v3069 = vld [vmem:[%s3037 + $0xb8] sm:$0xf]
        %v3070 = vld [vmem:[%s3037 + $0x8] sm:$0x1]
        %v3071 = vld [vmem:[%s3037 + $0x14] sm:$0x1]
        %v3072 = vld [vmem:[%s3037 + $0x20] sm:$0x1]
        %v3073 = vld [vmem:[%s3037 + $0x2c] sm:$0x1]
        %v3074 = vld [vmem:[%s3037 + $0x38] sm:$0x1]
        %v3075 = vld [vmem:[%s3037 + $0x44] sm:$0x1]
        %v3076 = vld [vmem:[%s3037 + $0x50] sm:$0x1]
        %v3077 = vld [vmem:[%s3037 + $0x5c] sm:$0x1]
        %v3078 = vld [vmem:[%s3037 + $0x68] sm:$0x1]
        %v3079 = vld [vmem:[%s3037 + $0x74] sm:$0x1]
        %v3080 = vld [vmem:[%s3037 + $0x80] sm:$0x1]
        %v3081 = vld [vmem:[%s3037 + $0x8c] sm:$0x1]
        %v3082 = vld [vmem:[%s3037 + $0x98] sm:$0x1]
        %v3083 = vld [vmem:[%s3037 + $0xa4] sm:$0x1]
        %v3084 = vld [vmem:[%s3037 + $0xb0] sm:$0x1]
        %v3085 = vld [vmem:[%s3037 + $0xbc] sm:$0x1]
        %v3087 = vshrl.u32 %v3038, 16
        %v3089 = vrot.slane %v3087, 4
        %v3090 = vshll.u32 %v3038, 16
        %v3092 = vrot.slane %v3090, 5
        %v3093 = vor.u32 %v3089, %v3092
        %v3094 = vrot.slane %v3093, 4
        %v3096 = vshll.u32 %v3039, 16
        %v3098 = vrot.slane %v3096, 5
        %v3099 = vsel %vm1865, %v3094, %v3098
        %v3100 = vshrl.u32 %v3039, 16
        %v3102 = vrot.slane %v3100, 4
        %v3103 = vor.u32 %v3102, %v3098
        %v3104 = vrot.slane %v3103, 4
        %v3106 = vshll.u32 %v3070, 16
        %v3108 = vrot.slane %v3106, 5
        %v3109 = vsel %vm1865, %v3104, %v3108
        %v3111 = vshrl.u32 %v3040, 16
        %v3113 = vrot.slane %v3111, 4
        %v3114 = vshll.u32 %v3040, 16
        %v3116 = vrot.slane %v3114, 5
        %v3117 = vor.u32 %v3113, %v3116
        %v3118 = vrot.slane %v3117, 4
        %v3120 = vshll.u32 %v3041, 16
        %v3122 = vrot.slane %v3120, 5
        %v3123 = vsel %vm1865, %v3118, %v3122
        %v3124 = vshrl.u32 %v3041, 16
        %v3126 = vrot.slane %v3124, 4
        %v3127 = vor.u32 %v3126, %v3122
        %v3128 = vrot.slane %v3127, 4
        %v3130 = vshll.u32 %v3071, 16
        %v3132 = vrot.slane %v3130, 5
        %v3133 = vsel %vm1865, %v3128, %v3132
        %v3135 = vshrl.u32 %v3042, 16
        %v3137 = vrot.slane %v3135, 4
        %v3138 = vshll.u32 %v3042, 16
        %v3140 = vrot.slane %v3138, 5
        %v3141 = vor.u32 %v3137, %v3140
        %v3142 = vrot.slane %v3141, 4
        %v3144 = vshll.u32 %v3043, 16
        %v3146 = vrot.slane %v3144, 5
        %v3147 = vsel %vm1865, %v3142, %v3146
        %v3148 = vshrl.u32 %v3043, 16
        %v3150 = vrot.slane %v3148, 4
        %v3151 = vor.u32 %v3150, %v3146
        %v3152 = vrot.slane %v3151, 4
        %v3154 = vshll.u32 %v3072, 16
        %v3156 = vrot.slane %v3154, 5
        %v3157 = vsel %vm1865, %v3152, %v3156
        %v3159 = vshrl.u32 %v3044, 16
        %v3161 = vrot.slane %v3159, 4
        %v3162 = vshll.u32 %v3044, 16
        %v3164 = vrot.slane %v3162, 5
        %v3165 = vor.u32 %v3161, %v3164
        %v3166 = vrot.slane %v3165, 4
        %v3168 = vshll.u32 %v3045, 16
        %v3170 = vrot.slane %v3168, 5
        %v3171 = vsel %vm1865, %v3166, %v3170
        %v3172 = vshrl.u32 %v3045, 16
        %v3174 = vrot.slane %v3172, 4
        %v3175 = vor.u32 %v3174, %v3170
        %v3176 = vrot.slane %v3175, 4
        %v3178 = vshll.u32 %v3073, 16
        %v3180 = vrot.slane %v3178, 5
        %v3181 = vsel %vm1865, %v3176, %v3180
        %v3183 = vshrl.u32 %v3046, 16
        %v3185 = vrot.slane %v3183, 4
        %v3186 = vshll.u32 %v3046, 16
        %v3188 = vrot.slane %v3186, 5
        %v3189 = vor.u32 %v3185, %v3188
        %v3190 = vrot.slane %v3189, 4
        %v3192 = vshll.u32 %v3047, 16
        %v3194 = vrot.slane %v3192, 5
        %v3195 = vsel %vm1865, %v3190, %v3194
        %v3196 = vshrl.u32 %v3047, 16
        %v3198 = vrot.slane %v3196, 4
        %v3199 = vor.u32 %v3198, %v3194
        %v3200 = vrot.slane %v3199, 4
        %v3202 = vshll.u32 %v3074, 16
        %v3204 = vrot.slane %v3202, 5
        %v3205 = vsel %vm1865, %v3200, %v3204
        %v3207 = vshrl.u32 %v3048, 16
        %v3209 = vrot.slane %v3207, 4
        %v3210 = vshll.u32 %v3048, 16
        %v3212 = vrot.slane %v3210, 5
        %v3213 = vor.u32 %v3209, %v3212
        %v3214 = vrot.slane %v3213, 4
        %v3216 = vshll.u32 %v3049, 16
        %v3218 = vrot.slane %v3216, 5
        %v3219 = vsel %vm1865, %v3214, %v3218
        %v3220 = vshrl.u32 %v3049, 16
        %v3222 = vrot.slane %v3220, 4
        %v3223 = vor.u32 %v3222, %v3218
        %v3224 = vrot.slane %v3223, 4
        %v3226 = vshll.u32 %v3075, 16
        %v3228 = vrot.slane %v3226, 5
        %v3229 = vsel %vm1865, %v3224, %v3228
        %v3231 = vshrl.u32 %v3050, 16
        %v3233 = vrot.slane %v3231, 4
        %v3234 = vshll.u32 %v3050, 16
        %v3236 = vrot.slane %v3234, 5
        %v3237 = vor.u32 %v3233, %v3236
        %v3238 = vrot.slane %v3237, 4
        %v3240 = vshll.u32 %v3051, 16
        %v3242 = vrot.slane %v3240, 5
        %v3243 = vsel %vm1865, %v3238, %v3242
        %v3244 = vshrl.u32 %v3051, 16
        %v3246 = vrot.slane %v3244, 4
        %v3247 = vor.u32 %v3246, %v3242
        %v3248 = vrot.slane %v3247, 4
        %v3250 = vshll.u32 %v3076, 16
        %v3252 = vrot.slane %v3250, 5
        %v3253 = vsel %vm1865, %v3248, %v3252
        %v3255 = vshrl.u32 %v3052, 16
        %v3257 = vrot.slane %v3255, 4
        %v3258 = vshll.u32 %v3052, 16
        %v3260 = vrot.slane %v3258, 5
        %v3261 = vor.u32 %v3257, %v3260
        %v3262 = vrot.slane %v3261, 4
        %v3264 = vshll.u32 %v3053, 16
        %v3266 = vrot.slane %v3264, 5
        %v3267 = vsel %vm1865, %v3262, %v3266
        %v3268 = vshrl.u32 %v3053, 16
        %v3270 = vrot.slane %v3268, 4
        %v3271 = vor.u32 %v3270, %v3266
        %v3272 = vrot.slane %v3271, 4
        %v3274 = vshll.u32 %v3077, 16
        %v3276 = vrot.slane %v3274, 5
        %v3277 = vsel %vm1865, %v3272, %v3276
        %v3279 = vshrl.u32 %v3054, 16
        %v3281 = vrot.slane %v3279, 4
        %v3282 = vshll.u32 %v3054, 16
        %v3284 = vrot.slane %v3282, 5
        %v3285 = vor.u32 %v3281, %v3284
        %v3286 = vrot.slane %v3285, 4
        %v3288 = vshll.u32 %v3055, 16
        %v3290 = vrot.slane %v3288, 5
        %v3291 = vsel %vm1865, %v3286, %v3290
        %v3292 = vshrl.u32 %v3055, 16
        %v3294 = vrot.slane %v3292, 4
        %v3295 = vor.u32 %v3294, %v3290
        %v3296 = vrot.slane %v3295, 4
        %v3298 = vshll.u32 %v3078, 16
        %v3300 = vrot.slane %v3298, 5
        %v3301 = vsel %vm1865, %v3296, %v3300
        %v3303 = vshrl.u32 %v3056, 16
        %v3305 = vrot.slane %v3303, 4
        %v3306 = vshll.u32 %v3056, 16
        %v3308 = vrot.slane %v3306, 5
        %v3309 = vor.u32 %v3305, %v3308
        %v3310 = vrot.slane %v3309, 4
        %v3312 = vshll.u32 %v3057, 16
        %v3314 = vrot.slane %v3312, 5
        %v3315 = vsel %vm1865, %v3310, %v3314
        %v3316 = vshrl.u32 %v3057, 16
        %v3318 = vrot.slane %v3316, 4
        %v3319 = vor.u32 %v3318, %v3314
        %v3320 = vrot.slane %v3319, 4
        %v3322 = vshll.u32 %v3079, 16
        %v3324 = vrot.slane %v3322, 5
        %v3325 = vsel %vm1865, %v3320, %v3324
        %v3327 = vshrl.u32 %v3058, 16
        %v3329 = vrot.slane %v3327, 4
        %v3330 = vshll.u32 %v3058, 16
        %v3332 = vrot.slane %v3330, 5
        %v3333 = vor.u32 %v3329, %v3332
        %v3334 = vrot.slane %v3333, 4
        %v3336 = vshll.u32 %v3059, 16
        %v3338 = vrot.slane %v3336, 5
        %v3339 = vsel %vm1865, %v3334, %v3338
        %v3340 = vshrl.u32 %v3059, 16
        %v3342 = vrot.slane %v3340, 4
        %v3343 = vor.u32 %v3342, %v3338
        %v3344 = vrot.slane %v3343, 4
        %v3346 = vshll.u32 %v3080, 16
        %v3348 = vrot.slane %v3346, 5
        %v3349 = vsel %vm1865, %v3344, %v3348
        %v3351 = vshrl.u32 %v3060, 16
        %v3353 = vrot.slane %v3351, 4
        %v3354 = vshll.u32 %v3060, 16
        %v3356 = vrot.slane %v3354, 5
        %v3357 = vor.u32 %v3353, %v3356
        %v3358 = vrot.slane %v3357, 4
        %v3360 = vshll.u32 %v3061, 16
        %v3362 = vrot.slane %v3360, 5
        %v3363 = vsel %vm1865, %v3358, %v3362
        %v3364 = vshrl.u32 %v3061, 16
        %v3366 = vrot.slane %v3364, 4
        %v3367 = vor.u32 %v3366, %v3362
        %v3368 = vrot.slane %v3367, 4
        %v3370 = vshll.u32 %v3081, 16
        %v3372 = vrot.slane %v3370, 5
        %v3373 = vsel %vm1865, %v3368, %v3372
        %v3375 = vshrl.u32 %v3062, 16
        %v3377 = vrot.slane %v3375, 4
        %v3378 = vshll.u32 %v3062, 16
        %v3380 = vrot.slane %v3378, 5
        %v3381 = vor.u32 %v3377, %v3380
        %v3382 = vrot.slane %v3381, 4
        %v3384 = vshll.u32 %v3063, 16
        %v3386 = vrot.slane %v3384, 5
        %v3387 = vsel %vm1865, %v3382, %v3386
        %v3388 = vshrl.u32 %v3063, 16
        %v3390 = vrot.slane %v3388, 4
        %v3391 = vor.u32 %v3390, %v3386
        %v3392 = vrot.slane %v3391, 4
        %v3394 = vshll.u32 %v3082, 16
        %v3396 = vrot.slane %v3394, 5
        %v3397 = vsel %vm1865, %v3392, %v3396
        %v3399 = vshrl.u32 %v3064, 16
        %v3401 = vrot.slane %v3399, 4
        %v3402 = vshll.u32 %v3064, 16
        %v3404 = vrot.slane %v3402, 5
        %v3405 = vor.u32 %v3401, %v3404
        %v3406 = vrot.slane %v3405, 4
        %v3408 = vshll.u32 %v3065, 16
        %v3410 = vrot.slane %v3408, 5
        %v3411 = vsel %vm1865, %v3406, %v3410
        %v3412 = vshrl.u32 %v3065, 16
        %v3414 = vrot.slane %v3412, 4
        %v3415 = vor.u32 %v3414, %v3410
        %v3416 = vrot.slane %v3415, 4
        %v3418 = vshll.u32 %v3083, 16
        %v3420 = vrot.slane %v3418, 5
        %v3421 = vsel %vm1865, %v3416, %v3420
        %v3423 = vshrl.u32 %v3066, 16
        %v3425 = vrot.slane %v3423, 4
        %v3426 = vshll.u32 %v3066, 16
        %v3428 = vrot.slane %v3426, 5
        %v3429 = vor.u32 %v3425, %v3428
        %v3430 = vrot.slane %v3429, 4
        %v3432 = vshll.u32 %v3067, 16
        %v3434 = vrot.slane %v3432, 5
        %v3435 = vsel %vm1865, %v3430, %v3434
        %v3436 = vshrl.u32 %v3067, 16
        %v3438 = vrot.slane %v3436, 4
        %v3439 = vor.u32 %v3438, %v3434
        %v3440 = vrot.slane %v3439, 4
        %v3442 = vshll.u32 %v3084, 16
        %v3444 = vrot.slane %v3442, 5
        %v3445 = vsel %vm1865, %v3440, %v3444
        %v3447 = vshrl.u32 %v3068, 16
        %v3449 = vrot.slane %v3447, 4
        %v3450 = vshll.u32 %v3068, 16
        %v3452 = vrot.slane %v3450, 5
        %v3453 = vor.u32 %v3449, %v3452
        %v3454 = vrot.slane %v3453, 4
        %v3456 = vshll.u32 %v3069, 16
        %v3458 = vrot.slane %v3456, 5
        %v3459 = vsel %vm1865, %v3454, %v3458
        %v3460 = vshrl.u32 %v3069, 16
        %v3462 = vrot.slane %v3460, 4
        %v3463 = vor.u32 %v3462, %v3458
        %v3464 = vrot.slane %v3463, 4
        %v3466 = vshll.u32 %v3085, 16
        %v3468 = vrot.slane %v3466, 5
        %v3469 = vsel %vm1865, %v3464, %v3468
        %v3470 = vld [vmem:[%s3037] sm:$0xe]
        %v3471 = vld [vmem:[%s3037 + $0xc] sm:$0xe]
        %v3472 = vld [vmem:[%s3037 + $0x18] sm:$0xe]
        %v3473 = vld [vmem:[%s3037 + $0x24] sm:$0xe]
        %v3474 = vld [vmem:[%s3037 + $0x30] sm:$0xe]
        %v3475 = vld [vmem:[%s3037 + $0x3c] sm:$0xe]
        %v3476 = vld [vmem:[%s3037 + $0x48] sm:$0xe]
        %v3477 = vld [vmem:[%s3037 + $0x54] sm:$0xe]
        %v3478 = vld [vmem:[%s3037 + $0x60] sm:$0xe]
        %v3479 = vld [vmem:[%s3037 + $0x6c] sm:$0xe]
        %v3480 = vld [vmem:[%s3037 + $0x78] sm:$0xe]
        %v3481 = vld [vmem:[%s3037 + $0x84] sm:$0xe]
        %v3482 = vld [vmem:[%s3037 + $0x90] sm:$0xe]
        %v3483 = vld [vmem:[%s3037 + $0x9c] sm:$0xe]
        %v3484 = vld [vmem:[%s3037 + $0xa8] sm:$0xe]
        %v3485 = vld [vmem:[%s3037 + $0xb4] sm:$0xe]
        %v3534 = vrot.slane %v3470, 5
        %v3535 = vrot.slane %v3534, 4
        %v3536 = vrot.slane %v3039, 5
        %v3537 = vsel %vm2316, %v3535, %v3536
        %v3538 = vrot.slane %v3536, 4
        %v3539 = vrot.slane %v3070, 5
        %v3540 = vsel %vm2316, %v3538, %v3539
        %v3541 = vrot.slane %v3471, 5
        %v3542 = vrot.slane %v3541, 4
        %v3543 = vrot.slane %v3041, 5
        %v3544 = vsel %vm2316, %v3542, %v3543
        %v3545 = vrot.slane %v3543, 4
        %v3546 = vrot.slane %v3071, 5
        %v3547 = vsel %vm2316, %v3545, %v3546
        %v3548 = vrot.slane %v3472, 5
        %v3549 = vrot.slane %v3548, 4
        %v3550 = vrot.slane %v3043, 5
        %v3551 = vsel %vm2316, %v3549, %v3550
        %v3552 = vrot.slane %v3550, 4
        %v3553 = vrot.slane %v3072, 5
        %v3554 = vsel %vm2316, %v3552, %v3553
        %v3555 = vrot.slane %v3473, 5
        %v3556 = vrot.slane %v3555, 4
        %v3557 = vrot.slane %v3045, 5
        %v3558 = vsel %vm2316, %v3556, %v3557
        %v3559 = vrot.slane %v3557, 4
        %v3560 = vrot.slane %v3073, 5
        %v3561 = vsel %vm2316, %v3559, %v3560
        %v3562 = vrot.slane %v3474, 5
        %v3563 = vrot.slane %v3562, 4
        %v3564 = vrot.slane %v3047, 5
        %v3565 = vsel %vm2316, %v3563, %v3564
        %v3566 = vrot.slane %v3564, 4
        %v3567 = vrot.slane %v3074, 5
        %v3568 = vsel %vm2316, %v3566, %v3567
        %v3569 = vrot.slane %v3475, 5
        %v3570 = vrot.slane %v3569, 4
        %v3571 = vrot.slane %v3049, 5
        %v3572 = vsel %vm2316, %v3570, %v3571
        %v3573 = vrot.slane %v3571, 4
        %v3574 = vrot.slane %v3075, 5
        %v3575 = vsel %vm2316, %v3573, %v3574
        %v3576 = vrot.slane %v3476, 5
        %v3577 = vrot.slane %v3576, 4
        %v3578 = vrot.slane %v3051, 5
        %v3579 = vsel %vm2316, %v3577, %v3578
        %v3580 = vrot.slane %v3578, 4
        %v3581 = vrot.slane %v3076, 5
        %v3582 = vsel %vm2316, %v3580, %v3581
        %v3583 = vrot.slane %v3477, 5
        %v3584 = vrot.slane %v3583, 4
        %v3585 = vrot.slane %v3053, 5
        %v3586 = vsel %vm2316, %v3584, %v3585
        %v3587 = vrot.slane %v3585, 4
        %v3588 = vrot.slane %v3077, 5
        %v3589 = vsel %vm2316, %v3587, %v3588
        %v3590 = vrot.slane %v3478, 5
        %v3591 = vrot.slane %v3590, 4
        %v3592 = vrot.slane %v3055, 5
        %v3593 = vsel %vm2316, %v3591, %v3592
        %v3594 = vrot.slane %v3592, 4
        %v3595 = vrot.slane %v3078, 5
        %v3596 = vsel %vm2316, %v3594, %v3595
        %v3597 = vrot.slane %v3479, 5
        %v3598 = vrot.slane %v3597, 4
        %v3599 = vrot.slane %v3057, 5
        %v3600 = vsel %vm2316, %v3598, %v3599
        %v3601 = vrot.slane %v3599, 4
        %v3602 = vrot.slane %v3079, 5
        %v3603 = vsel %vm2316, %v3601, %v3602
        %v3604 = vrot.slane %v3480, 5
        %v3605 = vrot.slane %v3604, 4
        %v3606 = vrot.slane %v3059, 5
        %v3607 = vsel %vm2316, %v3605, %v3606
        %v3608 = vrot.slane %v3606, 4
        %v3609 = vrot.slane %v3080, 5
        %v3610 = vsel %vm2316, %v3608, %v3609
        %v3611 = vrot.slane %v3481, 5
        %v3612 = vrot.slane %v3611, 4
        %v3613 = vrot.slane %v3061, 5
        %v3614 = vsel %vm2316, %v3612, %v3613
        %v3615 = vrot.slane %v3613, 4
        %v3616 = vrot.slane %v3081, 5
        %v3617 = vsel %vm2316, %v3615, %v3616
        %v3618 = vrot.slane %v3482, 5
        %v3619 = vrot.slane %v3618, 4
        %v3620 = vrot.slane %v3063, 5
        %v3621 = vsel %vm2316, %v3619, %v3620
        %v3622 = vrot.slane %v3620, 4
        %v3623 = vrot.slane %v3082, 5
        %v3624 = vsel %vm2316, %v3622, %v3623
        %v3625 = vrot.slane %v3483, 5
        %v3626 = vrot.slane %v3625, 4
        %v3627 = vrot.slane %v3065, 5
        %v3628 = vsel %vm2316, %v3626, %v3627
        %v3629 = vrot.slane %v3627, 4
        %v3630 = vrot.slane %v3083, 5
        %v3631 = vsel %vm2316, %v3629, %v3630
        %v3632 = vrot.slane %v3484, 5
        %v3633 = vrot.slane %v3632, 4
        %v3634 = vrot.slane %v3067, 5
        %v3635 = vsel %vm2316, %v3633, %v3634
        %v3636 = vrot.slane %v3634, 4
        %v3637 = vrot.slane %v3084, 5
        %v3638 = vsel %vm2316, %v3636, %v3637
        %v3639 = vrot.slane %v3485, 5
        %v3640 = vrot.slane %v3639, 4
        %v3641 = vrot.slane %v3069, 5
        %v3642 = vsel %vm2316, %v3640, %v3641
        %v3643 = vrot.slane %v3641, 4
        %v3644 = vrot.slane %v3085, 5
        %v3645 = vsel %vm2316, %v3643, %v3644
        %v3662 = vunpack.c.l.b16 %v1815
        %v3663 = vunpack.c.l.b16 %v1816
        %v3664 = vunpack.c.l.b16 %v1817
        %v3665 = vunpack.c.l.b16 %v1818
        %v3666 = vunpack.c.l.b16 %v1819
        %v3667 = vunpack.c.l.b16 %v1820
        %v3668 = vunpack.c.l.b16 %v1821
        %v3669 = vunpack.c.l.b16 %v1822
        %v3670 = vunpack.c.l.b16 %v1823
        %v3671 = vunpack.c.l.b16 %v1824
        %v3672 = vunpack.c.l.b16 %v1825
        %v3673 = vunpack.c.l.b16 %v1826
        %v3674 = vunpack.c.l.b16 %v1827
        %v3675 = vunpack.c.l.b16 %v1828
        %v3676 = vunpack.c.l.b16 %v1829
        %v3677 = vunpack.c.l.b16 %v1830
        %v3678 = vunpack.c.l.b16 %v1831
        %v3679 = vunpack.c.l.b16 %v1832
        %v3680 = vunpack.c.l.b16 %v1833
        %v3681 = vunpack.c.l.b16 %v1834
        %v3682 = vunpack.c.l.b16 %v1835
        %v3683 = vunpack.c.l.b16 %v1836
        %v3684 = vunpack.c.l.b16 %v1837
        %v3685 = vunpack.c.l.b16 %v1838
        %v3686 = vunpack.c.l.b16 %v1839
        %v3687 = vunpack.c.l.b16 %v1840
        %v3688 = vunpack.c.l.b16 %v1841
        %v3689 = vunpack.c.l.b16 %v1842
        %v3690 = vunpack.c.l.b16 %v1843
        %v3691 = vunpack.c.l.b16 %v1844
        %v3692 = vunpack.c.l.b16 %v1845
        %v3693 = vunpack.c.l.b16 %v1846
        %v3694 = vpack.c.b16 %v3663, %v3662
        %v3695 = vpack.c.b16 %v3665, %v3664
        %v3696 = vpack.c.b16 %v3667, %v3666
        %v3697 = vpack.c.b16 %v3669, %v3668
        %v3698 = vpack.c.b16 %v3671, %v3670
        %v3699 = vpack.c.b16 %v3673, %v3672
        %v3700 = vpack.c.b16 %v3675, %v3674
        %v3701 = vpack.c.b16 %v3677, %v3676
        %v3702 = vpack.c.b16 %v3679, %v3678
        %v3703 = vpack.c.b16 %v3681, %v3680
        %v3704 = vpack.c.b16 %v3683, %v3682
        %v3705 = vpack.c.b16 %v3685, %v3684
        %v3706 = vpack.c.b16 %v3687, %v3686
        %v3707 = vpack.c.b16 %v3689, %v3688
        %v3708 = vpack.c.b16 %v3691, %v3690
        %v3709 = vpack.c.b16 %v3693, %v3692
        %v3726 = vunpack.c.l.b16 %v1879
        %v3727 = vunpack.c.l.b16 %v1889
        %v3728 = vunpack.c.l.b16 %v1903
        %v3729 = vunpack.c.l.b16 %v1913
        %v3730 = vunpack.c.l.b16 %v1927
        %v3731 = vunpack.c.l.b16 %v1937
        %v3732 = vunpack.c.l.b16 %v1951
        %v3733 = vunpack.c.l.b16 %v1961
        %v3734 = vunpack.c.l.b16 %v1975
        %v3735 = vunpack.c.l.b16 %v1985
        %v3736 = vunpack.c.l.b16 %v1999
        %v3737 = vunpack.c.l.b16 %v2009
        %v3738 = vunpack.c.l.b16 %v2023
        %v3739 = vunpack.c.l.b16 %v2033
        %v3740 = vunpack.c.l.b16 %v2047
        %v3741 = vunpack.c.l.b16 %v2057
        %v3742 = vunpack.c.l.b16 %v2071
        %v3743 = vunpack.c.l.b16 %v2081
        %v3744 = vunpack.c.l.b16 %v2095
        %v3745 = vunpack.c.l.b16 %v2105
        %v3746 = vunpack.c.l.b16 %v2119
        %v3747 = vunpack.c.l.b16 %v2129
        %v3748 = vunpack.c.l.b16 %v2143
        %v3749 = vunpack.c.l.b16 %v2153
        %v3750 = vunpack.c.l.b16 %v2167
        %v3751 = vunpack.c.l.b16 %v2177
        %v3752 = vunpack.c.l.b16 %v2191
        %v3753 = vunpack.c.l.b16 %v2201
        %v3754 = vunpack.c.l.b16 %v2215
        %v3755 = vunpack.c.l.b16 %v2225
        %v3756 = vunpack.c.l.b16 %v2239
        %v3757 = vunpack.c.l.b16 %v2249
        %v3758 = vpack.c.b16 %v3727, %v3726
        %v3759 = vpack.c.b16 %v3729, %v3728
        %v3760 = vpack.c.b16 %v3731, %v3730
        %v3761 = vpack.c.b16 %v3733, %v3732
        %v3762 = vpack.c.b16 %v3735, %v3734
        %v3763 = vpack.c.b16 %v3737, %v3736
        %v3764 = vpack.c.b16 %v3739, %v3738
        %v3765 = vpack.c.b16 %v3741, %v3740
        %v3766 = vpack.c.b16 %v3743, %v3742
        %v3767 = vpack.c.b16 %v3745, %v3744
        %v3768 = vpack.c.b16 %v3747, %v3746
        %v3769 = vpack.c.b16 %v3749, %v3748
        %v3770 = vpack.c.b16 %v3751, %v3750
        %v3771 = vpack.c.b16 %v3753, %v3752
        %v3772 = vpack.c.b16 %v3755, %v3754
        %v3773 = vpack.c.b16 %v3757, %v3756
        %v3790 = vunpack.c.l.b16 %v2320
        %v3791 = vunpack.c.l.b16 %v2323
        %v3792 = vunpack.c.l.b16 %v2327
        %v3793 = vunpack.c.l.b16 %v2330
        %v3794 = vunpack.c.l.b16 %v2334
        %v3795 = vunpack.c.l.b16 %v2337
        %v3796 = vunpack.c.l.b16 %v2341
        %v3797 = vunpack.c.l.b16 %v2344
        %v3798 = vunpack.c.l.b16 %v2348
        %v3799 = vunpack.c.l.b16 %v2351
        %v3800 = vunpack.c.l.b16 %v2355
        %v3801 = vunpack.c.l.b16 %v2358
        %v3802 = vunpack.c.l.b16 %v2362
        %v3803 = vunpack.c.l.b16 %v2365
        %v3804 = vunpack.c.l.b16 %v2369
        %v3805 = vunpack.c.l.b16 %v2372
        %v3806 = vunpack.c.l.b16 %v2376
        %v3807 = vunpack.c.l.b16 %v2379
        %v3808 = vunpack.c.l.b16 %v2383
        %v3809 = vunpack.c.l.b16 %v2386
        %v3810 = vunpack.c.l.b16 %v2390
        %v3811 = vunpack.c.l.b16 %v2393
        %v3812 = vunpack.c.l.b16 %v2397
        %v3813 = vunpack.c.l.b16 %v2400
        %v3814 = vunpack.c.l.b16 %v2404
        %v3815 = vunpack.c.l.b16 %v2407
        %v3816 = vunpack.c.l.b16 %v2411
        %v3817 = vunpack.c.l.b16 %v2414
        %v3818 = vunpack.c.l.b16 %v2418
        %v3819 = vunpack.c.l.b16 %v2421
        %v3820 = vunpack.c.l.b16 %v2425
        %v3821 = vunpack.c.l.b16 %v2428
        %v3822 = vpack.c.b16 %v3791, %v3790
        %v3823 = vpack.c.b16 %v3793, %v3792
        %v3824 = vpack.c.b16 %v3795, %v3794
        %v3825 = vpack.c.b16 %v3797, %v3796
        %v3826 = vpack.c.b16 %v3799, %v3798
        %v3827 = vpack.c.b16 %v3801, %v3800
        %v3828 = vpack.c.b16 %v3803, %v3802
        %v3829 = vpack.c.b16 %v3805, %v3804
        %v3830 = vpack.c.b16 %v3807, %v3806
        %v3831 = vpack.c.b16 %v3809, %v3808
        %v3832 = vpack.c.b16 %v3811, %v3810
        %v3833 = vpack.c.b16 %v3813, %v3812
        %v3834 = vpack.c.b16 %v3815, %v3814
        %v3835 = vpack.c.b16 %v3817, %v3816
        %v3836 = vpack.c.b16 %v3819, %v3818
        %v3837 = vpack.c.b16 %v3821, %v3820
        %v3870 = vunpack.c.l.b16 %v2429
        %v3871 = vunpack.c.l.b16 %v2430
        %v3872 = vunpack.c.l.b16 %v2431
        %v3873 = vunpack.c.l.b16 %v2432
        %v3874 = vunpack.c.l.b16 %v2433
        %v3875 = vunpack.c.l.b16 %v2434
        %v3876 = vunpack.c.l.b16 %v2435
        %v3877 = vunpack.c.l.b16 %v2436
        %v3878 = vunpack.c.l.b16 %v2437
        %v3879 = vunpack.c.l.b16 %v2438
        %v3880 = vunpack.c.l.b16 %v2439
        %v3881 = vunpack.c.l.b16 %v2440
        %v3882 = vunpack.c.l.b16 %v2441
        %v3883 = vunpack.c.l.b16 %v2442
        %v3884 = vunpack.c.l.b16 %v2443
        %v3885 = vunpack.c.l.b16 %v2444
        %v3886 = vunpack.c.l.b16 %v2445
        %v3887 = vunpack.c.l.b16 %v2446
        %v3888 = vunpack.c.l.b16 %v2447
        %v3889 = vunpack.c.l.b16 %v2448
        %v3890 = vunpack.c.l.b16 %v2449
        %v3891 = vunpack.c.l.b16 %v2450
        %v3892 = vunpack.c.l.b16 %v2451
        %v3893 = vunpack.c.l.b16 %v2452
        %v3894 = vunpack.c.l.b16 %v2453
        %v3895 = vunpack.c.l.b16 %v2454
        %v3896 = vunpack.c.l.b16 %v2455
        %v3897 = vunpack.c.l.b16 %v2456
        %v3898 = vunpack.c.l.b16 %v2457
        %v3899 = vunpack.c.l.b16 %v2458
        %v3900 = vunpack.c.l.b16 %v2459
        %v3901 = vunpack.c.l.b16 %v2460
        %v3902 = vpack.c.b16 %v3871, %v3870
        %v3903 = vpack.c.b16 %v3873, %v3872
        %v3904 = vpack.c.b16 %v3875, %v3874
        %v3905 = vpack.c.b16 %v3877, %v3876
        %v3906 = vpack.c.b16 %v3879, %v3878
        %v3907 = vpack.c.b16 %v3881, %v3880
        %v3908 = vpack.c.b16 %v3883, %v3882
        %v3909 = vpack.c.b16 %v3885, %v3884
        %v3910 = vpack.c.b16 %v3887, %v3886
        %v3911 = vpack.c.b16 %v3889, %v3888
        %v3912 = vpack.c.b16 %v3891, %v3890
        %v3913 = vpack.c.b16 %v3893, %v3892
        %v3914 = vpack.c.b16 %v3895, %v3894
        %v3915 = vpack.c.b16 %v3897, %v3896
        %v3916 = vpack.c.b16 %v3899, %v3898
        %v3917 = vpack.c.b16 %v3901, %v3900
        %v3934 = vunpack.c.l.b16 %v2490
        %v3935 = vunpack.c.l.b16 %v2500
        %v3936 = vunpack.c.l.b16 %v2514
        %v3937 = vunpack.c.l.b16 %v2524
        %v3938 = vunpack.c.l.b16 %v2538
        %v3939 = vunpack.c.l.b16 %v2548
        %v3940 = vunpack.c.l.b16 %v2562
        %v3941 = vunpack.c.l.b16 %v2572
        %v3942 = vunpack.c.l.b16 %v2586
        %v3943 = vunpack.c.l.b16 %v2596
        %v3944 = vunpack.c.l.b16 %v2610
        %v3945 = vunpack.c.l.b16 %v2620
        %v3946 = vunpack.c.l.b16 %v2634
        %v3947 = vunpack.c.l.b16 %v2644
        %v3948 = vunpack.c.l.b16 %v2658
        %v3949 = vunpack.c.l.b16 %v2668
        %v3950 = vunpack.c.l.b16 %v2682
        %v3951 = vunpack.c.l.b16 %v2692
        %v3952 = vunpack.c.l.b16 %v2706
        %v3953 = vunpack.c.l.b16 %v2716
        %v3954 = vunpack.c.l.b16 %v2730
        %v3955 = vunpack.c.l.b16 %v2740
        %v3956 = vunpack.c.l.b16 %v2754
        %v3957 = vunpack.c.l.b16 %v2764
        %v3958 = vunpack.c.l.b16 %v2778
        %v3959 = vunpack.c.l.b16 %v2788
        %v3960 = vunpack.c.l.b16 %v2802
        %v3961 = vunpack.c.l.b16 %v2812
        %v3962 = vunpack.c.l.b16 %v2826
        %v3963 = vunpack.c.l.b16 %v2836
        %v3964 = vunpack.c.l.b16 %v2850
        %v3965 = vunpack.c.l.b16 %v2860
        %v3966 = vpack.c.b16 %v3935, %v3934
        %v3967 = vpack.c.b16 %v3937, %v3936
        %v3968 = vpack.c.b16 %v3939, %v3938
        %v3969 = vpack.c.b16 %v3941, %v3940
        %v3970 = vpack.c.b16 %v3943, %v3942
        %v3971 = vpack.c.b16 %v3945, %v3944
        %v3972 = vpack.c.b16 %v3947, %v3946
        %v3973 = vpack.c.b16 %v3949, %v3948
        %v3974 = vpack.c.b16 %v3951, %v3950
        %v3975 = vpack.c.b16 %v3953, %v3952
        %v3976 = vpack.c.b16 %v3955, %v3954
        %v3977 = vpack.c.b16 %v3957, %v3956
        %v3978 = vpack.c.b16 %v3959, %v3958
        %v3979 = vpack.c.b16 %v3961, %v3960
        %v3980 = vpack.c.b16 %v3963, %v3962
        %v3981 = vpack.c.b16 %v3965, %v3964
        %v3998 = vunpack.c.l.b16 %v2928
        %v3999 = vunpack.c.l.b16 %v2931
        %v4000 = vunpack.c.l.b16 %v2935
        %v4001 = vunpack.c.l.b16 %v2938
        %v4002 = vunpack.c.l.b16 %v2942
        %v4003 = vunpack.c.l.b16 %v2945
        %v4004 = vunpack.c.l.b16 %v2949
        %v4005 = vunpack.c.l.b16 %v2952
        %v4006 = vunpack.c.l.b16 %v2956
        %v4007 = vunpack.c.l.b16 %v2959
        %v4008 = vunpack.c.l.b16 %v2963
        %v4009 = vunpack.c.l.b16 %v2966
        %v4010 = vunpack.c.l.b16 %v2970
        %v4011 = vunpack.c.l.b16 %v2973
        %v4012 = vunpack.c.l.b16 %v2977
        %v4013 = vunpack.c.l.b16 %v2980
        %v4014 = vunpack.c.l.b16 %v2984
        %v4015 = vunpack.c.l.b16 %v2987
        %v4016 = vunpack.c.l.b16 %v2991
        %v4017 = vunpack.c.l.b16 %v2994
        %v4018 = vunpack.c.l.b16 %v2998
        %v4019 = vunpack.c.l.b16 %v3001
        %v4020 = vunpack.c.l.b16 %v3005
        %v4021 = vunpack.c.l.b16 %v3008
        %v4022 = vunpack.c.l.b16 %v3012
        %v4023 = vunpack.c.l.b16 %v3015
        %v4024 = vunpack.c.l.b16 %v3019
        %v4025 = vunpack.c.l.b16 %v3022
        %v4026 = vunpack.c.l.b16 %v3026
        %v4027 = vunpack.c.l.b16 %v3029
        %v4028 = vunpack.c.l.b16 %v3033
        %v4029 = vunpack.c.l.b16 %v3036
        %v4030 = vpack.c.b16 %v3999, %v3998
        %v4031 = vpack.c.b16 %v4001, %v4000
        %v4032 = vpack.c.b16 %v4003, %v4002
        %v4033 = vpack.c.b16 %v4005, %v4004
        %v4034 = vpack.c.b16 %v4007, %v4006
        %v4035 = vpack.c.b16 %v4009, %v4008
        %v4036 = vpack.c.b16 %v4011, %v4010
        %v4037 = vpack.c.b16 %v4013, %v4012
        %v4038 = vpack.c.b16 %v4015, %v4014
        %v4039 = vpack.c.b16 %v4017, %v4016
        %v4040 = vpack.c.b16 %v4019, %v4018
        %v4041 = vpack.c.b16 %v4021, %v4020
        %v4042 = vpack.c.b16 %v4023, %v4022
        %v4043 = vpack.c.b16 %v4025, %v4024
        %v4044 = vpack.c.b16 %v4027, %v4026
        %v4045 = vpack.c.b16 %v4029, %v4028
        %v4078 = vunpack.c.l.b16 %v3038
        %v4079 = vunpack.c.l.b16 %v3039
        %v4080 = vunpack.c.l.b16 %v3040
        %v4081 = vunpack.c.l.b16 %v3041
        %v4082 = vunpack.c.l.b16 %v3042
        %v4083 = vunpack.c.l.b16 %v3043
        %v4084 = vunpack.c.l.b16 %v3044
        %v4085 = vunpack.c.l.b16 %v3045
        %v4086 = vunpack.c.l.b16 %v3046
        %v4087 = vunpack.c.l.b16 %v3047
        %v4088 = vunpack.c.l.b16 %v3048
        %v4089 = vunpack.c.l.b16 %v3049
        %v4090 = vunpack.c.l.b16 %v3050
        %v4091 = vunpack.c.l.b16 %v3051
        %v4092 = vunpack.c.l.b16 %v3052
        %v4093 = vunpack.c.l.b16 %v3053
        %v4094 = vunpack.c.l.b16 %v3054
        %v4095 = vunpack.c.l.b16 %v3055
        %v4096 = vunpack.c.l.b16 %v3056
        %v4097 = vunpack.c.l.b16 %v3057
        %v4098 = vunpack.c.l.b16 %v3058
        %v4099 = vunpack.c.l.b16 %v3059
        %v4100 = vunpack.c.l.b16 %v3060
        %v4101 = vunpack.c.l.b16 %v3061
        %v4102 = vunpack.c.l.b16 %v3062
        %v4103 = vunpack.c.l.b16 %v3063
        %v4104 = vunpack.c.l.b16 %v3064
        %v4105 = vunpack.c.l.b16 %v3065
        %v4106 = vunpack.c.l.b16 %v3066
        %v4107 = vunpack.c.l.b16 %v3067
        %v4108 = vunpack.c.l.b16 %v3068
        %v4109 = vunpack.c.l.b16 %v3069
        %v4110 = vpack.c.b16 %v4079, %v4078
        %v4111 = vpack.c.b16 %v4081, %v4080
        %v4112 = vpack.c.b16 %v4083, %v4082
        %v4113 = vpack.c.b16 %v4085, %v4084
        %v4114 = vpack.c.b16 %v4087, %v4086
        %v4115 = vpack.c.b16 %v4089, %v4088
        %v4116 = vpack.c.b16 %v4091, %v4090
        %v4117 = vpack.c.b16 %v4093, %v4092
        %v4118 = vpack.c.b16 %v4095, %v4094
        %v4119 = vpack.c.b16 %v4097, %v4096
        %v4120 = vpack.c.b16 %v4099, %v4098
        %v4121 = vpack.c.b16 %v4101, %v4100
        %v4122 = vpack.c.b16 %v4103, %v4102
        %v4123 = vpack.c.b16 %v4105, %v4104
        %v4124 = vpack.c.b16 %v4107, %v4106
        %v4125 = vpack.c.b16 %v4109, %v4108
        %v4142 = vunpack.c.l.b16 %v3099
        %v4143 = vunpack.c.l.b16 %v3109
        %v4144 = vunpack.c.l.b16 %v3123
        %v4145 = vunpack.c.l.b16 %v3133
        %v4146 = vunpack.c.l.b16 %v3147
        %v4147 = vunpack.c.l.b16 %v3157
        %v4148 = vunpack.c.l.b16 %v3171
        %v4149 = vunpack.c.l.b16 %v3181
        %v4150 = vunpack.c.l.b16 %v3195
        %v4151 = vunpack.c.l.b16 %v3205
        %v4152 = vunpack.c.l.b16 %v3219
        %v4153 = vunpack.c.l.b16 %v3229
        %v4154 = vunpack.c.l.b16 %v3243
        %v4155 = vunpack.c.l.b16 %v3253
        %v4156 = vunpack.c.l.b16 %v3267
        %v4157 = vunpack.c.l.b16 %v3277
        %v4158 = vunpack.c.l.b16 %v3291
        %v4159 = vunpack.c.l.b16 %v3301
        %v4160 = vunpack.c.l.b16 %v3315
        %v4161 = vunpack.c.l.b16 %v3325
        %v4162 = vunpack.c.l.b16 %v3339
        %v4163 = vunpack.c.l.b16 %v3349
        %v4164 = vunpack.c.l.b16 %v3363
        %v4165 = vunpack.c.l.b16 %v3373
        %v4166 = vunpack.c.l.b16 %v3387
        %v4167 = vunpack.c.l.b16 %v3397
        %v4168 = vunpack.c.l.b16 %v3411
        %v4169 = vunpack.c.l.b16 %v3421
        %v4170 = vunpack.c.l.b16 %v3435
        %v4171 = vunpack.c.l.b16 %v3445
        %v4172 = vunpack.c.l.b16 %v3459
        %v4173 = vunpack.c.l.b16 %v3469
        %v4174 = vpack.c.b16 %v4143, %v4142
        %v4175 = vpack.c.b16 %v4145, %v4144
        %v4176 = vpack.c.b16 %v4147, %v4146
        %v4177 = vpack.c.b16 %v4149, %v4148
        %v4178 = vpack.c.b16 %v4151, %v4150
        %v4179 = vpack.c.b16 %v4153, %v4152
        %v4180 = vpack.c.b16 %v4155, %v4154
        %v4181 = vpack.c.b16 %v4157, %v4156
        %v4182 = vpack.c.b16 %v4159, %v4158
        %v4183 = vpack.c.b16 %v4161, %v4160
        %v4184 = vpack.c.b16 %v4163, %v4162
        %v4185 = vpack.c.b16 %v4165, %v4164
        %v4186 = vpack.c.b16 %v4167, %v4166
        %v4187 = vpack.c.b16 %v4169, %v4168
        %v4188 = vpack.c.b16 %v4171, %v4170
        %v4189 = vpack.c.b16 %v4173, %v4172
        %v4206 = vunpack.c.l.b16 %v3537
        %v4207 = vunpack.c.l.b16 %v3540
        %v4208 = vunpack.c.l.b16 %v3544
        %v4209 = vunpack.c.l.b16 %v3547
        %v4210 = vunpack.c.l.b16 %v3551
        %v4211 = vunpack.c.l.b16 %v3554
        %v4212 = vunpack.c.l.b16 %v3558
        %v4213 = vunpack.c.l.b16 %v3561
        %v4214 = vunpack.c.l.b16 %v3565
        %v4215 = vunpack.c.l.b16 %v3568
        %v4216 = vunpack.c.l.b16 %v3572
        %v4217 = vunpack.c.l.b16 %v3575
        %v4218 = vunpack.c.l.b16 %v3579
        %v4219 = vunpack.c.l.b16 %v3582
        %v4220 = vunpack.c.l.b16 %v3586
        %v4221 = vunpack.c.l.b16 %v3589
        %v4222 = vunpack.c.l.b16 %v3593
        %v4223 = vunpack.c.l.b16 %v3596
        %v4224 = vunpack.c.l.b16 %v3600
        %v4225 = vunpack.c.l.b16 %v3603
        %v4226 = vunpack.c.l.b16 %v3607
        %v4227 = vunpack.c.l.b16 %v3610
        %v4228 = vunpack.c.l.b16 %v3614
        %v4229 = vunpack.c.l.b16 %v3617
        %v4230 = vunpack.c.l.b16 %v3621
        %v4231 = vunpack.c.l.b16 %v3624
        %v4232 = vunpack.c.l.b16 %v3628
        %v4233 = vunpack.c.l.b16 %v3631
        %v4234 = vunpack.c.l.b16 %v3635
        %v4235 = vunpack.c.l.b16 %v3638
        %v4236 = vunpack.c.l.b16 %v3642
        %v4237 = vunpack.c.l.b16 %v3645
        %v4238 = vpack.c.b16 %v4207, %v4206
        %v4239 = vpack.c.b16 %v4209, %v4208
        %v4240 = vpack.c.b16 %v4211, %v4210
        %v4241 = vpack.c.b16 %v4213, %v4212
        %v4242 = vpack.c.b16 %v4215, %v4214
        %v4243 = vpack.c.b16 %v4217, %v4216
        %v4244 = vpack.c.b16 %v4219, %v4218
        %v4245 = vpack.c.b16 %v4221, %v4220
        %v4246 = vpack.c.b16 %v4223, %v4222
        %v4247 = vpack.c.b16 %v4225, %v4224
        %v4248 = vpack.c.b16 %v4227, %v4226
        %v4249 = vpack.c.b16 %v4229, %v4228
        %v4250 = vpack.c.b16 %v4231, %v4230
        %v4251 = vpack.c.b16 %v4233, %v4232
        %v4252 = vpack.c.b16 %v4235, %v4234
        %v4253 = vpack.c.b16 %v4237, %v4236
        %v4271 = vlaneseq
        %v4272 = vshrl.u32 %v4271, 7
        %v4273 = vsub.s32 0, %v4272
        %v4274 = vrot.slane %v1814, %v4273
        %v4420 = vunpack.c.l.b16 %v1670
        %v4421 = vunpack.c.l.b16 %v1671
        %v4422 = vunpack.c.l.b16 %v1672
        %v4423 = vunpack.c.l.b16 %v1673
        %v4424 = vunpack.c.l.b16 %v1674
        %v4425 = vunpack.c.l.b16 %v1675
        %v4426 = vunpack.c.l.b16 %v1676
        %v4427 = vunpack.c.l.b16 %v1677
        %v4428 = vunpack.c.l.b16 %v1678
        %v4429 = vunpack.c.l.b16 %v1679
        %v4430 = vunpack.c.l.b16 %v1680
        %v4431 = vunpack.c.l.b16 %v1681
        %v4432 = vunpack.c.l.b16 %v1682
        %v4433 = vunpack.c.l.b16 %v1683
        %v4434 = vunpack.c.l.b16 %v1684
        %v4435 = vunpack.c.l.b16 %v1685
        %v4436 = vunpack.c.l.b16 %v1686
        %v4437 = vunpack.c.l.b16 %v1687
        %v4438 = vunpack.c.l.b16 %v1688
        %v4439 = vunpack.c.l.b16 %v1689
        %v4440 = vunpack.c.l.b16 %v1690
        %v4441 = vunpack.c.l.b16 %v1691
        %v4442 = vunpack.c.l.b16 %v1692
        %v4443 = vunpack.c.l.b16 %v1693
        %v4444 = vunpack.c.l.b16 %v1694
        %v4445 = vunpack.c.l.b16 %v1695
        %v4446 = vunpack.c.l.b16 %v1696
        %v4447 = vunpack.c.l.b16 %v1697
        %v4448 = vunpack.c.l.b16 %v1698
        %v4449 = vunpack.c.l.b16 %v1699
        %v4450 = vunpack.c.l.b16 %v1700
        %v4451 = vunpack.c.l.b16 %v1701
        %v4452 = vunpack.c.l.b16 %v1702
        %v4453 = vunpack.c.l.b16 %v1703
        %v4454 = vunpack.c.l.b16 %v1704
        %v4455 = vunpack.c.l.b16 %v1705
        %v4456 = vunpack.c.l.b16 %v1706
        %v4457 = vunpack.c.l.b16 %v1707
        %v4458 = vunpack.c.l.b16 %v1708
        %v4459 = vunpack.c.l.b16 %v1709
        %v4460 = vunpack.c.l.b16 %v1710
        %v4461 = vunpack.c.l.b16 %v1711
        %v4462 = vunpack.c.l.b16 %v1712
        %v4463 = vunpack.c.l.b16 %v1713
        %v4464 = vunpack.c.l.b16 %v1714
        %v4465 = vunpack.c.l.b16 %v1715
        %v4466 = vunpack.c.l.b16 %v1716
        %v4467 = vunpack.c.l.b16 %v1717
        %v4468 = vunpack.c.l.b16 %v1718
        %v4469 = vunpack.c.l.b16 %v1719
        %v4470 = vunpack.c.l.b16 %v1720
        %v4471 = vunpack.c.l.b16 %v1721
        %v4472 = vunpack.c.l.b16 %v1722
        %v4473 = vunpack.c.l.b16 %v1723
        %v4474 = vunpack.c.l.b16 %v1724
        %v4475 = vunpack.c.l.b16 %v1725
        %v4476 = vunpack.c.l.b16 %v1726
        %v4477 = vunpack.c.l.b16 %v1727
        %v4478 = vunpack.c.l.b16 %v1728
        %v4479 = vunpack.c.l.b16 %v1729
        %v4480 = vunpack.c.l.b16 %v1730
        %v4481 = vunpack.c.l.b16 %v1731
        %v4482 = vunpack.c.l.b16 %v1732
        %v4483 = vunpack.c.l.b16 %v1733
        %v4484 = vunpack.c.l.b16 %v1734
        %v4485 = vunpack.c.l.b16 %v1735
        %v4486 = vunpack.c.l.b16 %v1736
        %v4487 = vunpack.c.l.b16 %v1737
        %v4488 = vunpack.c.l.b16 %v1738
        %v4489 = vunpack.c.l.b16 %v1739
        %v4490 = vunpack.c.l.b16 %v1740
        %v4491 = vunpack.c.l.b16 %v1741
        %v4492 = vunpack.c.l.b16 %v1742
        %v4493 = vunpack.c.l.b16 %v1743
        %v4494 = vunpack.c.l.b16 %v1744
        %v4495 = vunpack.c.l.b16 %v1745
        %v4496 = vunpack.c.l.b16 %v1746
        %v4497 = vunpack.c.l.b16 %v1747
        %v4498 = vunpack.c.l.b16 %v1748
        %v4499 = vunpack.c.l.b16 %v1749
        %v4500 = vunpack.c.l.b16 %v1750
        %v4501 = vunpack.c.l.b16 %v1751
        %v4502 = vunpack.c.l.b16 %v1752
        %v4503 = vunpack.c.l.b16 %v1753
        %v4504 = vunpack.c.l.b16 %v1754
        %v4505 = vunpack.c.l.b16 %v1755
        %v4506 = vunpack.c.l.b16 %v1756
        %v4507 = vunpack.c.l.b16 %v1757
        %v4508 = vunpack.c.l.b16 %v1758
        %v4509 = vunpack.c.l.b16 %v1759
        %v4510 = vunpack.c.l.b16 %v1760
        %v4511 = vunpack.c.l.b16 %v1761
        %v4512 = vunpack.c.l.b16 %v1762
        %v4513 = vunpack.c.l.b16 %v1763
        %v4514 = vunpack.c.l.b16 %v1764
        %v4515 = vunpack.c.l.b16 %v1765
        %v4516 = vunpack.c.l.b16 %v1766
        %v4517 = vunpack.c.l.b16 %v1767
        %v4518 = vunpack.c.l.b16 %v1768
        %v4519 = vunpack.c.l.b16 %v1769
        %v4520 = vunpack.c.l.b16 %v1770
        %v4521 = vunpack.c.l.b16 %v1771
        %v4522 = vunpack.c.l.b16 %v1772
        %v4523 = vunpack.c.l.b16 %v1773
        %v4524 = vunpack.c.l.b16 %v1774
        %v4525 = vunpack.c.l.b16 %v1775
        %v4526 = vunpack.c.l.b16 %v1776
        %v4527 = vunpack.c.l.b16 %v1777
        %v4528 = vunpack.c.l.b16 %v1778
        %v4529 = vunpack.c.l.b16 %v1779
        %v4530 = vunpack.c.l.b16 %v1780
        %v4531 = vunpack.c.l.b16 %v1781
        %v4532 = vunpack.c.l.b16 %v1782
        %v4533 = vunpack.c.l.b16 %v1783
        %v4534 = vunpack.c.l.b16 %v1784
        %v4535 = vunpack.c.l.b16 %v1785
        %v4536 = vunpack.c.l.b16 %v1786
        %v4537 = vunpack.c.l.b16 %v1787
        %v4538 = vunpack.c.l.b16 %v1788
        %v4539 = vunpack.c.l.b16 %v1789
        %v4540 = vunpack.c.l.b16 %v1790
        %v4541 = vunpack.c.l.b16 %v1791
        %v4542 = vunpack.c.l.b16 %v1792
        %v4543 = vunpack.c.l.b16 %v1793
        %v4544 = vunpack.c.l.b16 %v1794
        %v4545 = vunpack.c.l.b16 %v1795
        %v4546 = vunpack.c.l.b16 %v1796
        %v4547 = vunpack.c.l.b16 %v1797
        %v4548 = vunpack.c.l.b16 %v1798
        %v4549 = vunpack.c.l.b16 %v1799
        %v4550 = vunpack.c.l.b16 %v1800
        %v4551 = vunpack.c.l.b16 %v1801
        %v4552 = vunpack.c.l.b16 %v1802
        %v4553 = vunpack.c.l.b16 %v1803
        %v4554 = vunpack.c.l.b16 %v1804
        %v4555 = vunpack.c.l.b16 %v1805
        %v4556 = vunpack.c.l.b16 %v1806
        %v4557 = vunpack.c.l.b16 %v1807
        %v4558 = vunpack.c.l.b16 %v1808
        %v4559 = vunpack.c.l.b16 %v1809
        %v4560 = vunpack.c.l.b16 %v1810
        %v4561 = vunpack.c.l.b16 %v1811
        %v4562 = vunpack.c.l.b16 %v1812
        %v4563 = vunpack.c.l.b16 %v1813
        %v4564 = vpack.c.b16 %v4421, %v4420
        %v4565 = vpack.c.b16 %v4423, %v4422
        %v4566 = vpack.c.b16 %v4425, %v4424
        %v4567 = vpack.c.b16 %v4427, %v4426
        %v4568 = vpack.c.b16 %v4429, %v4428
        %v4569 = vpack.c.b16 %v4431, %v4430
        %v4570 = vpack.c.b16 %v4433, %v4432
        %v4571 = vpack.c.b16 %v4435, %v4434
        %v4572 = vpack.c.b16 %v4437, %v4436
        %v4573 = vpack.c.b16 %v4439, %v4438
        %v4574 = vpack.c.b16 %v4441, %v4440
        %v4575 = vpack.c.b16 %v4443, %v4442
        %v4576 = vpack.c.b16 %v4445, %v4444
        %v4577 = vpack.c.b16 %v4447, %v4446
        %v4578 = vpack.c.b16 %v4449, %v4448
        %v4579 = vpack.c.b16 %v4451, %v4450
        %v4580 = vpack.c.b16 %v4453, %v4452
        %v4581 = vpack.c.b16 %v4455, %v4454
        %v4582 = vpack.c.b16 %v4457, %v4456
        %v4583 = vpack.c.b16 %v4459, %v4458
        %v4584 = vpack.c.b16 %v4461, %v4460
        %v4585 = vpack.c.b16 %v4463, %v4462
        %v4586 = vpack.c.b16 %v4465, %v4464
        %v4587 = vpack.c.b16 %v4467, %v4466
        %v4588 = vpack.c.b16 %v4469, %v4468
        %v4589 = vpack.c.b16 %v4471, %v4470
        %v4590 = vpack.c.b16 %v4473, %v4472
        %v4591 = vpack.c.b16 %v4475, %v4474
        %v4592 = vpack.c.b16 %v4477, %v4476
        %v4593 = vpack.c.b16 %v4479, %v4478
        %v4594 = vpack.c.b16 %v4481, %v4480
        %v4595 = vpack.c.b16 %v4483, %v4482
        %v4596 = vpack.c.b16 %v4485, %v4484
        %v4597 = vpack.c.b16 %v4487, %v4486
        %v4598 = vpack.c.b16 %v4489, %v4488
        %v4599 = vpack.c.b16 %v4491, %v4490
        %v4600 = vpack.c.b16 %v4493, %v4492
        %v4601 = vpack.c.b16 %v4495, %v4494
        %v4602 = vpack.c.b16 %v4497, %v4496
        %v4603 = vpack.c.b16 %v4499, %v4498
        %v4604 = vpack.c.b16 %v4501, %v4500
        %v4605 = vpack.c.b16 %v4503, %v4502
        %v4606 = vpack.c.b16 %v4505, %v4504
        %v4607 = vpack.c.b16 %v4507, %v4506
        %v4608 = vpack.c.b16 %v4509, %v4508
        %v4609 = vpack.c.b16 %v4511, %v4510
        %v4610 = vpack.c.b16 %v4513, %v4512
        %v4611 = vpack.c.b16 %v4515, %v4514
        %v4612 = vpack.c.b16 %v4517, %v4516
        %v4613 = vpack.c.b16 %v4519, %v4518
        %v4614 = vpack.c.b16 %v4521, %v4520
        %v4615 = vpack.c.b16 %v4523, %v4522
        %v4616 = vpack.c.b16 %v4525, %v4524
        %v4617 = vpack.c.b16 %v4527, %v4526
        %v4618 = vpack.c.b16 %v4529, %v4528
        %v4619 = vpack.c.b16 %v4531, %v4530
        %v4620 = vpack.c.b16 %v4533, %v4532
        %v4621 = vpack.c.b16 %v4535, %v4534
        %v4622 = vpack.c.b16 %v4537, %v4536
        %v4623 = vpack.c.b16 %v4539, %v4538
        %v4624 = vpack.c.b16 %v4541, %v4540
        %v4625 = vpack.c.b16 %v4543, %v4542
        %v4626 = vpack.c.b16 %v4545, %v4544
        %v4627 = vpack.c.b16 %v4547, %v4546
        %v4628 = vpack.c.b16 %v4549, %v4548
        %v4629 = vpack.c.b16 %v4551, %v4550
        %v4630 = vpack.c.b16 %v4553, %v4552
        %v4631 = vpack.c.b16 %v4555, %v4554
        %v4632 = vpack.c.b16 %v4557, %v4556
        %v4633 = vpack.c.b16 %v4559, %v4558
        %v4634 = vpack.c.b16 %v4561, %v4560
        %v4635 = vpack.c.b16 %v4563, %v4562
        %4708 = vmatprep.subr.bf16.mxu0 0
        %4709 = vmatpush1.bf16.msra.mxu0 %v4571
        %4710 = vmatprep.subr.bf16.mxu0 0
        %4711 = vmatpush1.bf16.msra.mxu0 %v4570
        %4712 = vmatprep.subr.bf16.mxu0 0
        %4713 = vmatpush1.bf16.msra.mxu0 %v4569
        %4714 = vmatprep.subr.bf16.mxu0 0
        %4715 = vmatpush1.bf16.msra.mxu0 %v4568
        %4716 = vmatprep.subr.bf16.mxu0 0
        %4717 = vmatpush1.bf16.msra.mxu0 %v4567
        %4718 = vmatprep.subr.bf16.mxu0 0
        %4719 = vmatpush1.bf16.msra.mxu0 %v4566
        %4720 = vmatprep.subr.bf16.mxu0 0
        %4721 = vmatpush1.bf16.msra.mxu0 %v4565
        %4722 = vmatprep.subr.bf16.mxu0 0
        %4723 = vmatpush1.bf16.msra.mxu0 %v4564
        %4724 = vmatprep.subr.bf16.mxu0 0
        %4725 = vmatpush2.bf16.msra.mxu0 %v4579
        %4726 = vmatprep.subr.bf16.mxu0 0
        %4727 = vmatpush2.bf16.msra.mxu0 %v4578
        %4728 = vmatprep.subr.bf16.mxu0 0
        %4729 = vmatpush2.bf16.msra.mxu0 %v4577
        %4730 = vmatprep.subr.bf16.mxu0 0
        %4731 = vmatpush2.bf16.msra.mxu0 %v4576
        %4732 = vmatprep.subr.bf16.mxu0 0
        %4733 = vmatpush2.bf16.msra.mxu0 %v4575
        %4734 = vmatprep.subr.bf16.mxu0 0
        %4735 = vmatpush2.bf16.msra.mxu0 %v4574
        %4736 = vmatprep.subr.bf16.mxu0 0
        %4737 = vmatpush2.bf16.msra.mxu0 %v4573
        %4738 = vmatprep.subr.bf16.mxu0 0
        %4739 = vmatpush2.bf16.msra.mxu0 %v4572
        %4740 = vmatprep.mubr.bf16.mxu0 %v3758
        %4741 = vmatmul.mubr.bf16.gmra.mxu0 %v3694
        %v4742 = vpop.f32.mrf.mxu0
        %v4743 = vadd.f32 %v4274, %v4742
        %v4744 = vpop.f32.mrf.mxu0
        %v4745 = vpop.f32.mrf.mxu0
        %v4746 = vadd.f32 %v4274, %v4745
        %v4747 = vpop.f32.mrf.mxu0
        %4748 = vmatprep.mubr.bf16.mxu0 %v3759
        %4749 = vmatmul.mubr.bf16.gmra.mxu0 %v3695
        %v4750 = vpop.f32.mrf.mxu0
        %v4751 = vadd.f32 %v4274, %v4750
        %v4752 = vpop.f32.mrf.mxu0
        %v4753 = vpop.f32.mrf.mxu0
        %v4754 = vadd.f32 %v4274, %v4753
        %v4755 = vpop.f32.mrf.mxu0
        %4756 = vmatprep.mubr.bf16.mxu0 %v3760
        %4757 = vmatmul.mubr.bf16.gmra.mxu0 %v3696
        %v4758 = vpop.f32.mrf.mxu0
        %v4759 = vadd.f32 %v4274, %v4758
        %v4760 = vpop.f32.mrf.mxu0
        %v4761 = vpop.f32.mrf.mxu0
        %v4762 = vadd.f32 %v4274, %v4761
        %v4763 = vpop.f32.mrf.mxu0
        %4764 = vmatprep.mubr.bf16.mxu0 %v3761
        %4765 = vmatmul.mubr.bf16.gmra.mxu0 %v3697
        %v4766 = vpop.f32.mrf.mxu0
        %v4767 = vadd.f32 %v4274, %v4766
        %v4768 = vpop.f32.mrf.mxu0
        %v4769 = vpop.f32.mrf.mxu0
        %v4770 = vadd.f32 %v4274, %v4769
        %v4771 = vpop.f32.mrf.mxu0
        %4772 = vmatprep.mubr.bf16.mxu0 %v3762
        %4773 = vmatmul.mubr.bf16.gmra.mxu0 %v3698
        %v4774 = vpop.f32.mrf.mxu0
        %v4775 = vadd.f32 %v4274, %v4774
        %v4776 = vpop.f32.mrf.mxu0
        %v4777 = vpop.f32.mrf.mxu0
        %v4778 = vadd.f32 %v4274, %v4777
        %v4779 = vpop.f32.mrf.mxu0
        %4780 = vmatprep.mubr.bf16.mxu0 %v3763
        %4781 = vmatmul.mubr.bf16.gmra.mxu0 %v3699
        %v4782 = vpop.f32.mrf.mxu0
        %v4783 = vadd.f32 %v4274, %v4782
        %v4784 = vpop.f32.mrf.mxu0
        %v4785 = vpop.f32.mrf.mxu0
        %v4786 = vadd.f32 %v4274, %v4785
        %v4787 = vpop.f32.mrf.mxu0
        %4788 = vmatprep.mubr.bf16.mxu0 %v3764
        %4789 = vmatmul.mubr.bf16.gmra.mxu0 %v3700
        %v4790 = vpop.f32.mrf.mxu0
        %v4791 = vadd.f32 %v4274, %v4790
        %v4792 = vpop.f32.mrf.mxu0
        %v4793 = vpop.f32.mrf.mxu0
        %v4794 = vadd.f32 %v4274, %v4793
        %v4795 = vpop.f32.mrf.mxu0
        %4796 = vmatprep.mubr.bf16.mxu0 %v3765
        %4797 = vmatmul.mubr.bf16.gmra.mxu0 %v3701
        %v4798 = vpop.f32.mrf.mxu0
        %v4799 = vadd.f32 %v4274, %v4798
        %v4800 = vpop.f32.mrf.mxu0
        %v4801 = vpop.f32.mrf.mxu0
        %v4802 = vadd.f32 %v4274, %v4801
        %v4803 = vpop.f32.mrf.mxu0
        %4804 = vmatprep.mubr.bf16.mxu0 %v3766
        %4805 = vmatmul.mubr.bf16.gmra.mxu0 %v3702
        %v4806 = vpop.f32.mrf.mxu0
        %v4807 = vadd.f32 %v4274, %v4806
        %v4808 = vpop.f32.mrf.mxu0
        %v4809 = vpop.f32.mrf.mxu0
        %v4810 = vadd.f32 %v4274, %v4809
        %v4811 = vpop.f32.mrf.mxu0
        %4812 = vmatprep.mubr.bf16.mxu0 %v3767
        %4813 = vmatmul.mubr.bf16.gmra.mxu0 %v3703
        %v4814 = vpop.f32.mrf.mxu0
        %v4815 = vadd.f32 %v4274, %v4814
        %v4816 = vpop.f32.mrf.mxu0
        %v4817 = vpop.f32.mrf.mxu0
        %v4818 = vadd.f32 %v4274, %v4817
        %v4819 = vpop.f32.mrf.mxu0
        %4820 = vmatprep.mubr.bf16.mxu0 %v3768
        %4821 = vmatmul.mubr.bf16.gmra.mxu0 %v3704
        %v4822 = vpop.f32.mrf.mxu0
        %v4823 = vadd.f32 %v4274, %v4822
        %v4824 = vpop.f32.mrf.mxu0
        %v4825 = vpop.f32.mrf.mxu0
        %v4826 = vadd.f32 %v4274, %v4825
        %v4827 = vpop.f32.mrf.mxu0
        %4828 = vmatprep.mubr.bf16.mxu0 %v3769
        %4829 = vmatmul.mubr.bf16.gmra.mxu0 %v3705
        %v4830 = vpop.f32.mrf.mxu0
        %v4831 = vadd.f32 %v4274, %v4830
        %v4832 = vpop.f32.mrf.mxu0
        %v4833 = vpop.f32.mrf.mxu0
        %v4834 = vadd.f32 %v4274, %v4833
        %v4835 = vpop.f32.mrf.mxu0
        %4836 = vmatprep.mubr.bf16.mxu0 %v3770
        %4837 = vmatmul.mubr.bf16.gmra.mxu0 %v3706
        %v4838 = vpop.f32.mrf.mxu0
        %v4839 = vadd.f32 %v4274, %v4838
        %v4840 = vpop.f32.mrf.mxu0
        %v4841 = vpop.f32.mrf.mxu0
        %v4842 = vadd.f32 %v4274, %v4841
        %v4843 = vpop.f32.mrf.mxu0
        %4844 = vmatprep.mubr.bf16.mxu0 %v3771
        %4845 = vmatmul.mubr.bf16.gmra.mxu0 %v3707
        %v4846 = vpop.f32.mrf.mxu0
        %v4847 = vadd.f32 %v4274, %v4846
        %v4848 = vpop.f32.mrf.mxu0
        %v4849 = vpop.f32.mrf.mxu0
        %v4850 = vadd.f32 %v4274, %v4849
        %v4851 = vpop.f32.mrf.mxu0
        %4852 = vmatprep.mubr.bf16.mxu0 %v3772
        %4853 = vmatmul.mubr.bf16.gmra.mxu0 %v3708
        %v4854 = vpop.f32.mrf.mxu0
        %v4855 = vadd.f32 %v4274, %v4854
        %v4856 = vpop.f32.mrf.mxu0
        %v4857 = vpop.f32.mrf.mxu0
        %v4858 = vadd.f32 %v4274, %v4857
        %v4859 = vpop.f32.mrf.mxu0
        %4860 = vmatprep.mubr.bf16.mxu0 %v3773
        %4861 = vmatmul.mubr.bf16.gmra.mxu0 %v3709
        %v4862 = vpop.f32.mrf.mxu0
        %v4863 = vadd.f32 %v4274, %v4862
        %v4864 = vpop.f32.mrf.mxu0
        %v4865 = vpop.f32.mrf.mxu0
        %v4866 = vadd.f32 %v4274, %v4865
        %v4867 = vpop.f32.mrf.mxu0
        %4868 = vdwg.mxu0
        %4869 = vmatprep.subr.bf16.mxu0 0
        %4870 = vmatpush1.bf16.msra.mxu0 %v4587
        %4871 = vmatprep.subr.bf16.mxu0 0
        %4872 = vmatpush1.bf16.msra.mxu0 %v4586
        %4873 = vmatprep.subr.bf16.mxu0 0
        %4874 = vmatpush1.bf16.msra.mxu0 %v4585
        %4875 = vmatprep.subr.bf16.mxu0 0
        %4876 = vmatpush1.bf16.msra.mxu0 %v4584
        %4877 = vmatprep.subr.bf16.mxu0 0
        %4878 = vmatpush1.bf16.msra.mxu0 %v4583
        %4879 = vmatprep.subr.bf16.mxu0 0
        %4880 = vmatpush1.bf16.msra.mxu0 %v4582
        %4881 = vmatprep.subr.bf16.mxu0 0
        %4882 = vmatpush1.bf16.msra.mxu0 %v4581
        %4883 = vmatprep.subr.bf16.mxu0 0
        %4884 = vmatpush1.bf16.msra.mxu0 %v4580
        %4885 = vmatprep.subr.bf16.mxu0 0
        %4886 = vmatpush2.bf16.msra.mxu0 %v4595
        %4887 = vmatprep.subr.bf16.mxu0 0
        %4888 = vmatpush2.bf16.msra.mxu0 %v4594
        %4889 = vmatprep.subr.bf16.mxu0 0
        %4890 = vmatpush2.bf16.msra.mxu0 %v4593
        %4891 = vmatprep.subr.bf16.mxu0 0
        %4892 = vmatpush2.bf16.msra.mxu0 %v4592
        %4893 = vmatprep.subr.bf16.mxu0 0
        %4894 = vmatpush2.bf16.msra.mxu0 %v4591
        %4895 = vmatprep.subr.bf16.mxu0 0
        %4896 = vmatpush2.bf16.msra.mxu0 %v4590
        %4897 = vmatprep.subr.bf16.mxu0 0
        %4898 = vmatpush2.bf16.msra.mxu0 %v4589
        %4899 = vmatprep.subr.bf16.mxu0 0
        %4900 = vmatpush2.bf16.msra.mxu0 %v4588
        %4901 = vmatprep.mubr.bf16.mxu0 %v3902
        %4902 = vmatmul.mubr.bf16.gmra.mxu0 %v3822
        %v4903 = vpop.f32.mrf.mxu0
        %v4904 = vadd.f32 %v4743, %v4903
        %v4905 = vpop.f32.mrf.mxu0
        %v4906 = vpop.f32.mrf.mxu0
        %v4907 = vadd.f32 %v4746, %v4906
        %v4908 = vpop.f32.mrf.mxu0
        %4909 = vmatprep.mubr.bf16.mxu0 %v3903
        %4910 = vmatmul.mubr.bf16.gmra.mxu0 %v3823
        %v4911 = vpop.f32.mrf.mxu0
        %v4912 = vadd.f32 %v4751, %v4911
        %v4913 = vpop.f32.mrf.mxu0
        %v4914 = vpop.f32.mrf.mxu0
        %v4915 = vadd.f32 %v4754, %v4914
        %v4916 = vpop.f32.mrf.mxu0
        %4917 = vmatprep.mubr.bf16.mxu0 %v3904
        %4918 = vmatmul.mubr.bf16.gmra.mxu0 %v3824
        %v4919 = vpop.f32.mrf.mxu0
        %v4920 = vadd.f32 %v4759, %v4919
        %v4921 = vpop.f32.mrf.mxu0
        %v4922 = vpop.f32.mrf.mxu0
        %v4923 = vadd.f32 %v4762, %v4922
        %v4924 = vpop.f32.mrf.mxu0
        %4925 = vmatprep.mubr.bf16.mxu0 %v3905
        %4926 = vmatmul.mubr.bf16.gmra.mxu0 %v3825
        %v4927 = vpop.f32.mrf.mxu0
        %v4928 = vadd.f32 %v4767, %v4927
        %v4929 = vpop.f32.mrf.mxu0
        %v4930 = vpop.f32.mrf.mxu0
        %v4931 = vadd.f32 %v4770, %v4930
        %v4932 = vpop.f32.mrf.mxu0
        %4933 = vmatprep.mubr.bf16.mxu0 %v3906
        %4934 = vmatmul.mubr.bf16.gmra.mxu0 %v3826
        %v4935 = vpop.f32.mrf.mxu0
        %v4936 = vadd.f32 %v4775, %v4935
        %v4937 = vpop.f32.mrf.mxu0
        %v4938 = vpop.f32.mrf.mxu0
        %v4939 = vadd.f32 %v4778, %v4938
        %v4940 = vpop.f32.mrf.mxu0
        %4941 = vmatprep.mubr.bf16.mxu0 %v3907
        %4942 = vmatmul.mubr.bf16.gmra.mxu0 %v3827
        %v4943 = vpop.f32.mrf.mxu0
        %v4944 = vadd.f32 %v4783, %v4943
        %v4945 = vpop.f32.mrf.mxu0
        %v4946 = vpop.f32.mrf.mxu0
        %v4947 = vadd.f32 %v4786, %v4946
        %v4948 = vpop.f32.mrf.mxu0
        %4949 = vmatprep.mubr.bf16.mxu0 %v3908
        %4950 = vmatmul.mubr.bf16.gmra.mxu0 %v3828
        %v4951 = vpop.f32.mrf.mxu0
        %v4952 = vadd.f32 %v4791, %v4951
        %v4953 = vpop.f32.mrf.mxu0
        %v4954 = vpop.f32.mrf.mxu0
        %v4955 = vadd.f32 %v4794, %v4954
        %v4956 = vpop.f32.mrf.mxu0
        %4957 = vmatprep.mubr.bf16.mxu0 %v3909
        %4958 = vmatmul.mubr.bf16.gmra.mxu0 %v3829
        %v4959 = vpop.f32.mrf.mxu0
        %v4960 = vadd.f32 %v4799, %v4959
        %v4961 = vpop.f32.mrf.mxu0
        %v4962 = vpop.f32.mrf.mxu0
        %v4963 = vadd.f32 %v4802, %v4962
        %v4964 = vpop.f32.mrf.mxu0
        %4965 = vmatprep.mubr.bf16.mxu0 %v3910
        %4966 = vmatmul.mubr.bf16.gmra.mxu0 %v3830
        %v4967 = vpop.f32.mrf.mxu0
        %v4968 = vadd.f32 %v4807, %v4967
        %v4969 = vpop.f32.mrf.mxu0
        %v4970 = vpop.f32.mrf.mxu0
        %v4971 = vadd.f32 %v4810, %v4970
        %v4972 = vpop.f32.mrf.mxu0
        %4973 = vmatprep.mubr.bf16.mxu0 %v3911
        %4974 = vmatmul.mubr.bf16.gmra.mxu0 %v3831
        %v4975 = vpop.f32.mrf.mxu0
        %v4976 = vadd.f32 %v4815, %v4975
        %v4977 = vpop.f32.mrf.mxu0
        %v4978 = vpop.f32.mrf.mxu0
        %v4979 = vadd.f32 %v4818, %v4978
        %v4980 = vpop.f32.mrf.mxu0
        %4981 = vmatprep.mubr.bf16.mxu0 %v3912
        %4982 = vmatmul.mubr.bf16.gmra.mxu0 %v3832
        %v4983 = vpop.f32.mrf.mxu0
        %v4984 = vadd.f32 %v4823, %v4983
        %v4985 = vpop.f32.mrf.mxu0
        %v4986 = vpop.f32.mrf.mxu0
        %v4987 = vadd.f32 %v4826, %v4986
        %v4988 = vpop.f32.mrf.mxu0
        %4989 = vmatprep.mubr.bf16.mxu0 %v3913
        %4990 = vmatmul.mubr.bf16.gmra.mxu0 %v3833
        %v4991 = vpop.f32.mrf.mxu0
        %v4992 = vadd.f32 %v4831, %v4991
        %v4993 = vpop.f32.mrf.mxu0
        %v4994 = vpop.f32.mrf.mxu0
        %v4995 = vadd.f32 %v4834, %v4994
        %v4996 = vpop.f32.mrf.mxu0
        %4997 = vmatprep.mubr.bf16.mxu0 %v3914
        %4998 = vmatmul.mubr.bf16.gmra.mxu0 %v3834
        %v4999 = vpop.f32.mrf.mxu0
        %v5000 = vadd.f32 %v4839, %v4999
        %v5001 = vpop.f32.mrf.mxu0
        %v5002 = vpop.f32.mrf.mxu0
        %v5003 = vadd.f32 %v4842, %v5002
        %v5004 = vpop.f32.mrf.mxu0
        %5005 = vmatprep.mubr.bf16.mxu0 %v3915
        %5006 = vmatmul.mubr.bf16.gmra.mxu0 %v3835
        %v5007 = vpop.f32.mrf.mxu0
        %v5008 = vadd.f32 %v4847, %v5007
        %v5009 = vpop.f32.mrf.mxu0
        %v5010 = vpop.f32.mrf.mxu0
        %v5011 = vadd.f32 %v4850, %v5010
        %v5012 = vpop.f32.mrf.mxu0
        %5013 = vmatprep.mubr.bf16.mxu0 %v3916
        %5014 = vmatmul.mubr.bf16.gmra.mxu0 %v3836
        %v5015 = vpop.f32.mrf.mxu0
        %v5016 = vadd.f32 %v4855, %v5015
        %v5017 = vpop.f32.mrf.mxu0
        %v5018 = vpop.f32.mrf.mxu0
        %v5019 = vadd.f32 %v4858, %v5018
        %v5020 = vpop.f32.mrf.mxu0
        %5021 = vmatprep.mubr.bf16.mxu0 %v3917
        %5022 = vmatmul.mubr.bf16.gmra.mxu0 %v3837
        %v5023 = vpop.f32.mrf.mxu0
        %v5024 = vadd.f32 %v4863, %v5023
        %v5025 = vpop.f32.mrf.mxu0
        %v5026 = vpop.f32.mrf.mxu0
        %v5027 = vadd.f32 %v4866, %v5026
        %v5028 = vpop.f32.mrf.mxu0
        %5029 = vdwg.mxu0
        %5030 = vmatprep.subr.bf16.mxu0 0
        %5031 = vmatpush1.bf16.msra.mxu0 %v4603
        %5032 = vmatprep.subr.bf16.mxu0 0
        %5033 = vmatpush1.bf16.msra.mxu0 %v4602
        %5034 = vmatprep.subr.bf16.mxu0 0
        %5035 = vmatpush1.bf16.msra.mxu0 %v4601
        %5036 = vmatprep.subr.bf16.mxu0 0
        %5037 = vmatpush1.bf16.msra.mxu0 %v4600
        %5038 = vmatprep.subr.bf16.mxu0 0
        %5039 = vmatpush1.bf16.msra.mxu0 %v4599
        %5040 = vmatprep.subr.bf16.mxu0 0
        %5041 = vmatpush1.bf16.msra.mxu0 %v4598
        %5042 = vmatprep.subr.bf16.mxu0 0
        %5043 = vmatpush1.bf16.msra.mxu0 %v4597
        %5044 = vmatprep.subr.bf16.mxu0 0
        %5045 = vmatpush1.bf16.msra.mxu0 %v4596
        %5046 = vmatprep.subr.bf16.mxu0 0
        %5047 = vmatpush2.bf16.msra.mxu0 %v4611
        %5048 = vmatprep.subr.bf16.mxu0 0
        %5049 = vmatpush2.bf16.msra.mxu0 %v4610
        %5050 = vmatprep.subr.bf16.mxu0 0
        %5051 = vmatpush2.bf16.msra.mxu0 %v4609
        %5052 = vmatprep.subr.bf16.mxu0 0
        %5053 = vmatpush2.bf16.msra.mxu0 %v4608
        %5054 = vmatprep.subr.bf16.mxu0 0
        %5055 = vmatpush2.bf16.msra.mxu0 %v4607
        %5056 = vmatprep.subr.bf16.mxu0 0
        %5057 = vmatpush2.bf16.msra.mxu0 %v4606
        %5058 = vmatprep.subr.bf16.mxu0 0
        %5059 = vmatpush2.bf16.msra.mxu0 %v4605
        %5060 = vmatprep.subr.bf16.mxu0 0
        %5061 = vmatpush2.bf16.msra.mxu0 %v4604
        %5062 = vmatprep.mubr.bf16.mxu0 %v4030
        %5063 = vmatmul.mubr.bf16.gmra.mxu0 %v3966
        %v5064 = vpop.f32.mrf.mxu0
        %v5065 = vadd.f32 %v4904, %v5064
        %v5066 = vpop.f32.mrf.mxu0
        %v5067 = vpop.f32.mrf.mxu0
        %v5068 = vadd.f32 %v4907, %v5067
        %v5069 = vpop.f32.mrf.mxu0
        %5070 = vmatprep.mubr.bf16.mxu0 %v4031
        %5071 = vmatmul.mubr.bf16.gmra.mxu0 %v3967
        %v5072 = vpop.f32.mrf.mxu0
        %v5073 = vadd.f32 %v4912, %v5072
        %v5074 = vpop.f32.mrf.mxu0
        %v5075 = vpop.f32.mrf.mxu0
        %v5076 = vadd.f32 %v4915, %v5075
        %v5077 = vpop.f32.mrf.mxu0
        %5078 = vmatprep.mubr.bf16.mxu0 %v4032
        %5079 = vmatmul.mubr.bf16.gmra.mxu0 %v3968
        %v5080 = vpop.f32.mrf.mxu0
        %v5081 = vadd.f32 %v4920, %v5080
        %v5082 = vpop.f32.mrf.mxu0
        %v5083 = vpop.f32.mrf.mxu0
        %v5084 = vadd.f32 %v4923, %v5083
        %v5085 = vpop.f32.mrf.mxu0
        %5086 = vmatprep.mubr.bf16.mxu0 %v4033
        %5087 = vmatmul.mubr.bf16.gmra.mxu0 %v3969
        %v5088 = vpop.f32.mrf.mxu0
        %v5089 = vadd.f32 %v4928, %v5088
        %v5090 = vpop.f32.mrf.mxu0
        %v5091 = vpop.f32.mrf.mxu0
        %v5092 = vadd.f32 %v4931, %v5091
        %v5093 = vpop.f32.mrf.mxu0
        %5094 = vmatprep.mubr.bf16.mxu0 %v4034
        %5095 = vmatmul.mubr.bf16.gmra.mxu0 %v3970
        %v5096 = vpop.f32.mrf.mxu0
        %v5097 = vadd.f32 %v4936, %v5096
        %v5098 = vpop.f32.mrf.mxu0
        %v5099 = vpop.f32.mrf.mxu0
        %v5100 = vadd.f32 %v4939, %v5099
        %v5101 = vpop.f32.mrf.mxu0
        %5102 = vmatprep.mubr.bf16.mxu0 %v4035
        %5103 = vmatmul.mubr.bf16.gmra.mxu0 %v3971
        %v5104 = vpop.f32.mrf.mxu0
        %v5105 = vadd.f32 %v4944, %v5104
        %v5106 = vpop.f32.mrf.mxu0
        %v5107 = vpop.f32.mrf.mxu0
        %v5108 = vadd.f32 %v4947, %v5107
        %v5109 = vpop.f32.mrf.mxu0
        %5110 = vmatprep.mubr.bf16.mxu0 %v4036
        %5111 = vmatmul.mubr.bf16.gmra.mxu0 %v3972
        %v5112 = vpop.f32.mrf.mxu0
        %v5113 = vadd.f32 %v4952, %v5112
        %v5114 = vpop.f32.mrf.mxu0
        %v5115 = vpop.f32.mrf.mxu0
        %v5116 = vadd.f32 %v4955, %v5115
        %v5117 = vpop.f32.mrf.mxu0
        %5118 = vmatprep.mubr.bf16.mxu0 %v4037
        %5119 = vmatmul.mubr.bf16.gmra.mxu0 %v3973
        %v5120 = vpop.f32.mrf.mxu0
        %v5121 = vadd.f32 %v4960, %v5120
        %v5122 = vpop.f32.mrf.mxu0
        %v5123 = vpop.f32.mrf.mxu0
        %v5124 = vadd.f32 %v4963, %v5123
        %v5125 = vpop.f32.mrf.mxu0
        %5126 = vmatprep.mubr.bf16.mxu0 %v4038
        %5127 = vmatmul.mubr.bf16.gmra.mxu0 %v3974
        %v5128 = vpop.f32.mrf.mxu0
        %v5129 = vadd.f32 %v4968, %v5128
        %v5130 = vpop.f32.mrf.mxu0
        %v5131 = vpop.f32.mrf.mxu0
        %v5132 = vadd.f32 %v4971, %v5131
        %v5133 = vpop.f32.mrf.mxu0
        %5134 = vmatprep.mubr.bf16.mxu0 %v4039
        %5135 = vmatmul.mubr.bf16.gmra.mxu0 %v3975
        %v5136 = vpop.f32.mrf.mxu0
        %v5137 = vadd.f32 %v4976, %v5136
        %v5138 = vpop.f32.mrf.mxu0
        %v5139 = vpop.f32.mrf.mxu0
        %v5140 = vadd.f32 %v4979, %v5139
        %v5141 = vpop.f32.mrf.mxu0
        %5142 = vmatprep.mubr.bf16.mxu0 %v4040
        %5143 = vmatmul.mubr.bf16.gmra.mxu0 %v3976
        %v5144 = vpop.f32.mrf.mxu0
        %v5145 = vadd.f32 %v4984, %v5144
        %v5146 = vpop.f32.mrf.mxu0
        %v5147 = vpop.f32.mrf.mxu0
        %v5148 = vadd.f32 %v4987, %v5147
        %v5149 = vpop.f32.mrf.mxu0
        %5150 = vmatprep.mubr.bf16.mxu0 %v4041
        %5151 = vmatmul.mubr.bf16.gmra.mxu0 %v3977
        %v5152 = vpop.f32.mrf.mxu0
        %v5153 = vadd.f32 %v4992, %v5152
        %v5154 = vpop.f32.mrf.mxu0
        %v5155 = vpop.f32.mrf.mxu0
        %v5156 = vadd.f32 %v4995, %v5155
        %v5157 = vpop.f32.mrf.mxu0
        %5158 = vmatprep.mubr.bf16.mxu0 %v4042
        %5159 = vmatmul.mubr.bf16.gmra.mxu0 %v3978
        %v5160 = vpop.f32.mrf.mxu0
        %v5161 = vadd.f32 %v5000, %v5160
        %v5162 = vpop.f32.mrf.mxu0
        %v5163 = vpop.f32.mrf.mxu0
        %v5164 = vadd.f32 %v5003, %v5163
        %v5165 = vpop.f32.mrf.mxu0
        %5166 = vmatprep.mubr.bf16.mxu0 %v4043
        %5167 = vmatmul.mubr.bf16.gmra.mxu0 %v3979
        %v5168 = vpop.f32.mrf.mxu0
        %v5169 = vadd.f32 %v5008, %v5168
        %v5170 = vpop.f32.mrf.mxu0
        %v5171 = vpop.f32.mrf.mxu0
        %v5172 = vadd.f32 %v5011, %v5171
        %v5173 = vpop.f32.mrf.mxu0
        %5174 = vmatprep.mubr.bf16.mxu0 %v4044
        %5175 = vmatmul.mubr.bf16.gmra.mxu0 %v3980
        %v5176 = vpop.f32.mrf.mxu0
        %v5177 = vadd.f32 %v5016, %v5176
        %v5178 = vpop.f32.mrf.mxu0
        %v5179 = vpop.f32.mrf.mxu0
        %v5180 = vadd.f32 %v5019, %v5179
        %v5181 = vpop.f32.mrf.mxu0
        %5182 = vmatprep.mubr.bf16.mxu0 %v4045
        %5183 = vmatmul.mubr.bf16.gmra.mxu0 %v3981
        %v5184 = vpop.f32.mrf.mxu0
        %v5185 = vadd.f32 %v5024, %v5184
        %v5186 = vpop.f32.mrf.mxu0
        %v5187 = vpop.f32.mrf.mxu0
        %v5188 = vadd.f32 %v5027, %v5187
        %v5189 = vpop.f32.mrf.mxu0
        %5190 = vdwg.mxu0
        %5191 = vmatprep.subr.bf16.mxu0 0
        %5192 = vmatpush1.bf16.msra.mxu0 %v4619
        %5193 = vmatprep.subr.bf16.mxu0 0
        %5194 = vmatpush1.bf16.msra.mxu0 %v4618
        %5195 = vmatprep.subr.bf16.mxu0 0
        %5196 = vmatpush1.bf16.msra.mxu0 %v4617
        %5197 = vmatprep.subr.bf16.mxu0 0
        %5198 = vmatpush1.bf16.msra.mxu0 %v4616
        %5199 = vmatprep.subr.bf16.mxu0 0
        %5200 = vmatpush1.bf16.msra.mxu0 %v4615
        %5201 = vmatprep.subr.bf16.mxu0 0
        %5202 = vmatpush1.bf16.msra.mxu0 %v4614
        %5203 = vmatprep.subr.bf16.mxu0 0
        %5204 = vmatpush1.bf16.msra.mxu0 %v4613
        %5205 = vmatprep.subr.bf16.mxu0 0
        %5206 = vmatpush1.bf16.msra.mxu0 %v4612
        %5207 = vmatprep.subr.bf16.mxu0 0
        %5208 = vmatpush2.bf16.msra.mxu0 %v4627
        %5209 = vmatprep.subr.bf16.mxu0 0
        %5210 = vmatpush2.bf16.msra.mxu0 %v4626
        %5211 = vmatprep.subr.bf16.mxu0 0
        %5212 = vmatpush2.bf16.msra.mxu0 %v4625
        %5213 = vmatprep.subr.bf16.mxu0 0
        %5214 = vmatpush2.bf16.msra.mxu0 %v4624
        %5215 = vmatprep.subr.bf16.mxu0 0
        %5216 = vmatpush2.bf16.msra.mxu0 %v4623
        %5217 = vmatprep.subr.bf16.mxu0 0
        %5218 = vmatpush2.bf16.msra.mxu0 %v4622
        %5219 = vmatprep.subr.bf16.mxu0 0
        %5220 = vmatpush2.bf16.msra.mxu0 %v4621
        %5221 = vmatprep.subr.bf16.mxu0 0
        %5222 = vmatpush2.bf16.msra.mxu0 %v4620
        %5223 = vmatprep.mubr.bf16.mxu0 %v4174
        %5224 = vmatmul.mubr.bf16.gmra.mxu0 %v4110
        %v5225 = vpop.f32.mrf.mxu0
        %v5226 = vadd.f32 %v5065, %v5225
        %v5227 = vpop.f32.mrf.mxu0
        %v5228 = vpop.f32.mrf.mxu0
        %v5229 = vadd.f32 %v5068, %v5228
        %v5230 = vpop.f32.mrf.mxu0
        %5231 = vmatprep.mubr.bf16.mxu0 %v4175
        %5232 = vmatmul.mubr.bf16.gmra.mxu0 %v4111
        %v5233 = vpop.f32.mrf.mxu0
        %v5234 = vadd.f32 %v5073, %v5233
        %v5235 = vpop.f32.mrf.mxu0
        %v5236 = vpop.f32.mrf.mxu0
        %v5237 = vadd.f32 %v5076, %v5236
        %v5238 = vpop.f32.mrf.mxu0
        %5239 = vmatprep.mubr.bf16.mxu0 %v4176
        %5240 = vmatmul.mubr.bf16.gmra.mxu0 %v4112
        %v5241 = vpop.f32.mrf.mxu0
        %v5242 = vadd.f32 %v5081, %v5241
        %v5243 = vpop.f32.mrf.mxu0
        %v5244 = vpop.f32.mrf.mxu0
        %v5245 = vadd.f32 %v5084, %v5244
        %v5246 = vpop.f32.mrf.mxu0
        %5247 = vmatprep.mubr.bf16.mxu0 %v4177
        %5248 = vmatmul.mubr.bf16.gmra.mxu0 %v4113
        %v5249 = vpop.f32.mrf.mxu0
        %v5250 = vadd.f32 %v5089, %v5249
        %v5251 = vpop.f32.mrf.mxu0
        %v5252 = vpop.f32.mrf.mxu0
        %v5253 = vadd.f32 %v5092, %v5252
        %v5254 = vpop.f32.mrf.mxu0
        %5255 = vmatprep.mubr.bf16.mxu0 %v4178
        %5256 = vmatmul.mubr.bf16.gmra.mxu0 %v4114
        %v5257 = vpop.f32.mrf.mxu0
        %v5258 = vadd.f32 %v5097, %v5257
        %v5259 = vpop.f32.mrf.mxu0
        %v5260 = vpop.f32.mrf.mxu0
        %v5261 = vadd.f32 %v5100, %v5260
        %v5262 = vpop.f32.mrf.mxu0
        %5263 = vmatprep.mubr.bf16.mxu0 %v4179
        %5264 = vmatmul.mubr.bf16.gmra.mxu0 %v4115
        %v5265 = vpop.f32.mrf.mxu0
        %v5266 = vadd.f32 %v5105, %v5265
        %v5267 = vpop.f32.mrf.mxu0
        %v5268 = vpop.f32.mrf.mxu0
        %v5269 = vadd.f32 %v5108, %v5268
        %v5270 = vpop.f32.mrf.mxu0
        %5271 = vmatprep.mubr.bf16.mxu0 %v4180
        %5272 = vmatmul.mubr.bf16.gmra.mxu0 %v4116
        %v5273 = vpop.f32.mrf.mxu0
        %v5274 = vadd.f32 %v5113, %v5273
        %v5275 = vpop.f32.mrf.mxu0
        %v5276 = vpop.f32.mrf.mxu0
        %v5277 = vadd.f32 %v5116, %v5276
        %v5278 = vpop.f32.mrf.mxu0
        %5279 = vmatprep.mubr.bf16.mxu0 %v4181
        %5280 = vmatmul.mubr.bf16.gmra.mxu0 %v4117
        %v5281 = vpop.f32.mrf.mxu0
        %v5282 = vadd.f32 %v5121, %v5281
        %v5283 = vpop.f32.mrf.mxu0
        %v5284 = vpop.f32.mrf.mxu0
        %v5285 = vadd.f32 %v5124, %v5284
        %v5286 = vpop.f32.mrf.mxu0
        %5287 = vmatprep.mubr.bf16.mxu0 %v4182
        %5288 = vmatmul.mubr.bf16.gmra.mxu0 %v4118
        %v5289 = vpop.f32.mrf.mxu0
        %v5290 = vadd.f32 %v5129, %v5289
        %v5291 = vpop.f32.mrf.mxu0
        %v5292 = vpop.f32.mrf.mxu0
        %v5293 = vadd.f32 %v5132, %v5292
        %v5294 = vpop.f32.mrf.mxu0
        %5295 = vmatprep.mubr.bf16.mxu0 %v4183
        %5296 = vmatmul.mubr.bf16.gmra.mxu0 %v4119
        %v5297 = vpop.f32.mrf.mxu0
        %v5298 = vadd.f32 %v5137, %v5297
        %v5299 = vpop.f32.mrf.mxu0
        %v5300 = vpop.f32.mrf.mxu0
        %v5301 = vadd.f32 %v5140, %v5300
        %v5302 = vpop.f32.mrf.mxu0
        %5303 = vmatprep.mubr.bf16.mxu0 %v4184
        %5304 = vmatmul.mubr.bf16.gmra.mxu0 %v4120
        %v5305 = vpop.f32.mrf.mxu0
        %v5306 = vadd.f32 %v5145, %v5305
        %v5307 = vpop.f32.mrf.mxu0
        %v5308 = vpop.f32.mrf.mxu0
        %v5309 = vadd.f32 %v5148, %v5308
        %v5310 = vpop.f32.mrf.mxu0
        %5311 = vmatprep.mubr.bf16.mxu0 %v4185
        %5312 = vmatmul.mubr.bf16.gmra.mxu0 %v4121
        %v5313 = vpop.f32.mrf.mxu0
        %v5314 = vadd.f32 %v5153, %v5313
        %v5315 = vpop.f32.mrf.mxu0
        %v5316 = vpop.f32.mrf.mxu0
        %v5317 = vadd.f32 %v5156, %v5316
        %v5318 = vpop.f32.mrf.mxu0
        %5319 = vmatprep.mubr.bf16.mxu0 %v4186
        %5320 = vmatmul.mubr.bf16.gmra.mxu0 %v4122
        %v5321 = vpop.f32.mrf.mxu0
        %v5322 = vadd.f32 %v5161, %v5321
        %v5323 = vpop.f32.mrf.mxu0
        %v5324 = vpop.f32.mrf.mxu0
        %v5325 = vadd.f32 %v5164, %v5324
        %v5326 = vpop.f32.mrf.mxu0
        %5327 = vmatprep.mubr.bf16.mxu0 %v4187
        %5328 = vmatmul.mubr.bf16.gmra.mxu0 %v4123
        %v5329 = vpop.f32.mrf.mxu0
        %v5330 = vadd.f32 %v5169, %v5329
        %v5331 = vpop.f32.mrf.mxu0
        %v5332 = vpop.f32.mrf.mxu0
        %v5333 = vadd.f32 %v5172, %v5332
        %v5334 = vpop.f32.mrf.mxu0
        %5335 = vmatprep.mubr.bf16.mxu0 %v4188
        %5336 = vmatmul.mubr.bf16.gmra.mxu0 %v4124
        %v5337 = vpop.f32.mrf.mxu0
        %v5338 = vadd.f32 %v5177, %v5337
        %v5339 = vpop.f32.mrf.mxu0
        %v5340 = vpop.f32.mrf.mxu0
        %v5341 = vadd.f32 %v5180, %v5340
        %v5342 = vpop.f32.mrf.mxu0
        %5343 = vmatprep.mubr.bf16.mxu0 %v4189
        %5344 = vmatmul.mubr.bf16.gmra.mxu0 %v4125
        %v5345 = vpop.f32.mrf.mxu0
        %v5346 = vadd.f32 %v5185, %v5345
        %v5347 = vpop.f32.mrf.mxu0
        %v5348 = vpop.f32.mrf.mxu0
        %v5349 = vadd.f32 %v5188, %v5348
        %v5350 = vpop.f32.mrf.mxu0
        %5351 = vdwg.mxu0
        %5352 = vmatprep.subr.bf16.mxu0 0
        %5353 = vmatpush1.bf16.msra.mxu0 %v4635
        %5354 = vmatprep.subr.bf16.mxu0 0
        %5355 = vmatpush1.bf16.msra.mxu0 %v4634
        %5356 = vmatprep.subr.bf16.mxu0 0
        %5357 = vmatpush1.bf16.msra.mxu0 %v4633
        %5358 = vmatprep.subr.bf16.mxu0 0
        %5359 = vmatpush1.bf16.msra.mxu0 %v4632
        %5360 = vmatprep.subr.bf16.mxu0 0
        %5361 = vmatpush1.bf16.msra.mxu0 %v4631
        %5362 = vmatprep.subr.bf16.mxu0 0
        %5363 = vmatpush1.bf16.msra.mxu0 %v4630
        %5364 = vmatprep.subr.bf16.mxu0 0
        %5365 = vmatpush1.bf16.msra.mxu0 %v4629
        %5366 = vmatprep.subr.bf16.mxu0 0
        %5367 = vmatpush1.bf16.msra.mxu0 %v4628
        %5368 = vmatprep.subr.bf16.mxu0 0
        %5369 = vmatpush2.bf16.msra.mxu0 0
        %5370 = vmatprep.subr.bf16.mxu0 0
        %5371 = vmatpush2.bf16.msra.mxu0 0
        %5372 = vmatprep.subr.bf16.mxu0 0
        %5373 = vmatpush2.bf16.msra.mxu0 0
        %5374 = vmatprep.subr.bf16.mxu0 0
        %5375 = vmatpush2.bf16.msra.mxu0 0
        %5376 = vmatprep.subr.bf16.mxu0 0
        %5377 = vmatpush2.bf16.msra.mxu0 0
        %5378 = vmatprep.subr.bf16.mxu0 0
        %5379 = vmatpush2.bf16.msra.mxu0 0
        %5380 = vmatprep.subr.bf16.mxu0 0
        %5381 = vmatpush2.bf16.msra.mxu0 0
        %5382 = vmatprep.subr.bf16.mxu0 0
        %5383 = vmatpush2.bf16.msra.mxu0 0
        %5384 = vmatprep.mubr.bf16.mxu0 0
        %5385 = vmatmul.mubr.bf16.gmra.mxu0 %v4238
        %v5386 = vpop.f32.mrf.mxu0
        %v5387 = vadd.f32 %v5226, %v5386
        %v5388 = vpop.f32.mrf.mxu0
        %v5389 = vpop.f32.mrf.mxu0
        %v5390 = vadd.f32 %v5229, %v5389
        %v5391 = vpop.f32.mrf.mxu0
        %5392 = vmatprep.mubr.bf16.mxu0 0
        %5393 = vmatmul.mubr.bf16.gmra.mxu0 %v4239
        %v5394 = vpop.f32.mrf.mxu0
        %v5395 = vadd.f32 %v5234, %v5394
        %v5396 = vpop.f32.mrf.mxu0
        %v5397 = vpop.f32.mrf.mxu0
        %v5398 = vadd.f32 %v5237, %v5397
        %v5399 = vpop.f32.mrf.mxu0
        %5400 = vmatprep.mubr.bf16.mxu0 0
        %5401 = vmatmul.mubr.bf16.gmra.mxu0 %v4240
        %v5402 = vpop.f32.mrf.mxu0
        %v5403 = vadd.f32 %v5242, %v5402
        %v5404 = vpop.f32.mrf.mxu0
        %v5405 = vpop.f32.mrf.mxu0
        %v5406 = vadd.f32 %v5245, %v5405
        %v5407 = vpop.f32.mrf.mxu0
        %5408 = vmatprep.mubr.bf16.mxu0 0
        %5409 = vmatmul.mubr.bf16.gmra.mxu0 %v4241
        %v5410 = vpop.f32.mrf.mxu0
        %v5411 = vadd.f32 %v5250, %v5410
        %v5412 = vpop.f32.mrf.mxu0
        %v5413 = vpop.f32.mrf.mxu0
        %v5414 = vadd.f32 %v5253, %v5413
        %v5415 = vpop.f32.mrf.mxu0
        %5416 = vmatprep.mubr.bf16.mxu0 0
        %5417 = vmatmul.mubr.bf16.gmra.mxu0 %v4242
        %v5418 = vpop.f32.mrf.mxu0
        %v5419 = vadd.f32 %v5258, %v5418
        %v5420 = vpop.f32.mrf.mxu0
        %v5421 = vpop.f32.mrf.mxu0
        %v5422 = vadd.f32 %v5261, %v5421
        %v5423 = vpop.f32.mrf.mxu0
        %5424 = vmatprep.mubr.bf16.mxu0 0
        %5425 = vmatmul.mubr.bf16.gmra.mxu0 %v4243
        %v5426 = vpop.f32.mrf.mxu0
        %v5427 = vadd.f32 %v5266, %v5426
        %v5428 = vpop.f32.mrf.mxu0
        %v5429 = vpop.f32.mrf.mxu0
        %v5430 = vadd.f32 %v5269, %v5429
        %v5431 = vpop.f32.mrf.mxu0
        %5432 = vmatprep.mubr.bf16.mxu0 0
        %5433 = vmatmul.mubr.bf16.gmra.mxu0 %v4244
        %v5434 = vpop.f32.mrf.mxu0
        %v5435 = vadd.f32 %v5274, %v5434
        %v5436 = vpop.f32.mrf.mxu0
        %v5437 = vpop.f32.mrf.mxu0
        %v5438 = vadd.f32 %v5277, %v5437
        %v5439 = vpop.f32.mrf.mxu0
        %5440 = vmatprep.mubr.bf16.mxu0 0
        %5441 = vmatmul.mubr.bf16.gmra.mxu0 %v4245
        %v5442 = vpop.f32.mrf.mxu0
        %v5443 = vadd.f32 %v5282, %v5442
        %v5444 = vpop.f32.mrf.mxu0
        %v5445 = vpop.f32.mrf.mxu0
        %v5446 = vadd.f32 %v5285, %v5445
        %v5447 = vpop.f32.mrf.mxu0
        %5448 = vmatprep.mubr.bf16.mxu0 0
        %5449 = vmatmul.mubr.bf16.gmra.mxu0 %v4246
        %v5450 = vpop.f32.mrf.mxu0
        %v5451 = vadd.f32 %v5290, %v5450
        %v5452 = vpop.f32.mrf.mxu0
        %v5453 = vpop.f32.mrf.mxu0
        %v5454 = vadd.f32 %v5293, %v5453
        %v5455 = vpop.f32.mrf.mxu0
        %5456 = vmatprep.mubr.bf16.mxu0 0
        %5457 = vmatmul.mubr.bf16.gmra.mxu0 %v4247
        %v5458 = vpop.f32.mrf.mxu0
        %v5459 = vadd.f32 %v5298, %v5458
        %v5460 = vpop.f32.mrf.mxu0
        %v5461 = vpop.f32.mrf.mxu0
        %v5462 = vadd.f32 %v5301, %v5461
        %v5463 = vpop.f32.mrf.mxu0
        %5464 = vmatprep.mubr.bf16.mxu0 0
        %5465 = vmatmul.mubr.bf16.gmra.mxu0 %v4248
        %v5466 = vpop.f32.mrf.mxu0
        %v5467 = vadd.f32 %v5306, %v5466
        %v5468 = vpop.f32.mrf.mxu0
        %v5469 = vpop.f32.mrf.mxu0
        %v5470 = vadd.f32 %v5309, %v5469
        %v5471 = vpop.f32.mrf.mxu0
        %5472 = vmatprep.mubr.bf16.mxu0 0
        %5473 = vmatmul.mubr.bf16.gmra.mxu0 %v4249
        %v5474 = vpop.f32.mrf.mxu0
        %v5475 = vadd.f32 %v5314, %v5474
        %v5476 = vpop.f32.mrf.mxu0
        %v5477 = vpop.f32.mrf.mxu0
        %v5478 = vadd.f32 %v5317, %v5477
        %v5479 = vpop.f32.mrf.mxu0
        %5480 = vmatprep.mubr.bf16.mxu0 0
        %5481 = vmatmul.mubr.bf16.gmra.mxu0 %v4250
        %v5482 = vpop.f32.mrf.mxu0
        %v5483 = vadd.f32 %v5322, %v5482
        %v5484 = vpop.f32.mrf.mxu0
        %v5485 = vpop.f32.mrf.mxu0
        %v5486 = vadd.f32 %v5325, %v5485
        %v5487 = vpop.f32.mrf.mxu0
        %5488 = vmatprep.mubr.bf16.mxu0 0
        %5489 = vmatmul.mubr.bf16.gmra.mxu0 %v4251
        %v5490 = vpop.f32.mrf.mxu0
        %v5491 = vadd.f32 %v5330, %v5490
        %v5492 = vpop.f32.mrf.mxu0
        %v5493 = vpop.f32.mrf.mxu0
        %v5494 = vadd.f32 %v5333, %v5493
        %v5495 = vpop.f32.mrf.mxu0
        %5496 = vmatprep.mubr.bf16.mxu0 0
        %5497 = vmatmul.mubr.bf16.gmra.mxu0 %v4252
        %v5498 = vpop.f32.mrf.mxu0
        %v5499 = vadd.f32 %v5338, %v5498
        %v5500 = vpop.f32.mrf.mxu0
        %v5501 = vpop.f32.mrf.mxu0
        %v5502 = vadd.f32 %v5341, %v5501
        %v5503 = vpop.f32.mrf.mxu0
        %5504 = vmatprep.mubr.bf16.mxu0 0
        %5505 = vmatmul.mubr.bf16.gmra.mxu0 %v4253
        %v5506 = vpop.f32.mrf.mxu0
        %v5507 = vadd.f32 %v5346, %v5506
        %v5508 = vpop.f32.mrf.mxu0
        %v5509 = vpop.f32.mrf.mxu0
        %v5510 = vadd.f32 %v5349, %v5509
        %v5511 = vpop.f32.mrf.mxu0
        %5512 = vdwg.mxu0
        %vm5513 = vcmp.gt.f32.partialorder %v5387, 0.0
        %vm5514 = vcmp.gt.f32.partialorder %v5390, 0.0
        %vm5515 = vcmp.gt.f32.partialorder %v5395, 0.0
        %vm5516 = vcmp.gt.f32.partialorder %v5398, 0.0
        %vm5517 = vcmp.gt.f32.partialorder %v5403, 0.0
        %vm5518 = vcmp.gt.f32.partialorder %v5406, 0.0
        %vm5519 = vcmp.gt.f32.partialorder %v5411, 0.0
        %vm5520 = vcmp.gt.f32.partialorder %v5414, 0.0
        %vm5521 = vcmp.gt.f32.partialorder %v5419, 0.0
        %vm5522 = vcmp.gt.f32.partialorder %v5422, 0.0
        %vm5523 = vcmp.gt.f32.partialorder %v5427, 0.0
        %vm5524 = vcmp.gt.f32.partialorder %v5430, 0.0
        %vm5525 = vcmp.gt.f32.partialorder %v5435, 0.0
        %vm5526 = vcmp.gt.f32.partialorder %v5438, 0.0
        %vm5527 = vcmp.gt.f32.partialorder %v5443, 0.0
        %vm5528 = vcmp.gt.f32.partialorder %v5446, 0.0
        %vm5529 = vcmp.gt.f32.partialorder %v5451, 0.0
        %vm5530 = vcmp.gt.f32.partialorder %v5454, 0.0
        %vm5531 = vcmp.gt.f32.partialorder %v5459, 0.0
        %vm5532 = vcmp.gt.f32.partialorder %v5462, 0.0
        %vm5533 = vcmp.gt.f32.partialorder %v5467, 0.0
        %vm5534 = vcmp.gt.f32.partialorder %v5470, 0.0
        %vm5535 = vcmp.gt.f32.partialorder %v5475, 0.0
        %vm5536 = vcmp.gt.f32.partialorder %v5478, 0.0
        %vm5537 = vcmp.gt.f32.partialorder %v5483, 0.0
        %vm5538 = vcmp.gt.f32.partialorder %v5486, 0.0
        %vm5539 = vcmp.gt.f32.partialorder %v5491, 0.0
        %vm5540 = vcmp.gt.f32.partialorder %v5494, 0.0
        %vm5541 = vcmp.gt.f32.partialorder %v5499, 0.0
        %vm5542 = vcmp.gt.f32.partialorder %v5502, 0.0
        %vm5543 = vcmp.gt.f32.partialorder %v5507, 0.0
        %vm5544 = vcmp.gt.f32.partialorder %v5510, 0.0
        %v5545 = vmul.f32 %v5387, 0.2
        %v5546 = vmul.f32 %v5390, 0.2
        %v5547 = vmul.f32 %v5395, 0.2
        %v5548 = vmul.f32 %v5398, 0.2
        %v5549 = vmul.f32 %v5403, 0.2
        %v5550 = vmul.f32 %v5406, 0.2
        %v5551 = vmul.f32 %v5411, 0.2
        %v5552 = vmul.f32 %v5414, 0.2
        %v5553 = vmul.f32 %v5419, 0.2
        %v5554 = vmul.f32 %v5422, 0.2
        %v5555 = vmul.f32 %v5427, 0.2
        %v5556 = vmul.f32 %v5430, 0.2
        %v5557 = vmul.f32 %v5435, 0.2
        %v5558 = vmul.f32 %v5438, 0.2
        %v5559 = vmul.f32 %v5443, 0.2
        %v5560 = vmul.f32 %v5446, 0.2
        %v5561 = vmul.f32 %v5451, 0.2
        %v5562 = vmul.f32 %v5454, 0.2
        %v5563 = vmul.f32 %v5459, 0.2
        %v5564 = vmul.f32 %v5462, 0.2
        %v5565 = vmul.f32 %v5467, 0.2
        %v5566 = vmul.f32 %v5470, 0.2
        %v5567 = vmul.f32 %v5475, 0.2
        %v5568 = vmul.f32 %v5478, 0.2
        %v5569 = vmul.f32 %v5483, 0.2
        %v5570 = vmul.f32 %v5486, 0.2
        %v5571 = vmul.f32 %v5491, 0.2
        %v5572 = vmul.f32 %v5494, 0.2
        %v5573 = vmul.f32 %v5499, 0.2
        %v5574 = vmul.f32 %v5502, 0.2
        %v5575 = vmul.f32 %v5507, 0.2
        %v5576 = vmul.f32 %v5510, 0.2
        %v5577 = vsel %vm5513, %v5387, %v5545
        %v5578 = vsel %vm5514, %v5390, %v5546
        %v5579 = vsel %vm5515, %v5395, %v5547
        %v5580 = vsel %vm5516, %v5398, %v5548
        %v5581 = vsel %vm5517, %v5403, %v5549
        %v5582 = vsel %vm5518, %v5406, %v5550
        %v5583 = vsel %vm5519, %v5411, %v5551
        %v5584 = vsel %vm5520, %v5414, %v5552
        %v5585 = vsel %vm5521, %v5419, %v5553
        %v5586 = vsel %vm5522, %v5422, %v5554
        %v5587 = vsel %vm5523, %v5427, %v5555
        %v5588 = vsel %vm5524, %v5430, %v5556
        %v5589 = vsel %vm5525, %v5435, %v5557
        %v5590 = vsel %vm5526, %v5438, %v5558
        %v5591 = vsel %vm5527, %v5443, %v5559
        %v5592 = vsel %vm5528, %v5446, %v5560
        %v5593 = vsel %vm5529, %v5451, %v5561
        %v5594 = vsel %vm5530, %v5454, %v5562
        %v5595 = vsel %vm5531, %v5459, %v5563
        %v5596 = vsel %vm5532, %v5462, %v5564
        %v5597 = vsel %vm5533, %v5467, %v5565
        %v5598 = vsel %vm5534, %v5470, %v5566
        %v5599 = vsel %vm5535, %v5475, %v5567
        %v5600 = vsel %vm5536, %v5478, %v5568
        %v5601 = vsel %vm5537, %v5483, %v5569
        %v5602 = vsel %vm5538, %v5486, %v5570
        %v5603 = vsel %vm5539, %v5491, %v5571
        %v5604 = vsel %vm5540, %v5494, %v5572
        %v5605 = vsel %vm5541, %v5499, %v5573
        %v5606 = vsel %vm5542, %v5502, %v5574
        %v5607 = vsel %vm5543, %v5507, %v5575
        %v5608 = vsel %vm5544, %v5510, %v5576
        %v5609 = vpack.c.bf16 %v5578, %v5577
        %v5610 = vpack.c.bf16 %v5580, %v5579
        %v5611 = vpack.c.bf16 %v5582, %v5581
        %v5612 = vpack.c.bf16 %v5584, %v5583
        %v5613 = vpack.c.bf16 %v5586, %v5585
        %v5614 = vpack.c.bf16 %v5588, %v5587
        %v5615 = vpack.c.bf16 %v5590, %v5589
        %v5616 = vpack.c.bf16 %v5592, %v5591
        %v5617 = vpack.c.bf16 %v5594, %v5593
        %v5618 = vpack.c.bf16 %v5596, %v5595
        %v5619 = vpack.c.bf16 %v5598, %v5597
        %v5620 = vpack.c.bf16 %v5600, %v5599
        %v5621 = vpack.c.bf16 %v5602, %v5601
        %v5622 = vpack.c.bf16 %v5604, %v5603
        %v5623 = vpack.c.bf16 %v5606, %v5605
        %v5624 = vpack.c.bf16 %v5608, %v5607
        %v5641 = vunpack.c.l.b16 %v5609
        %v5642 = vunpack.c.h.b16 %v5609
        %v5643 = vunpack.c.l.b16 %v5610
        %v5644 = vunpack.c.h.b16 %v5610
        %v5645 = vunpack.c.l.b16 %v5611
        %v5646 = vunpack.c.h.b16 %v5611
        %v5647 = vunpack.c.l.b16 %v5612
        %v5648 = vunpack.c.h.b16 %v5612
        %v5649 = vunpack.c.l.b16 %v5613
        %v5650 = vunpack.c.h.b16 %v5613
        %v5651 = vunpack.c.l.b16 %v5614
        %v5652 = vunpack.c.h.b16 %v5614
        %v5653 = vunpack.c.l.b16 %v5615
        %v5654 = vunpack.c.h.b16 %v5615
        %v5655 = vunpack.c.l.b16 %v5616
        %v5656 = vunpack.c.h.b16 %v5616
        %v5657 = vunpack.c.l.b16 %v5617
        %v5658 = vunpack.c.h.b16 %v5617
        %v5659 = vunpack.c.l.b16 %v5618
        %v5660 = vunpack.c.h.b16 %v5618
        %v5661 = vunpack.c.l.b16 %v5619
        %v5662 = vunpack.c.h.b16 %v5619
        %v5663 = vunpack.c.l.b16 %v5620
        %v5664 = vunpack.c.h.b16 %v5620
        %v5665 = vunpack.c.l.b16 %v5621
        %v5666 = vunpack.c.h.b16 %v5621
        %v5667 = vunpack.c.l.b16 %v5622
        %v5668 = vunpack.c.h.b16 %v5622
        %v5669 = vunpack.c.l.b16 %v5623
        %v5670 = vunpack.c.h.b16 %v5623
        %v5671 = vunpack.c.l.b16 %v5624
        %v5672 = vunpack.c.h.b16 %v5624
        %v5673 = vpack.c.b16 %v5641, %v5641
        %v5674 = vpack.c.b16 %v5642, %v5642
        %v5675 = vpack.c.b16 %v5643, %v5643
        %v5676 = vpack.c.b16 %v5644, %v5644
        %v5677 = vpack.c.b16 %v5645, %v5645
        %v5678 = vpack.c.b16 %v5646, %v5646
        %v5679 = vpack.c.b16 %v5647, %v5647
        %v5680 = vpack.c.b16 %v5648, %v5648
        %v5681 = vpack.c.b16 %v5649, %v5649
        %v5682 = vpack.c.b16 %v5650, %v5650
        %v5683 = vpack.c.b16 %v5651, %v5651
        %v5684 = vpack.c.b16 %v5652, %v5652
        %v5685 = vpack.c.b16 %v5653, %v5653
        %v5686 = vpack.c.b16 %v5654, %v5654
        %v5687 = vpack.c.b16 %v5655, %v5655
        %v5688 = vpack.c.b16 %v5656, %v5656
        %v5689 = vpack.c.b16 %v5657, %v5657
        %v5690 = vpack.c.b16 %v5658, %v5658
        %v5691 = vpack.c.b16 %v5659, %v5659
        %v5692 = vpack.c.b16 %v5660, %v5660
        %v5693 = vpack.c.b16 %v5661, %v5661
        %v5694 = vpack.c.b16 %v5662, %v5662
        %v5695 = vpack.c.b16 %v5663, %v5663
        %v5696 = vpack.c.b16 %v5664, %v5664
        %v5697 = vpack.c.b16 %v5665, %v5665
        %v5698 = vpack.c.b16 %v5666, %v5666
        %v5699 = vpack.c.b16 %v5667, %v5667
        %v5700 = vpack.c.b16 %v5668, %v5668
        %v5701 = vpack.c.b16 %v5669, %v5669
        %v5702 = vpack.c.b16 %v5670, %v5670
        %v5703 = vpack.c.b16 %v5671, %v5671
        %v5704 = vpack.c.b16 %v5672, %v5672
        %v5706 = vshrl.u32 %v5673, 16
        %v5708 = vrot.slane %v5706, 7
        %v5709 = vshll.u32 %v5673, 16
        %v5711 = vor.u32 %v5708, %v5709
        %v5712 = vrot.slane %v5708, 4
        %v5714 = vshrl.u32 %v5674, 16
        %v5716 = vrot.slane %v5714, 7
        %v5717 = vshll.u32 %v5674, 16
        %v5719 = vor.u32 %v5716, %v5717
        %v5720 = vsel %vm1391, %v5712, %v5719
        %v5721 = vrot.slane %v5716, 4
        %v5723 = vshrl.u32 %v5675, 16
        %v5725 = vrot.slane %v5723, 7
        %v5726 = vshll.u32 %v5675, 16
        %v5728 = vor.u32 %v5725, %v5726
        %v5729 = vrot.slane %v5725, 4
        %v5731 = vshrl.u32 %v5676, 16
        %v5733 = vrot.slane %v5731, 7
        %v5734 = vshll.u32 %v5676, 16
        %v5736 = vor.u32 %v5733, %v5734
        %v5737 = vsel %vm1391, %v5729, %v5736
        %v5738 = vrot.slane %v5733, 4
        %v5740 = vshrl.u32 %v5677, 16
        %v5742 = vrot.slane %v5740, 7
        %v5743 = vshll.u32 %v5677, 16
        %v5745 = vor.u32 %v5742, %v5743
        %v5746 = vrot.slane %v5742, 4
        %v5748 = vshrl.u32 %v5678, 16
        %v5750 = vrot.slane %v5748, 7
        %v5751 = vshll.u32 %v5678, 16
        %v5753 = vor.u32 %v5750, %v5751
        %v5754 = vsel %vm1391, %v5746, %v5753
        %v5755 = vrot.slane %v5750, 4
        %v5757 = vshrl.u32 %v5679, 16
        %v5759 = vrot.slane %v5757, 7
        %v5760 = vshll.u32 %v5679, 16
        %v5762 = vor.u32 %v5759, %v5760
        %v5763 = vrot.slane %v5759, 4
        %v5765 = vshrl.u32 %v5680, 16
        %v5767 = vrot.slane %v5765, 7
        %v5768 = vshll.u32 %v5680, 16
        %v5770 = vor.u32 %v5767, %v5768
        %v5771 = vsel %vm1391, %v5763, %v5770
        %v5772 = vrot.slane %v5767, 4
        %v5774 = vshrl.u32 %v5681, 16
        %v5776 = vrot.slane %v5774, 7
        %v5777 = vshll.u32 %v5681, 16
        %v5779 = vor.u32 %v5776, %v5777
        %v5780 = vrot.slane %v5776, 4
        %v5782 = vshrl.u32 %v5682, 16
        %v5784 = vrot.slane %v5782, 7
        %v5785 = vshll.u32 %v5682, 16
        %v5787 = vor.u32 %v5784, %v5785
        %v5788 = vsel %vm1391, %v5780, %v5787
        %v5789 = vrot.slane %v5784, 4
        %v5791 = vshrl.u32 %v5683, 16
        %v5793 = vrot.slane %v5791, 7
        %v5794 = vshll.u32 %v5683, 16
        %v5796 = vor.u32 %v5793, %v5794
        %v5797 = vrot.slane %v5793, 4
        %v5799 = vshrl.u32 %v5684, 16
        %v5801 = vrot.slane %v5799, 7
        %v5802 = vshll.u32 %v5684, 16
        %v5804 = vor.u32 %v5801, %v5802
        %v5805 = vsel %vm1391, %v5797, %v5804
        %v5806 = vrot.slane %v5801, 4
        %v5808 = vshrl.u32 %v5685, 16
        %v5810 = vrot.slane %v5808, 7
        %v5811 = vshll.u32 %v5685, 16
        %v5813 = vor.u32 %v5810, %v5811
        %v5814 = vrot.slane %v5810, 4
        %v5816 = vshrl.u32 %v5686, 16
        %v5818 = vrot.slane %v5816, 7
        %v5819 = vshll.u32 %v5686, 16
        %v5821 = vor.u32 %v5818, %v5819
        %v5822 = vsel %vm1391, %v5814, %v5821
        %v5823 = vrot.slane %v5818, 4
        %v5825 = vshrl.u32 %v5687, 16
        %v5827 = vrot.slane %v5825, 7
        %v5828 = vshll.u32 %v5687, 16
        %v5830 = vor.u32 %v5827, %v5828
        %v5831 = vrot.slane %v5827, 4
        %v5833 = vshrl.u32 %v5688, 16
        %v5835 = vrot.slane %v5833, 7
        %v5836 = vshll.u32 %v5688, 16
        %v5838 = vor.u32 %v5835, %v5836
        %v5839 = vsel %vm1391, %v5831, %v5838
        %v5840 = vrot.slane %v5835, 4
        %v5842 = vshrl.u32 %v5689, 16
        %v5844 = vrot.slane %v5842, 7
        %v5845 = vshll.u32 %v5689, 16
        %v5847 = vor.u32 %v5844, %v5845
        %v5848 = vrot.slane %v5844, 4
        %v5850 = vshrl.u32 %v5690, 16
        %v5852 = vrot.slane %v5850, 7
        %v5853 = vshll.u32 %v5690, 16
        %v5855 = vor.u32 %v5852, %v5853
        %v5856 = vsel %vm1391, %v5848, %v5855
        %v5857 = vrot.slane %v5852, 4
        %v5859 = vshrl.u32 %v5691, 16
        %v5861 = vrot.slane %v5859, 7
        %v5862 = vshll.u32 %v5691, 16
        %v5864 = vor.u32 %v5861, %v5862
        %v5865 = vrot.slane %v5861, 4
        %v5867 = vshrl.u32 %v5692, 16
        %v5869 = vrot.slane %v5867, 7
        %v5870 = vshll.u32 %v5692, 16
        %v5872 = vor.u32 %v5869, %v5870
        %v5873 = vsel %vm1391, %v5865, %v5872
        %v5874 = vrot.slane %v5869, 4
        %v5876 = vshrl.u32 %v5693, 16
        %v5878 = vrot.slane %v5876, 7
        %v5879 = vshll.u32 %v5693, 16
        %v5881 = vor.u32 %v5878, %v5879
        %v5882 = vrot.slane %v5878, 4
        %v5884 = vshrl.u32 %v5694, 16
        %v5886 = vrot.slane %v5884, 7
        %v5887 = vshll.u32 %v5694, 16
        %v5889 = vor.u32 %v5886, %v5887
        %v5890 = vsel %vm1391, %v5882, %v5889
        %v5891 = vrot.slane %v5886, 4
        %v5893 = vshrl.u32 %v5695, 16
        %v5895 = vrot.slane %v5893, 7
        %v5896 = vshll.u32 %v5695, 16
        %v5898 = vor.u32 %v5895, %v5896
        %v5899 = vrot.slane %v5895, 4
        %v5901 = vshrl.u32 %v5696, 16
        %v5903 = vrot.slane %v5901, 7
        %v5904 = vshll.u32 %v5696, 16
        %v5906 = vor.u32 %v5903, %v5904
        %v5907 = vsel %vm1391, %v5899, %v5906
        %v5908 = vrot.slane %v5903, 4
        %v5910 = vshrl.u32 %v5697, 16
        %v5912 = vrot.slane %v5910, 7
        %v5913 = vshll.u32 %v5697, 16
        %v5915 = vor.u32 %v5912, %v5913
        %v5916 = vrot.slane %v5912, 4
        %v5918 = vshrl.u32 %v5698, 16
        %v5920 = vrot.slane %v5918, 7
        %v5921 = vshll.u32 %v5698, 16
        %v5923 = vor.u32 %v5920, %v5921
        %v5924 = vsel %vm1391, %v5916, %v5923
        %v5925 = vrot.slane %v5920, 4
        %v5927 = vshrl.u32 %v5699, 16
        %v5929 = vrot.slane %v5927, 7
        %v5930 = vshll.u32 %v5699, 16
        %v5932 = vor.u32 %v5929, %v5930
        %v5933 = vrot.slane %v5929, 4
        %v5935 = vshrl.u32 %v5700, 16
        %v5937 = vrot.slane %v5935, 7
        %v5938 = vshll.u32 %v5700, 16
        %v5940 = vor.u32 %v5937, %v5938
        %v5941 = vsel %vm1391, %v5933, %v5940
        %v5942 = vrot.slane %v5937, 4
        %v5944 = vshrl.u32 %v5701, 16
        %v5946 = vrot.slane %v5944, 7
        %v5947 = vshll.u32 %v5701, 16
        %v5949 = vor.u32 %v5946, %v5947
        %v5950 = vrot.slane %v5946, 4
        %v5952 = vshrl.u32 %v5702, 16
        %v5954 = vrot.slane %v5952, 7
        %v5955 = vshll.u32 %v5702, 16
        %v5957 = vor.u32 %v5954, %v5955
        %v5958 = vsel %vm1391, %v5950, %v5957
        %v5959 = vrot.slane %v5954, 4
        %v5961 = vshrl.u32 %v5703, 16
        %v5963 = vrot.slane %v5961, 7
        %v5964 = vshll.u32 %v5703, 16
        %v5966 = vor.u32 %v5963, %v5964
        %v5967 = vrot.slane %v5963, 4
        %v5969 = vshrl.u32 %v5704, 16
        %v5971 = vrot.slane %v5969, 7
        %v5972 = vshll.u32 %v5704, 16
        %v5974 = vor.u32 %v5971, %v5972
        %v5975 = vsel %vm1391, %v5967, %v5974
        %v5976 = vrot.slane %v5971, 4
        %s6025 = scalar_lea.vmem [#allocation3], 12
        %v6026 = vld [vmem:[%s6025] sm:$0xf]
        %v6027 = vsel %vm1555, %v5711, %v6026
        %6028 = vst [vmem:[%s6025] sm:$0xf] %v6027
        %6029 = vst [vmem:[%s6025 + $0x4] sm:$0xf] %v5720
        %v6030 = vld [vmem:[%s6025 + $0x8] sm:$0x1]
        %v6031 = vsel %vm1561, %v5721, %v6030
        %6032 = vst [vmem:[%s6025 + $0x8] sm:$0x1] %v6031
        %v6033 = vld [vmem:[%s6025 + $0xc] sm:$0xf]
        %v6034 = vsel %vm1555, %v5728, %v6033
        %6035 = vst [vmem:[%s6025 + $0xc] sm:$0xf] %v6034
        %6036 = vst [vmem:[%s6025 + $0x10] sm:$0xf] %v5737
        %v6037 = vld [vmem:[%s6025 + $0x14] sm:$0x1]
        %v6038 = vsel %vm1561, %v5738, %v6037
        %6039 = vst [vmem:[%s6025 + $0x14] sm:$0x1] %v6038
        %v6040 = vld [vmem:[%s6025 + $0x18] sm:$0xf]
        %v6041 = vsel %vm1555, %v5745, %v6040
        %6042 = vst [vmem:[%s6025 + $0x18] sm:$0xf] %v6041
        %6043 = vst [vmem:[%s6025 + $0x1c] sm:$0xf] %v5754
        %v6044 = vld [vmem:[%s6025 + $0x20] sm:$0x1]
        %v6045 = vsel %vm1561, %v5755, %v6044
        %6046 = vst [vmem:[%s6025 + $0x20] sm:$0x1] %v6045
        %v6047 = vld [vmem:[%s6025 + $0x24] sm:$0xf]
        %v6048 = vsel %vm1555, %v5762, %v6047
        %6049 = vst [vmem:[%s6025 + $0x24] sm:$0xf] %v6048
        %6050 = vst [vmem:[%s6025 + $0x28] sm:$0xf] %v5771
        %v6051 = vld [vmem:[%s6025 + $0x2c] sm:$0x1]
        %v6052 = vsel %vm1561, %v5772, %v6051
        %6053 = vst [vmem:[%s6025 + $0x2c] sm:$0x1] %v6052
        %v6054 = vld [vmem:[%s6025 + $0x30] sm:$0xf]
        %v6055 = vsel %vm1555, %v5779, %v6054
        %6056 = vst [vmem:[%s6025 + $0x30] sm:$0xf] %v6055
        %6057 = vst [vmem:[%s6025 + $0x34] sm:$0xf] %v5788
        %v6058 = vld [vmem:[%s6025 + $0x38] sm:$0x1]
        %v6059 = vsel %vm1561, %v5789, %v6058
        %6060 = vst [vmem:[%s6025 + $0x38] sm:$0x1] %v6059
        %v6061 = vld [vmem:[%s6025 + $0x3c] sm:$0xf]
        %v6062 = vsel %vm1555, %v5796, %v6061
        %6063 = vst [vmem:[%s6025 + $0x3c] sm:$0xf] %v6062
        %6064 = vst [vmem:[%s6025 + $0x40] sm:$0xf] %v5805
        %v6065 = vld [vmem:[%s6025 + $0x44] sm:$0x1]
        %v6066 = vsel %vm1561, %v5806, %v6065
        %6067 = vst [vmem:[%s6025 + $0x44] sm:$0x1] %v6066
        %v6068 = vld [vmem:[%s6025 + $0x48] sm:$0xf]
        %v6069 = vsel %vm1555, %v5813, %v6068
        %6070 = vst [vmem:[%s6025 + $0x48] sm:$0xf] %v6069
        %6071 = vst [vmem:[%s6025 + $0x4c] sm:$0xf] %v5822
        %v6072 = vld [vmem:[%s6025 + $0x50] sm:$0x1]
        %v6073 = vsel %vm1561, %v5823, %v6072
        %6074 = vst [vmem:[%s6025 + $0x50] sm:$0x1] %v6073
        %v6075 = vld [vmem:[%s6025 + $0x54] sm:$0xf]
        %v6076 = vsel %vm1555, %v5830, %v6075
        %6077 = vst [vmem:[%s6025 + $0x54] sm:$0xf] %v6076
        %6078 = vst [vmem:[%s6025 + $0x58] sm:$0xf] %v5839
        %v6079 = vld [vmem:[%s6025 + $0x5c] sm:$0x1]
        %v6080 = vsel %vm1561, %v5840, %v6079
        %6081 = vst [vmem:[%s6025 + $0x5c] sm:$0x1] %v6080
        %v6082 = vld [vmem:[%s6025 + $0x60] sm:$0xf]
        %v6083 = vsel %vm1555, %v5847, %v6082
        %6084 = vst [vmem:[%s6025 + $0x60] sm:$0xf] %v6083
        %6085 = vst [vmem:[%s6025 + $0x64] sm:$0xf] %v5856
        %v6086 = vld [vmem:[%s6025 + $0x68] sm:$0x1]
        %v6087 = vsel %vm1561, %v5857, %v6086
        %6088 = vst [vmem:[%s6025 + $0x68] sm:$0x1] %v6087
        %v6089 = vld [vmem:[%s6025 + $0x6c] sm:$0xf]
        %v6090 = vsel %vm1555, %v5864, %v6089
        %6091 = vst [vmem:[%s6025 + $0x6c] sm:$0xf] %v6090
        %6092 = vst [vmem:[%s6025 + $0x70] sm:$0xf] %v5873
        %v6093 = vld [vmem:[%s6025 + $0x74] sm:$0x1]
        %v6094 = vsel %vm1561, %v5874, %v6093
        %6095 = vst [vmem:[%s6025 + $0x74] sm:$0x1] %v6094
        %v6096 = vld [vmem:[%s6025 + $0x78] sm:$0xf]
        %v6097 = vsel %vm1555, %v5881, %v6096
        %6098 = vst [vmem:[%s6025 + $0x78] sm:$0xf] %v6097
        %6099 = vst [vmem:[%s6025 + $0x7c] sm:$0xf] %v5890
        %v6100 = vld [vmem:[%s6025 + $0x80] sm:$0x1]
        %v6101 = vsel %vm1561, %v5891, %v6100
        %6102 = vst [vmem:[%s6025 + $0x80] sm:$0x1] %v6101
        %v6103 = vld [vmem:[%s6025 + $0x84] sm:$0xf]
        %v6104 = vsel %vm1555, %v5898, %v6103
        %6105 = vst [vmem:[%s6025 + $0x84] sm:$0xf] %v6104
        %6106 = vst [vmem:[%s6025 + $0x88] sm:$0xf] %v5907
        %v6107 = vld [vmem:[%s6025 + $0x8c] sm:$0x1]
        %v6108 = vsel %vm1561, %v5908, %v6107
        %6109 = vst [vmem:[%s6025 + $0x8c] sm:$0x1] %v6108
        %v6110 = vld [vmem:[%s6025 + $0x90] sm:$0xf]
        %v6111 = vsel %vm1555, %v5915, %v6110
        %6112 = vst [vmem:[%s6025 + $0x90] sm:$0xf] %v6111
        %6113 = vst [vmem:[%s6025 + $0x94] sm:$0xf] %v5924
        %v6114 = vld [vmem:[%s6025 + $0x98] sm:$0x1]
        %v6115 = vsel %vm1561, %v5925, %v6114
        %6116 = vst [vmem:[%s6025 + $0x98] sm:$0x1] %v6115
        %v6117 = vld [vmem:[%s6025 + $0x9c] sm:$0xf]
        %v6118 = vsel %vm1555, %v5932, %v6117
        %6119 = vst [vmem:[%s6025 + $0x9c] sm:$0xf] %v6118
        %6120 = vst [vmem:[%s6025 + $0xa0] sm:$0xf] %v5941
        %v6121 = vld [vmem:[%s6025 + $0xa4] sm:$0x1]
        %v6122 = vsel %vm1561, %v5942, %v6121
        %6123 = vst [vmem:[%s6025 + $0xa4] sm:$0x1] %v6122
        %v6124 = vld [vmem:[%s6025 + $0xa8] sm:$0xf]
        %v6125 = vsel %vm1555, %v5949, %v6124
        %6126 = vst [vmem:[%s6025 + $0xa8] sm:$0xf] %v6125
        %6127 = vst [vmem:[%s6025 + $0xac] sm:$0xf] %v5958
        %v6128 = vld [vmem:[%s6025 + $0xb0] sm:$0x1]
        %v6129 = vsel %vm1561, %v5959, %v6128
        %6130 = vst [vmem:[%s6025 + $0xb0] sm:$0x1] %v6129
        %v6131 = vld [vmem:[%s6025 + $0xb4] sm:$0xf]
        %v6132 = vsel %vm1555, %v5966, %v6131
        %6133 = vst [vmem:[%s6025 + $0xb4] sm:$0xf] %v6132
        %6134 = vst [vmem:[%s6025 + $0xb8] sm:$0xf] %v5975
        %v6135 = vld [vmem:[%s6025 + $0xbc] sm:$0x1]
        %v6136 = vsel %vm1561, %v5976, %v6135
        %6137 = vst [vmem:[%s6025 + $0xbc] sm:$0x1] %v6136
        %v6138 = vld [vmem:[#allocation9] sm:$0xf]
        %v6139 = vld [vmem:[#allocation9 + $0x4] sm:$0xf]
        %v6140 = vld [vmem:[#allocation9 + $0x8] sm:$0xf]
        %v6141 = vld [vmem:[#allocation9 + $0xc] sm:$0xf]
        %v6142 = vld [vmem:[#allocation9 + $0x10] sm:$0xf]
        %v6143 = vld [vmem:[#allocation9 + $0x14] sm:$0xf]
        %v6144 = vld [vmem:[#allocation9 + $0x18] sm:$0xf]
        %v6145 = vld [vmem:[#allocation9 + $0x1c] sm:$0xf]
        %v6146 = vld [vmem:[#allocation9 + $0x20] sm:$0xf]
        %v6147 = vld [vmem:[#allocation9 + $0x24] sm:$0xf]
        %v6148 = vld [vmem:[#allocation9 + $0x28] sm:$0xf]
        %v6149 = vld [vmem:[#allocation9 + $0x2c] sm:$0xf]
        %v6150 = vld [vmem:[#allocation9 + $0x30] sm:$0xf]
        %v6151 = vld [vmem:[#allocation9 + $0x34] sm:$0xf]
        %v6152 = vld [vmem:[#allocation9 + $0x38] sm:$0xf]
        %v6153 = vld [vmem:[#allocation9 + $0x3c] sm:$0xf]
        %v6154 = vld [vmem:[#allocation9 + $0x40] sm:$0xf]
        %v6155 = vld [vmem:[#allocation9 + $0x44] sm:$0xf]
        %v6156 = vld [vmem:[#allocation9 + $0x48] sm:$0xf]
        %v6157 = vld [vmem:[#allocation9 + $0x4c] sm:$0xf]
        %v6158 = vld [vmem:[#allocation9 + $0x50] sm:$0xf]
        %v6159 = vld [vmem:[#allocation9 + $0x54] sm:$0xf]
        %v6160 = vld [vmem:[#allocation9 + $0x58] sm:$0xf]
        %v6161 = vld [vmem:[#allocation9 + $0x5c] sm:$0xf]
        %v6162 = vld [vmem:[#allocation9 + $0x60] sm:$0xf]
        %v6163 = vld [vmem:[#allocation9 + $0x64] sm:$0xf]
        %v6164 = vld [vmem:[#allocation9 + $0x68] sm:$0xf]
        %v6165 = vld [vmem:[#allocation9 + $0x6c] sm:$0xf]
        %v6166 = vld [vmem:[#allocation9 + $0x70] sm:$0xf]
        %v6167 = vld [vmem:[#allocation9 + $0x74] sm:$0xf]
        %v6168 = vld [vmem:[#allocation9 + $0x78] sm:$0xf]
        %v6169 = vld [vmem:[#allocation9 + $0x7c] sm:$0xf]
        %v6170 = vld [vmem:[#allocation9 + $0x80] sm:$0xf]
        %v6171 = vld [vmem:[#allocation9 + $0x84] sm:$0xf]
        %v6172 = vld [vmem:[#allocation9 + $0x88] sm:$0xf]
        %v6173 = vld [vmem:[#allocation9 + $0x8c] sm:$0xf]
        %v6174 = vld [vmem:[#allocation9 + $0x90] sm:$0xf]
        %v6175 = vld [vmem:[#allocation9 + $0x94] sm:$0xf]
        %v6176 = vld [vmem:[#allocation9 + $0x98] sm:$0xf]
        %v6177 = vld [vmem:[#allocation9 + $0x9c] sm:$0xf]
        %v6178 = vld [vmem:[#allocation9 + $0xa0] sm:$0xf]
        %v6179 = vld [vmem:[#allocation9 + $0xa4] sm:$0xf]
        %v6180 = vld [vmem:[#allocation9 + $0xa8] sm:$0xf]
        %v6181 = vld [vmem:[#allocation9 + $0xac] sm:$0xf]
        %v6182 = vld [vmem:[#allocation9 + $0xb0] sm:$0xf]
        %v6183 = vld [vmem:[#allocation9 + $0xb4] sm:$0xf]
        %v6184 = vld [vmem:[#allocation9 + $0xb8] sm:$0xf]
        %v6185 = vld [vmem:[#allocation9 + $0xbc] sm:$0xf]
        %v6186 = vld [vmem:[#allocation9 + $0xc0] sm:$0xf]
        %v6187 = vld [vmem:[#allocation9 + $0xc4] sm:$0xf]
        %v6188 = vld [vmem:[#allocation9 + $0xc8] sm:$0xf]
        %v6189 = vld [vmem:[#allocation9 + $0xcc] sm:$0xf]
        %v6190 = vld [vmem:[#allocation9 + $0xd0] sm:$0xf]
        %v6191 = vld [vmem:[#allocation9 + $0xd4] sm:$0xf]
        %v6192 = vld [vmem:[#allocation9 + $0xd8] sm:$0xf]
        %v6193 = vld [vmem:[#allocation9 + $0xdc] sm:$0xf]
        %v6194 = vld [vmem:[#allocation9 + $0xe0] sm:$0xf]
        %v6195 = vld [vmem:[#allocation9 + $0xe4] sm:$0xf]
        %v6196 = vld [vmem:[#allocation9 + $0xe8] sm:$0xf]
        %v6197 = vld [vmem:[#allocation9 + $0xec] sm:$0xf]
        %v6198 = vld [vmem:[#allocation9 + $0xf0] sm:$0xf]
        %v6199 = vld [vmem:[#allocation9 + $0xf4] sm:$0xf]
        %v6200 = vld [vmem:[#allocation9 + $0xf8] sm:$0xf]
        %v6201 = vld [vmem:[#allocation9 + $0xfc] sm:$0xf]
        %v6202 = vld [vmem:[#allocation9 + $0x100] sm:$0xf]
        %v6203 = vld [vmem:[#allocation9 + $0x104] sm:$0xf]
        %v6204 = vld [vmem:[#allocation9 + $0x108] sm:$0xf]
        %v6205 = vld [vmem:[#allocation9 + $0x10c] sm:$0xf]
        %v6206 = vld [vmem:[#allocation9 + $0x110] sm:$0xf]
        %v6207 = vld [vmem:[#allocation9 + $0x114] sm:$0xf]
        %v6208 = vld [vmem:[#allocation9 + $0x118] sm:$0xf]
        %v6209 = vld [vmem:[#allocation9 + $0x11c] sm:$0xf]
        %v6210 = vld [vmem:[#allocation9 + $0x120] sm:$0xf]
        %v6211 = vld [vmem:[#allocation9 + $0x124] sm:$0xf]
        %v6212 = vld [vmem:[#allocation9 + $0x128] sm:$0xf]
        %v6213 = vld [vmem:[#allocation9 + $0x12c] sm:$0xf]
        %v6214 = vld [vmem:[#allocation9 + $0x130] sm:$0xf]
        %v6215 = vld [vmem:[#allocation9 + $0x134] sm:$0xf]
        %v6216 = vld [vmem:[#allocation9 + $0x138] sm:$0xf]
        %v6217 = vld [vmem:[#allocation9 + $0x13c] sm:$0xf]
        %v6218 = vld [vmem:[#allocation9 + $0x140] sm:$0xf]
        %v6219 = vld [vmem:[#allocation9 + $0x144] sm:$0xf]
        %v6220 = vld [vmem:[#allocation9 + $0x148] sm:$0xf]
        %v6221 = vld [vmem:[#allocation9 + $0x14c] sm:$0xf]
        %v6222 = vld [vmem:[#allocation9 + $0x150] sm:$0xf]
        %v6223 = vld [vmem:[#allocation9 + $0x154] sm:$0xf]
        %v6224 = vld [vmem:[#allocation9 + $0x158] sm:$0xf]
        %v6225 = vld [vmem:[#allocation9 + $0x15c] sm:$0xf]
        %v6226 = vld [vmem:[#allocation9 + $0x160] sm:$0xf]
        %v6227 = vld [vmem:[#allocation9 + $0x164] sm:$0xf]
        %v6228 = vld [vmem:[#allocation9 + $0x168] sm:$0xf]
        %v6229 = vld [vmem:[#allocation9 + $0x16c] sm:$0xf]
        %v6230 = vld [vmem:[#allocation9 + $0x170] sm:$0xf]
        %v6231 = vld [vmem:[#allocation9 + $0x174] sm:$0xf]
        %v6232 = vld [vmem:[#allocation9 + $0x178] sm:$0xf]
        %v6233 = vld [vmem:[#allocation9 + $0x17c] sm:$0xf]
        %v6234 = vld [vmem:[#allocation9 + $0x180] sm:$0xf]
        %v6235 = vld [vmem:[#allocation9 + $0x184] sm:$0xf]
        %v6236 = vld [vmem:[#allocation9 + $0x188] sm:$0xf]
        %v6237 = vld [vmem:[#allocation9 + $0x18c] sm:$0xf]
        %v6238 = vld [vmem:[#allocation9 + $0x190] sm:$0xf]
        %v6239 = vld [vmem:[#allocation9 + $0x194] sm:$0xf]
        %v6240 = vld [vmem:[#allocation9 + $0x198] sm:$0xf]
        %v6241 = vld [vmem:[#allocation9 + $0x19c] sm:$0xf]
        %v6242 = vld [vmem:[#allocation9 + $0x1a0] sm:$0xf]
        %v6243 = vld [vmem:[#allocation9 + $0x1a4] sm:$0xf]
        %v6244 = vld [vmem:[#allocation9 + $0x1a8] sm:$0xf]
        %v6245 = vld [vmem:[#allocation9 + $0x1ac] sm:$0xf]
        %v6246 = vld [vmem:[#allocation9 + $0x1b0] sm:$0xf]
        %v6247 = vld [vmem:[#allocation9 + $0x1b4] sm:$0xf]
        %v6248 = vld [vmem:[#allocation9 + $0x1b8] sm:$0xf]
        %v6249 = vld [vmem:[#allocation9 + $0x1bc] sm:$0xf]
        %v6250 = vld [vmem:[#allocation9 + $0x1c0] sm:$0xf]
        %v6251 = vld [vmem:[#allocation9 + $0x1c4] sm:$0xf]
        %v6252 = vld [vmem:[#allocation9 + $0x1c8] sm:$0xf]
        %v6253 = vld [vmem:[#allocation9 + $0x1cc] sm:$0xf]
        %v6254 = vld [vmem:[#allocation9 + $0x1d0] sm:$0xf]
        %v6255 = vld [vmem:[#allocation9 + $0x1d4] sm:$0xf]
        %v6256 = vld [vmem:[#allocation9 + $0x1d8] sm:$0xf]
        %v6257 = vld [vmem:[#allocation9 + $0x1dc] sm:$0xf]
        %v6258 = vld [vmem:[#allocation9 + $0x1e0] sm:$0xf]
        %v6259 = vld [vmem:[#allocation9 + $0x1e4] sm:$0xf]
        %v6260 = vld [vmem:[#allocation9 + $0x1e8] sm:$0xf]
        %v6261 = vld [vmem:[#allocation9 + $0x1ec] sm:$0xf]
        %v6262 = vld [vmem:[#allocation9 + $0x1f0] sm:$0xf]
        %v6263 = vld [vmem:[#allocation9 + $0x1f4] sm:$0xf]
        %v6264 = vld [vmem:[#allocation9 + $0x1f8] sm:$0xf]
        %v6265 = vld [vmem:[#allocation9 + $0x1fc] sm:$0xf]
        %v6266 = vld [vmem:[#allocation9 + $0x200] sm:$0xf]
        %v6267 = vld [vmem:[#allocation9 + $0x204] sm:$0xf]
        %v6268 = vld [vmem:[#allocation9 + $0x208] sm:$0xf]
        %v6269 = vld [vmem:[#allocation9 + $0x20c] sm:$0xf]
        %v6270 = vld [vmem:[#allocation9 + $0x210] sm:$0xf]
        %v6271 = vld [vmem:[#allocation9 + $0x214] sm:$0xf]
        %v6272 = vld [vmem:[#allocation9 + $0x218] sm:$0xf]
        %v6273 = vld [vmem:[#allocation9 + $0x21c] sm:$0xf]
        %v6274 = vld [vmem:[#allocation9 + $0x220] sm:$0xf]
        %v6275 = vld [vmem:[#allocation9 + $0x224] sm:$0xf]
        %v6276 = vld [vmem:[#allocation9 + $0x228] sm:$0xf]
        %v6277 = vld [vmem:[#allocation9 + $0x22c] sm:$0xf]
        %v6278 = vld [vmem:[#allocation9 + $0x230] sm:$0xf]
        %v6279 = vld [vmem:[#allocation9 + $0x234] sm:$0xf]
        %v6280 = vld [vmem:[#allocation9 + $0x238] sm:$0xf]
        %v6281 = vld [vmem:[#allocation9 + $0x23c] sm:$0xf]
        %v6282 = vld [vmem:[%s4] sm:$0x1]
        %v6283 = vld [vmem:[#allocation3] sm:$0xf]
        %v6284 = vld [vmem:[#allocation3 + $0x4] sm:$0xf]
        %v6285 = vld [vmem:[#allocation3 + $0xc] sm:$0xf]
        %v6286 = vld [vmem:[#allocation3 + $0x10] sm:$0xf]
        %v6287 = vld [vmem:[#allocation3 + $0x18] sm:$0xf]
        %v6288 = vld [vmem:[#allocation3 + $0x1c] sm:$0xf]
        %v6289 = vld [vmem:[#allocation3 + $0x24] sm:$0xf]
        %v6290 = vld [vmem:[#allocation3 + $0x28] sm:$0xf]
        %v6291 = vld [vmem:[#allocation3 + $0x30] sm:$0xf]
        %v6292 = vld [vmem:[#allocation3 + $0x34] sm:$0xf]
        %v6293 = vld [vmem:[#allocation3 + $0x3c] sm:$0xf]
        %v6294 = vld [vmem:[#allocation3 + $0x40] sm:$0xf]
        %v6295 = vld [vmem:[#allocation3 + $0x48] sm:$0xf]
        %v6296 = vld [vmem:[#allocation3 + $0x4c] sm:$0xf]
        %v6297 = vld [vmem:[#allocation3 + $0x54] sm:$0xf]
        %v6298 = vld [vmem:[#allocation3 + $0x58] sm:$0xf]
        %v6299 = vld [vmem:[#allocation3 + $0x60] sm:$0xf]
        %v6300 = vld [vmem:[#allocation3 + $0x64] sm:$0xf]
        %v6301 = vld [vmem:[#allocation3 + $0x6c] sm:$0xf]
        %v6302 = vld [vmem:[#allocation3 + $0x70] sm:$0xf]
        %v6303 = vld [vmem:[#allocation3 + $0x78] sm:$0xf]
        %v6304 = vld [vmem:[#allocation3 + $0x7c] sm:$0xf]
        %v6305 = vld [vmem:[#allocation3 + $0x84] sm:$0xf]
        %v6306 = vld [vmem:[#allocation3 + $0x88] sm:$0xf]
        %v6307 = vld [vmem:[#allocation3 + $0x90] sm:$0xf]
        %v6308 = vld [vmem:[#allocation3 + $0x94] sm:$0xf]
        %v6309 = vld [vmem:[#allocation3 + $0x9c] sm:$0xf]
        %v6310 = vld [vmem:[#allocation3 + $0xa0] sm:$0xf]
        %v6311 = vld [vmem:[#allocation3 + $0xa8] sm:$0xf]
        %v6312 = vld [vmem:[#allocation3 + $0xac] sm:$0xf]
        %v6313 = vld [vmem:[#allocation3 + $0xb4] sm:$0xf]
        %v6314 = vld [vmem:[#allocation3 + $0xb8] sm:$0xf]
        %v6315 = vld [vmem:[#allocation3 + $0x8] sm:$0x1]
        %v6316 = vld [vmem:[#allocation3 + $0x14] sm:$0x1]
        %v6317 = vld [vmem:[#allocation3 + $0x20] sm:$0x1]
        %v6318 = vld [vmem:[#allocation3 + $0x2c] sm:$0x1]
        %v6319 = vld [vmem:[#allocation3 + $0x38] sm:$0x1]
        %v6320 = vld [vmem:[#allocation3 + $0x44] sm:$0x1]
        %v6321 = vld [vmem:[#allocation3 + $0x50] sm:$0x1]
        %v6322 = vld [vmem:[#allocation3 + $0x5c] sm:$0x1]
        %v6323 = vld [vmem:[#allocation3 + $0x68] sm:$0x1]
        %v6324 = vld [vmem:[#allocation3 + $0x74] sm:$0x1]
        %v6325 = vld [vmem:[#allocation3 + $0x80] sm:$0x1]
        %v6326 = vld [vmem:[#allocation3 + $0x8c] sm:$0x1]
        %v6327 = vld [vmem:[#allocation3 + $0x98] sm:$0x1]
        %v6328 = vld [vmem:[#allocation3 + $0xa4] sm:$0x1]
        %v6329 = vld [vmem:[#allocation3 + $0xb0] sm:$0x1]
        %v6330 = vld [vmem:[#allocation3 + $0xbc] sm:$0x1]
        %v6332 = vshrl.u32 %v6283, 16
        %v6334 = vrot.slane %v6332, 4
        %v6335 = vshll.u32 %v6283, 16
        %v6337 = vrot.slane %v6335, 5
        %v6338 = vor.u32 %v6334, %v6337
        %v6339 = vrot.slane %v6338, 4
        %v6341 = vshll.u32 %v6284, 16
        %v6343 = vrot.slane %v6341, 5
        %v6344 = vsel %vm1865, %v6339, %v6343
        %v6345 = vshrl.u32 %v6284, 16
        %v6347 = vrot.slane %v6345, 4
        %v6348 = vor.u32 %v6347, %v6343
        %v6349 = vrot.slane %v6348, 4
        %v6351 = vshll.u32 %v6315, 16
        %v6353 = vrot.slane %v6351, 5
        %v6354 = vsel %vm1865, %v6349, %v6353
        %v6356 = vshrl.u32 %v6285, 16
        %v6358 = vrot.slane %v6356, 4
        %v6359 = vshll.u32 %v6285, 16
        %v6361 = vrot.slane %v6359, 5
        %v6362 = vor.u32 %v6358, %v6361
        %v6363 = vrot.slane %v6362, 4
        %v6365 = vshll.u32 %v6286, 16
        %v6367 = vrot.slane %v6365, 5
        %v6368 = vsel %vm1865, %v6363, %v6367
        %v6369 = vshrl.u32 %v6286, 16
        %v6371 = vrot.slane %v6369, 4
        %v6372 = vor.u32 %v6371, %v6367
        %v6373 = vrot.slane %v6372, 4
        %v6375 = vshll.u32 %v6316, 16
        %v6377 = vrot.slane %v6375, 5
        %v6378 = vsel %vm1865, %v6373, %v6377
        %v6380 = vshrl.u32 %v6287, 16
        %v6382 = vrot.slane %v6380, 4
        %v6383 = vshll.u32 %v6287, 16
        %v6385 = vrot.slane %v6383, 5
        %v6386 = vor.u32 %v6382, %v6385
        %v6387 = vrot.slane %v6386, 4
        %v6389 = vshll.u32 %v6288, 16
        %v6391 = vrot.slane %v6389, 5
        %v6392 = vsel %vm1865, %v6387, %v6391
        %v6393 = vshrl.u32 %v6288, 16
        %v6395 = vrot.slane %v6393, 4
        %v6396 = vor.u32 %v6395, %v6391
        %v6397 = vrot.slane %v6396, 4
        %v6399 = vshll.u32 %v6317, 16
        %v6401 = vrot.slane %v6399, 5
        %v6402 = vsel %vm1865, %v6397, %v6401
        %v6404 = vshrl.u32 %v6289, 16
        %v6406 = vrot.slane %v6404, 4
        %v6407 = vshll.u32 %v6289, 16
        %v6409 = vrot.slane %v6407, 5
        %v6410 = vor.u32 %v6406, %v6409
        %v6411 = vrot.slane %v6410, 4
        %v6413 = vshll.u32 %v6290, 16
        %v6415 = vrot.slane %v6413, 5
        %v6416 = vsel %vm1865, %v6411, %v6415
        %v6417 = vshrl.u32 %v6290, 16
        %v6419 = vrot.slane %v6417, 4
        %v6420 = vor.u32 %v6419, %v6415
        %v6421 = vrot.slane %v6420, 4
        %v6423 = vshll.u32 %v6318, 16
        %v6425 = vrot.slane %v6423, 5
        %v6426 = vsel %vm1865, %v6421, %v6425
        %v6428 = vshrl.u32 %v6291, 16
        %v6430 = vrot.slane %v6428, 4
        %v6431 = vshll.u32 %v6291, 16
        %v6433 = vrot.slane %v6431, 5
        %v6434 = vor.u32 %v6430, %v6433
        %v6435 = vrot.slane %v6434, 4
        %v6437 = vshll.u32 %v6292, 16
        %v6439 = vrot.slane %v6437, 5
        %v6440 = vsel %vm1865, %v6435, %v6439
        %v6441 = vshrl.u32 %v6292, 16
        %v6443 = vrot.slane %v6441, 4
        %v6444 = vor.u32 %v6443, %v6439
        %v6445 = vrot.slane %v6444, 4
        %v6447 = vshll.u32 %v6319, 16
        %v6449 = vrot.slane %v6447, 5
        %v6450 = vsel %vm1865, %v6445, %v6449
        %v6452 = vshrl.u32 %v6293, 16
        %v6454 = vrot.slane %v6452, 4
        %v6455 = vshll.u32 %v6293, 16
        %v6457 = vrot.slane %v6455, 5
        %v6458 = vor.u32 %v6454, %v6457
        %v6459 = vrot.slane %v6458, 4
        %v6461 = vshll.u32 %v6294, 16
        %v6463 = vrot.slane %v6461, 5
        %v6464 = vsel %vm1865, %v6459, %v6463
        %v6465 = vshrl.u32 %v6294, 16
        %v6467 = vrot.slane %v6465, 4
        %v6468 = vor.u32 %v6467, %v6463
        %v6469 = vrot.slane %v6468, 4
        %v6471 = vshll.u32 %v6320, 16
        %v6473 = vrot.slane %v6471, 5
        %v6474 = vsel %vm1865, %v6469, %v6473
        %v6476 = vshrl.u32 %v6295, 16
        %v6478 = vrot.slane %v6476, 4
        %v6479 = vshll.u32 %v6295, 16
        %v6481 = vrot.slane %v6479, 5
        %v6482 = vor.u32 %v6478, %v6481
        %v6483 = vrot.slane %v6482, 4
        %v6485 = vshll.u32 %v6296, 16
        %v6487 = vrot.slane %v6485, 5
        %v6488 = vsel %vm1865, %v6483, %v6487
        %v6489 = vshrl.u32 %v6296, 16
        %v6491 = vrot.slane %v6489, 4
        %v6492 = vor.u32 %v6491, %v6487
        %v6493 = vrot.slane %v6492, 4
        %v6495 = vshll.u32 %v6321, 16
        %v6497 = vrot.slane %v6495, 5
        %v6498 = vsel %vm1865, %v6493, %v6497
        %v6500 = vshrl.u32 %v6297, 16
        %v6502 = vrot.slane %v6500, 4
        %v6503 = vshll.u32 %v6297, 16
        %v6505 = vrot.slane %v6503, 5
        %v6506 = vor.u32 %v6502, %v6505
        %v6507 = vrot.slane %v6506, 4
        %v6509 = vshll.u32 %v6298, 16
        %v6511 = vrot.slane %v6509, 5
        %v6512 = vsel %vm1865, %v6507, %v6511
        %v6513 = vshrl.u32 %v6298, 16
        %v6515 = vrot.slane %v6513, 4
        %v6516 = vor.u32 %v6515, %v6511
        %v6517 = vrot.slane %v6516, 4
        %v6519 = vshll.u32 %v6322, 16
        %v6521 = vrot.slane %v6519, 5
        %v6522 = vsel %vm1865, %v6517, %v6521
        %v6524 = vshrl.u32 %v6299, 16
        %v6526 = vrot.slane %v6524, 4
        %v6527 = vshll.u32 %v6299, 16
        %v6529 = vrot.slane %v6527, 5
        %v6530 = vor.u32 %v6526, %v6529
        %v6531 = vrot.slane %v6530, 4
        %v6533 = vshll.u32 %v6300, 16
        %v6535 = vrot.slane %v6533, 5
        %v6536 = vsel %vm1865, %v6531, %v6535
        %v6537 = vshrl.u32 %v6300, 16
        %v6539 = vrot.slane %v6537, 4
        %v6540 = vor.u32 %v6539, %v6535
        %v6541 = vrot.slane %v6540, 4
        %v6543 = vshll.u32 %v6323, 16
        %v6545 = vrot.slane %v6543, 5
        %v6546 = vsel %vm1865, %v6541, %v6545
        %v6548 = vshrl.u32 %v6301, 16
        %v6550 = vrot.slane %v6548, 4
        %v6551 = vshll.u32 %v6301, 16
        %v6553 = vrot.slane %v6551, 5
        %v6554 = vor.u32 %v6550, %v6553
        %v6555 = vrot.slane %v6554, 4
        %v6557 = vshll.u32 %v6302, 16
        %v6559 = vrot.slane %v6557, 5
        %v6560 = vsel %vm1865, %v6555, %v6559
        %v6561 = vshrl.u32 %v6302, 16
        %v6563 = vrot.slane %v6561, 4
        %v6564 = vor.u32 %v6563, %v6559
        %v6565 = vrot.slane %v6564, 4
        %v6567 = vshll.u32 %v6324, 16
        %v6569 = vrot.slane %v6567, 5
        %v6570 = vsel %vm1865, %v6565, %v6569
        %v6572 = vshrl.u32 %v6303, 16
        %v6574 = vrot.slane %v6572, 4
        %v6575 = vshll.u32 %v6303, 16
        %v6577 = vrot.slane %v6575, 5
        %v6578 = vor.u32 %v6574, %v6577
        %v6579 = vrot.slane %v6578, 4
        %v6581 = vshll.u32 %v6304, 16
        %v6583 = vrot.slane %v6581, 5
        %v6584 = vsel %vm1865, %v6579, %v6583
        %v6585 = vshrl.u32 %v6304, 16
        %v6587 = vrot.slane %v6585, 4
        %v6588 = vor.u32 %v6587, %v6583
        %v6589 = vrot.slane %v6588, 4
        %v6591 = vshll.u32 %v6325, 16
        %v6593 = vrot.slane %v6591, 5
        %v6594 = vsel %vm1865, %v6589, %v6593
        %v6596 = vshrl.u32 %v6305, 16
        %v6598 = vrot.slane %v6596, 4
        %v6599 = vshll.u32 %v6305, 16
        %v6601 = vrot.slane %v6599, 5
        %v6602 = vor.u32 %v6598, %v6601
        %v6603 = vrot.slane %v6602, 4
        %v6605 = vshll.u32 %v6306, 16
        %v6607 = vrot.slane %v6605, 5
        %v6608 = vsel %vm1865, %v6603, %v6607
        %v6609 = vshrl.u32 %v6306, 16
        %v6611 = vrot.slane %v6609, 4
        %v6612 = vor.u32 %v6611, %v6607
        %v6613 = vrot.slane %v6612, 4
        %v6615 = vshll.u32 %v6326, 16
        %v6617 = vrot.slane %v6615, 5
        %v6618 = vsel %vm1865, %v6613, %v6617
        %v6620 = vshrl.u32 %v6307, 16
        %v6622 = vrot.slane %v6620, 4
        %v6623 = vshll.u32 %v6307, 16
        %v6625 = vrot.slane %v6623, 5
        %v6626 = vor.u32 %v6622, %v6625
        %v6627 = vrot.slane %v6626, 4
        %v6629 = vshll.u32 %v6308, 16
        %v6631 = vrot.slane %v6629, 5
        %v6632 = vsel %vm1865, %v6627, %v6631
        %v6633 = vshrl.u32 %v6308, 16
        %v6635 = vrot.slane %v6633, 4
        %v6636 = vor.u32 %v6635, %v6631
        %v6637 = vrot.slane %v6636, 4
        %v6639 = vshll.u32 %v6327, 16
        %v6641 = vrot.slane %v6639, 5
        %v6642 = vsel %vm1865, %v6637, %v6641
        %v6644 = vshrl.u32 %v6309, 16
        %v6646 = vrot.slane %v6644, 4
        %v6647 = vshll.u32 %v6309, 16
        %v6649 = vrot.slane %v6647, 5
        %v6650 = vor.u32 %v6646, %v6649
        %v6651 = vrot.slane %v6650, 4
        %v6653 = vshll.u32 %v6310, 16
        %v6655 = vrot.slane %v6653, 5
        %v6656 = vsel %vm1865, %v6651, %v6655
        %v6657 = vshrl.u32 %v6310, 16
        %v6659 = vrot.slane %v6657, 4
        %v6660 = vor.u32 %v6659, %v6655
        %v6661 = vrot.slane %v6660, 4
        %v6663 = vshll.u32 %v6328, 16
        %v6665 = vrot.slane %v6663, 5
        %v6666 = vsel %vm1865, %v6661, %v6665
        %v6668 = vshrl.u32 %v6311, 16
        %v6670 = vrot.slane %v6668, 4
        %v6671 = vshll.u32 %v6311, 16
        %v6673 = vrot.slane %v6671, 5
        %v6674 = vor.u32 %v6670, %v6673
        %v6675 = vrot.slane %v6674, 4
        %v6677 = vshll.u32 %v6312, 16
        %v6679 = vrot.slane %v6677, 5
        %v6680 = vsel %vm1865, %v6675, %v6679
        %v6681 = vshrl.u32 %v6312, 16
        %v6683 = vrot.slane %v6681, 4
        %v6684 = vor.u32 %v6683, %v6679
        %v6685 = vrot.slane %v6684, 4
        %v6687 = vshll.u32 %v6329, 16
        %v6689 = vrot.slane %v6687, 5
        %v6690 = vsel %vm1865, %v6685, %v6689
        %v6692 = vshrl.u32 %v6313, 16
        %v6694 = vrot.slane %v6692, 4
        %v6695 = vshll.u32 %v6313, 16
        %v6697 = vrot.slane %v6695, 5
        %v6698 = vor.u32 %v6694, %v6697
        %v6699 = vrot.slane %v6698, 4
        %v6701 = vshll.u32 %v6314, 16
        %v6703 = vrot.slane %v6701, 5
        %v6704 = vsel %vm1865, %v6699, %v6703
        %v6705 = vshrl.u32 %v6314, 16
        %v6707 = vrot.slane %v6705, 4
        %v6708 = vor.u32 %v6707, %v6703
        %v6709 = vrot.slane %v6708, 4
        %v6711 = vshll.u32 %v6330, 16
        %v6713 = vrot.slane %v6711, 5
        %v6714 = vsel %vm1865, %v6709, %v6713
        %v6715 = vld [vmem:[#allocation3] sm:$0xe]
        %v6716 = vld [vmem:[#allocation3 + $0xc] sm:$0xe]
        %v6717 = vld [vmem:[#allocation3 + $0x18] sm:$0xe]
        %v6718 = vld [vmem:[#allocation3 + $0x24] sm:$0xe]
        %v6719 = vld [vmem:[#allocation3 + $0x30] sm:$0xe]
        %v6720 = vld [vmem:[#allocation3 + $0x3c] sm:$0xe]
        %v6721 = vld [vmem:[#allocation3 + $0x48] sm:$0xe]
        %v6722 = vld [vmem:[#allocation3 + $0x54] sm:$0xe]
        %v6723 = vld [vmem:[#allocation3 + $0x60] sm:$0xe]
        %v6724 = vld [vmem:[#allocation3 + $0x6c] sm:$0xe]
        %v6725 = vld [vmem:[#allocation3 + $0x78] sm:$0xe]
        %v6726 = vld [vmem:[#allocation3 + $0x84] sm:$0xe]
        %v6727 = vld [vmem:[#allocation3 + $0x90] sm:$0xe]
        %v6728 = vld [vmem:[#allocation3 + $0x9c] sm:$0xe]
        %v6729 = vld [vmem:[#allocation3 + $0xa8] sm:$0xe]
        %v6730 = vld [vmem:[#allocation3 + $0xb4] sm:$0xe]
        %v6779 = vrot.slane %v6715, 5
        %v6780 = vrot.slane %v6779, 4
        %v6781 = vrot.slane %v6284, 5
        %v6782 = vsel %vm2316, %v6780, %v6781
        %v6783 = vrot.slane %v6781, 4
        %v6784 = vrot.slane %v6315, 5
        %v6785 = vsel %vm2316, %v6783, %v6784
        %v6786 = vrot.slane %v6716, 5
        %v6787 = vrot.slane %v6786, 4
        %v6788 = vrot.slane %v6286, 5
        %v6789 = vsel %vm2316, %v6787, %v6788
        %v6790 = vrot.slane %v6788, 4
        %v6791 = vrot.slane %v6316, 5
        %v6792 = vsel %vm2316, %v6790, %v6791
        %v6793 = vrot.slane %v6717, 5
        %v6794 = vrot.slane %v6793, 4
        %v6795 = vrot.slane %v6288, 5
        %v6796 = vsel %vm2316, %v6794, %v6795
        %v6797 = vrot.slane %v6795, 4
        %v6798 = vrot.slane %v6317, 5
        %v6799 = vsel %vm2316, %v6797, %v6798
        %v6800 = vrot.slane %v6718, 5
        %v6801 = vrot.slane %v6800, 4
        %v6802 = vrot.slane %v6290, 5
        %v6803 = vsel %vm2316, %v6801, %v6802
        %v6804 = vrot.slane %v6802, 4
        %v6805 = vrot.slane %v6318, 5
        %v6806 = vsel %vm2316, %v6804, %v6805
        %v6807 = vrot.slane %v6719, 5
        %v6808 = vrot.slane %v6807, 4
        %v6809 = vrot.slane %v6292, 5
        %v6810 = vsel %vm2316, %v6808, %v6809
        %v6811 = vrot.slane %v6809, 4
        %v6812 = vrot.slane %v6319, 5
        %v6813 = vsel %vm2316, %v6811, %v6812
        %v6814 = vrot.slane %v6720, 5
        %v6815 = vrot.slane %v6814, 4
        %v6816 = vrot.slane %v6294, 5
        %v6817 = vsel %vm2316, %v6815, %v6816
        %v6818 = vrot.slane %v6816, 4
        %v6819 = vrot.slane %v6320, 5
        %v6820 = vsel %vm2316, %v6818, %v6819
        %v6821 = vrot.slane %v6721, 5
        %v6822 = vrot.slane %v6821, 4
        %v6823 = vrot.slane %v6296, 5
        %v6824 = vsel %vm2316, %v6822, %v6823
        %v6825 = vrot.slane %v6823, 4
        %v6826 = vrot.slane %v6321, 5
        %v6827 = vsel %vm2316, %v6825, %v6826
        %v6828 = vrot.slane %v6722, 5
        %v6829 = vrot.slane %v6828, 4
        %v6830 = vrot.slane %v6298, 5
        %v6831 = vsel %vm2316, %v6829, %v6830
        %v6832 = vrot.slane %v6830, 4
        %v6833 = vrot.slane %v6322, 5
        %v6834 = vsel %vm2316, %v6832, %v6833
        %v6835 = vrot.slane %v6723, 5
        %v6836 = vrot.slane %v6835, 4
        %v6837 = vrot.slane %v6300, 5
        %v6838 = vsel %vm2316, %v6836, %v6837
        %v6839 = vrot.slane %v6837, 4
        %v6840 = vrot.slane %v6323, 5
        %v6841 = vsel %vm2316, %v6839, %v6840
        %v6842 = vrot.slane %v6724, 5
        %v6843 = vrot.slane %v6842, 4
        %v6844 = vrot.slane %v6302, 5
        %v6845 = vsel %vm2316, %v6843, %v6844
        %v6846 = vrot.slane %v6844, 4
        %v6847 = vrot.slane %v6324, 5
        %v6848 = vsel %vm2316, %v6846, %v6847
        %v6849 = vrot.slane %v6725, 5
        %v6850 = vrot.slane %v6849, 4
        %v6851 = vrot.slane %v6304, 5
        %v6852 = vsel %vm2316, %v6850, %v6851
        %v6853 = vrot.slane %v6851, 4
        %v6854 = vrot.slane %v6325, 5
        %v6855 = vsel %vm2316, %v6853, %v6854
        %v6856 = vrot.slane %v6726, 5
        %v6857 = vrot.slane %v6856, 4
        %v6858 = vrot.slane %v6306, 5
        %v6859 = vsel %vm2316, %v6857, %v6858
        %v6860 = vrot.slane %v6858, 4
        %v6861 = vrot.slane %v6326, 5
        %v6862 = vsel %vm2316, %v6860, %v6861
        %v6863 = vrot.slane %v6727, 5
        %v6864 = vrot.slane %v6863, 4
        %v6865 = vrot.slane %v6308, 5
        %v6866 = vsel %vm2316, %v6864, %v6865
        %v6867 = vrot.slane %v6865, 4
        %v6868 = vrot.slane %v6327, 5
        %v6869 = vsel %vm2316, %v6867, %v6868
        %v6870 = vrot.slane %v6728, 5
        %v6871 = vrot.slane %v6870, 4
        %v6872 = vrot.slane %v6310, 5
        %v6873 = vsel %vm2316, %v6871, %v6872
        %v6874 = vrot.slane %v6872, 4
        %v6875 = vrot.slane %v6328, 5
        %v6876 = vsel %vm2316, %v6874, %v6875
        %v6877 = vrot.slane %v6729, 5
        %v6878 = vrot.slane %v6877, 4
        %v6879 = vrot.slane %v6312, 5
        %v6880 = vsel %vm2316, %v6878, %v6879
        %v6881 = vrot.slane %v6879, 4
        %v6882 = vrot.slane %v6329, 5
        %v6883 = vsel %vm2316, %v6881, %v6882
        %v6884 = vrot.slane %v6730, 5
        %v6885 = vrot.slane %v6884, 4
        %v6886 = vrot.slane %v6314, 5
        %v6887 = vsel %vm2316, %v6885, %v6886
        %v6888 = vrot.slane %v6886, 4
        %v6889 = vrot.slane %v6330, 5
        %v6890 = vsel %vm2316, %v6888, %v6889
        %v6891 = vld [vmem:[%s6025] sm:$0xf]
        %v6892 = vld [vmem:[%s6025 + $0x4] sm:$0xf]
        %v6893 = vld [vmem:[%s6025 + $0xc] sm:$0xf]
        %v6894 = vld [vmem:[%s6025 + $0x10] sm:$0xf]
        %v6895 = vld [vmem:[%s6025 + $0x18] sm:$0xf]
        %v6896 = vld [vmem:[%s6025 + $0x1c] sm:$0xf]
        %v6897 = vld [vmem:[%s6025 + $0x24] sm:$0xf]
        %v6898 = vld [vmem:[%s6025 + $0x28] sm:$0xf]
        %v6899 = vld [vmem:[%s6025 + $0x30] sm:$0xf]
        %v6900 = vld [vmem:[%s6025 + $0x34] sm:$0xf]
        %v6901 = vld [vmem:[%s6025 + $0x3c] sm:$0xf]
        %v6902 = vld [vmem:[%s6025 + $0x40] sm:$0xf]
        %v6903 = vld [vmem:[%s6025 + $0x48] sm:$0xf]
        %v6904 = vld [vmem:[%s6025 + $0x4c] sm:$0xf]
        %v6905 = vld [vmem:[%s6025 + $0x54] sm:$0xf]
        %v6906 = vld [vmem:[%s6025 + $0x58] sm:$0xf]
        %v6907 = vld [vmem:[%s6025 + $0x60] sm:$0xf]
        %v6908 = vld [vmem:[%s6025 + $0x64] sm:$0xf]
        %v6909 = vld [vmem:[%s6025 + $0x6c] sm:$0xf]
        %v6910 = vld [vmem:[%s6025 + $0x70] sm:$0xf]
        %v6911 = vld [vmem:[%s6025 + $0x78] sm:$0xf]
        %v6912 = vld [vmem:[%s6025 + $0x7c] sm:$0xf]
        %v6913 = vld [vmem:[%s6025 + $0x84] sm:$0xf]
        %v6914 = vld [vmem:[%s6025 + $0x88] sm:$0xf]
        %v6915 = vld [vmem:[%s6025 + $0x90] sm:$0xf]
        %v6916 = vld [vmem:[%s6025 + $0x94] sm:$0xf]
        %v6917 = vld [vmem:[%s6025 + $0x9c] sm:$0xf]
        %v6918 = vld [vmem:[%s6025 + $0xa0] sm:$0xf]
        %v6919 = vld [vmem:[%s6025 + $0xa8] sm:$0xf]
        %v6920 = vld [vmem:[%s6025 + $0xac] sm:$0xf]
        %v6921 = vld [vmem:[%s6025 + $0xb4] sm:$0xf]
        %v6922 = vld [vmem:[%s6025 + $0xb8] sm:$0xf]
        %v6923 = vld [vmem:[%s6025 + $0x8] sm:$0x1]
        %v6924 = vld [vmem:[%s6025 + $0x14] sm:$0x1]
        %v6925 = vld [vmem:[%s6025 + $0x20] sm:$0x1]
        %v6926 = vld [vmem:[%s6025 + $0x2c] sm:$0x1]
        %v6927 = vld [vmem:[%s6025 + $0x38] sm:$0x1]
        %v6928 = vld [vmem:[%s6025 + $0x44] sm:$0x1]
        %v6929 = vld [vmem:[%s6025 + $0x50] sm:$0x1]
        %v6930 = vld [vmem:[%s6025 + $0x5c] sm:$0x1]
        %v6931 = vld [vmem:[%s6025 + $0x68] sm:$0x1]
        %v6932 = vld [vmem:[%s6025 + $0x74] sm:$0x1]
        %v6933 = vld [vmem:[%s6025 + $0x80] sm:$0x1]
        %v6934 = vld [vmem:[%s6025 + $0x8c] sm:$0x1]
        %v6935 = vld [vmem:[%s6025 + $0x98] sm:$0x1]
        %v6936 = vld [vmem:[%s6025 + $0xa4] sm:$0x1]
        %v6937 = vld [vmem:[%s6025 + $0xb0] sm:$0x1]
        %v6938 = vld [vmem:[%s6025 + $0xbc] sm:$0x1]
        %v6940 = vshrl.u32 %v6891, 16
        %v6942 = vrot.slane %v6940, 4
        %v6943 = vshll.u32 %v6891, 16
        %v6945 = vrot.slane %v6943, 5
        %v6946 = vor.u32 %v6942, %v6945
        %v6947 = vrot.slane %v6946, 4
        %v6949 = vshll.u32 %v6892, 16
        %v6951 = vrot.slane %v6949, 5
        %v6952 = vsel %vm1865, %v6947, %v6951
        %v6953 = vshrl.u32 %v6892, 16
        %v6955 = vrot.slane %v6953, 4
        %v6956 = vor.u32 %v6955, %v6951
        %v6957 = vrot.slane %v6956, 4
        %v6959 = vshll.u32 %v6923, 16
        %v6961 = vrot.slane %v6959, 5
        %v6962 = vsel %vm1865, %v6957, %v6961
        %v6964 = vshrl.u32 %v6893, 16
        %v6966 = vrot.slane %v6964, 4
        %v6967 = vshll.u32 %v6893, 16
        %v6969 = vrot.slane %v6967, 5
        %v6970 = vor.u32 %v6966, %v6969
        %v6971 = vrot.slane %v6970, 4
        %v6973 = vshll.u32 %v6894, 16
        %v6975 = vrot.slane %v6973, 5
        %v6976 = vsel %vm1865, %v6971, %v6975
        %v6977 = vshrl.u32 %v6894, 16
        %v6979 = vrot.slane %v6977, 4
        %v6980 = vor.u32 %v6979, %v6975
        %v6981 = vrot.slane %v6980, 4
        %v6983 = vshll.u32 %v6924, 16
        %v6985 = vrot.slane %v6983, 5
        %v6986 = vsel %vm1865, %v6981, %v6985
        %v6988 = vshrl.u32 %v6895, 16
        %v6990 = vrot.slane %v6988, 4
        %v6991 = vshll.u32 %v6895, 16
        %v6993 = vrot.slane %v6991, 5
        %v6994 = vor.u32 %v6990, %v6993
        %v6995 = vrot.slane %v6994, 4
        %v6997 = vshll.u32 %v6896, 16
        %v6999 = vrot.slane %v6997, 5
        %v7000 = vsel %vm1865, %v6995, %v6999
        %v7001 = vshrl.u32 %v6896, 16
        %v7003 = vrot.slane %v7001, 4
        %v7004 = vor.u32 %v7003, %v6999
        %v7005 = vrot.slane %v7004, 4
        %v7007 = vshll.u32 %v6925, 16
        %v7009 = vrot.slane %v7007, 5
        %v7010 = vsel %vm1865, %v7005, %v7009
        %v7012 = vshrl.u32 %v6897, 16
        %v7014 = vrot.slane %v7012, 4
        %v7015 = vshll.u32 %v6897, 16
        %v7017 = vrot.slane %v7015, 5
        %v7018 = vor.u32 %v7014, %v7017
        %v7019 = vrot.slane %v7018, 4
        %v7021 = vshll.u32 %v6898, 16
        %v7023 = vrot.slane %v7021, 5
        %v7024 = vsel %vm1865, %v7019, %v7023
        %v7025 = vshrl.u32 %v6898, 16
        %v7027 = vrot.slane %v7025, 4
        %v7028 = vor.u32 %v7027, %v7023
        %v7029 = vrot.slane %v7028, 4
        %v7031 = vshll.u32 %v6926, 16
        %v7033 = vrot.slane %v7031, 5
        %v7034 = vsel %vm1865, %v7029, %v7033
        %v7036 = vshrl.u32 %v6899, 16
        %v7038 = vrot.slane %v7036, 4
        %v7039 = vshll.u32 %v6899, 16
        %v7041 = vrot.slane %v7039, 5
        %v7042 = vor.u32 %v7038, %v7041
        %v7043 = vrot.slane %v7042, 4
        %v7045 = vshll.u32 %v6900, 16
        %v7047 = vrot.slane %v7045, 5
        %v7048 = vsel %vm1865, %v7043, %v7047
        %v7049 = vshrl.u32 %v6900, 16
        %v7051 = vrot.slane %v7049, 4
        %v7052 = vor.u32 %v7051, %v7047
        %v7053 = vrot.slane %v7052, 4
        %v7055 = vshll.u32 %v6927, 16
        %v7057 = vrot.slane %v7055, 5
        %v7058 = vsel %vm1865, %v7053, %v7057
        %v7060 = vshrl.u32 %v6901, 16
        %v7062 = vrot.slane %v7060, 4
        %v7063 = vshll.u32 %v6901, 16
        %v7065 = vrot.slane %v7063, 5
        %v7066 = vor.u32 %v7062, %v7065
        %v7067 = vrot.slane %v7066, 4
        %v7069 = vshll.u32 %v6902, 16
        %v7071 = vrot.slane %v7069, 5
        %v7072 = vsel %vm1865, %v7067, %v7071
        %v7073 = vshrl.u32 %v6902, 16
        %v7075 = vrot.slane %v7073, 4
        %v7076 = vor.u32 %v7075, %v7071
        %v7077 = vrot.slane %v7076, 4
        %v7079 = vshll.u32 %v6928, 16
        %v7081 = vrot.slane %v7079, 5
        %v7082 = vsel %vm1865, %v7077, %v7081
        %v7084 = vshrl.u32 %v6903, 16
        %v7086 = vrot.slane %v7084, 4
        %v7087 = vshll.u32 %v6903, 16
        %v7089 = vrot.slane %v7087, 5
        %v7090 = vor.u32 %v7086, %v7089
        %v7091 = vrot.slane %v7090, 4
        %v7093 = vshll.u32 %v6904, 16
        %v7095 = vrot.slane %v7093, 5
        %v7096 = vsel %vm1865, %v7091, %v7095
        %v7097 = vshrl.u32 %v6904, 16
        %v7099 = vrot.slane %v7097, 4
        %v7100 = vor.u32 %v7099, %v7095
        %v7101 = vrot.slane %v7100, 4
        %v7103 = vshll.u32 %v6929, 16
        %v7105 = vrot.slane %v7103, 5
        %v7106 = vsel %vm1865, %v7101, %v7105
        %v7108 = vshrl.u32 %v6905, 16
        %v7110 = vrot.slane %v7108, 4
        %v7111 = vshll.u32 %v6905, 16
        %v7113 = vrot.slane %v7111, 5
        %v7114 = vor.u32 %v7110, %v7113
        %v7115 = vrot.slane %v7114, 4
        %v7117 = vshll.u32 %v6906, 16
        %v7119 = vrot.slane %v7117, 5
        %v7120 = vsel %vm1865, %v7115, %v7119
        %v7121 = vshrl.u32 %v6906, 16
        %v7123 = vrot.slane %v7121, 4
        %v7124 = vor.u32 %v7123, %v7119
        %v7125 = vrot.slane %v7124, 4
        %v7127 = vshll.u32 %v6930, 16
        %v7129 = vrot.slane %v7127, 5
        %v7130 = vsel %vm1865, %v7125, %v7129
        %v7132 = vshrl.u32 %v6907, 16
        %v7134 = vrot.slane %v7132, 4
        %v7135 = vshll.u32 %v6907, 16
        %v7137 = vrot.slane %v7135, 5
        %v7138 = vor.u32 %v7134, %v7137
        %v7139 = vrot.slane %v7138, 4
        %v7141 = vshll.u32 %v6908, 16
        %v7143 = vrot.slane %v7141, 5
        %v7144 = vsel %vm1865, %v7139, %v7143
        %v7145 = vshrl.u32 %v6908, 16
        %v7147 = vrot.slane %v7145, 4
        %v7148 = vor.u32 %v7147, %v7143
        %v7149 = vrot.slane %v7148, 4
        %v7151 = vshll.u32 %v6931, 16
        %v7153 = vrot.slane %v7151, 5
        %v7154 = vsel %vm1865, %v7149, %v7153
        %v7156 = vshrl.u32 %v6909, 16
        %v7158 = vrot.slane %v7156, 4
        %v7159 = vshll.u32 %v6909, 16
        %v7161 = vrot.slane %v7159, 5
        %v7162 = vor.u32 %v7158, %v7161
        %v7163 = vrot.slane %v7162, 4
        %v7165 = vshll.u32 %v6910, 16
        %v7167 = vrot.slane %v7165, 5
        %v7168 = vsel %vm1865, %v7163, %v7167
        %v7169 = vshrl.u32 %v6910, 16
        %v7171 = vrot.slane %v7169, 4
        %v7172 = vor.u32 %v7171, %v7167
        %v7173 = vrot.slane %v7172, 4
        %v7175 = vshll.u32 %v6932, 16
        %v7177 = vrot.slane %v7175, 5
        %v7178 = vsel %vm1865, %v7173, %v7177
        %v7180 = vshrl.u32 %v6911, 16
        %v7182 = vrot.slane %v7180, 4
        %v7183 = vshll.u32 %v6911, 16
        %v7185 = vrot.slane %v7183, 5
        %v7186 = vor.u32 %v7182, %v7185
        %v7187 = vrot.slane %v7186, 4
        %v7189 = vshll.u32 %v6912, 16
        %v7191 = vrot.slane %v7189, 5
        %v7192 = vsel %vm1865, %v7187, %v7191
        %v7193 = vshrl.u32 %v6912, 16
        %v7195 = vrot.slane %v7193, 4
        %v7196 = vor.u32 %v7195, %v7191
        %v7197 = vrot.slane %v7196, 4
        %v7199 = vshll.u32 %v6933, 16
        %v7201 = vrot.slane %v7199, 5
        %v7202 = vsel %vm1865, %v7197, %v7201
        %v7204 = vshrl.u32 %v6913, 16
        %v7206 = vrot.slane %v7204, 4
        %v7207 = vshll.u32 %v6913, 16
        %v7209 = vrot.slane %v7207, 5
        %v7210 = vor.u32 %v7206, %v7209
        %v7211 = vrot.slane %v7210, 4
        %v7213 = vshll.u32 %v6914, 16
        %v7215 = vrot.slane %v7213, 5
        %v7216 = vsel %vm1865, %v7211, %v7215
        %v7217 = vshrl.u32 %v6914, 16
        %v7219 = vrot.slane %v7217, 4
        %v7220 = vor.u32 %v7219, %v7215
        %v7221 = vrot.slane %v7220, 4
        %v7223 = vshll.u32 %v6934, 16
        %v7225 = vrot.slane %v7223, 5
        %v7226 = vsel %vm1865, %v7221, %v7225
        %v7228 = vshrl.u32 %v6915, 16
        %v7230 = vrot.slane %v7228, 4
        %v7231 = vshll.u32 %v6915, 16
        %v7233 = vrot.slane %v7231, 5
        %v7234 = vor.u32 %v7230, %v7233
        %v7235 = vrot.slane %v7234, 4
        %v7237 = vshll.u32 %v6916, 16
        %v7239 = vrot.slane %v7237, 5
        %v7240 = vsel %vm1865, %v7235, %v7239
        %v7241 = vshrl.u32 %v6916, 16
        %v7243 = vrot.slane %v7241, 4
        %v7244 = vor.u32 %v7243, %v7239
        %v7245 = vrot.slane %v7244, 4
        %v7247 = vshll.u32 %v6935, 16
        %v7249 = vrot.slane %v7247, 5
        %v7250 = vsel %vm1865, %v7245, %v7249
        %v7252 = vshrl.u32 %v6917, 16
        %v7254 = vrot.slane %v7252, 4
        %v7255 = vshll.u32 %v6917, 16
        %v7257 = vrot.slane %v7255, 5
        %v7258 = vor.u32 %v7254, %v7257
        %v7259 = vrot.slane %v7258, 4
        %v7261 = vshll.u32 %v6918, 16
        %v7263 = vrot.slane %v7261, 5
        %v7264 = vsel %vm1865, %v7259, %v7263
        %v7265 = vshrl.u32 %v6918, 16
        %v7267 = vrot.slane %v7265, 4
        %v7268 = vor.u32 %v7267, %v7263
        %v7269 = vrot.slane %v7268, 4
        %v7271 = vshll.u32 %v6936, 16
        %v7273 = vrot.slane %v7271, 5
        %v7274 = vsel %vm1865, %v7269, %v7273
        %v7276 = vshrl.u32 %v6919, 16
        %v7278 = vrot.slane %v7276, 4
        %v7279 = vshll.u32 %v6919, 16
        %v7281 = vrot.slane %v7279, 5
        %v7282 = vor.u32 %v7278, %v7281
        %v7283 = vrot.slane %v7282, 4
        %v7285 = vshll.u32 %v6920, 16
        %v7287 = vrot.slane %v7285, 5
        %v7288 = vsel %vm1865, %v7283, %v7287
        %v7289 = vshrl.u32 %v6920, 16
        %v7291 = vrot.slane %v7289, 4
        %v7292 = vor.u32 %v7291, %v7287
        %v7293 = vrot.slane %v7292, 4
        %v7295 = vshll.u32 %v6937, 16
        %v7297 = vrot.slane %v7295, 5
        %v7298 = vsel %vm1865, %v7293, %v7297
        %v7300 = vshrl.u32 %v6921, 16
        %v7302 = vrot.slane %v7300, 4
        %v7303 = vshll.u32 %v6921, 16
        %v7305 = vrot.slane %v7303, 5
        %v7306 = vor.u32 %v7302, %v7305
        %v7307 = vrot.slane %v7306, 4
        %v7309 = vshll.u32 %v6922, 16
        %v7311 = vrot.slane %v7309, 5
        %v7312 = vsel %vm1865, %v7307, %v7311
        %v7313 = vshrl.u32 %v6922, 16
        %v7315 = vrot.slane %v7313, 4
        %v7316 = vor.u32 %v7315, %v7311
        %v7317 = vrot.slane %v7316, 4
        %v7319 = vshll.u32 %v6938, 16
        %v7321 = vrot.slane %v7319, 5
        %v7322 = vsel %vm1865, %v7317, %v7321
        %v7323 = vld [vmem:[%s6025] sm:$0xe]
        %v7324 = vld [vmem:[%s6025 + $0xc] sm:$0xe]
        %v7325 = vld [vmem:[%s6025 + $0x18] sm:$0xe]
        %v7326 = vld [vmem:[%s6025 + $0x24] sm:$0xe]
        %v7327 = vld [vmem:[%s6025 + $0x30] sm:$0xe]
        %v7328 = vld [vmem:[%s6025 + $0x3c] sm:$0xe]
        %v7329 = vld [vmem:[%s6025 + $0x48] sm:$0xe]
        %v7330 = vld [vmem:[%s6025 + $0x54] sm:$0xe]
        %v7331 = vld [vmem:[%s6025 + $0x60] sm:$0xe]
        %v7332 = vld [vmem:[%s6025 + $0x6c] sm:$0xe]
        %v7333 = vld [vmem:[%s6025 + $0x78] sm:$0xe]
        %v7334 = vld [vmem:[%s6025 + $0x84] sm:$0xe]
        %v7335 = vld [vmem:[%s6025 + $0x90] sm:$0xe]
        %v7336 = vld [vmem:[%s6025 + $0x9c] sm:$0xe]
        %v7337 = vld [vmem:[%s6025 + $0xa8] sm:$0xe]
        %v7338 = vld [vmem:[%s6025 + $0xb4] sm:$0xe]
        %v7387 = vrot.slane %v7323, 5
        %v7388 = vrot.slane %v7387, 4
        %v7389 = vrot.slane %v6892, 5
        %v7390 = vsel %vm2316, %v7388, %v7389
        %v7391 = vrot.slane %v7389, 4
        %v7392 = vrot.slane %v6923, 5
        %v7393 = vsel %vm2316, %v7391, %v7392
        %v7394 = vrot.slane %v7324, 5
        %v7395 = vrot.slane %v7394, 4
        %v7396 = vrot.slane %v6894, 5
        %v7397 = vsel %vm2316, %v7395, %v7396
        %v7398 = vrot.slane %v7396, 4
        %v7399 = vrot.slane %v6924, 5
        %v7400 = vsel %vm2316, %v7398, %v7399
        %v7401 = vrot.slane %v7325, 5
        %v7402 = vrot.slane %v7401, 4
        %v7403 = vrot.slane %v6896, 5
        %v7404 = vsel %vm2316, %v7402, %v7403
        %v7405 = vrot.slane %v7403, 4
        %v7406 = vrot.slane %v6925, 5
        %v7407 = vsel %vm2316, %v7405, %v7406
        %v7408 = vrot.slane %v7326, 5
        %v7409 = vrot.slane %v7408, 4
        %v7410 = vrot.slane %v6898, 5
        %v7411 = vsel %vm2316, %v7409, %v7410
        %v7412 = vrot.slane %v7410, 4
        %v7413 = vrot.slane %v6926, 5
        %v7414 = vsel %vm2316, %v7412, %v7413
        %v7415 = vrot.slane %v7327, 5
        %v7416 = vrot.slane %v7415, 4
        %v7417 = vrot.slane %v6900, 5
        %v7418 = vsel %vm2316, %v7416, %v7417
        %v7419 = vrot.slane %v7417, 4
        %v7420 = vrot.slane %v6927, 5
        %v7421 = vsel %vm2316, %v7419, %v7420
        %v7422 = vrot.slane %v7328, 5
        %v7423 = vrot.slane %v7422, 4
        %v7424 = vrot.slane %v6902, 5
        %v7425 = vsel %vm2316, %v7423, %v7424
        %v7426 = vrot.slane %v7424, 4
        %v7427 = vrot.slane %v6928, 5
        %v7428 = vsel %vm2316, %v7426, %v7427
        %v7429 = vrot.slane %v7329, 5
        %v7430 = vrot.slane %v7429, 4
        %v7431 = vrot.slane %v6904, 5
        %v7432 = vsel %vm2316, %v7430, %v7431
        %v7433 = vrot.slane %v7431, 4
        %v7434 = vrot.slane %v6929, 5
        %v7435 = vsel %vm2316, %v7433, %v7434
        %v7436 = vrot.slane %v7330, 5
        %v7437 = vrot.slane %v7436, 4
        %v7438 = vrot.slane %v6906, 5
        %v7439 = vsel %vm2316, %v7437, %v7438
        %v7440 = vrot.slane %v7438, 4
        %v7441 = vrot.slane %v6930, 5
        %v7442 = vsel %vm2316, %v7440, %v7441
        %v7443 = vrot.slane %v7331, 5
        %v7444 = vrot.slane %v7443, 4
        %v7445 = vrot.slane %v6908, 5
        %v7446 = vsel %vm2316, %v7444, %v7445
        %v7447 = vrot.slane %v7445, 4
        %v7448 = vrot.slane %v6931, 5
        %v7449 = vsel %vm2316, %v7447, %v7448
        %v7450 = vrot.slane %v7332, 5
        %v7451 = vrot.slane %v7450, 4
        %v7452 = vrot.slane %v6910, 5
        %v7453 = vsel %vm2316, %v7451, %v7452
        %v7454 = vrot.slane %v7452, 4
        %v7455 = vrot.slane %v6932, 5
        %v7456 = vsel %vm2316, %v7454, %v7455
        %v7457 = vrot.slane %v7333, 5
        %v7458 = vrot.slane %v7457, 4
        %v7459 = vrot.slane %v6912, 5
        %v7460 = vsel %vm2316, %v7458, %v7459
        %v7461 = vrot.slane %v7459, 4
        %v7462 = vrot.slane %v6933, 5
        %v7463 = vsel %vm2316, %v7461, %v7462
        %v7464 = vrot.slane %v7334, 5
        %v7465 = vrot.slane %v7464, 4
        %v7466 = vrot.slane %v6914, 5
        %v7467 = vsel %vm2316, %v7465, %v7466
        %v7468 = vrot.slane %v7466, 4
        %v7469 = vrot.slane %v6934, 5
        %v7470 = vsel %vm2316, %v7468, %v7469
        %v7471 = vrot.slane %v7335, 5
        %v7472 = vrot.slane %v7471, 4
        %v7473 = vrot.slane %v6916, 5
        %v7474 = vsel %vm2316, %v7472, %v7473
        %v7475 = vrot.slane %v7473, 4
        %v7476 = vrot.slane %v6935, 5
        %v7477 = vsel %vm2316, %v7475, %v7476
        %v7478 = vrot.slane %v7336, 5
        %v7479 = vrot.slane %v7478, 4
        %v7480 = vrot.slane %v6918, 5
        %v7481 = vsel %vm2316, %v7479, %v7480
        %v7482 = vrot.slane %v7480, 4
        %v7483 = vrot.slane %v6936, 5
        %v7484 = vsel %vm2316, %v7482, %v7483
        %v7485 = vrot.slane %v7337, 5
        %v7486 = vrot.slane %v7485, 4
        %v7487 = vrot.slane %v6920, 5
        %v7488 = vsel %vm2316, %v7486, %v7487
        %v7489 = vrot.slane %v7487, 4
        %v7490 = vrot.slane %v6937, 5
        %v7491 = vsel %vm2316, %v7489, %v7490
        %v7492 = vrot.slane %v7338, 5
        %v7493 = vrot.slane %v7492, 4
        %v7494 = vrot.slane %v6922, 5
        %v7495 = vsel %vm2316, %v7493, %v7494
        %v7496 = vrot.slane %v7494, 4
        %v7497 = vrot.slane %v6938, 5
        %v7498 = vsel %vm2316, %v7496, %v7497
        %s7499 = scalar_lea.vmem [#allocation3], 24
        %v7500 = vld [vmem:[%s7499] sm:$0xf]
        %v7501 = vld [vmem:[%s7499 + $0x4] sm:$0xf]
        %v7502 = vld [vmem:[%s7499 + $0xc] sm:$0xf]
        %v7503 = vld [vmem:[%s7499 + $0x10] sm:$0xf]
        %v7504 = vld [vmem:[%s7499 + $0x18] sm:$0xf]
        %v7505 = vld [vmem:[%s7499 + $0x1c] sm:$0xf]
        %v7506 = vld [vmem:[%s7499 + $0x24] sm:$0xf]
        %v7507 = vld [vmem:[%s7499 + $0x28] sm:$0xf]
        %v7508 = vld [vmem:[%s7499 + $0x30] sm:$0xf]
        %v7509 = vld [vmem:[%s7499 + $0x34] sm:$0xf]
        %v7510 = vld [vmem:[%s7499 + $0x3c] sm:$0xf]
        %v7511 = vld [vmem:[%s7499 + $0x40] sm:$0xf]
        %v7512 = vld [vmem:[%s7499 + $0x48] sm:$0xf]
        %v7513 = vld [vmem:[%s7499 + $0x4c] sm:$0xf]
        %v7514 = vld [vmem:[%s7499 + $0x54] sm:$0xf]
        %v7515 = vld [vmem:[%s7499 + $0x58] sm:$0xf]
        %v7516 = vld [vmem:[%s7499 + $0x60] sm:$0xf]
        %v7517 = vld [vmem:[%s7499 + $0x64] sm:$0xf]
        %v7518 = vld [vmem:[%s7499 + $0x6c] sm:$0xf]
        %v7519 = vld [vmem:[%s7499 + $0x70] sm:$0xf]
        %v7520 = vld [vmem:[%s7499 + $0x78] sm:$0xf]
        %v7521 = vld [vmem:[%s7499 + $0x7c] sm:$0xf]
        %v7522 = vld [vmem:[%s7499 + $0x84] sm:$0xf]
        %v7523 = vld [vmem:[%s7499 + $0x88] sm:$0xf]
        %v7524 = vld [vmem:[%s7499 + $0x90] sm:$0xf]
        %v7525 = vld [vmem:[%s7499 + $0x94] sm:$0xf]
        %v7526 = vld [vmem:[%s7499 + $0x9c] sm:$0xf]
        %v7527 = vld [vmem:[%s7499 + $0xa0] sm:$0xf]
        %v7528 = vld [vmem:[%s7499 + $0xa8] sm:$0xf]
        %v7529 = vld [vmem:[%s7499 + $0xac] sm:$0xf]
        %v7530 = vld [vmem:[%s7499 + $0xb4] sm:$0xf]
        %v7531 = vld [vmem:[%s7499 + $0xb8] sm:$0xf]
        %v7532 = vld [vmem:[%s7499 + $0x8] sm:$0x1]
        %v7533 = vld [vmem:[%s7499 + $0x14] sm:$0x1]
        %v7534 = vld [vmem:[%s7499 + $0x20] sm:$0x1]
        %v7535 = vld [vmem:[%s7499 + $0x2c] sm:$0x1]
        %v7536 = vld [vmem:[%s7499 + $0x38] sm:$0x1]
        %v7537 = vld [vmem:[%s7499 + $0x44] sm:$0x1]
        %v7538 = vld [vmem:[%s7499 + $0x50] sm:$0x1]
        %v7539 = vld [vmem:[%s7499 + $0x5c] sm:$0x1]
        %v7540 = vld [vmem:[%s7499 + $0x68] sm:$0x1]
        %v7541 = vld [vmem:[%s7499 + $0x74] sm:$0x1]
        %v7542 = vld [vmem:[%s7499 + $0x80] sm:$0x1]
        %v7543 = vld [vmem:[%s7499 + $0x8c] sm:$0x1]
        %v7544 = vld [vmem:[%s7499 + $0x98] sm:$0x1]
        %v7545 = vld [vmem:[%s7499 + $0xa4] sm:$0x1]
        %v7546 = vld [vmem:[%s7499 + $0xb0] sm:$0x1]
        %v7547 = vld [vmem:[%s7499 + $0xbc] sm:$0x1]
        %v7549 = vshrl.u32 %v7500, 16
        %v7551 = vrot.slane %v7549, 4
        %v7552 = vshll.u32 %v7500, 16
        %v7554 = vrot.slane %v7552, 5
        %v7555 = vor.u32 %v7551, %v7554
        %v7556 = vrot.slane %v7555, 4
        %v7558 = vshll.u32 %v7501, 16
        %v7560 = vrot.slane %v7558, 5
        %v7561 = vsel %vm1865, %v7556, %v7560
        %v7562 = vshrl.u32 %v7501, 16
        %v7564 = vrot.slane %v7562, 4
        %v7565 = vor.u32 %v7564, %v7560
        %v7566 = vrot.slane %v7565, 4
        %v7568 = vshll.u32 %v7532, 16
        %v7570 = vrot.slane %v7568, 5
        %v7571 = vsel %vm1865, %v7566, %v7570
        %v7573 = vshrl.u32 %v7502, 16
        %v7575 = vrot.slane %v7573, 4
        %v7576 = vshll.u32 %v7502, 16
        %v7578 = vrot.slane %v7576, 5
        %v7579 = vor.u32 %v7575, %v7578
        %v7580 = vrot.slane %v7579, 4
        %v7582 = vshll.u32 %v7503, 16
        %v7584 = vrot.slane %v7582, 5
        %v7585 = vsel %vm1865, %v7580, %v7584
        %v7586 = vshrl.u32 %v7503, 16
        %v7588 = vrot.slane %v7586, 4
        %v7589 = vor.u32 %v7588, %v7584
        %v7590 = vrot.slane %v7589, 4
        %v7592 = vshll.u32 %v7533, 16
        %v7594 = vrot.slane %v7592, 5
        %v7595 = vsel %vm1865, %v7590, %v7594
        %v7597 = vshrl.u32 %v7504, 16
        %v7599 = vrot.slane %v7597, 4
        %v7600 = vshll.u32 %v7504, 16
        %v7602 = vrot.slane %v7600, 5
        %v7603 = vor.u32 %v7599, %v7602
        %v7604 = vrot.slane %v7603, 4
        %v7606 = vshll.u32 %v7505, 16
        %v7608 = vrot.slane %v7606, 5
        %v7609 = vsel %vm1865, %v7604, %v7608
        %v7610 = vshrl.u32 %v7505, 16
        %v7612 = vrot.slane %v7610, 4
        %v7613 = vor.u32 %v7612, %v7608
        %v7614 = vrot.slane %v7613, 4
        %v7616 = vshll.u32 %v7534, 16
        %v7618 = vrot.slane %v7616, 5
        %v7619 = vsel %vm1865, %v7614, %v7618
        %v7621 = vshrl.u32 %v7506, 16
        %v7623 = vrot.slane %v7621, 4
        %v7624 = vshll.u32 %v7506, 16
        %v7626 = vrot.slane %v7624, 5
        %v7627 = vor.u32 %v7623, %v7626
        %v7628 = vrot.slane %v7627, 4
        %v7630 = vshll.u32 %v7507, 16
        %v7632 = vrot.slane %v7630, 5
        %v7633 = vsel %vm1865, %v7628, %v7632
        %v7634 = vshrl.u32 %v7507, 16
        %v7636 = vrot.slane %v7634, 4
        %v7637 = vor.u32 %v7636, %v7632
        %v7638 = vrot.slane %v7637, 4
        %v7640 = vshll.u32 %v7535, 16
        %v7642 = vrot.slane %v7640, 5
        %v7643 = vsel %vm1865, %v7638, %v7642
        %v7645 = vshrl.u32 %v7508, 16
        %v7647 = vrot.slane %v7645, 4
        %v7648 = vshll.u32 %v7508, 16
        %v7650 = vrot.slane %v7648, 5
        %v7651 = vor.u32 %v7647, %v7650
        %v7652 = vrot.slane %v7651, 4
        %v7654 = vshll.u32 %v7509, 16
        %v7656 = vrot.slane %v7654, 5
        %v7657 = vsel %vm1865, %v7652, %v7656
        %v7658 = vshrl.u32 %v7509, 16
        %v7660 = vrot.slane %v7658, 4
        %v7661 = vor.u32 %v7660, %v7656
        %v7662 = vrot.slane %v7661, 4
        %v7664 = vshll.u32 %v7536, 16
        %v7666 = vrot.slane %v7664, 5
        %v7667 = vsel %vm1865, %v7662, %v7666
        %v7669 = vshrl.u32 %v7510, 16
        %v7671 = vrot.slane %v7669, 4
        %v7672 = vshll.u32 %v7510, 16
        %v7674 = vrot.slane %v7672, 5
        %v7675 = vor.u32 %v7671, %v7674
        %v7676 = vrot.slane %v7675, 4
        %v7678 = vshll.u32 %v7511, 16
        %v7680 = vrot.slane %v7678, 5
        %v7681 = vsel %vm1865, %v7676, %v7680
        %v7682 = vshrl.u32 %v7511, 16
        %v7684 = vrot.slane %v7682, 4
        %v7685 = vor.u32 %v7684, %v7680
        %v7686 = vrot.slane %v7685, 4
        %v7688 = vshll.u32 %v7537, 16
        %v7690 = vrot.slane %v7688, 5
        %v7691 = vsel %vm1865, %v7686, %v7690
        %v7693 = vshrl.u32 %v7512, 16
        %v7695 = vrot.slane %v7693, 4
        %v7696 = vshll.u32 %v7512, 16
        %v7698 = vrot.slane %v7696, 5
        %v7699 = vor.u32 %v7695, %v7698
        %v7700 = vrot.slane %v7699, 4
        %v7702 = vshll.u32 %v7513, 16
        %v7704 = vrot.slane %v7702, 5
        %v7705 = vsel %vm1865, %v7700, %v7704
        %v7706 = vshrl.u32 %v7513, 16
        %v7708 = vrot.slane %v7706, 4
        %v7709 = vor.u32 %v7708, %v7704
        %v7710 = vrot.slane %v7709, 4
        %v7712 = vshll.u32 %v7538, 16
        %v7714 = vrot.slane %v7712, 5
        %v7715 = vsel %vm1865, %v7710, %v7714
        %v7717 = vshrl.u32 %v7514, 16
        %v7719 = vrot.slane %v7717, 4
        %v7720 = vshll.u32 %v7514, 16
        %v7722 = vrot.slane %v7720, 5
        %v7723 = vor.u32 %v7719, %v7722
        %v7724 = vrot.slane %v7723, 4
        %v7726 = vshll.u32 %v7515, 16
        %v7728 = vrot.slane %v7726, 5
        %v7729 = vsel %vm1865, %v7724, %v7728
        %v7730 = vshrl.u32 %v7515, 16
        %v7732 = vrot.slane %v7730, 4
        %v7733 = vor.u32 %v7732, %v7728
        %v7734 = vrot.slane %v7733, 4
        %v7736 = vshll.u32 %v7539, 16
        %v7738 = vrot.slane %v7736, 5
        %v7739 = vsel %vm1865, %v7734, %v7738
        %v7741 = vshrl.u32 %v7516, 16
        %v7743 = vrot.slane %v7741, 4
        %v7744 = vshll.u32 %v7516, 16
        %v7746 = vrot.slane %v7744, 5
        %v7747 = vor.u32 %v7743, %v7746
        %v7748 = vrot.slane %v7747, 4
        %v7750 = vshll.u32 %v7517, 16
        %v7752 = vrot.slane %v7750, 5
        %v7753 = vsel %vm1865, %v7748, %v7752
        %v7754 = vshrl.u32 %v7517, 16
        %v7756 = vrot.slane %v7754, 4
        %v7757 = vor.u32 %v7756, %v7752
        %v7758 = vrot.slane %v7757, 4
        %v7760 = vshll.u32 %v7540, 16
        %v7762 = vrot.slane %v7760, 5
        %v7763 = vsel %vm1865, %v7758, %v7762
        %v7765 = vshrl.u32 %v7518, 16
        %v7767 = vrot.slane %v7765, 4
        %v7768 = vshll.u32 %v7518, 16
        %v7770 = vrot.slane %v7768, 5
        %v7771 = vor.u32 %v7767, %v7770
        %v7772 = vrot.slane %v7771, 4
        %v7774 = vshll.u32 %v7519, 16
        %v7776 = vrot.slane %v7774, 5
        %v7777 = vsel %vm1865, %v7772, %v7776
        %v7778 = vshrl.u32 %v7519, 16
        %v7780 = vrot.slane %v7778, 4
        %v7781 = vor.u32 %v7780, %v7776
        %v7782 = vrot.slane %v7781, 4
        %v7784 = vshll.u32 %v7541, 16
        %v7786 = vrot.slane %v7784, 5
        %v7787 = vsel %vm1865, %v7782, %v7786
        %v7789 = vshrl.u32 %v7520, 16
        %v7791 = vrot.slane %v7789, 4
        %v7792 = vshll.u32 %v7520, 16
        %v7794 = vrot.slane %v7792, 5
        %v7795 = vor.u32 %v7791, %v7794
        %v7796 = vrot.slane %v7795, 4
        %v7798 = vshll.u32 %v7521, 16
        %v7800 = vrot.slane %v7798, 5
        %v7801 = vsel %vm1865, %v7796, %v7800
        %v7802 = vshrl.u32 %v7521, 16
        %v7804 = vrot.slane %v7802, 4
        %v7805 = vor.u32 %v7804, %v7800
        %v7806 = vrot.slane %v7805, 4
        %v7808 = vshll.u32 %v7542, 16
        %v7810 = vrot.slane %v7808, 5
        %v7811 = vsel %vm1865, %v7806, %v7810
        %v7813 = vshrl.u32 %v7522, 16
        %v7815 = vrot.slane %v7813, 4
        %v7816 = vshll.u32 %v7522, 16
        %v7818 = vrot.slane %v7816, 5
        %v7819 = vor.u32 %v7815, %v7818
        %v7820 = vrot.slane %v7819, 4
        %v7822 = vshll.u32 %v7523, 16
        %v7824 = vrot.slane %v7822, 5
        %v7825 = vsel %vm1865, %v7820, %v7824
        %v7826 = vshrl.u32 %v7523, 16
        %v7828 = vrot.slane %v7826, 4
        %v7829 = vor.u32 %v7828, %v7824
        %v7830 = vrot.slane %v7829, 4
        %v7832 = vshll.u32 %v7543, 16
        %v7834 = vrot.slane %v7832, 5
        %v7835 = vsel %vm1865, %v7830, %v7834
        %v7837 = vshrl.u32 %v7524, 16
        %v7839 = vrot.slane %v7837, 4
        %v7840 = vshll.u32 %v7524, 16
        %v7842 = vrot.slane %v7840, 5
        %v7843 = vor.u32 %v7839, %v7842
        %v7844 = vrot.slane %v7843, 4
        %v7846 = vshll.u32 %v7525, 16
        %v7848 = vrot.slane %v7846, 5
        %v7849 = vsel %vm1865, %v7844, %v7848
        %v7850 = vshrl.u32 %v7525, 16
        %v7852 = vrot.slane %v7850, 4
        %v7853 = vor.u32 %v7852, %v7848
        %v7854 = vrot.slane %v7853, 4
        %v7856 = vshll.u32 %v7544, 16
        %v7858 = vrot.slane %v7856, 5
        %v7859 = vsel %vm1865, %v7854, %v7858
        %v7861 = vshrl.u32 %v7526, 16
        %v7863 = vrot.slane %v7861, 4
        %v7864 = vshll.u32 %v7526, 16
        %v7866 = vrot.slane %v7864, 5
        %v7867 = vor.u32 %v7863, %v7866
        %v7868 = vrot.slane %v7867, 4
        %v7870 = vshll.u32 %v7527, 16
        %v7872 = vrot.slane %v7870, 5
        %v7873 = vsel %vm1865, %v7868, %v7872
        %v7874 = vshrl.u32 %v7527, 16
        %v7876 = vrot.slane %v7874, 4
        %v7877 = vor.u32 %v7876, %v7872
        %v7878 = vrot.slane %v7877, 4
        %v7880 = vshll.u32 %v7545, 16
        %v7882 = vrot.slane %v7880, 5
        %v7883 = vsel %vm1865, %v7878, %v7882
        %v7885 = vshrl.u32 %v7528, 16
        %v7887 = vrot.slane %v7885, 4
        %v7888 = vshll.u32 %v7528, 16
        %v7890 = vrot.slane %v7888, 5
        %v7891 = vor.u32 %v7887, %v7890
        %v7892 = vrot.slane %v7891, 4
        %v7894 = vshll.u32 %v7529, 16
        %v7896 = vrot.slane %v7894, 5
        %v7897 = vsel %vm1865, %v7892, %v7896
        %v7898 = vshrl.u32 %v7529, 16
        %v7900 = vrot.slane %v7898, 4
        %v7901 = vor.u32 %v7900, %v7896
        %v7902 = vrot.slane %v7901, 4
        %v7904 = vshll.u32 %v7546, 16
        %v7906 = vrot.slane %v7904, 5
        %v7907 = vsel %vm1865, %v7902, %v7906
        %v7909 = vshrl.u32 %v7530, 16
        %v7911 = vrot.slane %v7909, 4
        %v7912 = vshll.u32 %v7530, 16
        %v7914 = vrot.slane %v7912, 5
        %v7915 = vor.u32 %v7911, %v7914
        %v7916 = vrot.slane %v7915, 4
        %v7918 = vshll.u32 %v7531, 16
        %v7920 = vrot.slane %v7918, 5
        %v7921 = vsel %vm1865, %v7916, %v7920
        %v7922 = vshrl.u32 %v7531, 16
        %v7924 = vrot.slane %v7922, 4
        %v7925 = vor.u32 %v7924, %v7920
        %v7926 = vrot.slane %v7925, 4
        %v7928 = vshll.u32 %v7547, 16
        %v7930 = vrot.slane %v7928, 5
        %v7931 = vsel %vm1865, %v7926, %v7930
        %v7932 = vld [vmem:[%s7499] sm:$0xe]
        %v7933 = vld [vmem:[%s7499 + $0xc] sm:$0xe]
        %v7934 = vld [vmem:[%s7499 + $0x18] sm:$0xe]
        %v7935 = vld [vmem:[%s7499 + $0x24] sm:$0xe]
        %v7936 = vld [vmem:[%s7499 + $0x30] sm:$0xe]
        %v7937 = vld [vmem:[%s7499 + $0x3c] sm:$0xe]
        %v7938 = vld [vmem:[%s7499 + $0x48] sm:$0xe]
        %v7939 = vld [vmem:[%s7499 + $0x54] sm:$0xe]
        %v7940 = vld [vmem:[%s7499 + $0x60] sm:$0xe]
        %v7941 = vld [vmem:[%s7499 + $0x6c] sm:$0xe]
        %v7942 = vld [vmem:[%s7499 + $0x78] sm:$0xe]
        %v7943 = vld [vmem:[%s7499 + $0x84] sm:$0xe]
        %v7944 = vld [vmem:[%s7499 + $0x90] sm:$0xe]
        %v7945 = vld [vmem:[%s7499 + $0x9c] sm:$0xe]
        %v7946 = vld [vmem:[%s7499 + $0xa8] sm:$0xe]
        %v7947 = vld [vmem:[%s7499 + $0xb4] sm:$0xe]
        %v7996 = vrot.slane %v7932, 5
        %v7997 = vrot.slane %v7996, 4
        %v7998 = vrot.slane %v7501, 5
        %v7999 = vsel %vm2316, %v7997, %v7998
        %v8000 = vrot.slane %v7998, 4
        %v8001 = vrot.slane %v7532, 5
        %v8002 = vsel %vm2316, %v8000, %v8001
        %v8003 = vrot.slane %v7933, 5
        %v8004 = vrot.slane %v8003, 4
        %v8005 = vrot.slane %v7503, 5
        %v8006 = vsel %vm2316, %v8004, %v8005
        %v8007 = vrot.slane %v8005, 4
        %v8008 = vrot.slane %v7533, 5
        %v8009 = vsel %vm2316, %v8007, %v8008
        %v8010 = vrot.slane %v7934, 5
        %v8011 = vrot.slane %v8010, 4
        %v8012 = vrot.slane %v7505, 5
        %v8013 = vsel %vm2316, %v8011, %v8012
        %v8014 = vrot.slane %v8012, 4
        %v8015 = vrot.slane %v7534, 5
        %v8016 = vsel %vm2316, %v8014, %v8015
        %v8017 = vrot.slane %v7935, 5
        %v8018 = vrot.slane %v8017, 4
        %v8019 = vrot.slane %v7507, 5
        %v8020 = vsel %vm2316, %v8018, %v8019
        %v8021 = vrot.slane %v8019, 4
        %v8022 = vrot.slane %v7535, 5
        %v8023 = vsel %vm2316, %v8021, %v8022
        %v8024 = vrot.slane %v7936, 5
        %v8025 = vrot.slane %v8024, 4
        %v8026 = vrot.slane %v7509, 5
        %v8027 = vsel %vm2316, %v8025, %v8026
        %v8028 = vrot.slane %v8026, 4
        %v8029 = vrot.slane %v7536, 5
        %v8030 = vsel %vm2316, %v8028, %v8029
        %v8031 = vrot.slane %v7937, 5
        %v8032 = vrot.slane %v8031, 4
        %v8033 = vrot.slane %v7511, 5
        %v8034 = vsel %vm2316, %v8032, %v8033
        %v8035 = vrot.slane %v8033, 4
        %v8036 = vrot.slane %v7537, 5
        %v8037 = vsel %vm2316, %v8035, %v8036
        %v8038 = vrot.slane %v7938, 5
        %v8039 = vrot.slane %v8038, 4
        %v8040 = vrot.slane %v7513, 5
        %v8041 = vsel %vm2316, %v8039, %v8040
        %v8042 = vrot.slane %v8040, 4
        %v8043 = vrot.slane %v7538, 5
        %v8044 = vsel %vm2316, %v8042, %v8043
        %v8045 = vrot.slane %v7939, 5
        %v8046 = vrot.slane %v8045, 4
        %v8047 = vrot.slane %v7515, 5
        %v8048 = vsel %vm2316, %v8046, %v8047
        %v8049 = vrot.slane %v8047, 4
        %v8050 = vrot.slane %v7539, 5
        %v8051 = vsel %vm2316, %v8049, %v8050
        %v8052 = vrot.slane %v7940, 5
        %v8053 = vrot.slane %v8052, 4
        %v8054 = vrot.slane %v7517, 5
        %v8055 = vsel %vm2316, %v8053, %v8054
        %v8056 = vrot.slane %v8054, 4
        %v8057 = vrot.slane %v7540, 5
        %v8058 = vsel %vm2316, %v8056, %v8057
        %v8059 = vrot.slane %v7941, 5
        %v8060 = vrot.slane %v8059, 4
        %v8061 = vrot.slane %v7519, 5
        %v8062 = vsel %vm2316, %v8060, %v8061
        %v8063 = vrot.slane %v8061, 4
        %v8064 = vrot.slane %v7541, 5
        %v8065 = vsel %vm2316, %v8063, %v8064
        %v8066 = vrot.slane %v7942, 5
        %v8067 = vrot.slane %v8066, 4
        %v8068 = vrot.slane %v7521, 5
        %v8069 = vsel %vm2316, %v8067, %v8068
        %v8070 = vrot.slane %v8068, 4
        %v8071 = vrot.slane %v7542, 5
        %v8072 = vsel %vm2316, %v8070, %v8071
        %v8073 = vrot.slane %v7943, 5
        %v8074 = vrot.slane %v8073, 4
        %v8075 = vrot.slane %v7523, 5
        %v8076 = vsel %vm2316, %v8074, %v8075
        %v8077 = vrot.slane %v8075, 4
        %v8078 = vrot.slane %v7543, 5
        %v8079 = vsel %vm2316, %v8077, %v8078
        %v8080 = vrot.slane %v7944, 5
        %v8081 = vrot.slane %v8080, 4
        %v8082 = vrot.slane %v7525, 5
        %v8083 = vsel %vm2316, %v8081, %v8082
        %v8084 = vrot.slane %v8082, 4
        %v8085 = vrot.slane %v7544, 5
        %v8086 = vsel %vm2316, %v8084, %v8085
        %v8087 = vrot.slane %v7945, 5
        %v8088 = vrot.slane %v8087, 4
        %v8089 = vrot.slane %v7527, 5
        %v8090 = vsel %vm2316, %v8088, %v8089
        %v8091 = vrot.slane %v8089, 4
        %v8092 = vrot.slane %v7545, 5
        %v8093 = vsel %vm2316, %v8091, %v8092
        %v8094 = vrot.slane %v7946, 5
        %v8095 = vrot.slane %v8094, 4
        %v8096 = vrot.slane %v7529, 5
        %v8097 = vsel %vm2316, %v8095, %v8096
        %v8098 = vrot.slane %v8096, 4
        %v8099 = vrot.slane %v7546, 5
        %v8100 = vsel %vm2316, %v8098, %v8099
        %v8101 = vrot.slane %v7947, 5
        %v8102 = vrot.slane %v8101, 4
        %v8103 = vrot.slane %v7531, 5
        %v8104 = vsel %vm2316, %v8102, %v8103
        %v8105 = vrot.slane %v8103, 4
        %v8106 = vrot.slane %v7547, 5
        %v8107 = vsel %vm2316, %v8105, %v8106
        %v8124 = vunpack.c.l.b16 %v6283
        %v8125 = vunpack.c.l.b16 %v6284
        %v8126 = vunpack.c.l.b16 %v6285
        %v8127 = vunpack.c.l.b16 %v6286
        %v8128 = vunpack.c.l.b16 %v6287
        %v8129 = vunpack.c.l.b16 %v6288
        %v8130 = vunpack.c.l.b16 %v6289
        %v8131 = vunpack.c.l.b16 %v6290
        %v8132 = vunpack.c.l.b16 %v6291
        %v8133 = vunpack.c.l.b16 %v6292
        %v8134 = vunpack.c.l.b16 %v6293
        %v8135 = vunpack.c.l.b16 %v6294
        %v8136 = vunpack.c.l.b16 %v6295
        %v8137 = vunpack.c.l.b16 %v6296
        %v8138 = vunpack.c.l.b16 %v6297
        %v8139 = vunpack.c.l.b16 %v6298
        %v8140 = vunpack.c.l.b16 %v6299
        %v8141 = vunpack.c.l.b16 %v6300
        %v8142 = vunpack.c.l.b16 %v6301
        %v8143 = vunpack.c.l.b16 %v6302
        %v8144 = vunpack.c.l.b16 %v6303
        %v8145 = vunpack.c.l.b16 %v6304
        %v8146 = vunpack.c.l.b16 %v6305
        %v8147 = vunpack.c.l.b16 %v6306
        %v8148 = vunpack.c.l.b16 %v6307
        %v8149 = vunpack.c.l.b16 %v6308
        %v8150 = vunpack.c.l.b16 %v6309
        %v8151 = vunpack.c.l.b16 %v6310
        %v8152 = vunpack.c.l.b16 %v6311
        %v8153 = vunpack.c.l.b16 %v6312
        %v8154 = vunpack.c.l.b16 %v6313
        %v8155 = vunpack.c.l.b16 %v6314
        %v8156 = vpack.c.b16 %v8125, %v8124
        %v8157 = vpack.c.b16 %v8127, %v8126
        %v8158 = vpack.c.b16 %v8129, %v8128
        %v8159 = vpack.c.b16 %v8131, %v8130
        %v8160 = vpack.c.b16 %v8133, %v8132
        %v8161 = vpack.c.b16 %v8135, %v8134
        %v8162 = vpack.c.b16 %v8137, %v8136
        %v8163 = vpack.c.b16 %v8139, %v8138
        %v8164 = vpack.c.b16 %v8141, %v8140
        %v8165 = vpack.c.b16 %v8143, %v8142
        %v8166 = vpack.c.b16 %v8145, %v8144
        %v8167 = vpack.c.b16 %v8147, %v8146
        %v8168 = vpack.c.b16 %v8149, %v8148
        %v8169 = vpack.c.b16 %v8151, %v8150
        %v8170 = vpack.c.b16 %v8153, %v8152
        %v8171 = vpack.c.b16 %v8155, %v8154
        %v8188 = vunpack.c.l.b16 %v6344
        %v8189 = vunpack.c.l.b16 %v6354
        %v8190 = vunpack.c.l.b16 %v6368
        %v8191 = vunpack.c.l.b16 %v6378
        %v8192 = vunpack.c.l.b16 %v6392
        %v8193 = vunpack.c.l.b16 %v6402
        %v8194 = vunpack.c.l.b16 %v6416
        %v8195 = vunpack.c.l.b16 %v6426
        %v8196 = vunpack.c.l.b16 %v6440
        %v8197 = vunpack.c.l.b16 %v6450
        %v8198 = vunpack.c.l.b16 %v6464
        %v8199 = vunpack.c.l.b16 %v6474
        %v8200 = vunpack.c.l.b16 %v6488
        %v8201 = vunpack.c.l.b16 %v6498
        %v8202 = vunpack.c.l.b16 %v6512
        %v8203 = vunpack.c.l.b16 %v6522
        %v8204 = vunpack.c.l.b16 %v6536
        %v8205 = vunpack.c.l.b16 %v6546
        %v8206 = vunpack.c.l.b16 %v6560
        %v8207 = vunpack.c.l.b16 %v6570
        %v8208 = vunpack.c.l.b16 %v6584
        %v8209 = vunpack.c.l.b16 %v6594
        %v8210 = vunpack.c.l.b16 %v6608
        %v8211 = vunpack.c.l.b16 %v6618
        %v8212 = vunpack.c.l.b16 %v6632
        %v8213 = vunpack.c.l.b16 %v6642
        %v8214 = vunpack.c.l.b16 %v6656
        %v8215 = vunpack.c.l.b16 %v6666
        %v8216 = vunpack.c.l.b16 %v6680
        %v8217 = vunpack.c.l.b16 %v6690
        %v8218 = vunpack.c.l.b16 %v6704
        %v8219 = vunpack.c.l.b16 %v6714
        %v8220 = vpack.c.b16 %v8189, %v8188
        %v8221 = vpack.c.b16 %v8191, %v8190
        %v8222 = vpack.c.b16 %v8193, %v8192
        %v8223 = vpack.c.b16 %v8195, %v8194
        %v8224 = vpack.c.b16 %v8197, %v8196
        %v8225 = vpack.c.b16 %v8199, %v8198
        %v8226 = vpack.c.b16 %v8201, %v8200
        %v8227 = vpack.c.b16 %v8203, %v8202
        %v8228 = vpack.c.b16 %v8205, %v8204
        %v8229 = vpack.c.b16 %v8207, %v8206
        %v8230 = vpack.c.b16 %v8209, %v8208
        %v8231 = vpack.c.b16 %v8211, %v8210
        %v8232 = vpack.c.b16 %v8213, %v8212
        %v8233 = vpack.c.b16 %v8215, %v8214
        %v8234 = vpack.c.b16 %v8217, %v8216
        %v8235 = vpack.c.b16 %v8219, %v8218
        %v8252 = vunpack.c.l.b16 %v6782
        %v8253 = vunpack.c.l.b16 %v6785
        %v8254 = vunpack.c.l.b16 %v6789
        %v8255 = vunpack.c.l.b16 %v6792
        %v8256 = vunpack.c.l.b16 %v6796
        %v8257 = vunpack.c.l.b16 %v6799
        %v8258 = vunpack.c.l.b16 %v6803
        %v8259 = vunpack.c.l.b16 %v6806
        %v8260 = vunpack.c.l.b16 %v6810
        %v8261 = vunpack.c.l.b16 %v6813
        %v8262 = vunpack.c.l.b16 %v6817
        %v8263 = vunpack.c.l.b16 %v6820
        %v8264 = vunpack.c.l.b16 %v6824
        %v8265 = vunpack.c.l.b16 %v6827
        %v8266 = vunpack.c.l.b16 %v6831
        %v8267 = vunpack.c.l.b16 %v6834
        %v8268 = vunpack.c.l.b16 %v6838
        %v8269 = vunpack.c.l.b16 %v6841
        %v8270 = vunpack.c.l.b16 %v6845
        %v8271 = vunpack.c.l.b16 %v6848
        %v8272 = vunpack.c.l.b16 %v6852
        %v8273 = vunpack.c.l.b16 %v6855
        %v8274 = vunpack.c.l.b16 %v6859
        %v8275 = vunpack.c.l.b16 %v6862
        %v8276 = vunpack.c.l.b16 %v6866
        %v8277 = vunpack.c.l.b16 %v6869
        %v8278 = vunpack.c.l.b16 %v6873
        %v8279 = vunpack.c.l.b16 %v6876
        %v8280 = vunpack.c.l.b16 %v6880
        %v8281 = vunpack.c.l.b16 %v6883
        %v8282 = vunpack.c.l.b16 %v6887
        %v8283 = vunpack.c.l.b16 %v6890
        %v8284 = vpack.c.b16 %v8253, %v8252
        %v8285 = vpack.c.b16 %v8255, %v8254
        %v8286 = vpack.c.b16 %v8257, %v8256
        %v8287 = vpack.c.b16 %v8259, %v8258
        %v8288 = vpack.c.b16 %v8261, %v8260
        %v8289 = vpack.c.b16 %v8263, %v8262
        %v8290 = vpack.c.b16 %v8265, %v8264
        %v8291 = vpack.c.b16 %v8267, %v8266
        %v8292 = vpack.c.b16 %v8269, %v8268
        %v8293 = vpack.c.b16 %v8271, %v8270
        %v8294 = vpack.c.b16 %v8273, %v8272
        %v8295 = vpack.c.b16 %v8275, %v8274
        %v8296 = vpack.c.b16 %v8277, %v8276
        %v8297 = vpack.c.b16 %v8279, %v8278
        %v8298 = vpack.c.b16 %v8281, %v8280
        %v8299 = vpack.c.b16 %v8283, %v8282
        %v8332 = vunpack.c.l.b16 %v6891
        %v8333 = vunpack.c.l.b16 %v6892
        %v8334 = vunpack.c.l.b16 %v6893
        %v8335 = vunpack.c.l.b16 %v6894
        %v8336 = vunpack.c.l.b16 %v6895
        %v8337 = vunpack.c.l.b16 %v6896
        %v8338 = vunpack.c.l.b16 %v6897
        %v8339 = vunpack.c.l.b16 %v6898
        %v8340 = vunpack.c.l.b16 %v6899
        %v8341 = vunpack.c.l.b16 %v6900
        %v8342 = vunpack.c.l.b16 %v6901
        %v8343 = vunpack.c.l.b16 %v6902
        %v8344 = vunpack.c.l.b16 %v6903
        %v8345 = vunpack.c.l.b16 %v6904
        %v8346 = vunpack.c.l.b16 %v6905
        %v8347 = vunpack.c.l.b16 %v6906
        %v8348 = vunpack.c.l.b16 %v6907
        %v8349 = vunpack.c.l.b16 %v6908
        %v8350 = vunpack.c.l.b16 %v6909
        %v8351 = vunpack.c.l.b16 %v6910
        %v8352 = vunpack.c.l.b16 %v6911
        %v8353 = vunpack.c.l.b16 %v6912
        %v8354 = vunpack.c.l.b16 %v6913
        %v8355 = vunpack.c.l.b16 %v6914
        %v8356 = vunpack.c.l.b16 %v6915
        %v8357 = vunpack.c.l.b16 %v6916
        %v8358 = vunpack.c.l.b16 %v6917
        %v8359 = vunpack.c.l.b16 %v6918
        %v8360 = vunpack.c.l.b16 %v6919
        %v8361 = vunpack.c.l.b16 %v6920
        %v8362 = vunpack.c.l.b16 %v6921
        %v8363 = vunpack.c.l.b16 %v6922
        %v8364 = vpack.c.b16 %v8333, %v8332
        %v8365 = vpack.c.b16 %v8335, %v8334
        %v8366 = vpack.c.b16 %v8337, %v8336
        %v8367 = vpack.c.b16 %v8339, %v8338
        %v8368 = vpack.c.b16 %v8341, %v8340
        %v8369 = vpack.c.b16 %v8343, %v8342
        %v8370 = vpack.c.b16 %v8345, %v8344
        %v8371 = vpack.c.b16 %v8347, %v8346
        %v8372 = vpack.c.b16 %v8349, %v8348
        %v8373 = vpack.c.b16 %v8351, %v8350
        %v8374 = vpack.c.b16 %v8353, %v8352
        %v8375 = vpack.c.b16 %v8355, %v8354
        %v8376 = vpack.c.b16 %v8357, %v8356
        %v8377 = vpack.c.b16 %v8359, %v8358
        %v8378 = vpack.c.b16 %v8361, %v8360
        %v8379 = vpack.c.b16 %v8363, %v8362
        %v8396 = vunpack.c.l.b16 %v6952
        %v8397 = vunpack.c.l.b16 %v6962
        %v8398 = vunpack.c.l.b16 %v6976
        %v8399 = vunpack.c.l.b16 %v6986
        %v8400 = vunpack.c.l.b16 %v7000
        %v8401 = vunpack.c.l.b16 %v7010
        %v8402 = vunpack.c.l.b16 %v7024
        %v8403 = vunpack.c.l.b16 %v7034
        %v8404 = vunpack.c.l.b16 %v7048
        %v8405 = vunpack.c.l.b16 %v7058
        %v8406 = vunpack.c.l.b16 %v7072
        %v8407 = vunpack.c.l.b16 %v7082
        %v8408 = vunpack.c.l.b16 %v7096
        %v8409 = vunpack.c.l.b16 %v7106
        %v8410 = vunpack.c.l.b16 %v7120
        %v8411 = vunpack.c.l.b16 %v7130
        %v8412 = vunpack.c.l.b16 %v7144
        %v8413 = vunpack.c.l.b16 %v7154
        %v8414 = vunpack.c.l.b16 %v7168
        %v8415 = vunpack.c.l.b16 %v7178
        %v8416 = vunpack.c.l.b16 %v7192
        %v8417 = vunpack.c.l.b16 %v7202
        %v8418 = vunpack.c.l.b16 %v7216
        %v8419 = vunpack.c.l.b16 %v7226
        %v8420 = vunpack.c.l.b16 %v7240
        %v8421 = vunpack.c.l.b16 %v7250
        %v8422 = vunpack.c.l.b16 %v7264
        %v8423 = vunpack.c.l.b16 %v7274
        %v8424 = vunpack.c.l.b16 %v7288
        %v8425 = vunpack.c.l.b16 %v7298
        %v8426 = vunpack.c.l.b16 %v7312
        %v8427 = vunpack.c.l.b16 %v7322
        %v8428 = vpack.c.b16 %v8397, %v8396
        %v8429 = vpack.c.b16 %v8399, %v8398
        %v8430 = vpack.c.b16 %v8401, %v8400
        %v8431 = vpack.c.b16 %v8403, %v8402
        %v8432 = vpack.c.b16 %v8405, %v8404
        %v8433 = vpack.c.b16 %v8407, %v8406
        %v8434 = vpack.c.b16 %v8409, %v8408
        %v8435 = vpack.c.b16 %v8411, %v8410
        %v8436 = vpack.c.b16 %v8413, %v8412
        %v8437 = vpack.c.b16 %v8415, %v8414
        %v8438 = vpack.c.b16 %v8417, %v8416
        %v8439 = vpack.c.b16 %v8419, %v8418
        %v8440 = vpack.c.b16 %v8421, %v8420
        %v8441 = vpack.c.b16 %v8423, %v8422
        %v8442 = vpack.c.b16 %v8425, %v8424
        %v8443 = vpack.c.b16 %v8427, %v8426
        %v8460 = vunpack.c.l.b16 %v7390
        %v8461 = vunpack.c.l.b16 %v7393
        %v8462 = vunpack.c.l.b16 %v7397
        %v8463 = vunpack.c.l.b16 %v7400
        %v8464 = vunpack.c.l.b16 %v7404
        %v8465 = vunpack.c.l.b16 %v7407
        %v8466 = vunpack.c.l.b16 %v7411
        %v8467 = vunpack.c.l.b16 %v7414
        %v8468 = vunpack.c.l.b16 %v7418
        %v8469 = vunpack.c.l.b16 %v7421
        %v8470 = vunpack.c.l.b16 %v7425
        %v8471 = vunpack.c.l.b16 %v7428
        %v8472 = vunpack.c.l.b16 %v7432
        %v8473 = vunpack.c.l.b16 %v7435
        %v8474 = vunpack.c.l.b16 %v7439
        %v8475 = vunpack.c.l.b16 %v7442
        %v8476 = vunpack.c.l.b16 %v7446
        %v8477 = vunpack.c.l.b16 %v7449
        %v8478 = vunpack.c.l.b16 %v7453
        %v8479 = vunpack.c.l.b16 %v7456
        %v8480 = vunpack.c.l.b16 %v7460
        %v8481 = vunpack.c.l.b16 %v7463
        %v8482 = vunpack.c.l.b16 %v7467
        %v8483 = vunpack.c.l.b16 %v7470
        %v8484 = vunpack.c.l.b16 %v7474
        %v8485 = vunpack.c.l.b16 %v7477
        %v8486 = vunpack.c.l.b16 %v7481
        %v8487 = vunpack.c.l.b16 %v7484
        %v8488 = vunpack.c.l.b16 %v7488
        %v8489 = vunpack.c.l.b16 %v7491
        %v8490 = vunpack.c.l.b16 %v7495
        %v8491 = vunpack.c.l.b16 %v7498
        %v8492 = vpack.c.b16 %v8461, %v8460
        %v8493 = vpack.c.b16 %v8463, %v8462
        %v8494 = vpack.c.b16 %v8465, %v8464
        %v8495 = vpack.c.b16 %v8467, %v8466
        %v8496 = vpack.c.b16 %v8469, %v8468
        %v8497 = vpack.c.b16 %v8471, %v8470
        %v8498 = vpack.c.b16 %v8473, %v8472
        %v8499 = vpack.c.b16 %v8475, %v8474
        %v8500 = vpack.c.b16 %v8477, %v8476
        %v8501 = vpack.c.b16 %v8479, %v8478
        %v8502 = vpack.c.b16 %v8481, %v8480
        %v8503 = vpack.c.b16 %v8483, %v8482
        %v8504 = vpack.c.b16 %v8485, %v8484
        %v8505 = vpack.c.b16 %v8487, %v8486
        %v8506 = vpack.c.b16 %v8489, %v8488
        %v8507 = vpack.c.b16 %v8491, %v8490
        %v8540 = vunpack.c.l.b16 %v7500
        %v8541 = vunpack.c.l.b16 %v7501
        %v8542 = vunpack.c.l.b16 %v7502
        %v8543 = vunpack.c.l.b16 %v7503
        %v8544 = vunpack.c.l.b16 %v7504
        %v8545 = vunpack.c.l.b16 %v7505
        %v8546 = vunpack.c.l.b16 %v7506
        %v8547 = vunpack.c.l.b16 %v7507
        %v8548 = vunpack.c.l.b16 %v7508
        %v8549 = vunpack.c.l.b16 %v7509
        %v8550 = vunpack.c.l.b16 %v7510
        %v8551 = vunpack.c.l.b16 %v7511
        %v8552 = vunpack.c.l.b16 %v7512
        %v8553 = vunpack.c.l.b16 %v7513
        %v8554 = vunpack.c.l.b16 %v7514
        %v8555 = vunpack.c.l.b16 %v7515
        %v8556 = vunpack.c.l.b16 %v7516
        %v8557 = vunpack.c.l.b16 %v7517
        %v8558 = vunpack.c.l.b16 %v7518
        %v8559 = vunpack.c.l.b16 %v7519
        %v8560 = vunpack.c.l.b16 %v7520
        %v8561 = vunpack.c.l.b16 %v7521
        %v8562 = vunpack.c.l.b16 %v7522
        %v8563 = vunpack.c.l.b16 %v7523
        %v8564 = vunpack.c.l.b16 %v7524
        %v8565 = vunpack.c.l.b16 %v7525
        %v8566 = vunpack.c.l.b16 %v7526
        %v8567 = vunpack.c.l.b16 %v7527
        %v8568 = vunpack.c.l.b16 %v7528
        %v8569 = vunpack.c.l.b16 %v7529
        %v8570 = vunpack.c.l.b16 %v7530
        %v8571 = vunpack.c.l.b16 %v7531
        %v8572 = vpack.c.b16 %v8541, %v8540
        %v8573 = vpack.c.b16 %v8543, %v8542
        %v8574 = vpack.c.b16 %v8545, %v8544
        %v8575 = vpack.c.b16 %v8547, %v8546
        %v8576 = vpack.c.b16 %v8549, %v8548
        %v8577 = vpack.c.b16 %v8551, %v8550
        %v8578 = vpack.c.b16 %v8553, %v8552
        %v8579 = vpack.c.b16 %v8555, %v8554
        %v8580 = vpack.c.b16 %v8557, %v8556
        %v8581 = vpack.c.b16 %v8559, %v8558
        %v8582 = vpack.c.b16 %v8561, %v8560
        %v8583 = vpack.c.b16 %v8563, %v8562
        %v8584 = vpack.c.b16 %v8565, %v8564
        %v8585 = vpack.c.b16 %v8567, %v8566
        %v8586 = vpack.c.b16 %v8569, %v8568
        %v8587 = vpack.c.b16 %v8571, %v8570
        %v8604 = vunpack.c.l.b16 %v7561
        %v8605 = vunpack.c.l.b16 %v7571
        %v8606 = vunpack.c.l.b16 %v7585
        %v8607 = vunpack.c.l.b16 %v7595
        %v8608 = vunpack.c.l.b16 %v7609
        %v8609 = vunpack.c.l.b16 %v7619
        %v8610 = vunpack.c.l.b16 %v7633
        %v8611 = vunpack.c.l.b16 %v7643
        %v8612 = vunpack.c.l.b16 %v7657
        %v8613 = vunpack.c.l.b16 %v7667
        %v8614 = vunpack.c.l.b16 %v7681
        %v8615 = vunpack.c.l.b16 %v7691
        %v8616 = vunpack.c.l.b16 %v7705
        %v8617 = vunpack.c.l.b16 %v7715
        %v8618 = vunpack.c.l.b16 %v7729
        %v8619 = vunpack.c.l.b16 %v7739
        %v8620 = vunpack.c.l.b16 %v7753
        %v8621 = vunpack.c.l.b16 %v7763
        %v8622 = vunpack.c.l.b16 %v7777
        %v8623 = vunpack.c.l.b16 %v7787
        %v8624 = vunpack.c.l.b16 %v7801
        %v8625 = vunpack.c.l.b16 %v7811
        %v8626 = vunpack.c.l.b16 %v7825
        %v8627 = vunpack.c.l.b16 %v7835
        %v8628 = vunpack.c.l.b16 %v7849
        %v8629 = vunpack.c.l.b16 %v7859
        %v8630 = vunpack.c.l.b16 %v7873
        %v8631 = vunpack.c.l.b16 %v7883
        %v8632 = vunpack.c.l.b16 %v7897
        %v8633 = vunpack.c.l.b16 %v7907
        %v8634 = vunpack.c.l.b16 %v7921
        %v8635 = vunpack.c.l.b16 %v7931
        %v8636 = vpack.c.b16 %v8605, %v8604
        %v8637 = vpack.c.b16 %v8607, %v8606
        %v8638 = vpack.c.b16 %v8609, %v8608
        %v8639 = vpack.c.b16 %v8611, %v8610
        %v8640 = vpack.c.b16 %v8613, %v8612
        %v8641 = vpack.c.b16 %v8615, %v8614
        %v8642 = vpack.c.b16 %v8617, %v8616
        %v8643 = vpack.c.b16 %v8619, %v8618
        %v8644 = vpack.c.b16 %v8621, %v8620
        %v8645 = vpack.c.b16 %v8623, %v8622
        %v8646 = vpack.c.b16 %v8625, %v8624
        %v8647 = vpack.c.b16 %v8627, %v8626
        %v8648 = vpack.c.b16 %v8629, %v8628
        %v8649 = vpack.c.b16 %v8631, %v8630
        %v8650 = vpack.c.b16 %v8633, %v8632
        %v8651 = vpack.c.b16 %v8635, %v8634
        %v8668 = vunpack.c.l.b16 %v7999
        %v8669 = vunpack.c.l.b16 %v8002
        %v8670 = vunpack.c.l.b16 %v8006
        %v8671 = vunpack.c.l.b16 %v8009
        %v8672 = vunpack.c.l.b16 %v8013
        %v8673 = vunpack.c.l.b16 %v8016
        %v8674 = vunpack.c.l.b16 %v8020
        %v8675 = vunpack.c.l.b16 %v8023
        %v8676 = vunpack.c.l.b16 %v8027
        %v8677 = vunpack.c.l.b16 %v8030
        %v8678 = vunpack.c.l.b16 %v8034
        %v8679 = vunpack.c.l.b16 %v8037
        %v8680 = vunpack.c.l.b16 %v8041
        %v8681 = vunpack.c.l.b16 %v8044
        %v8682 = vunpack.c.l.b16 %v8048
        %v8683 = vunpack.c.l.b16 %v8051
        %v8684 = vunpack.c.l.b16 %v8055
        %v8685 = vunpack.c.l.b16 %v8058
        %v8686 = vunpack.c.l.b16 %v8062
        %v8687 = vunpack.c.l.b16 %v8065
        %v8688 = vunpack.c.l.b16 %v8069
        %v8689 = vunpack.c.l.b16 %v8072
        %v8690 = vunpack.c.l.b16 %v8076
        %v8691 = vunpack.c.l.b16 %v8079
        %v8692 = vunpack.c.l.b16 %v8083
        %v8693 = vunpack.c.l.b16 %v8086
        %v8694 = vunpack.c.l.b16 %v8090
        %v8695 = vunpack.c.l.b16 %v8093
        %v8696 = vunpack.c.l.b16 %v8097
        %v8697 = vunpack.c.l.b16 %v8100
        %v8698 = vunpack.c.l.b16 %v8104
        %v8699 = vunpack.c.l.b16 %v8107
        %v8700 = vpack.c.b16 %v8669, %v8668
        %v8701 = vpack.c.b16 %v8671, %v8670
        %v8702 = vpack.c.b16 %v8673, %v8672
        %v8703 = vpack.c.b16 %v8675, %v8674
        %v8704 = vpack.c.b16 %v8677, %v8676
        %v8705 = vpack.c.b16 %v8679, %v8678
        %v8706 = vpack.c.b16 %v8681, %v8680
        %v8707 = vpack.c.b16 %v8683, %v8682
        %v8708 = vpack.c.b16 %v8685, %v8684
        %v8709 = vpack.c.b16 %v8687, %v8686
        %v8710 = vpack.c.b16 %v8689, %v8688
        %v8711 = vpack.c.b16 %v8691, %v8690
        %v8712 = vpack.c.b16 %v8693, %v8692
        %v8713 = vpack.c.b16 %v8695, %v8694
        %v8714 = vpack.c.b16 %v8697, %v8696
        %v8715 = vpack.c.b16 %v8699, %v8698
        %v8733 = vlaneseq
        %v8734 = vshrl.u32 %v8733, 7
        %v8735 = vsub.s32 0, %v8734
        %v8736 = vrot.slane %v6282, %v8735
        %v8882 = vunpack.c.l.b16 %v6138
        %v8883 = vunpack.c.l.b16 %v6139
        %v8884 = vunpack.c.l.b16 %v6140
        %v8885 = vunpack.c.l.b16 %v6141
        %v8886 = vunpack.c.l.b16 %v6142
        %v8887 = vunpack.c.l.b16 %v6143
        %v8888 = vunpack.c.l.b16 %v6144
        %v8889 = vunpack.c.l.b16 %v6145
        %v8890 = vunpack.c.l.b16 %v6146
        %v8891 = vunpack.c.l.b16 %v6147
        %v8892 = vunpack.c.l.b16 %v6148
        %v8893 = vunpack.c.l.b16 %v6149
        %v8894 = vunpack.c.l.b16 %v6150
        %v8895 = vunpack.c.l.b16 %v6151
        %v8896 = vunpack.c.l.b16 %v6152
        %v8897 = vunpack.c.l.b16 %v6153
        %v8898 = vunpack.c.l.b16 %v6154
        %v8899 = vunpack.c.l.b16 %v6155
        %v8900 = vunpack.c.l.b16 %v6156
        %v8901 = vunpack.c.l.b16 %v6157
        %v8902 = vunpack.c.l.b16 %v6158
        %v8903 = vunpack.c.l.b16 %v6159
        %v8904 = vunpack.c.l.b16 %v6160
        %v8905 = vunpack.c.l.b16 %v6161
        %v8906 = vunpack.c.l.b16 %v6162
        %v8907 = vunpack.c.l.b16 %v6163
        %v8908 = vunpack.c.l.b16 %v6164
        %v8909 = vunpack.c.l.b16 %v6165
        %v8910 = vunpack.c.l.b16 %v6166
        %v8911 = vunpack.c.l.b16 %v6167
        %v8912 = vunpack.c.l.b16 %v6168
        %v8913 = vunpack.c.l.b16 %v6169
        %v8914 = vunpack.c.l.b16 %v6170
        %v8915 = vunpack.c.l.b16 %v6171
        %v8916 = vunpack.c.l.b16 %v6172
        %v8917 = vunpack.c.l.b16 %v6173
        %v8918 = vunpack.c.l.b16 %v6174
        %v8919 = vunpack.c.l.b16 %v6175
        %v8920 = vunpack.c.l.b16 %v6176
        %v8921 = vunpack.c.l.b16 %v6177
        %v8922 = vunpack.c.l.b16 %v6178
        %v8923 = vunpack.c.l.b16 %v6179
        %v8924 = vunpack.c.l.b16 %v6180
        %v8925 = vunpack.c.l.b16 %v6181
        %v8926 = vunpack.c.l.b16 %v6182
        %v8927 = vunpack.c.l.b16 %v6183
        %v8928 = vunpack.c.l.b16 %v6184
        %v8929 = vunpack.c.l.b16 %v6185
        %v8930 = vunpack.c.l.b16 %v6186
        %v8931 = vunpack.c.l.b16 %v6187
        %v8932 = vunpack.c.l.b16 %v6188
        %v8933 = vunpack.c.l.b16 %v6189
        %v8934 = vunpack.c.l.b16 %v6190
        %v8935 = vunpack.c.l.b16 %v6191
        %v8936 = vunpack.c.l.b16 %v6192
        %v8937 = vunpack.c.l.b16 %v6193
        %v8938 = vunpack.c.l.b16 %v6194
        %v8939 = vunpack.c.l.b16 %v6195
        %v8940 = vunpack.c.l.b16 %v6196
        %v8941 = vunpack.c.l.b16 %v6197
        %v8942 = vunpack.c.l.b16 %v6198
        %v8943 = vunpack.c.l.b16 %v6199
        %v8944 = vunpack.c.l.b16 %v6200
        %v8945 = vunpack.c.l.b16 %v6201
        %v8946 = vunpack.c.l.b16 %v6202
        %v8947 = vunpack.c.l.b16 %v6203
        %v8948 = vunpack.c.l.b16 %v6204
        %v8949 = vunpack.c.l.b16 %v6205
        %v8950 = vunpack.c.l.b16 %v6206
        %v8951 = vunpack.c.l.b16 %v6207
        %v8952 = vunpack.c.l.b16 %v6208
        %v8953 = vunpack.c.l.b16 %v6209
        %v8954 = vunpack.c.l.b16 %v6210
        %v8955 = vunpack.c.l.b16 %v6211
        %v8956 = vunpack.c.l.b16 %v6212
        %v8957 = vunpack.c.l.b16 %v6213
        %v8958 = vunpack.c.l.b16 %v6214
        %v8959 = vunpack.c.l.b16 %v6215
        %v8960 = vunpack.c.l.b16 %v6216
        %v8961 = vunpack.c.l.b16 %v6217
        %v8962 = vunpack.c.l.b16 %v6218
        %v8963 = vunpack.c.l.b16 %v6219
        %v8964 = vunpack.c.l.b16 %v6220
        %v8965 = vunpack.c.l.b16 %v6221
        %v8966 = vunpack.c.l.b16 %v6222
        %v8967 = vunpack.c.l.b16 %v6223
        %v8968 = vunpack.c.l.b16 %v6224
        %v8969 = vunpack.c.l.b16 %v6225
        %v8970 = vunpack.c.l.b16 %v6226
        %v8971 = vunpack.c.l.b16 %v6227
        %v8972 = vunpack.c.l.b16 %v6228
        %v8973 = vunpack.c.l.b16 %v6229
        %v8974 = vunpack.c.l.b16 %v6230
        %v8975 = vunpack.c.l.b16 %v6231
        %v8976 = vunpack.c.l.b16 %v6232
        %v8977 = vunpack.c.l.b16 %v6233
        %v8978 = vunpack.c.l.b16 %v6234
        %v8979 = vunpack.c.l.b16 %v6235
        %v8980 = vunpack.c.l.b16 %v6236
        %v8981 = vunpack.c.l.b16 %v6237
        %v8982 = vunpack.c.l.b16 %v6238
        %v8983 = vunpack.c.l.b16 %v6239
        %v8984 = vunpack.c.l.b16 %v6240
        %v8985 = vunpack.c.l.b16 %v6241
        %v8986 = vunpack.c.l.b16 %v6242
        %v8987 = vunpack.c.l.b16 %v6243
        %v8988 = vunpack.c.l.b16 %v6244
        %v8989 = vunpack.c.l.b16 %v6245
        %v8990 = vunpack.c.l.b16 %v6246
        %v8991 = vunpack.c.l.b16 %v6247
        %v8992 = vunpack.c.l.b16 %v6248
        %v8993 = vunpack.c.l.b16 %v6249
        %v8994 = vunpack.c.l.b16 %v6250
        %v8995 = vunpack.c.l.b16 %v6251
        %v8996 = vunpack.c.l.b16 %v6252
        %v8997 = vunpack.c.l.b16 %v6253
        %v8998 = vunpack.c.l.b16 %v6254
        %v8999 = vunpack.c.l.b16 %v6255
        %v9000 = vunpack.c.l.b16 %v6256
        %v9001 = vunpack.c.l.b16 %v6257
        %v9002 = vunpack.c.l.b16 %v6258
        %v9003 = vunpack.c.l.b16 %v6259
        %v9004 = vunpack.c.l.b16 %v6260
        %v9005 = vunpack.c.l.b16 %v6261
        %v9006 = vunpack.c.l.b16 %v6262
        %v9007 = vunpack.c.l.b16 %v6263
        %v9008 = vunpack.c.l.b16 %v6264
        %v9009 = vunpack.c.l.b16 %v6265
        %v9010 = vunpack.c.l.b16 %v6266
        %v9011 = vunpack.c.l.b16 %v6267
        %v9012 = vunpack.c.l.b16 %v6268
        %v9013 = vunpack.c.l.b16 %v6269
        %v9014 = vunpack.c.l.b16 %v6270
        %v9015 = vunpack.c.l.b16 %v6271
        %v9016 = vunpack.c.l.b16 %v6272
        %v9017 = vunpack.c.l.b16 %v6273
        %v9018 = vunpack.c.l.b16 %v6274
        %v9019 = vunpack.c.l.b16 %v6275
        %v9020 = vunpack.c.l.b16 %v6276
        %v9021 = vunpack.c.l.b16 %v6277
        %v9022 = vunpack.c.l.b16 %v6278
        %v9023 = vunpack.c.l.b16 %v6279
        %v9024 = vunpack.c.l.b16 %v6280
        %v9025 = vunpack.c.l.b16 %v6281
        %v9026 = vpack.c.b16 %v8883, %v8882
        %v9027 = vpack.c.b16 %v8885, %v8884
        %v9028 = vpack.c.b16 %v8887, %v8886
        %v9029 = vpack.c.b16 %v8889, %v8888
        %v9030 = vpack.c.b16 %v8891, %v8890
        %v9031 = vpack.c.b16 %v8893, %v8892
        %v9032 = vpack.c.b16 %v8895, %v8894
        %v9033 = vpack.c.b16 %v8897, %v8896
        %v9034 = vpack.c.b16 %v8899, %v8898
        %v9035 = vpack.c.b16 %v8901, %v8900
        %v9036 = vpack.c.b16 %v8903, %v8902
        %v9037 = vpack.c.b16 %v8905, %v8904
        %v9038 = vpack.c.b16 %v8907, %v8906
        %v9039 = vpack.c.b16 %v8909, %v8908
        %v9040 = vpack.c.b16 %v8911, %v8910
        %v9041 = vpack.c.b16 %v8913, %v8912
        %v9042 = vpack.c.b16 %v8915, %v8914
        %v9043 = vpack.c.b16 %v8917, %v8916
        %v9044 = vpack.c.b16 %v8919, %v8918
        %v9045 = vpack.c.b16 %v8921, %v8920
        %v9046 = vpack.c.b16 %v8923, %v8922
        %v9047 = vpack.c.b16 %v8925, %v8924
        %v9048 = vpack.c.b16 %v8927, %v8926
        %v9049 = vpack.c.b16 %v8929, %v8928
        %v9050 = vpack.c.b16 %v8931, %v8930
        %v9051 = vpack.c.b16 %v8933, %v8932
        %v9052 = vpack.c.b16 %v8935, %v8934
        %v9053 = vpack.c.b16 %v8937, %v8936
        %v9054 = vpack.c.b16 %v8939, %v8938
        %v9055 = vpack.c.b16 %v8941, %v8940
        %v9056 = vpack.c.b16 %v8943, %v8942
        %v9057 = vpack.c.b16 %v8945, %v8944
        %v9058 = vpack.c.b16 %v8947, %v8946
        %v9059 = vpack.c.b16 %v8949, %v8948
        %v9060 = vpack.c.b16 %v8951, %v8950
        %v9061 = vpack.c.b16 %v8953, %v8952
        %v9062 = vpack.c.b16 %v8955, %v8954
        %v9063 = vpack.c.b16 %v8957, %v8956
        %v9064 = vpack.c.b16 %v8959, %v8958
        %v9065 = vpack.c.b16 %v8961, %v8960
        %v9066 = vpack.c.b16 %v8963, %v8962
        %v9067 = vpack.c.b16 %v8965, %v8964
        %v9068 = vpack.c.b16 %v8967, %v8966
        %v9069 = vpack.c.b16 %v8969, %v8968
        %v9070 = vpack.c.b16 %v8971, %v8970
        %v9071 = vpack.c.b16 %v8973, %v8972
        %v9072 = vpack.c.b16 %v8975, %v8974
        %v9073 = vpack.c.b16 %v8977, %v8976
        %v9074 = vpack.c.b16 %v8979, %v8978
        %v9075 = vpack.c.b16 %v8981, %v8980
        %v9076 = vpack.c.b16 %v8983, %v8982
        %v9077 = vpack.c.b16 %v8985, %v8984
        %v9078 = vpack.c.b16 %v8987, %v8986
        %v9079 = vpack.c.b16 %v8989, %v8988
        %v9080 = vpack.c.b16 %v8991, %v8990
        %v9081 = vpack.c.b16 %v8993, %v8992
        %v9082 = vpack.c.b16 %v8995, %v8994
        %v9083 = vpack.c.b16 %v8997, %v8996
        %v9084 = vpack.c.b16 %v8999, %v8998
        %v9085 = vpack.c.b16 %v9001, %v9000
        %v9086 = vpack.c.b16 %v9003, %v9002
        %v9087 = vpack.c.b16 %v9005, %v9004
        %v9088 = vpack.c.b16 %v9007, %v9006
        %v9089 = vpack.c.b16 %v9009, %v9008
        %v9090 = vpack.c.b16 %v9011, %v9010
        %v9091 = vpack.c.b16 %v9013, %v9012
        %v9092 = vpack.c.b16 %v9015, %v9014
        %v9093 = vpack.c.b16 %v9017, %v9016
        %v9094 = vpack.c.b16 %v9019, %v9018
        %v9095 = vpack.c.b16 %v9021, %v9020
        %v9096 = vpack.c.b16 %v9023, %v9022
        %v9097 = vpack.c.b16 %v9025, %v9024
        %9170 = vmatprep.subr.bf16.mxu0 0
        %9171 = vmatpush1.bf16.msra.mxu0 %v9033
        %9172 = vmatprep.subr.bf16.mxu0 0
        %9173 = vmatpush1.bf16.msra.mxu0 %v9032
        %9174 = vmatprep.subr.bf16.mxu0 0
        %9175 = vmatpush1.bf16.msra.mxu0 %v9031
        %9176 = vmatprep.subr.bf16.mxu0 0
        %9177 = vmatpush1.bf16.msra.mxu0 %v9030
        %9178 = vmatprep.subr.bf16.mxu0 0
        %9179 = vmatpush1.bf16.msra.mxu0 %v9029
        %9180 = vmatprep.subr.bf16.mxu0 0
        %9181 = vmatpush1.bf16.msra.mxu0 %v9028
        %9182 = vmatprep.subr.bf16.mxu0 0
        %9183 = vmatpush1.bf16.msra.mxu0 %v9027
        %9184 = vmatprep.subr.bf16.mxu0 0
        %9185 = vmatpush1.bf16.msra.mxu0 %v9026
        %9186 = vmatprep.subr.bf16.mxu0 0
        %9187 = vmatpush2.bf16.msra.mxu0 %v9041
        %9188 = vmatprep.subr.bf16.mxu0 0
        %9189 = vmatpush2.bf16.msra.mxu0 %v9040
        %9190 = vmatprep.subr.bf16.mxu0 0
        %9191 = vmatpush2.bf16.msra.mxu0 %v9039
        %9192 = vmatprep.subr.bf16.mxu0 0
        %9193 = vmatpush2.bf16.msra.mxu0 %v9038
        %9194 = vmatprep.subr.bf16.mxu0 0
        %9195 = vmatpush2.bf16.msra.mxu0 %v9037
        %9196 = vmatprep.subr.bf16.mxu0 0
        %9197 = vmatpush2.bf16.msra.mxu0 %v9036
        %9198 = vmatprep.subr.bf16.mxu0 0
        %9199 = vmatpush2.bf16.msra.mxu0 %v9035
        %9200 = vmatprep.subr.bf16.mxu0 0
        %9201 = vmatpush2.bf16.msra.mxu0 %v9034
        %9202 = vmatprep.mubr.bf16.mxu0 %v8220
        %9203 = vmatmul.mubr.bf16.gmra.mxu0 %v8156
        %v9204 = vpop.f32.mrf.mxu0
        %v9205 = vadd.f32 %v8736, %v9204
        %v9206 = vpop.f32.mrf.mxu0
        %v9207 = vpop.f32.mrf.mxu0
        %v9208 = vadd.f32 %v8736, %v9207
        %v9209 = vpop.f32.mrf.mxu0
        %9210 = vmatprep.mubr.bf16.mxu0 %v8221
        %9211 = vmatmul.mubr.bf16.gmra.mxu0 %v8157
        %v9212 = vpop.f32.mrf.mxu0
        %v9213 = vadd.f32 %v8736, %v9212
        %v9214 = vpop.f32.mrf.mxu0
        %v9215 = vpop.f32.mrf.mxu0
        %v9216 = vadd.f32 %v8736, %v9215
        %v9217 = vpop.f32.mrf.mxu0
        %9218 = vmatprep.mubr.bf16.mxu0 %v8222
        %9219 = vmatmul.mubr.bf16.gmra.mxu0 %v8158
        %v9220 = vpop.f32.mrf.mxu0
        %v9221 = vadd.f32 %v8736, %v9220
        %v9222 = vpop.f32.mrf.mxu0
        %v9223 = vpop.f32.mrf.mxu0
        %v9224 = vadd.f32 %v8736, %v9223
        %v9225 = vpop.f32.mrf.mxu0
        %9226 = vmatprep.mubr.bf16.mxu0 %v8223
        %9227 = vmatmul.mubr.bf16.gmra.mxu0 %v8159
        %v9228 = vpop.f32.mrf.mxu0
        %v9229 = vadd.f32 %v8736, %v9228
        %v9230 = vpop.f32.mrf.mxu0
        %v9231 = vpop.f32.mrf.mxu0
        %v9232 = vadd.f32 %v8736, %v9231
        %v9233 = vpop.f32.mrf.mxu0
        %9234 = vmatprep.mubr.bf16.mxu0 %v8224
        %9235 = vmatmul.mubr.bf16.gmra.mxu0 %v8160
        %v9236 = vpop.f32.mrf.mxu0
        %v9237 = vadd.f32 %v8736, %v9236
        %v9238 = vpop.f32.mrf.mxu0
        %v9239 = vpop.f32.mrf.mxu0
        %v9240 = vadd.f32 %v8736, %v9239
        %v9241 = vpop.f32.mrf.mxu0
        %9242 = vmatprep.mubr.bf16.mxu0 %v8225
        %9243 = vmatmul.mubr.bf16.gmra.mxu0 %v8161
        %v9244 = vpop.f32.mrf.mxu0
        %v9245 = vadd.f32 %v8736, %v9244
        %v9246 = vpop.f32.mrf.mxu0
        %v9247 = vpop.f32.mrf.mxu0
        %v9248 = vadd.f32 %v8736, %v9247
        %v9249 = vpop.f32.mrf.mxu0
        %9250 = vmatprep.mubr.bf16.mxu0 %v8226
        %9251 = vmatmul.mubr.bf16.gmra.mxu0 %v8162
        %v9252 = vpop.f32.mrf.mxu0
        %v9253 = vadd.f32 %v8736, %v9252
        %v9254 = vpop.f32.mrf.mxu0
        %v9255 = vpop.f32.mrf.mxu0
        %v9256 = vadd.f32 %v8736, %v9255
        %v9257 = vpop.f32.mrf.mxu0
        %9258 = vmatprep.mubr.bf16.mxu0 %v8227
        %9259 = vmatmul.mubr.bf16.gmra.mxu0 %v8163
        %v9260 = vpop.f32.mrf.mxu0
        %v9261 = vadd.f32 %v8736, %v9260
        %v9262 = vpop.f32.mrf.mxu0
        %v9263 = vpop.f32.mrf.mxu0
        %v9264 = vadd.f32 %v8736, %v9263
        %v9265 = vpop.f32.mrf.mxu0
        %9266 = vmatprep.mubr.bf16.mxu0 %v8228
        %9267 = vmatmul.mubr.bf16.gmra.mxu0 %v8164
        %v9268 = vpop.f32.mrf.mxu0
        %v9269 = vadd.f32 %v8736, %v9268
        %v9270 = vpop.f32.mrf.mxu0
        %v9271 = vpop.f32.mrf.mxu0
        %v9272 = vadd.f32 %v8736, %v9271
        %v9273 = vpop.f32.mrf.mxu0
        %9274 = vmatprep.mubr.bf16.mxu0 %v8229
        %9275 = vmatmul.mubr.bf16.gmra.mxu0 %v8165
        %v9276 = vpop.f32.mrf.mxu0
        %v9277 = vadd.f32 %v8736, %v9276
        %v9278 = vpop.f32.mrf.mxu0
        %v9279 = vpop.f32.mrf.mxu0
        %v9280 = vadd.f32 %v8736, %v9279
        %v9281 = vpop.f32.mrf.mxu0
        %9282 = vmatprep.mubr.bf16.mxu0 %v8230
        %9283 = vmatmul.mubr.bf16.gmra.mxu0 %v8166
        %v9284 = vpop.f32.mrf.mxu0
        %v9285 = vadd.f32 %v8736, %v9284
        %v9286 = vpop.f32.mrf.mxu0
        %v9287 = vpop.f32.mrf.mxu0
        %v9288 = vadd.f32 %v8736, %v9287
        %v9289 = vpop.f32.mrf.mxu0
        %9290 = vmatprep.mubr.bf16.mxu0 %v8231
        %9291 = vmatmul.mubr.bf16.gmra.mxu0 %v8167
        %v9292 = vpop.f32.mrf.mxu0
        %v9293 = vadd.f32 %v8736, %v9292
        %v9294 = vpop.f32.mrf.mxu0
        %v9295 = vpop.f32.mrf.mxu0
        %v9296 = vadd.f32 %v8736, %v9295
        %v9297 = vpop.f32.mrf.mxu0
        %9298 = vmatprep.mubr.bf16.mxu0 %v8232
        %9299 = vmatmul.mubr.bf16.gmra.mxu0 %v8168
        %v9300 = vpop.f32.mrf.mxu0
        %v9301 = vadd.f32 %v8736, %v9300
        %v9302 = vpop.f32.mrf.mxu0
        %v9303 = vpop.f32.mrf.mxu0
        %v9304 = vadd.f32 %v8736, %v9303
        %v9305 = vpop.f32.mrf.mxu0
        %9306 = vmatprep.mubr.bf16.mxu0 %v8233
        %9307 = vmatmul.mubr.bf16.gmra.mxu0 %v8169
        %v9308 = vpop.f32.mrf.mxu0
        %v9309 = vadd.f32 %v8736, %v9308
        %v9310 = vpop.f32.mrf.mxu0
        %v9311 = vpop.f32.mrf.mxu0
        %v9312 = vadd.f32 %v8736, %v9311
        %v9313 = vpop.f32.mrf.mxu0
        %9314 = vmatprep.mubr.bf16.mxu0 %v8234
        %9315 = vmatmul.mubr.bf16.gmra.mxu0 %v8170
        %v9316 = vpop.f32.mrf.mxu0
        %v9317 = vadd.f32 %v8736, %v9316
        %v9318 = vpop.f32.mrf.mxu0
        %v9319 = vpop.f32.mrf.mxu0
        %v9320 = vadd.f32 %v8736, %v9319
        %v9321 = vpop.f32.mrf.mxu0
        %9322 = vmatprep.mubr.bf16.mxu0 %v8235
        %9323 = vmatmul.mubr.bf16.gmra.mxu0 %v8171
        %v9324 = vpop.f32.mrf.mxu0
        %v9325 = vadd.f32 %v8736, %v9324
        %v9326 = vpop.f32.mrf.mxu0
        %v9327 = vpop.f32.mrf.mxu0
        %v9328 = vadd.f32 %v8736, %v9327
        %v9329 = vpop.f32.mrf.mxu0
        %9330 = vdwg.mxu0
        %9331 = vmatprep.subr.bf16.mxu0 0
        %9332 = vmatpush1.bf16.msra.mxu0 %v9049
        %9333 = vmatprep.subr.bf16.mxu0 0
        %9334 = vmatpush1.bf16.msra.mxu0 %v9048
        %9335 = vmatprep.subr.bf16.mxu0 0
        %9336 = vmatpush1.bf16.msra.mxu0 %v9047
        %9337 = vmatprep.subr.bf16.mxu0 0
        %9338 = vmatpush1.bf16.msra.mxu0 %v9046
        %9339 = vmatprep.subr.bf16.mxu0 0
        %9340 = vmatpush1.bf16.msra.mxu0 %v9045
        %9341 = vmatprep.subr.bf16.mxu0 0
        %9342 = vmatpush1.bf16.msra.mxu0 %v9044
        %9343 = vmatprep.subr.bf16.mxu0 0
        %9344 = vmatpush1.bf16.msra.mxu0 %v9043
        %9345 = vmatprep.subr.bf16.mxu0 0
        %9346 = vmatpush1.bf16.msra.mxu0 %v9042
        %9347 = vmatprep.subr.bf16.mxu0 0
        %9348 = vmatpush2.bf16.msra.mxu0 %v9057
        %9349 = vmatprep.subr.bf16.mxu0 0
        %9350 = vmatpush2.bf16.msra.mxu0 %v9056
        %9351 = vmatprep.subr.bf16.mxu0 0
        %9352 = vmatpush2.bf16.msra.mxu0 %v9055
        %9353 = vmatprep.subr.bf16.mxu0 0
        %9354 = vmatpush2.bf16.msra.mxu0 %v9054
        %9355 = vmatprep.subr.bf16.mxu0 0
        %9356 = vmatpush2.bf16.msra.mxu0 %v9053
        %9357 = vmatprep.subr.bf16.mxu0 0
        %9358 = vmatpush2.bf16.msra.mxu0 %v9052
        %9359 = vmatprep.subr.bf16.mxu0 0
        %9360 = vmatpush2.bf16.msra.mxu0 %v9051
        %9361 = vmatprep.subr.bf16.mxu0 0
        %9362 = vmatpush2.bf16.msra.mxu0 %v9050
        %9363 = vmatprep.mubr.bf16.mxu0 %v8364
        %9364 = vmatmul.mubr.bf16.gmra.mxu0 %v8284
        %v9365 = vpop.f32.mrf.mxu0
        %v9366 = vadd.f32 %v9205, %v9365
        %v9367 = vpop.f32.mrf.mxu0
        %v9368 = vpop.f32.mrf.mxu0
        %v9369 = vadd.f32 %v9208, %v9368
        %v9370 = vpop.f32.mrf.mxu0
        %9371 = vmatprep.mubr.bf16.mxu0 %v8365
        %9372 = vmatmul.mubr.bf16.gmra.mxu0 %v8285
        %v9373 = vpop.f32.mrf.mxu0
        %v9374 = vadd.f32 %v9213, %v9373
        %v9375 = vpop.f32.mrf.mxu0
        %v9376 = vpop.f32.mrf.mxu0
        %v9377 = vadd.f32 %v9216, %v9376
        %v9378 = vpop.f32.mrf.mxu0
        %9379 = vmatprep.mubr.bf16.mxu0 %v8366
        %9380 = vmatmul.mubr.bf16.gmra.mxu0 %v8286
        %v9381 = vpop.f32.mrf.mxu0
        %v9382 = vadd.f32 %v9221, %v9381
        %v9383 = vpop.f32.mrf.mxu0
        %v9384 = vpop.f32.mrf.mxu0
        %v9385 = vadd.f32 %v9224, %v9384
        %v9386 = vpop.f32.mrf.mxu0
        %9387 = vmatprep.mubr.bf16.mxu0 %v8367
        %9388 = vmatmul.mubr.bf16.gmra.mxu0 %v8287
        %v9389 = vpop.f32.mrf.mxu0
        %v9390 = vadd.f32 %v9229, %v9389
        %v9391 = vpop.f32.mrf.mxu0
        %v9392 = vpop.f32.mrf.mxu0
        %v9393 = vadd.f32 %v9232, %v9392
        %v9394 = vpop.f32.mrf.mxu0
        %9395 = vmatprep.mubr.bf16.mxu0 %v8368
        %9396 = vmatmul.mubr.bf16.gmra.mxu0 %v8288
        %v9397 = vpop.f32.mrf.mxu0
        %v9398 = vadd.f32 %v9237, %v9397
        %v9399 = vpop.f32.mrf.mxu0
        %v9400 = vpop.f32.mrf.mxu0
        %v9401 = vadd.f32 %v9240, %v9400
        %v9402 = vpop.f32.mrf.mxu0
        %9403 = vmatprep.mubr.bf16.mxu0 %v8369
        %9404 = vmatmul.mubr.bf16.gmra.mxu0 %v8289
        %v9405 = vpop.f32.mrf.mxu0
        %v9406 = vadd.f32 %v9245, %v9405
        %v9407 = vpop.f32.mrf.mxu0
        %v9408 = vpop.f32.mrf.mxu0
        %v9409 = vadd.f32 %v9248, %v9408
        %v9410 = vpop.f32.mrf.mxu0
        %9411 = vmatprep.mubr.bf16.mxu0 %v8370
        %9412 = vmatmul.mubr.bf16.gmra.mxu0 %v8290
        %v9413 = vpop.f32.mrf.mxu0
        %v9414 = vadd.f32 %v9253, %v9413
        %v9415 = vpop.f32.mrf.mxu0
        %v9416 = vpop.f32.mrf.mxu0
        %v9417 = vadd.f32 %v9256, %v9416
        %v9418 = vpop.f32.mrf.mxu0
        %9419 = vmatprep.mubr.bf16.mxu0 %v8371
        %9420 = vmatmul.mubr.bf16.gmra.mxu0 %v8291
        %v9421 = vpop.f32.mrf.mxu0
        %v9422 = vadd.f32 %v9261, %v9421
        %v9423 = vpop.f32.mrf.mxu0
        %v9424 = vpop.f32.mrf.mxu0
        %v9425 = vadd.f32 %v9264, %v9424
        %v9426 = vpop.f32.mrf.mxu0
        %9427 = vmatprep.mubr.bf16.mxu0 %v8372
        %9428 = vmatmul.mubr.bf16.gmra.mxu0 %v8292
        %v9429 = vpop.f32.mrf.mxu0
        %v9430 = vadd.f32 %v9269, %v9429
        %v9431 = vpop.f32.mrf.mxu0
        %v9432 = vpop.f32.mrf.mxu0
        %v9433 = vadd.f32 %v9272, %v9432
        %v9434 = vpop.f32.mrf.mxu0
        %9435 = vmatprep.mubr.bf16.mxu0 %v8373
        %9436 = vmatmul.mubr.bf16.gmra.mxu0 %v8293
        %v9437 = vpop.f32.mrf.mxu0
        %v9438 = vadd.f32 %v9277, %v9437
        %v9439 = vpop.f32.mrf.mxu0
        %v9440 = vpop.f32.mrf.mxu0
        %v9441 = vadd.f32 %v9280, %v9440
        %v9442 = vpop.f32.mrf.mxu0
        %9443 = vmatprep.mubr.bf16.mxu0 %v8374
        %9444 = vmatmul.mubr.bf16.gmra.mxu0 %v8294
        %v9445 = vpop.f32.mrf.mxu0
        %v9446 = vadd.f32 %v9285, %v9445
        %v9447 = vpop.f32.mrf.mxu0
        %v9448 = vpop.f32.mrf.mxu0
        %v9449 = vadd.f32 %v9288, %v9448
        %v9450 = vpop.f32.mrf.mxu0
        %9451 = vmatprep.mubr.bf16.mxu0 %v8375
        %9452 = vmatmul.mubr.bf16.gmra.mxu0 %v8295
        %v9453 = vpop.f32.mrf.mxu0
        %v9454 = vadd.f32 %v9293, %v9453
        %v9455 = vpop.f32.mrf.mxu0
        %v9456 = vpop.f32.mrf.mxu0
        %v9457 = vadd.f32 %v9296, %v9456
        %v9458 = vpop.f32.mrf.mxu0
        %9459 = vmatprep.mubr.bf16.mxu0 %v8376
        %9460 = vmatmul.mubr.bf16.gmra.mxu0 %v8296
        %v9461 = vpop.f32.mrf.mxu0
        %v9462 = vadd.f32 %v9301, %v9461
        %v9463 = vpop.f32.mrf.mxu0
        %v9464 = vpop.f32.mrf.mxu0
        %v9465 = vadd.f32 %v9304, %v9464
        %v9466 = vpop.f32.mrf.mxu0
        %9467 = vmatprep.mubr.bf16.mxu0 %v8377
        %9468 = vmatmul.mubr.bf16.gmra.mxu0 %v8297
        %v9469 = vpop.f32.mrf.mxu0
        %v9470 = vadd.f32 %v9309, %v9469
        %v9471 = vpop.f32.mrf.mxu0
        %v9472 = vpop.f32.mrf.mxu0
        %v9473 = vadd.f32 %v9312, %v9472
        %v9474 = vpop.f32.mrf.mxu0
        %9475 = vmatprep.mubr.bf16.mxu0 %v8378
        %9476 = vmatmul.mubr.bf16.gmra.mxu0 %v8298
        %v9477 = vpop.f32.mrf.mxu0
        %v9478 = vadd.f32 %v9317, %v9477
        %v9479 = vpop.f32.mrf.mxu0
        %v9480 = vpop.f32.mrf.mxu0
        %v9481 = vadd.f32 %v9320, %v9480
        %v9482 = vpop.f32.mrf.mxu0
        %9483 = vmatprep.mubr.bf16.mxu0 %v8379
        %9484 = vmatmul.mubr.bf16.gmra.mxu0 %v8299
        %v9485 = vpop.f32.mrf.mxu0
        %v9486 = vadd.f32 %v9325, %v9485
        %v9487 = vpop.f32.mrf.mxu0
        %v9488 = vpop.f32.mrf.mxu0
        %v9489 = vadd.f32 %v9328, %v9488
        %v9490 = vpop.f32.mrf.mxu0
        %9491 = vdwg.mxu0
        %9492 = vmatprep.subr.bf16.mxu0 0
        %9493 = vmatpush1.bf16.msra.mxu0 %v9065
        %9494 = vmatprep.subr.bf16.mxu0 0
        %9495 = vmatpush1.bf16.msra.mxu0 %v9064
        %9496 = vmatprep.subr.bf16.mxu0 0
        %9497 = vmatpush1.bf16.msra.mxu0 %v9063
        %9498 = vmatprep.subr.bf16.mxu0 0
        %9499 = vmatpush1.bf16.msra.mxu0 %v9062
        %9500 = vmatprep.subr.bf16.mxu0 0
        %9501 = vmatpush1.bf16.msra.mxu0 %v9061
        %9502 = vmatprep.subr.bf16.mxu0 0
        %9503 = vmatpush1.bf16.msra.mxu0 %v9060
        %9504 = vmatprep.subr.bf16.mxu0 0
        %9505 = vmatpush1.bf16.msra.mxu0 %v9059
        %9506 = vmatprep.subr.bf16.mxu0 0
        %9507 = vmatpush1.bf16.msra.mxu0 %v9058
        %9508 = vmatprep.subr.bf16.mxu0 0
        %9509 = vmatpush2.bf16.msra.mxu0 %v9073
        %9510 = vmatprep.subr.bf16.mxu0 0
        %9511 = vmatpush2.bf16.msra.mxu0 %v9072
        %9512 = vmatprep.subr.bf16.mxu0 0
        %9513 = vmatpush2.bf16.msra.mxu0 %v9071
        %9514 = vmatprep.subr.bf16.mxu0 0
        %9515 = vmatpush2.bf16.msra.mxu0 %v9070
        %9516 = vmatprep.subr.bf16.mxu0 0
        %9517 = vmatpush2.bf16.msra.mxu0 %v9069
        %9518 = vmatprep.subr.bf16.mxu0 0
        %9519 = vmatpush2.bf16.msra.mxu0 %v9068
        %9520 = vmatprep.subr.bf16.mxu0 0
        %9521 = vmatpush2.bf16.msra.mxu0 %v9067
        %9522 = vmatprep.subr.bf16.mxu0 0
        %9523 = vmatpush2.bf16.msra.mxu0 %v9066
        %9524 = vmatprep.mubr.bf16.mxu0 %v8492
        %9525 = vmatmul.mubr.bf16.gmra.mxu0 %v8428
        %v9526 = vpop.f32.mrf.mxu0
        %v9527 = vadd.f32 %v9366, %v9526
        %v9528 = vpop.f32.mrf.mxu0
        %v9529 = vpop.f32.mrf.mxu0
        %v9530 = vadd.f32 %v9369, %v9529
        %v9531 = vpop.f32.mrf.mxu0
        %9532 = vmatprep.mubr.bf16.mxu0 %v8493
        %9533 = vmatmul.mubr.bf16.gmra.mxu0 %v8429
        %v9534 = vpop.f32.mrf.mxu0
        %v9535 = vadd.f32 %v9374, %v9534
        %v9536 = vpop.f32.mrf.mxu0
        %v9537 = vpop.f32.mrf.mxu0
        %v9538 = vadd.f32 %v9377, %v9537
        %v9539 = vpop.f32.mrf.mxu0
        %9540 = vmatprep.mubr.bf16.mxu0 %v8494
        %9541 = vmatmul.mubr.bf16.gmra.mxu0 %v8430
        %v9542 = vpop.f32.mrf.mxu0
        %v9543 = vadd.f32 %v9382, %v9542
        %v9544 = vpop.f32.mrf.mxu0
        %v9545 = vpop.f32.mrf.mxu0
        %v9546 = vadd.f32 %v9385, %v9545
        %v9547 = vpop.f32.mrf.mxu0
        %9548 = vmatprep.mubr.bf16.mxu0 %v8495
        %9549 = vmatmul.mubr.bf16.gmra.mxu0 %v8431
        %v9550 = vpop.f32.mrf.mxu0
        %v9551 = vadd.f32 %v9390, %v9550
        %v9552 = vpop.f32.mrf.mxu0
        %v9553 = vpop.f32.mrf.mxu0
        %v9554 = vadd.f32 %v9393, %v9553
        %v9555 = vpop.f32.mrf.mxu0
        %9556 = vmatprep.mubr.bf16.mxu0 %v8496
        %9557 = vmatmul.mubr.bf16.gmra.mxu0 %v8432
        %v9558 = vpop.f32.mrf.mxu0
        %v9559 = vadd.f32 %v9398, %v9558
        %v9560 = vpop.f32.mrf.mxu0
        %v9561 = vpop.f32.mrf.mxu0
        %v9562 = vadd.f32 %v9401, %v9561
        %v9563 = vpop.f32.mrf.mxu0
        %9564 = vmatprep.mubr.bf16.mxu0 %v8497
        %9565 = vmatmul.mubr.bf16.gmra.mxu0 %v8433
        %v9566 = vpop.f32.mrf.mxu0
        %v9567 = vadd.f32 %v9406, %v9566
        %v9568 = vpop.f32.mrf.mxu0
        %v9569 = vpop.f32.mrf.mxu0
        %v9570 = vadd.f32 %v9409, %v9569
        %v9571 = vpop.f32.mrf.mxu0
        %9572 = vmatprep.mubr.bf16.mxu0 %v8498
        %9573 = vmatmul.mubr.bf16.gmra.mxu0 %v8434
        %v9574 = vpop.f32.mrf.mxu0
        %v9575 = vadd.f32 %v9414, %v9574
        %v9576 = vpop.f32.mrf.mxu0
        %v9577 = vpop.f32.mrf.mxu0
        %v9578 = vadd.f32 %v9417, %v9577
        %v9579 = vpop.f32.mrf.mxu0
        %9580 = vmatprep.mubr.bf16.mxu0 %v8499
        %9581 = vmatmul.mubr.bf16.gmra.mxu0 %v8435
        %v9582 = vpop.f32.mrf.mxu0
        %v9583 = vadd.f32 %v9422, %v9582
        %v9584 = vpop.f32.mrf.mxu0
        %v9585 = vpop.f32.mrf.mxu0
        %v9586 = vadd.f32 %v9425, %v9585
        %v9587 = vpop.f32.mrf.mxu0
        %9588 = vmatprep.mubr.bf16.mxu0 %v8500
        %9589 = vmatmul.mubr.bf16.gmra.mxu0 %v8436
        %v9590 = vpop.f32.mrf.mxu0
        %v9591 = vadd.f32 %v9430, %v9590
        %v9592 = vpop.f32.mrf.mxu0
        %v9593 = vpop.f32.mrf.mxu0
        %v9594 = vadd.f32 %v9433, %v9593
        %v9595 = vpop.f32.mrf.mxu0
        %9596 = vmatprep.mubr.bf16.mxu0 %v8501
        %9597 = vmatmul.mubr.bf16.gmra.mxu0 %v8437
        %v9598 = vpop.f32.mrf.mxu0
        %v9599 = vadd.f32 %v9438, %v9598
        %v9600 = vpop.f32.mrf.mxu0
        %v9601 = vpop.f32.mrf.mxu0
        %v9602 = vadd.f32 %v9441, %v9601
        %v9603 = vpop.f32.mrf.mxu0
        %9604 = vmatprep.mubr.bf16.mxu0 %v8502
        %9605 = vmatmul.mubr.bf16.gmra.mxu0 %v8438
        %v9606 = vpop.f32.mrf.mxu0
        %v9607 = vadd.f32 %v9446, %v9606
        %v9608 = vpop.f32.mrf.mxu0
        %v9609 = vpop.f32.mrf.mxu0
        %v9610 = vadd.f32 %v9449, %v9609
        %v9611 = vpop.f32.mrf.mxu0
        %9612 = vmatprep.mubr.bf16.mxu0 %v8503
        %9613 = vmatmul.mubr.bf16.gmra.mxu0 %v8439
        %v9614 = vpop.f32.mrf.mxu0
        %v9615 = vadd.f32 %v9454, %v9614
        %v9616 = vpop.f32.mrf.mxu0
        %v9617 = vpop.f32.mrf.mxu0
        %v9618 = vadd.f32 %v9457, %v9617
        %v9619 = vpop.f32.mrf.mxu0
        %9620 = vmatprep.mubr.bf16.mxu0 %v8504
        %9621 = vmatmul.mubr.bf16.gmra.mxu0 %v8440
        %v9622 = vpop.f32.mrf.mxu0
        %v9623 = vadd.f32 %v9462, %v9622
        %v9624 = vpop.f32.mrf.mxu0
        %v9625 = vpop.f32.mrf.mxu0
        %v9626 = vadd.f32 %v9465, %v9625
        %v9627 = vpop.f32.mrf.mxu0
        %9628 = vmatprep.mubr.bf16.mxu0 %v8505
        %9629 = vmatmul.mubr.bf16.gmra.mxu0 %v8441
        %v9630 = vpop.f32.mrf.mxu0
        %v9631 = vadd.f32 %v9470, %v9630
        %v9632 = vpop.f32.mrf.mxu0
        %v9633 = vpop.f32.mrf.mxu0
        %v9634 = vadd.f32 %v9473, %v9633
        %v9635 = vpop.f32.mrf.mxu0
        %9636 = vmatprep.mubr.bf16.mxu0 %v8506
        %9637 = vmatmul.mubr.bf16.gmra.mxu0 %v8442
        %v9638 = vpop.f32.mrf.mxu0
        %v9639 = vadd.f32 %v9478, %v9638
        %v9640 = vpop.f32.mrf.mxu0
        %v9641 = vpop.f32.mrf.mxu0
        %v9642 = vadd.f32 %v9481, %v9641
        %v9643 = vpop.f32.mrf.mxu0
        %9644 = vmatprep.mubr.bf16.mxu0 %v8507
        %9645 = vmatmul.mubr.bf16.gmra.mxu0 %v8443
        %v9646 = vpop.f32.mrf.mxu0
        %v9647 = vadd.f32 %v9486, %v9646
        %v9648 = vpop.f32.mrf.mxu0
        %v9649 = vpop.f32.mrf.mxu0
        %v9650 = vadd.f32 %v9489, %v9649
        %v9651 = vpop.f32.mrf.mxu0
        %9652 = vdwg.mxu0
        %9653 = vmatprep.subr.bf16.mxu0 0
        %9654 = vmatpush1.bf16.msra.mxu0 %v9081
        %9655 = vmatprep.subr.bf16.mxu0 0
        %9656 = vmatpush1.bf16.msra.mxu0 %v9080
        %9657 = vmatprep.subr.bf16.mxu0 0
        %9658 = vmatpush1.bf16.msra.mxu0 %v9079
        %9659 = vmatprep.subr.bf16.mxu0 0
        %9660 = vmatpush1.bf16.msra.mxu0 %v9078
        %9661 = vmatprep.subr.bf16.mxu0 0
        %9662 = vmatpush1.bf16.msra.mxu0 %v9077
        %9663 = vmatprep.subr.bf16.mxu0 0
        %9664 = vmatpush1.bf16.msra.mxu0 %v9076
        %9665 = vmatprep.subr.bf16.mxu0 0
        %9666 = vmatpush1.bf16.msra.mxu0 %v9075
        %9667 = vmatprep.subr.bf16.mxu0 0
        %9668 = vmatpush1.bf16.msra.mxu0 %v9074
        %9669 = vmatprep.subr.bf16.mxu0 0
        %9670 = vmatpush2.bf16.msra.mxu0 %v9089
        %9671 = vmatprep.subr.bf16.mxu0 0
        %9672 = vmatpush2.bf16.msra.mxu0 %v9088
        %9673 = vmatprep.subr.bf16.mxu0 0
        %9674 = vmatpush2.bf16.msra.mxu0 %v9087
        %9675 = vmatprep.subr.bf16.mxu0 0
        %9676 = vmatpush2.bf16.msra.mxu0 %v9086
        %9677 = vmatprep.subr.bf16.mxu0 0
        %9678 = vmatpush2.bf16.msra.mxu0 %v9085
        %9679 = vmatprep.subr.bf16.mxu0 0
        %9680 = vmatpush2.bf16.msra.mxu0 %v9084
        %9681 = vmatprep.subr.bf16.mxu0 0
        %9682 = vmatpush2.bf16.msra.mxu0 %v9083
        %9683 = vmatprep.subr.bf16.mxu0 0
        %9684 = vmatpush2.bf16.msra.mxu0 %v9082
        %9685 = vmatprep.mubr.bf16.mxu0 %v8636
        %9686 = vmatmul.mubr.bf16.gmra.mxu0 %v8572
        %v9687 = vpop.f32.mrf.mxu0
        %v9688 = vadd.f32 %v9527, %v9687
        %v9689 = vpop.f32.mrf.mxu0
        %v9690 = vpop.f32.mrf.mxu0
        %v9691 = vadd.f32 %v9530, %v9690
        %v9692 = vpop.f32.mrf.mxu0
        %9693 = vmatprep.mubr.bf16.mxu0 %v8637
        %9694 = vmatmul.mubr.bf16.gmra.mxu0 %v8573
        %v9695 = vpop.f32.mrf.mxu0
        %v9696 = vadd.f32 %v9535, %v9695
        %v9697 = vpop.f32.mrf.mxu0
        %v9698 = vpop.f32.mrf.mxu0
        %v9699 = vadd.f32 %v9538, %v9698
        %v9700 = vpop.f32.mrf.mxu0
        %9701 = vmatprep.mubr.bf16.mxu0 %v8638
        %9702 = vmatmul.mubr.bf16.gmra.mxu0 %v8574
        %v9703 = vpop.f32.mrf.mxu0
        %v9704 = vadd.f32 %v9543, %v9703
        %v9705 = vpop.f32.mrf.mxu0
        %v9706 = vpop.f32.mrf.mxu0
        %v9707 = vadd.f32 %v9546, %v9706
        %v9708 = vpop.f32.mrf.mxu0
        %9709 = vmatprep.mubr.bf16.mxu0 %v8639
        %9710 = vmatmul.mubr.bf16.gmra.mxu0 %v8575
        %v9711 = vpop.f32.mrf.mxu0
        %v9712 = vadd.f32 %v9551, %v9711
        %v9713 = vpop.f32.mrf.mxu0
        %v9714 = vpop.f32.mrf.mxu0
        %v9715 = vadd.f32 %v9554, %v9714
        %v9716 = vpop.f32.mrf.mxu0
        %9717 = vmatprep.mubr.bf16.mxu0 %v8640
        %9718 = vmatmul.mubr.bf16.gmra.mxu0 %v8576
        %v9719 = vpop.f32.mrf.mxu0
        %v9720 = vadd.f32 %v9559, %v9719
        %v9721 = vpop.f32.mrf.mxu0
        %v9722 = vpop.f32.mrf.mxu0
        %v9723 = vadd.f32 %v9562, %v9722
        %v9724 = vpop.f32.mrf.mxu0
        %9725 = vmatprep.mubr.bf16.mxu0 %v8641
        %9726 = vmatmul.mubr.bf16.gmra.mxu0 %v8577
        %v9727 = vpop.f32.mrf.mxu0
        %v9728 = vadd.f32 %v9567, %v9727
        %v9729 = vpop.f32.mrf.mxu0
        %v9730 = vpop.f32.mrf.mxu0
        %v9731 = vadd.f32 %v9570, %v9730
        %v9732 = vpop.f32.mrf.mxu0
        %9733 = vmatprep.mubr.bf16.mxu0 %v8642
        %9734 = vmatmul.mubr.bf16.gmra.mxu0 %v8578
        %v9735 = vpop.f32.mrf.mxu0
        %v9736 = vadd.f32 %v9575, %v9735
        %v9737 = vpop.f32.mrf.mxu0
        %v9738 = vpop.f32.mrf.mxu0
        %v9739 = vadd.f32 %v9578, %v9738
        %v9740 = vpop.f32.mrf.mxu0
        %9741 = vmatprep.mubr.bf16.mxu0 %v8643
        %9742 = vmatmul.mubr.bf16.gmra.mxu0 %v8579
        %v9743 = vpop.f32.mrf.mxu0
        %v9744 = vadd.f32 %v9583, %v9743
        %v9745 = vpop.f32.mrf.mxu0
        %v9746 = vpop.f32.mrf.mxu0
        %v9747 = vadd.f32 %v9586, %v9746
        %v9748 = vpop.f32.mrf.mxu0
        %9749 = vmatprep.mubr.bf16.mxu0 %v8644
        %9750 = vmatmul.mubr.bf16.gmra.mxu0 %v8580
        %v9751 = vpop.f32.mrf.mxu0
        %v9752 = vadd.f32 %v9591, %v9751
        %v9753 = vpop.f32.mrf.mxu0
        %v9754 = vpop.f32.mrf.mxu0
        %v9755 = vadd.f32 %v9594, %v9754
        %v9756 = vpop.f32.mrf.mxu0
        %9757 = vmatprep.mubr.bf16.mxu0 %v8645
        %9758 = vmatmul.mubr.bf16.gmra.mxu0 %v8581
        %v9759 = vpop.f32.mrf.mxu0
        %v9760 = vadd.f32 %v9599, %v9759
        %v9761 = vpop.f32.mrf.mxu0
        %v9762 = vpop.f32.mrf.mxu0
        %v9763 = vadd.f32 %v9602, %v9762
        %v9764 = vpop.f32.mrf.mxu0
        %9765 = vmatprep.mubr.bf16.mxu0 %v8646
        %9766 = vmatmul.mubr.bf16.gmra.mxu0 %v8582
        %v9767 = vpop.f32.mrf.mxu0
        %v9768 = vadd.f32 %v9607, %v9767
        %v9769 = vpop.f32.mrf.mxu0
        %v9770 = vpop.f32.mrf.mxu0
        %v9771 = vadd.f32 %v9610, %v9770
        %v9772 = vpop.f32.mrf.mxu0
        %9773 = vmatprep.mubr.bf16.mxu0 %v8647
        %9774 = vmatmul.mubr.bf16.gmra.mxu0 %v8583
        %v9775 = vpop.f32.mrf.mxu0
        %v9776 = vadd.f32 %v9615, %v9775
        %v9777 = vpop.f32.mrf.mxu0
        %v9778 = vpop.f32.mrf.mxu0
        %v9779 = vadd.f32 %v9618, %v9778
        %v9780 = vpop.f32.mrf.mxu0
        %9781 = vmatprep.mubr.bf16.mxu0 %v8648
        %9782 = vmatmul.mubr.bf16.gmra.mxu0 %v8584
        %v9783 = vpop.f32.mrf.mxu0
        %v9784 = vadd.f32 %v9623, %v9783
        %v9785 = vpop.f32.mrf.mxu0
        %v9786 = vpop.f32.mrf.mxu0
        %v9787 = vadd.f32 %v9626, %v9786
        %v9788 = vpop.f32.mrf.mxu0
        %9789 = vmatprep.mubr.bf16.mxu0 %v8649
        %9790 = vmatmul.mubr.bf16.gmra.mxu0 %v8585
        %v9791 = vpop.f32.mrf.mxu0
        %v9792 = vadd.f32 %v9631, %v9791
        %v9793 = vpop.f32.mrf.mxu0
        %v9794 = vpop.f32.mrf.mxu0
        %v9795 = vadd.f32 %v9634, %v9794
        %v9796 = vpop.f32.mrf.mxu0
        %9797 = vmatprep.mubr.bf16.mxu0 %v8650
        %9798 = vmatmul.mubr.bf16.gmra.mxu0 %v8586
        %v9799 = vpop.f32.mrf.mxu0
        %v9800 = vadd.f32 %v9639, %v9799
        %v9801 = vpop.f32.mrf.mxu0
        %v9802 = vpop.f32.mrf.mxu0
        %v9803 = vadd.f32 %v9642, %v9802
        %v9804 = vpop.f32.mrf.mxu0
        %9805 = vmatprep.mubr.bf16.mxu0 %v8651
        %9806 = vmatmul.mubr.bf16.gmra.mxu0 %v8587
        %v9807 = vpop.f32.mrf.mxu0
        %v9808 = vadd.f32 %v9647, %v9807
        %v9809 = vpop.f32.mrf.mxu0
        %v9810 = vpop.f32.mrf.mxu0
        %v9811 = vadd.f32 %v9650, %v9810
        %v9812 = vpop.f32.mrf.mxu0
        %9813 = vdwg.mxu0
        %9814 = vmatprep.subr.bf16.mxu0 0
        %9815 = vmatpush1.bf16.msra.mxu0 %v9097
        %9816 = vmatprep.subr.bf16.mxu0 0
        %9817 = vmatpush1.bf16.msra.mxu0 %v9096
        %9818 = vmatprep.subr.bf16.mxu0 0
        %9819 = vmatpush1.bf16.msra.mxu0 %v9095
        %9820 = vmatprep.subr.bf16.mxu0 0
        %9821 = vmatpush1.bf16.msra.mxu0 %v9094
        %9822 = vmatprep.subr.bf16.mxu0 0
        %9823 = vmatpush1.bf16.msra.mxu0 %v9093
        %9824 = vmatprep.subr.bf16.mxu0 0
        %9825 = vmatpush1.bf16.msra.mxu0 %v9092
        %9826 = vmatprep.subr.bf16.mxu0 0
        %9827 = vmatpush1.bf16.msra.mxu0 %v9091
        %9828 = vmatprep.subr.bf16.mxu0 0
        %9829 = vmatpush1.bf16.msra.mxu0 %v9090
        %9830 = vmatprep.subr.bf16.mxu0 0
        %9831 = vmatpush2.bf16.msra.mxu0 0
        %9832 = vmatprep.subr.bf16.mxu0 0
        %9833 = vmatpush2.bf16.msra.mxu0 0
        %9834 = vmatprep.subr.bf16.mxu0 0
        %9835 = vmatpush2.bf16.msra.mxu0 0
        %9836 = vmatprep.subr.bf16.mxu0 0
        %9837 = vmatpush2.bf16.msra.mxu0 0
        %9838 = vmatprep.subr.bf16.mxu0 0
        %9839 = vmatpush2.bf16.msra.mxu0 0
        %9840 = vmatprep.subr.bf16.mxu0 0
        %9841 = vmatpush2.bf16.msra.mxu0 0
        %9842 = vmatprep.subr.bf16.mxu0 0
        %9843 = vmatpush2.bf16.msra.mxu0 0
        %9844 = vmatprep.subr.bf16.mxu0 0
        %9845 = vmatpush2.bf16.msra.mxu0 0
        %9846 = vmatprep.mubr.bf16.mxu0 0
        %9847 = vmatmul.mubr.bf16.gmra.mxu0 %v8700
        %v9848 = vpop.f32.mrf.mxu0
        %v9849 = vadd.f32 %v9688, %v9848
        %v9850 = vpop.f32.mrf.mxu0
        %v9851 = vpop.f32.mrf.mxu0
        %v9852 = vadd.f32 %v9691, %v9851
        %v9853 = vpop.f32.mrf.mxu0
        %9854 = vmatprep.mubr.bf16.mxu0 0
        %9855 = vmatmul.mubr.bf16.gmra.mxu0 %v8701
        %v9856 = vpop.f32.mrf.mxu0
        %v9857 = vadd.f32 %v9696, %v9856
        %v9858 = vpop.f32.mrf.mxu0
        %v9859 = vpop.f32.mrf.mxu0
        %v9860 = vadd.f32 %v9699, %v9859
        %v9861 = vpop.f32.mrf.mxu0
        %9862 = vmatprep.mubr.bf16.mxu0 0
        %9863 = vmatmul.mubr.bf16.gmra.mxu0 %v8702
        %v9864 = vpop.f32.mrf.mxu0
        %v9865 = vadd.f32 %v9704, %v9864
        %v9866 = vpop.f32.mrf.mxu0
        %v9867 = vpop.f32.mrf.mxu0
        %v9868 = vadd.f32 %v9707, %v9867
        %v9869 = vpop.f32.mrf.mxu0
        %9870 = vmatprep.mubr.bf16.mxu0 0
        %9871 = vmatmul.mubr.bf16.gmra.mxu0 %v8703
        %v9872 = vpop.f32.mrf.mxu0
        %v9873 = vadd.f32 %v9712, %v9872
        %v9874 = vpop.f32.mrf.mxu0
        %v9875 = vpop.f32.mrf.mxu0
        %v9876 = vadd.f32 %v9715, %v9875
        %v9877 = vpop.f32.mrf.mxu0
        %9878 = vmatprep.mubr.bf16.mxu0 0
        %9879 = vmatmul.mubr.bf16.gmra.mxu0 %v8704
        %v9880 = vpop.f32.mrf.mxu0
        %v9881 = vadd.f32 %v9720, %v9880
        %v9882 = vpop.f32.mrf.mxu0
        %v9883 = vpop.f32.mrf.mxu0
        %v9884 = vadd.f32 %v9723, %v9883
        %v9885 = vpop.f32.mrf.mxu0
        %9886 = vmatprep.mubr.bf16.mxu0 0
        %9887 = vmatmul.mubr.bf16.gmra.mxu0 %v8705
        %v9888 = vpop.f32.mrf.mxu0
        %v9889 = vadd.f32 %v9728, %v9888
        %v9890 = vpop.f32.mrf.mxu0
        %v9891 = vpop.f32.mrf.mxu0
        %v9892 = vadd.f32 %v9731, %v9891
        %v9893 = vpop.f32.mrf.mxu0
        %9894 = vmatprep.mubr.bf16.mxu0 0
        %9895 = vmatmul.mubr.bf16.gmra.mxu0 %v8706
        %v9896 = vpop.f32.mrf.mxu0
        %v9897 = vadd.f32 %v9736, %v9896
        %v9898 = vpop.f32.mrf.mxu0
        %v9899 = vpop.f32.mrf.mxu0
        %v9900 = vadd.f32 %v9739, %v9899
        %v9901 = vpop.f32.mrf.mxu0
        %9902 = vmatprep.mubr.bf16.mxu0 0
        %9903 = vmatmul.mubr.bf16.gmra.mxu0 %v8707
        %v9904 = vpop.f32.mrf.mxu0
        %v9905 = vadd.f32 %v9744, %v9904
        %v9906 = vpop.f32.mrf.mxu0
        %v9907 = vpop.f32.mrf.mxu0
        %v9908 = vadd.f32 %v9747, %v9907
        %v9909 = vpop.f32.mrf.mxu0
        %9910 = vmatprep.mubr.bf16.mxu0 0
        %9911 = vmatmul.mubr.bf16.gmra.mxu0 %v8708
        %v9912 = vpop.f32.mrf.mxu0
        %v9913 = vadd.f32 %v9752, %v9912
        %v9914 = vpop.f32.mrf.mxu0
        %v9915 = vpop.f32.mrf.mxu0
        %v9916 = vadd.f32 %v9755, %v9915
        %v9917 = vpop.f32.mrf.mxu0
        %9918 = vmatprep.mubr.bf16.mxu0 0
        %9919 = vmatmul.mubr.bf16.gmra.mxu0 %v8709
        %v9920 = vpop.f32.mrf.mxu0
        %v9921 = vadd.f32 %v9760, %v9920
        %v9922 = vpop.f32.mrf.mxu0
        %v9923 = vpop.f32.mrf.mxu0
        %v9924 = vadd.f32 %v9763, %v9923
        %v9925 = vpop.f32.mrf.mxu0
        %9926 = vmatprep.mubr.bf16.mxu0 0
        %9927 = vmatmul.mubr.bf16.gmra.mxu0 %v8710
        %v9928 = vpop.f32.mrf.mxu0
        %v9929 = vadd.f32 %v9768, %v9928
        %v9930 = vpop.f32.mrf.mxu0
        %v9931 = vpop.f32.mrf.mxu0
        %v9932 = vadd.f32 %v9771, %v9931
        %v9933 = vpop.f32.mrf.mxu0
        %9934 = vmatprep.mubr.bf16.mxu0 0
        %9935 = vmatmul.mubr.bf16.gmra.mxu0 %v8711
        %v9936 = vpop.f32.mrf.mxu0
        %v9937 = vadd.f32 %v9776, %v9936
        %v9938 = vpop.f32.mrf.mxu0
        %v9939 = vpop.f32.mrf.mxu0
        %v9940 = vadd.f32 %v9779, %v9939
        %v9941 = vpop.f32.mrf.mxu0
        %9942 = vmatprep.mubr.bf16.mxu0 0
        %9943 = vmatmul.mubr.bf16.gmra.mxu0 %v8712
        %v9944 = vpop.f32.mrf.mxu0
        %v9945 = vadd.f32 %v9784, %v9944
        %v9946 = vpop.f32.mrf.mxu0
        %v9947 = vpop.f32.mrf.mxu0
        %v9948 = vadd.f32 %v9787, %v9947
        %v9949 = vpop.f32.mrf.mxu0
        %9950 = vmatprep.mubr.bf16.mxu0 0
        %9951 = vmatmul.mubr.bf16.gmra.mxu0 %v8713
        %v9952 = vpop.f32.mrf.mxu0
        %v9953 = vadd.f32 %v9792, %v9952
        %v9954 = vpop.f32.mrf.mxu0
        %v9955 = vpop.f32.mrf.mxu0
        %v9956 = vadd.f32 %v9795, %v9955
        %v9957 = vpop.f32.mrf.mxu0
        %9958 = vmatprep.mubr.bf16.mxu0 0
        %9959 = vmatmul.mubr.bf16.gmra.mxu0 %v8714
        %v9960 = vpop.f32.mrf.mxu0
        %v9961 = vadd.f32 %v9800, %v9960
        %v9962 = vpop.f32.mrf.mxu0
        %v9963 = vpop.f32.mrf.mxu0
        %v9964 = vadd.f32 %v9803, %v9963
        %v9965 = vpop.f32.mrf.mxu0
        %9966 = vmatprep.mubr.bf16.mxu0 0
        %9967 = vmatmul.mubr.bf16.gmra.mxu0 %v8715
        %v9968 = vpop.f32.mrf.mxu0
        %v9969 = vadd.f32 %v9808, %v9968
        %v9970 = vpop.f32.mrf.mxu0
        %v9971 = vpop.f32.mrf.mxu0
        %v9972 = vadd.f32 %v9811, %v9971
        %v9973 = vpop.f32.mrf.mxu0
        %9974 = vdwg.mxu0
        %vm9975 = vcmp.gt.f32.partialorder %v9849, 0.0
        %vm9976 = vcmp.gt.f32.partialorder %v9852, 0.0
        %vm9977 = vcmp.gt.f32.partialorder %v9857, 0.0
        %vm9978 = vcmp.gt.f32.partialorder %v9860, 0.0
        %vm9979 = vcmp.gt.f32.partialorder %v9865, 0.0
        %vm9980 = vcmp.gt.f32.partialorder %v9868, 0.0
        %vm9981 = vcmp.gt.f32.partialorder %v9873, 0.0
        %vm9982 = vcmp.gt.f32.partialorder %v9876, 0.0
        %vm9983 = vcmp.gt.f32.partialorder %v9881, 0.0
        %vm9984 = vcmp.gt.f32.partialorder %v9884, 0.0
        %vm9985 = vcmp.gt.f32.partialorder %v9889, 0.0
        %vm9986 = vcmp.gt.f32.partialorder %v9892, 0.0
        %vm9987 = vcmp.gt.f32.partialorder %v9897, 0.0
        %vm9988 = vcmp.gt.f32.partialorder %v9900, 0.0
        %vm9989 = vcmp.gt.f32.partialorder %v9905, 0.0
        %vm9990 = vcmp.gt.f32.partialorder %v9908, 0.0
        %vm9991 = vcmp.gt.f32.partialorder %v9913, 0.0
        %vm9992 = vcmp.gt.f32.partialorder %v9916, 0.0
        %vm9993 = vcmp.gt.f32.partialorder %v9921, 0.0
        %vm9994 = vcmp.gt.f32.partialorder %v9924, 0.0
        %vm9995 = vcmp.gt.f32.partialorder %v9929, 0.0
        %vm9996 = vcmp.gt.f32.partialorder %v9932, 0.0
        %vm9997 = vcmp.gt.f32.partialorder %v9937, 0.0
        %vm9998 = vcmp.gt.f32.partialorder %v9940, 0.0
        %vm9999 = vcmp.gt.f32.partialorder %v9945, 0.0
        %vm10000 = vcmp.gt.f32.partialorder %v9948, 0.0
        %vm10001 = vcmp.gt.f32.partialorder %v9953, 0.0
        %vm10002 = vcmp.gt.f32.partialorder %v9956, 0.0
        %vm10003 = vcmp.gt.f32.partialorder %v9961, 0.0
        %vm10004 = vcmp.gt.f32.partialorder %v9964, 0.0
        %vm10005 = vcmp.gt.f32.partialorder %v9969, 0.0
        %vm10006 = vcmp.gt.f32.partialorder %v9972, 0.0
        %v10007 = vmul.f32 %v9849, 0.2
        %v10008 = vmul.f32 %v9852, 0.2
        %v10009 = vmul.f32 %v9857, 0.2
        %v10010 = vmul.f32 %v9860, 0.2
        %v10011 = vmul.f32 %v9865, 0.2
        %v10012 = vmul.f32 %v9868, 0.2
        %v10013 = vmul.f32 %v9873, 0.2
        %v10014 = vmul.f32 %v9876, 0.2
        %v10015 = vmul.f32 %v9881, 0.2
        %v10016 = vmul.f32 %v9884, 0.2
        %v10017 = vmul.f32 %v9889, 0.2
        %v10018 = vmul.f32 %v9892, 0.2
        %v10019 = vmul.f32 %v9897, 0.2
        %v10020 = vmul.f32 %v9900, 0.2
        %v10021 = vmul.f32 %v9905, 0.2
        %v10022 = vmul.f32 %v9908, 0.2
        %v10023 = vmul.f32 %v9913, 0.2
        %v10024 = vmul.f32 %v9916, 0.2
        %v10025 = vmul.f32 %v9921, 0.2
        %v10026 = vmul.f32 %v9924, 0.2
        %v10027 = vmul.f32 %v9929, 0.2
        %v10028 = vmul.f32 %v9932, 0.2
        %v10029 = vmul.f32 %v9937, 0.2
        %v10030 = vmul.f32 %v9940, 0.2
        %v10031 = vmul.f32 %v9945, 0.2
        %v10032 = vmul.f32 %v9948, 0.2
        %v10033 = vmul.f32 %v9953, 0.2
        %v10034 = vmul.f32 %v9956, 0.2
        %v10035 = vmul.f32 %v9961, 0.2
        %v10036 = vmul.f32 %v9964, 0.2
        %v10037 = vmul.f32 %v9969, 0.2
        %v10038 = vmul.f32 %v9972, 0.2
        %v10039 = vsel %vm9975, %v9849, %v10007
        %v10040 = vsel %vm9976, %v9852, %v10008
        %v10041 = vsel %vm9977, %v9857, %v10009
        %v10042 = vsel %vm9978, %v9860, %v10010
        %v10043 = vsel %vm9979, %v9865, %v10011
        %v10044 = vsel %vm9980, %v9868, %v10012
        %v10045 = vsel %vm9981, %v9873, %v10013
        %v10046 = vsel %vm9982, %v9876, %v10014
        %v10047 = vsel %vm9983, %v9881, %v10015
        %v10048 = vsel %vm9984, %v9884, %v10016
        %v10049 = vsel %vm9985, %v9889, %v10017
        %v10050 = vsel %vm9986, %v9892, %v10018
        %v10051 = vsel %vm9987, %v9897, %v10019
        %v10052 = vsel %vm9988, %v9900, %v10020
        %v10053 = vsel %vm9989, %v9905, %v10021
        %v10054 = vsel %vm9990, %v9908, %v10022
        %v10055 = vsel %vm9991, %v9913, %v10023
        %v10056 = vsel %vm9992, %v9916, %v10024
        %v10057 = vsel %vm9993, %v9921, %v10025
        %v10058 = vsel %vm9994, %v9924, %v10026
        %v10059 = vsel %vm9995, %v9929, %v10027
        %v10060 = vsel %vm9996, %v9932, %v10028
        %v10061 = vsel %vm9997, %v9937, %v10029
        %v10062 = vsel %vm9998, %v9940, %v10030
        %v10063 = vsel %vm9999, %v9945, %v10031
        %v10064 = vsel %vm10000, %v9948, %v10032
        %v10065 = vsel %vm10001, %v9953, %v10033
        %v10066 = vsel %vm10002, %v9956, %v10034
        %v10067 = vsel %vm10003, %v9961, %v10035
        %v10068 = vsel %vm10004, %v9964, %v10036
        %v10069 = vsel %vm10005, %v9969, %v10037
        %v10070 = vsel %vm10006, %v9972, %v10038
        %10071 = vst [vmem:[%s271] sm:$0xff] %v10039
        %10072 = vst [vmem:[%s271 + $0x8] sm:$0xff] %v10040
        %10073 = vst [vmem:[%s271 + $0x10] sm:$0xff] %v10041
        %10074 = vst [vmem:[%s271 + $0x18] sm:$0xff] %v10042
        %10075 = vst [vmem:[%s271 + $0x20] sm:$0xff] %v10043
        %10076 = vst [vmem:[%s271 + $0x28] sm:$0xff] %v10044
        %10077 = vst [vmem:[%s271 + $0x30] sm:$0xff] %v10045
        %10078 = vst [vmem:[%s271 + $0x38] sm:$0xff] %v10046
        %10079 = vst [vmem:[%s271 + $0x40] sm:$0xff] %v10047
        %10080 = vst [vmem:[%s271 + $0x48] sm:$0xff] %v10048
        %10081 = vst [vmem:[%s271 + $0x50] sm:$0xff] %v10049
        %10082 = vst [vmem:[%s271 + $0x58] sm:$0xff] %v10050
        %10083 = vst [vmem:[%s271 + $0x60] sm:$0xff] %v10051
        %10084 = vst [vmem:[%s271 + $0x68] sm:$0xff] %v10052
        %10085 = vst [vmem:[%s271 + $0x70] sm:$0xff] %v10053
        %10086 = vst [vmem:[%s271 + $0x78] sm:$0xff] %v10054
        %10087 = vst [vmem:[%s271 + $0x80] sm:$0xff] %v10055
        %10088 = vst [vmem:[%s271 + $0x88] sm:$0xff] %v10056
        %10089 = vst [vmem:[%s271 + $0x90] sm:$0xff] %v10057
        %10090 = vst [vmem:[%s271 + $0x98] sm:$0xff] %v10058
        %10091 = vst [vmem:[%s271 + $0xa0] sm:$0xff] %v10059
        %10092 = vst [vmem:[%s271 + $0xa8] sm:$0xff] %v10060
        %10093 = vst [vmem:[%s271 + $0xb0] sm:$0xff] %v10061
        %10094 = vst [vmem:[%s271 + $0xb8] sm:$0xff] %v10062
        %10095 = vst [vmem:[%s271 + $0xc0] sm:$0xff] %v10063
        %10096 = vst [vmem:[%s271 + $0xc8] sm:$0xff] %v10064
        %10097 = vst [vmem:[%s271 + $0xd0] sm:$0xff] %v10065
        %10098 = vst [vmem:[%s271 + $0xd8] sm:$0xff] %v10066
        %10099 = vst [vmem:[%s271 + $0xe0] sm:$0xff] %v10067
        %10100 = vst [vmem:[%s271 + $0xe8] sm:$0xff] %v10068
        %10101 = vst [vmem:[%s271 + $0xf0] sm:$0xff] %v10069
        %10102 = vst [vmem:[%s271 + $0xf8] sm:$0xff] %v10070
        %s10103 = sand.u32 %s141, 1
        %s10104 = scalar_lea.sflag [#allocation6], %s10103
        %s10105 = sand.u32 %s141, 1
        %s10106 = smul.addr %s10105, 256
        %s10107 = scalar_lea.vmem [#allocation10], %s10106
        // Predicated region
        $region53: #{tpu_custom_call.1} parent=39 // pred_check
          %p10108 = pneg %p151
        $region54: #{tpu_custom_call.1} parent=39 // pred_check_branch
          %10110 = sbr.rel (%p10108) target = $region56
        $region55: #{tpu_custom_call.1} parent=39 // pred_region
          %s10112 = ssub.s32 4096, 4096
          %10113 = vsyncadd %s10104, %s10112
          %s10114 = smul.addr %s23, 32
          %s10115 = smul.addr %s10114, 128
          %s10116 = scalar_lea.hbm %s5, %s10115
          %s10117 = sshll.u32 %s10107, 4
          %s10118 = int_to_ptr.vmem [resolvable:$true] %s10117
          %10123 = dma.vmem_to_hbm [thread:$0]  %s10118, 4096, %s10116, %s10104, 128, 128, 8
        $region56: #{tpu_custom_call.1} parent=39 // pred_fallthru
          _
      $region40: #{tpu_custom_call.1} parent=5 // pred_fallthru
        _
      %p10124 = scmp.le.s32.totalorder 2, %s18
      // Predicated region
      $region57: #{tpu_custom_call.1} parent=5 // pred_check
        %p10125 = pneg %p10124
      $region58: #{tpu_custom_call.1} parent=5 // pred_check_branch
        %10127 = sbr.rel (%p10125) target = $region60
      $region59: #{tpu_custom_call.1} parent=5 // pred_region
        %s10128 = ssub.s32 %s18, 2
        // Predicated region
        $region61: #{tpu_custom_call.1} parent=59 // pred_check
          %p10129 = pneg %p157
        $region62: #{tpu_custom_call.1} parent=59 // pred_check_branch
          %10131 = sbr.rel (%p10129) target = $region64
        $region63: #{tpu_custom_call.1} parent=59 // pred_region
          %s10132 = sand.u32 %s142, 1
          %s10133 = scalar_lea.sflag [#allocation6], %s10132
          %s10134 = sand.u32 %s142, 1
          %s10135 = smul.addr %s10134, 256
          %s10136 = scalar_lea.vmem [#allocation10], %s10135
          %10137 = dma.done %s10133, 4096
        $region64: #{tpu_custom_call.1} parent=59 // pred_fallthru
          _
      $region60: #{tpu_custom_call.1} parent=5 // pred_fallthru
        _
    $region6: #{tpu_custom_call.1} parent=1 // loop_footer
      %s22 = sadd.s32 1, %s18
    $region7: #{tpu_custom_call.1} parent=1 // loop_footer_branch
      %17 = sbr.rel target = $region3
    $region8: #{tpu_custom_call.1} parent=1 // loop_exit
      _
    %10138 = vsyncpa [#allocation5], 1
    %s10139 = scalar_lea.sflag [#allocation5], 1
    %10140 = vsyncpa %s10139, 1
    %10141 = vsyncpa [#allocation8], 1
    %10142 = vsyncpa [#allocation6], 1
    %s10143 = scalar_lea.sflag [#allocation6], 1
    %10144 = vsyncpa %s10143, 1

</llo_original>
